<compile_context>
chip_gen: v6e
topology: v6e:2x2x1
jax: 0.10.0
libtpu: 0.0.40
codegen_flags: <defaults>
</compile_context>

<pallas_src>
import numpy as np
import jax
import jax.numpy as jnp
from jax import lax
from jax.experimental import pallas as pl
from jax.experimental.pallas import tpu as pltpu

# ----------------------------- configuration --------------------------------
EMB = 64                  # embedding_size
NUM_HEAD = 4              # num_head
HEAD_DIM = EMB // NUM_HEAD
FFN = 2048                # nn.TransformerEncoderLayer default dim_feedforward
MAX_LENGTH = 8
MAX_PATHS = 4             # PathGather max_paths
NUM_LINKS = 2
SEQS = NUM_LINKS * MAX_PATHS            # 8 sequences total
ROWS = SEQS * MAX_LENGTH                # 64 rows, all processed in one step
LN_EPS = 1e-5
NEG_INF = -1e30
PAD_N = 8                 # padded per-type node count (max over types)

NTYPES = ("user", "answer", "topic", "question")        # id2nodetype 0..3
TYPE_IDX = {nt: i for i, nt in enumerate(NTYPES)}
NUM_NODES = {"user": 6, "answer": 8, "topic": 4, "question": 5}
NODE_ROWS = len(NTYPES) * PAD_N                         # 32-row padded node table
RELATIONS = (                                           # (src_type, etype, dst_type)
    ("user", "write", "answer"),
    ("answer", "written_by", "user"),
    ("answer", "answer_to", "question"),
    ("question", "has_answer", "answer"),
    ("answer", "about", "topic"),
    ("topic", "topic_of", "answer"),
)
NUM_REL = len(RELATIONS)
SRC_T = tuple(TYPE_IDX[s] for (s, _, d) in RELATIONS)
DST_T = tuple(TYPE_IDX[d] for (s, _, d) in RELATIONS)

# static (4, NUM_REL) matrix that sums per-relation GraphConv biases into their
# destination node type (HeteroGraphConv aggregate='sum').
_DST_SUM = np.zeros((len(NTYPES), NUM_REL), np.float32)
for _r in range(NUM_REL):
    _DST_SUM[DST_T[_r], _r] = 1.0


# ------------------------------ kernel helpers -------------------------------
def _layer_norm(x, g, b):
    mu = jnp.mean(x, axis=-1, keepdims=True)
    var = jnp.mean((x - mu) ** 2, axis=-1, keepdims=True)
    return (x - mu) * lax.rsqrt(var + LN_EPS) * g + b


def _rep8(x4):
    # (4, EMB) -> (NODE_ROWS, EMB): each per-type row repeated PAD_N times
    # (sublane broadcasts + aligned 8-row concat, pure VPU work).
    return jnp.concatenate(
        [jnp.broadcast_to(x4[t:t + 1, :], (PAD_N, EMB)) for t in range(len(NTYPES))],
        axis=0)


# --------------------------- fully fused kernel -------------------------------
def _fused_kernel(lens_ref, apos_ref,                    # scalar prefetch (SMEM)
                  idx_ref, h0_ref, ab_ref, cw1_ref, cb1_ref, cw2_ref, cb2_ref,
                  te_ref, pe_ref,
                  wq_ref, bq_ref, wk_ref, bk_ref, wv_ref, bv_ref, wo_ref, bo_ref,
                  ln1w_ref, ln1b_ref,
                  fw1_hbm, fb1_ref, fw2_hbm, fb2_ref, ln2w_ref, ln2b_ref,
                  o_ref,
                  w1_vmem, w2_vmem, dma_sem):
    f32 = jnp.float32

    # ---- (0) kick off the 512 KiB bf16 FFN-weight DMA immediately; it is
    #          hidden behind the RGCN + attention compute below.
    cp1 = pltpu.make_async_copy(fw1_hbm, w1_vmem, dma_sem.at[0])
    cp2 = pltpu.make_async_copy(fw2_hbm, w2_vmem, dma_sem.at[1])
    cp1.start()
    cp2.start()

    # read all SMEM scalars up front (before any DMA wait)
    lens = [lens_ref[s] for s in range(SEQS)]
    apos = [apos_ref[s] for s in range(SEQS)]

    # ---- (1) 2-layer RGCN over the padded (32, 64) node table ----------------
    # out_r = A_norm_r @ H_src_r @ W_r + b_r, summed per destination type.
    h = h0_ref[...]                                      # (32, 64)
    ab = ab_ref[...]                                     # (32, 48) block adjacency
    m1 = jnp.concatenate(
        [jnp.dot(h[SRC_T[r] * PAD_N:(SRC_T[r] + 1) * PAD_N, :], cw1_ref[r],
                 preferred_element_type=f32) for r in range(NUM_REL)], axis=0)
    h = jnp.maximum(jnp.dot(ab, m1, preferred_element_type=f32) + _rep8(cb1_ref[...]), 0.0)
    m2 = jnp.concatenate(
        [jnp.dot(h[SRC_T[r] * PAD_N:(SRC_T[r] + 1) * PAD_N, :], cw2_ref[r],
                 preferred_element_type=f32) for r in range(NUM_REL)], axis=0)
    table = jnp.dot(ab, m2, preferred_element_type=f32) + _rep8(cb2_ref[...])  # (32, 64)

    # ---- (2) gather per-path node embeddings + node-type + positional emb ----
    table = table + _rep8(te_ref[...])                   # fold type embedding into table
    col = lax.broadcasted_iota(jnp.int32, (ROWS, NODE_ROWS), 1)
    sel = (idx_ref[...] == col).astype(f32)              # (64, 32) one-hot gather
    pos = jnp.concatenate([pe_ref[...]] * SEQS, axis=0)  # (64, 64) positional emb
    x = jnp.dot(sel, table, preferred_element_type=f32) + pos

    # ---- (3) additive attention mask: block-diag per sequence + key padding --
    riota = lax.broadcasted_iota(jnp.int32, (ROWS, ROWS), 0)
    ciota = lax.broadcasted_iota(jnp.int32, (ROWS, ROWS), 1)
    allowed = None
    for s in range(SEQS):
        lo = s * MAX_LENGTH
        row_in = jnp.logical_and(riota >= lo, riota < lo + MAX_LENGTH)
        key_in = jnp.logical_and(ciota >= lo, ciota < lo + lens[s])
        term = jnp.logical_and(row_in, key_in)
        allowed = term if allowed is None else jnp.logical_or(allowed, term)
    amask = jnp.where(allowed, 0.0, NEG_INF).astype(f32)

    # ---- (4) multi-head self-attention (lane-masked heads: no slices/concat) -
    q = jnp.dot(x, wq_ref[...], preferred_element_type=f32) + bq_ref[...]
    k = jnp.dot(x, wk_ref[...], preferred_element_type=f32) + bk_ref[...]
    v = jnp.dot(x, wv_ref[...], preferred_element_type=f32) + bv_ref[...]
    scale = 1.0 / (HEAD_DIM ** 0.5)
    dn = (((1,), (1,)), ((), ()))                        # q @ k^T, no transpose materialized
    lane = lax.broadcasted_iota(jnp.int32, (1, EMB), 1)
    attn = jnp.zeros((ROWS, EMB), f32)
    for hd in range(NUM_HEAD):
        mh = jnp.logical_and(lane >= hd * HEAD_DIM,
                             lane < (hd + 1) * HEAD_DIM).astype(f32)
        s_ = lax.dot_general(q, k * mh, dn, preferred_element_type=f32) * scale + amask
        s_ = s_ - jnp.max(s_, axis=-1, keepdims=True)
        p = jnp.exp(s_)
        p = p * pl.reciprocal(jnp.sum(p, axis=-1, keepdims=True), approx=True)
        attn = attn + jnp.dot(p, v * mh, preferred_element_type=f32)
    attn = jnp.dot(attn, wo_ref[...], preferred_element_type=f32) + bo_ref[...]

    # TODO(synk): dropout layers are identity here (eval/inference semantics).
    src = _layer_norm(x + attn, ln1w_ref[...], ln1b_ref[...])       # post-norm

    # ---- (5) FFN — wait for the prefetched bf16 weights only now -------------
    cp1.wait()
    h1 = jnp.dot(src.astype(jnp.bfloat16), w1_vmem[...],
                 preferred_element_type=f32) + fb1_ref[...]
    h1 = jnp.maximum(h1, 0.0)
    cp2.wait()
    ff = jnp.dot(h1.astype(jnp.bfloat16), w2_vmem[...],
                 preferred_element_type=f32) + fb2_ref[...]
    y = _layer_norm(src + ff, ln2w_ref[...], ln2b_ref[...])         # (64, 64)

    # ---- (6) epilogue: user/answer row selection + PathGather ---------------
    prow = lax.broadcasted_iota(jnp.int32, (SEQS, ROWS), 0)
    lcol = lax.broadcasted_iota(jnp.int32, (SEQS, ROWS), 1)
    user_sel = (lcol == prow * MAX_LENGTH).astype(f32)              # row 0 of each seq
    ans_hit = None
    for s in range(SEQS):
        hit = jnp.logical_and(prow == s, lcol == s * MAX_LENGTH + apos[s])
        ans_hit = hit if ans_hit is None else jnp.logical_or(ans_hit, hit)
    ans_sel = ans_hit.astype(f32)
    user = jnp.dot(user_sel, y, preferred_element_type=f32)         # (8, 64)
    ans = jnp.dot(ans_sel, y, preferred_element_type=f32)           # (8, 64)

    lane_o = lax.broadcasted_iota(jnp.int32, (1, 128), 1)
    ovec = jnp.zeros((1, 128), f32)
    for l in range(NUM_LINKS):
        u = user[l * MAX_PATHS:(l + 1) * MAX_PATHS, :]              # (4, 64)
        a = ans[l * MAX_PATHS:(l + 1) * MAX_PATHS, :]
        sc = jnp.sum(u * a, axis=-1, keepdims=True)                 # (4, 1)
        sc = sc - jnp.max(sc, axis=0, keepdims=True)
        e = jnp.exp(sc)
        att = e * pl.reciprocal(jnp.sum(e, axis=0, keepdims=True), approx=True)
        up = jnp.sum(att * u, axis=0, keepdims=True)                # (1, 64)
        ap = jnp.sum(att * a, axis=0, keepdims=True)
        val = jnp.sum(up * ap, axis=-1, keepdims=True)              # (1, 1)
        ovec = jnp.where(lane_o == l, val, ovec)
    o_ref[...] = ovec                                               # lane-dense store


# --------------------------------- model glue --------------------------------
def forward(params, a_norms, node_paths_link, type_paths_link, masks_link,
            answer_position_link):
    enc = params["encoder"]

    # ---- static parameter / graph packing (tiny, once per call) ----
    h0 = jnp.concatenate([
        jnp.pad(params["embed"][nt], ((0, PAD_N - NUM_NODES[nt]), (0, 0)))
        for nt in NTYPES], axis=0)                                   # (32, 64)
    ab = jnp.concatenate([
        jnp.pad(a_norms[rel],
                ((DST_T[r] * PAD_N, NODE_ROWS - DST_T[r] * PAD_N - NUM_NODES[dst]),
                 (0, PAD_N - NUM_NODES[src])))
        for r, (src, rel, dst) in enumerate(RELATIONS)], axis=1)     # (32, 48)
    cw1 = jnp.stack([params["conv1"][rel]["w"] for (_, rel, _) in RELATIONS])
    cw2 = jnp.stack([params["conv2"][rel]["w"] for (_, rel, _) in RELATIONS])
    dst_sum = jnp.asarray(_DST_SUM)
    cb1 = dst_sum @ jnp.concatenate(
        [params["conv1"][rel]["b"] for (_, rel, _) in RELATIONS], axis=0)   # (4, 64)
    cb2 = dst_sum @ jnp.concatenate(
        [params["conv2"][rel]["b"] for (_, rel, _) in RELATIONS], axis=0)   # (4, 64)

    # flattened node-table row index per sequence position: type*PAD_N + node
    flat_idx = (type_paths_link * PAD_N + node_paths_link).reshape(ROWS, 1).astype(jnp.int32)
    # per-sequence valid length (src_key_padding_mask is suffix padding here)
    lens = jnp.sum(jnp.logical_not(masks_link), axis=-1).reshape(SEQS).astype(jnp.int32)
    apos = answer_position_link.reshape(SEQS).astype(jnp.int32)

    w1_bf16 = enc["w1"].astype(jnp.bfloat16)
    w2_bf16 = enc["w2"].astype(jnp.bfloat16)

    args = [flat_idx, h0, ab, cw1, cb1, cw2, cb2,
            params["type_emb"], params["pos_emb"],
            enc["wq"], enc["bq"], enc["wk"], enc["bk"], enc["wv"], enc["bv"],
            enc["wo"], enc["bo"], enc["ln1_w"], enc["ln1_b"],
            w1_bf16, enc["b1"], w2_bf16, enc["b2"], enc["ln2_w"], enc["ln2_b"]]
    hbm_args = {19, 21}          # w1_bf16 / w2_bf16: manual async DMA in-kernel

    def const(shape):
        nd = len(shape)
        return pl.BlockSpec(shape, lambda i, lens, apos, _nd=nd: (0,) * _nd)

    in_specs = [pl.BlockSpec(memory_space=pl.ANY) if i in hbm_args else const(a.shape)
                for i, a in enumerate(args)]

    out = pl.pallas_call(
        _fused_kernel,
        out_shape=jax.ShapeDtypeStruct((1, 128), jnp.float32),
        grid_spec=pltpu.PrefetchScalarGridSpec(
            num_scalar_prefetch=2,
            grid=(1,),
            in_specs=in_specs,
            out_specs=pl.BlockSpec((1, 128), lambda i, lens, apos: (0, 0)),
            scratch_shapes=[pltpu.VMEM((EMB, FFN), jnp.bfloat16),
                            pltpu.VMEM((FFN, EMB), jnp.bfloat16),
                            pltpu.SemaphoreType.DMA((2,))]),
        compiler_params=pltpu.CompilerParams(dimension_semantics=("arbitrary",)),
    )(lens, apos, *args)
    return out[0, :NUM_LINKS]                                        # (NUM_LINKS,)


# ------------------------------ synthetic setup -------------------------------
def init_params(key):
    keys = iter(jax.random.split(key, 128))

    def nrm(shape, scale=0.1):
        return scale * jax.random.normal(next(keys), shape, jnp.float32)

    params = {
        "embed": {nt: nrm((NUM_NODES[nt], EMB)) for nt in NTYPES},
        "conv1": {rel: {"w": nrm((EMB, EMB)), "b": nrm((1, EMB), 0.01)}
                  for (_, rel, _) in RELATIONS},
        "conv2": {rel: {"w": nrm((EMB, EMB)), "b": nrm((1, EMB), 0.01)}
                  for (_, rel, _) in RELATIONS},
        "pos_emb": nrm((MAX_LENGTH, EMB)),
        "type_emb": nrm((4, EMB)),
        "encoder": {
            "wq": nrm((EMB, EMB)), "bq": nrm((1, EMB), 0.01),
            "wk": nrm((EMB, EMB)), "bk": nrm((1, EMB), 0.01),
            "wv": nrm((EMB, EMB)), "bv": nrm((1, EMB), 0.01),
            "wo": nrm((EMB, EMB)), "bo": nrm((1, EMB), 0.01),
            "ln1_w": jnp.ones((1, EMB), jnp.float32),
            "ln1_b": jnp.zeros((1, EMB), jnp.float32),
            "w1": nrm((EMB, FFN), 0.05), "b1": nrm((1, FFN), 0.01),
            "w2": nrm((FFN, EMB), 0.05), "b2": nrm((1, EMB), 0.01),
            "ln2_w": jnp.ones((1, EMB), jnp.float32),
            "ln2_b": jnp.zeros((1, EMB), jnp.float32),
        },
    }
    return params


def make_graph(key):
    # Dense normalized adjacency per relation (replaces the DGL heterograph).
    a_norms = {}
    for i, (src, rel, dst) in enumerate(RELATIONS):
        k = jax.random.fold_in(key, i)
        a = jax.random.bernoulli(
            k, 0.4, (NUM_NODES[dst], NUM_NODES[src])).astype(jnp.float32)
        in_deg = jnp.maximum(jnp.sum(a, axis=1), 1.0)    # dst in-degree (clamped)
        out_deg = jnp.maximum(jnp.sum(a, axis=0), 1.0)   # src out-degree
        a_norms[rel] = a / jnp.sqrt(in_deg)[:, None] / jnp.sqrt(out_deg)[None, :]
    return a_norms


def make_paths(key):
    # type pattern starts with user (0) and has answer (1) at position 2
    type_pattern = jnp.array([0, 3, 1, 2, 1, 3, 1, 0], jnp.int32)
    type_paths = jnp.broadcast_to(type_pattern, (NUM_LINKS, MAX_PATHS, MAX_LENGTH))
    counts = jnp.array([NUM_NODES[nt] for nt in NTYPES], jnp.int32)
    raw = jax.random.randint(key, (NUM_LINKS, MAX_PATHS, MAX_LENGTH), 0, 10_000, jnp.int32)
    node_paths = raw % counts[type_paths]
    lengths = jnp.array([[8, 6, 5, 8], [7, 8, 4, 6]], jnp.int32)
    masks = jnp.arange(MAX_LENGTH, dtype=jnp.int32)[None, None, :] >= lengths[..., None]
    answer_pos = jnp.full((NUM_LINKS, MAX_PATHS), 2, jnp.int32)
    return node_paths, type_paths, masks, answer_pos


if __name__ == "__main__":
    key = jax.random.PRNGKey(0)
    k_param, k_graph, k_path = jax.random.split(key, 3)
    params = init_params(k_param)
    a_norms = make_graph(k_graph)
    node_paths, type_paths, masks, answer_pos = make_paths(k_path)

    fwd = jax.jit(forward)
    out = fwd(params, a_norms, node_paths, type_paths, masks, answer_pos)
    out = jax.block_until_ready(out)
    assert out.shape == (NUM_LINKS,) and out.dtype == jnp.float32
    print("KERNEL_OK")
</pallas_src>

<mosaic_0001>
module attributes {stable_mosaic.version = 11 : i64} {
  func.func @_fused_kernel(%arg0: i32, %arg1: memref<8xi32, #tpu.memory_space<smem>>, %arg2: memref<8xi32, #tpu.memory_space<smem>>, %arg3: memref<64x1xi32, #tpu.memory_space<vmem>>, %arg4: memref<32x64xf32, #tpu.memory_space<vmem>>, %arg5: memref<32x48xf32, #tpu.memory_space<vmem>>, %arg6: memref<6x64x64xf32, #tpu.memory_space<vmem>>, %arg7: memref<4x64xf32, #tpu.memory_space<vmem>>, %arg8: memref<6x64x64xf32, #tpu.memory_space<vmem>>, %arg9: memref<4x64xf32, #tpu.memory_space<vmem>>, %arg10: memref<4x64xf32, #tpu.memory_space<vmem>>, %arg11: memref<8x64xf32, #tpu.memory_space<vmem>>, %arg12: memref<64x64xf32, #tpu.memory_space<vmem>>, %arg13: memref<1x64xf32, #tpu.memory_space<vmem>>, %arg14: memref<64x64xf32, #tpu.memory_space<vmem>>, %arg15: memref<1x64xf32, #tpu.memory_space<vmem>>, %arg16: memref<64x64xf32, #tpu.memory_space<vmem>>, %arg17: memref<1x64xf32, #tpu.memory_space<vmem>>, %arg18: memref<64x64xf32, #tpu.memory_space<vmem>>, %arg19: memref<1x64xf32, #tpu.memory_space<vmem>>, %arg20: memref<1x64xf32, #tpu.memory_space<vmem>>, %arg21: memref<1x64xf32, #tpu.memory_space<vmem>>, %arg22: memref<64x2048xbf16, #tpu.memory_space<any>>, %arg23: memref<1x2048xf32, #tpu.memory_space<vmem>>, %arg24: memref<2048x64xbf16, #tpu.memory_space<any>>, %arg25: memref<1x64xf32, #tpu.memory_space<vmem>>, %arg26: memref<1x64xf32, #tpu.memory_space<vmem>>, %arg27: memref<1x64xf32, #tpu.memory_space<vmem>>, %arg28: memref<1x128xf32, #tpu.memory_space<vmem>>, %arg29: memref<64x2048xbf16, #tpu.memory_space<vmem>>, %arg30: memref<2048x64xbf16, #tpu.memory_space<vmem>>, %arg31: memref<2x!tpu.dma_semaphore, #tpu.memory_space<semaphore_mem>>) attributes {dimension_semantics = [#tpu.dimension_semantics<arbitrary>], iteration_bounds = array<i64: 1>, scalar_prefetch = 2 : i64, scratch_operands = 3 : i64, tpu.core_type = #tpu.core_type<tc>, window_params = [{pipeline_mode = #tpu.pipeline_mode<synchronous>, transform_indices = @transform_0, window_bounds = array<i64: 64, 1>}, {pipeline_mode = #tpu.pipeline_mode<synchronous>, transform_indices = @transform_1, window_bounds = array<i64: 32, 64>}, {pipeline_mode = #tpu.pipeline_mode<synchronous>, transform_indices = @transform_2, window_bounds = array<i64: 32, 48>}, {pipeline_mode = #tpu.pipeline_mode<synchronous>, transform_indices = @transform_3, window_bounds = array<i64: 6, 64, 64>}, {pipeline_mode = #tpu.pipeline_mode<synchronous>, transform_indices = @transform_4, window_bounds = array<i64: 4, 64>}, {pipeline_mode = #tpu.pipeline_mode<synchronous>, transform_indices = @transform_5, window_bounds = array<i64: 6, 64, 64>}, {pipeline_mode = #tpu.pipeline_mode<synchronous>, transform_indices = @transform_6, window_bounds = array<i64: 4, 64>}, {pipeline_mode = #tpu.pipeline_mode<synchronous>, transform_indices = @transform_7, window_bounds = array<i64: 4, 64>}, {pipeline_mode = #tpu.pipeline_mode<synchronous>, transform_indices = @transform_8, window_bounds = array<i64: 8, 64>}, {pipeline_mode = #tpu.pipeline_mode<synchronous>, transform_indices = @transform_9, window_bounds = array<i64: 64, 64>}, {pipeline_mode = #tpu.pipeline_mode<synchronous>, transform_indices = @transform_10, window_bounds = array<i64: 1, 64>}, {pipeline_mode = #tpu.pipeline_mode<synchronous>, transform_indices = @transform_11, window_bounds = array<i64: 64, 64>}, {pipeline_mode = #tpu.pipeline_mode<synchronous>, transform_indices = @transform_12, window_bounds = array<i64: 1, 64>}, {pipeline_mode = #tpu.pipeline_mode<synchronous>, transform_indices = @transform_13, window_bounds = array<i64: 64, 64>}, {pipeline_mode = #tpu.pipeline_mode<synchronous>, transform_indices = @transform_14, window_bounds = array<i64: 1, 64>}, {pipeline_mode = #tpu.pipeline_mode<synchronous>, transform_indices = @transform_15, window_bounds = array<i64: 64, 64>}, {pipeline_mode = #tpu.pipeline_mode<synchronous>, transform_indices = @transform_16, window_bounds = array<i64: 1, 64>}, {pipeline_mode = #tpu.pipeline_mode<synchronous>, transform_indices = @transform_17, window_bounds = array<i64: 1, 64>}, {pipeline_mode = #tpu.pipeline_mode<synchronous>, transform_indices = @transform_18, window_bounds = array<i64: 1, 64>}, {}, {pipeline_mode = #tpu.pipeline_mode<synchronous>, transform_indices = @transform_20, window_bounds = array<i64: 1, 2048>}, {}, {pipeline_mode = #tpu.pipeline_mode<synchronous>, transform_indices = @transform_22, window_bounds = array<i64: 1, 64>}, {pipeline_mode = #tpu.pipeline_mode<synchronous>, transform_indices = @transform_23, window_bounds = array<i64: 1, 64>}, {pipeline_mode = #tpu.pipeline_mode<synchronous>, transform_indices = @transform_24, window_bounds = array<i64: 1, 64>}, {pipeline_mode = #tpu.pipeline_mode<synchronous>, transform_indices = @transform_25, window_bounds = array<i64: 1, 128>}]} {
    %c0_i32 = arith.constant 0 : i32
    %0 = tpu.memref_slice %arg31[%c0_i32] : memref<2x!tpu.dma_semaphore, #tpu.memory_space<semaphore_mem>> -> memref<1x!tpu.dma_semaphore, #tpu.memory_space<semaphore_mem>>
    %1 = tpu.memref_squeeze %0 : memref<1x!tpu.dma_semaphore, #tpu.memory_space<semaphore_mem>> -> memref<!tpu.dma_semaphore, #tpu.memory_space<semaphore_mem>>
    tpu.enqueue_dma source(%arg22 : memref<64x2048xbf16, #tpu.memory_space<any>>) target(%arg29 : memref<64x2048xbf16, #tpu.memory_space<vmem>>) target_semaphore(%1 : memref<!tpu.dma_semaphore, #tpu.memory_space<semaphore_mem>>)
    %c1_i32 = arith.constant 1 : i32
    %2 = tpu.memref_slice %arg31[%c1_i32] : memref<2x!tpu.dma_semaphore, #tpu.memory_space<semaphore_mem>> -> memref<1x!tpu.dma_semaphore, #tpu.memory_space<semaphore_mem>>
    %3 = tpu.memref_squeeze %2 : memref<1x!tpu.dma_semaphore, #tpu.memory_space<semaphore_mem>> -> memref<!tpu.dma_semaphore, #tpu.memory_space<semaphore_mem>>
    tpu.enqueue_dma source(%arg24 : memref<2048x64xbf16, #tpu.memory_space<any>>) target(%arg30 : memref<2048x64xbf16, #tpu.memory_space<vmem>>) target_semaphore(%3 : memref<!tpu.dma_semaphore, #tpu.memory_space<semaphore_mem>>)
    %c0 = arith.constant 0 : index
    %4 = memref.load %arg1[%c0] : memref<8xi32, #tpu.memory_space<smem>>
    %c1 = arith.constant 1 : index
    %5 = memref.load %arg1[%c1] : memref<8xi32, #tpu.memory_space<smem>>
    %c2 = arith.constant 2 : index
    %6 = memref.load %arg1[%c2] : memref<8xi32, #tpu.memory_space<smem>>
    %c3 = arith.constant 3 : index
    %7 = memref.load %arg1[%c3] : memref<8xi32, #tpu.memory_space<smem>>
    %c4 = arith.constant 4 : index
    %8 = memref.load %arg1[%c4] : memref<8xi32, #tpu.memory_space<smem>>
    %c5 = arith.constant 5 : index
    %9 = memref.load %arg1[%c5] : memref<8xi32, #tpu.memory_space<smem>>
    %c6 = arith.constant 6 : index
    %10 = memref.load %arg1[%c6] : memref<8xi32, #tpu.memory_space<smem>>
    %c7 = arith.constant 7 : index
    %11 = memref.load %arg1[%c7] : memref<8xi32, #tpu.memory_space<smem>>
    %c0_0 = arith.constant 0 : index
    %12 = memref.load %arg2[%c0_0] : memref<8xi32, #tpu.memory_space<smem>>
    %c1_1 = arith.constant 1 : index
    %13 = memref.load %arg2[%c1_1] : memref<8xi32, #tpu.memory_space<smem>>
    %c2_2 = arith.constant 2 : index
    %14 = memref.load %arg2[%c2_2] : memref<8xi32, #tpu.memory_space<smem>>
    %c3_3 = arith.constant 3 : index
    %15 = memref.load %arg2[%c3_3] : memref<8xi32, #tpu.memory_space<smem>>
    %c4_4 = arith.constant 4 : index
    %16 = memref.load %arg2[%c4_4] : memref<8xi32, #tpu.memory_space<smem>>
    %c5_5 = arith.constant 5 : index
    %17 = memref.load %arg2[%c5_5] : memref<8xi32, #tpu.memory_space<smem>>
    %c6_6 = arith.constant 6 : index
    %18 = memref.load %arg2[%c6_6] : memref<8xi32, #tpu.memory_space<smem>>
    %c7_7 = arith.constant 7 : index
    %19 = memref.load %arg2[%c7_7] : memref<8xi32, #tpu.memory_space<smem>>
    %c0_8 = arith.constant 0 : index
    %c0_9 = arith.constant 0 : index
    %20 = vector.load %arg4[%c0_8, %c0_9] : memref<32x64xf32, #tpu.memory_space<vmem>>, vector<32x64xf32>
    %c0_10 = arith.constant 0 : index
    %c0_11 = arith.constant 0 : index
    %21 = vector.load %arg5[%c0_10, %c0_11] : memref<32x48xf32, #tpu.memory_space<vmem>>, vector<32x48xf32>
    %22 = vector.extract_strided_slice %20 {offsets = [0, 0], sizes = [8, 64], strides = [1, 1]} : vector<32x64xf32> to vector<8x64xf32>
    %c0_12 = arith.constant 0 : index
    %c0_13 = arith.constant 0 : index
    %c0_14 = arith.constant 0 : index
    %23 = vector.load %arg6[%c0_12, %c0_13, %c0_14] : memref<6x64x64xf32, #tpu.memory_space<vmem>>, vector<1x64x64xf32>
    %24 = vector.shape_cast %23 : vector<1x64x64xf32> to vector<64x64xf32>
    %cst = arith.constant dense<0.000000e+00> : vector<8x64xf32>
    %25 = tpu.matmul %22, %24, %cst {dimension_numbers = #tpu.dot_dimension_numbers<[1], [0], [0], [1], [0, 0, 1, 1], [], []>} : vector<8x64xf32>, vector<64x64xf32>, vector<8x64xf32> -> vector<8x64xf32>
    %26 = vector.extract_strided_slice %20 {offsets = [8, 0], sizes = [8, 64], strides = [1, 1]} : vector<32x64xf32> to vector<8x64xf32>
    %c1_15 = arith.constant 1 : index
    %c0_16 = arith.constant 0 : index
    %c0_17 = arith.constant 0 : index
    %27 = vector.load %arg6[%c1_15, %c0_16, %c0_17] : memref<6x64x64xf32, #tpu.memory_space<vmem>>, vector<1x64x64xf32>
    %28 = vector.shape_cast %27 : vector<1x64x64xf32> to vector<64x64xf32>
    %cst_18 = arith.constant dense<0.000000e+00> : vector<8x64xf32>
    %29 = tpu.matmul %26, %28, %cst_18 {dimension_numbers = #tpu.dot_dimension_numbers<[1], [0], [0], [1], [0, 0, 1, 1], [], []>} : vector<8x64xf32>, vector<64x64xf32>, vector<8x64xf32> -> vector<8x64xf32>
    %30 = vector.extract_strided_slice %20 {offsets = [8, 0], sizes = [8, 64], strides = [1, 1]} : vector<32x64xf32> to vector<8x64xf32>
    %c2_19 = arith.constant 2 : index
    %c0_20 = arith.constant 0 : index
    %c0_21 = arith.constant 0 : index
    %31 = vector.load %arg6[%c2_19, %c0_20, %c0_21] : memref<6x64x64xf32, #tpu.memory_space<vmem>>, vector<1x64x64xf32>
    %32 = vector.shape_cast %31 : vector<1x64x64xf32> to vector<64x64xf32>
    %cst_22 = arith.constant dense<0.000000e+00> : vector<8x64xf32>
    %33 = tpu.matmul %30, %32, %cst_22 {dimension_numbers = #tpu.dot_dimension_numbers<[1], [0], [0], [1], [0, 0, 1, 1], [], []>} : vector<8x64xf32>, vector<64x64xf32>, vector<8x64xf32> -> vector<8x64xf32>
    %34 = vector.extract_strided_slice %20 {offsets = [24, 0], sizes = [8, 64], strides = [1, 1]} : vector<32x64xf32> to vector<8x64xf32>
    %c3_23 = arith.constant 3 : index
    %c0_24 = arith.constant 0 : index
    %c0_25 = arith.constant 0 : index
    %35 = vector.load %arg6[%c3_23, %c0_24, %c0_25] : memref<6x64x64xf32, #tpu.memory_space<vmem>>, vector<1x64x64xf32>
    %36 = vector.shape_cast %35 : vector<1x64x64xf32> to vector<64x64xf32>
    %cst_26 = arith.constant dense<0.000000e+00> : vector<8x64xf32>
    %37 = tpu.matmul %34, %36, %cst_26 {dimension_numbers = #tpu.dot_dimension_numbers<[1], [0], [0], [1], [0, 0, 1, 1], [], []>} : vector<8x64xf32>, vector<64x64xf32>, vector<8x64xf32> -> vector<8x64xf32>
    %38 = vector.extract_strided_slice %20 {offsets = [8, 0], sizes = [8, 64], strides = [1, 1]} : vector<32x64xf32> to vector<8x64xf32>
    %c4_27 = arith.constant 4 : index
    %c0_28 = arith.constant 0 : index
    %c0_29 = arith.constant 0 : index
    %39 = vector.load %arg6[%c4_27, %c0_28, %c0_29] : memref<6x64x64xf32, #tpu.memory_space<vmem>>, vector<1x64x64xf32>
    %40 = vector.shape_cast %39 : vector<1x64x64xf32> to vector<64x64xf32>
    %cst_30 = arith.constant dense<0.000000e+00> : vector<8x64xf32>
    %41 = tpu.matmul %38, %40, %cst_30 {dimension_numbers = #tpu.dot_dimension_numbers<[1], [0], [0], [1], [0, 0, 1, 1], [], []>} : vector<8x64xf32>, vector<64x64xf32>, vector<8x64xf32> -> vector<8x64xf32>
    %42 = vector.extract_strided_slice %20 {offsets = [16, 0], sizes = [8, 64], strides = [1, 1]} : vector<32x64xf32> to vector<8x64xf32>
    %c5_31 = arith.constant 5 : index
    %c0_32 = arith.constant 0 : index
    %c0_33 = arith.constant 0 : index
    %43 = vector.load %arg6[%c5_31, %c0_32, %c0_33] : memref<6x64x64xf32, #tpu.memory_space<vmem>>, vector<1x64x64xf32>
    %44 = vector.shape_cast %43 : vector<1x64x64xf32> to vector<64x64xf32>
    %cst_34 = arith.constant dense<0.000000e+00> : vector<8x64xf32>
    %45 = tpu.matmul %42, %44, %cst_34 {dimension_numbers = #tpu.dot_dimension_numbers<[1], [0], [0], [1], [0, 0, 1, 1], [], []>} : vector<8x64xf32>, vector<64x64xf32>, vector<8x64xf32> -> vector<8x64xf32>
    %46 = tpu.concatenate %25, %29, %33, %37, %41, %45 in 0 : vector<8x64xf32>, vector<8x64xf32>, vector<8x64xf32>, vector<8x64xf32>, vector<8x64xf32>, vector<8x64xf32> -> vector<48x64xf32>
    %cst_35 = arith.constant dense<0.000000e+00> : vector<32x64xf32>
    %47 = tpu.matmul %21, %46, %cst_35 {dimension_numbers = #tpu.dot_dimension_numbers<[1], [0], [0], [1], [0, 0, 1, 1], [], []>} : vector<32x48xf32>, vector<48x64xf32>, vector<32x64xf32> -> vector<32x64xf32>
    %c0_36 = arith.constant 0 : index
    %c0_37 = arith.constant 0 : index
    %48 = vector.load %arg7[%c0_36, %c0_37] : memref<4x64xf32, #tpu.memory_space<vmem>>, vector<4x64xf32>
    %49 = vector.extract_strided_slice %48 {offsets = [0, 0], sizes = [1, 64], strides = [1, 1]} : vector<4x64xf32> to vector<1x64xf32>
    %50 = vector.shape_cast %49 : vector<1x64xf32> to vector<1x64xf32>
    %51 = vector.broadcast %50 : vector<1x64xf32> to vector<8x64xf32>
    %52 = vector.extract_strided_slice %48 {offsets = [1, 0], sizes = [1, 64], strides = [1, 1]} : vector<4x64xf32> to vector<1x64xf32>
    %53 = vector.shape_cast %52 : vector<1x64xf32> to vector<1x64xf32>
    %54 = vector.broadcast %53 : vector<1x64xf32> to vector<8x64xf32>
    %55 = vector.extract_strided_slice %48 {offsets = [2, 0], sizes = [1, 64], strides = [1, 1]} : vector<4x64xf32> to vector<1x64xf32>
    %56 = vector.shape_cast %55 : vector<1x64xf32> to vector<1x64xf32>
    %57 = vector.broadcast %56 : vector<1x64xf32> to vector<8x64xf32>
    %58 = vector.extract_strided_slice %48 {offsets = [3, 0], sizes = [1, 64], strides = [1, 1]} : vector<4x64xf32> to vector<1x64xf32>
    %59 = vector.shape_cast %58 : vector<1x64xf32> to vector<1x64xf32>
    %60 = vector.broadcast %59 : vector<1x64xf32> to vector<8x64xf32>
    %61 = tpu.concatenate %51, %54, %57, %60 in 0 : vector<8x64xf32>, vector<8x64xf32>, vector<8x64xf32>, vector<8x64xf32> -> vector<32x64xf32>
    %62 = arith.addf %47, %61 : vector<32x64xf32>
    %cst_38 = arith.constant 0.000000e+00 : f32
    %63 = vector.broadcast %cst_38 : f32 to vector<32x64xf32>
    %64 = arith.maximumf %62, %63 : vector<32x64xf32>
    %65 = vector.extract_strided_slice %64 {offsets = [0, 0], sizes = [8, 64], strides = [1, 1]} : vector<32x64xf32> to vector<8x64xf32>
    %c0_39 = arith.constant 0 : index
    %c0_40 = arith.constant 0 : index
    %c0_41 = arith.constant 0 : index
    %66 = vector.load %arg8[%c0_39, %c0_40, %c0_41] : memref<6x64x64xf32, #tpu.memory_space<vmem>>, vector<1x64x64xf32>
    %67 = vector.shape_cast %66 : vector<1x64x64xf32> to vector<64x64xf32>
    %cst_42 = arith.constant dense<0.000000e+00> : vector<8x64xf32>
    %68 = tpu.matmul %65, %67, %cst_42 {dimension_numbers = #tpu.dot_dimension_numbers<[1], [0], [0], [1], [0, 0, 1, 1], [], []>} : vector<8x64xf32>, vector<64x64xf32>, vector<8x64xf32> -> vector<8x64xf32>
    %69 = vector.extract_strided_slice %64 {offsets = [8, 0], sizes = [8, 64], strides = [1, 1]} : vector<32x64xf32> to vector<8x64xf32>
    %c1_43 = arith.constant 1 : index
    %c0_44 = arith.constant 0 : index
    %c0_45 = arith.constant 0 : index
    %70 = vector.load %arg8[%c1_43, %c0_44, %c0_45] : memref<6x64x64xf32, #tpu.memory_space<vmem>>, vector<1x64x64xf32>
    %71 = vector.shape_cast %70 : vector<1x64x64xf32> to vector<64x64xf32>
    %cst_46 = arith.constant dense<0.000000e+00> : vector<8x64xf32>
    %72 = tpu.matmul %69, %71, %cst_46 {dimension_numbers = #tpu.dot_dimension_numbers<[1], [0], [0], [1], [0, 0, 1, 1], [], []>} : vector<8x64xf32>, vector<64x64xf32>, vector<8x64xf32> -> vector<8x64xf32>
    %73 = vector.extract_strided_slice %64 {offsets = [8, 0], sizes = [8, 64], strides = [1, 1]} : vector<32x64xf32> to vector<8x64xf32>
    %c2_47 = arith.constant 2 : index
    %c0_48 = arith.constant 0 : index
    %c0_49 = arith.constant 0 : index
    %74 = vector.load %arg8[%c2_47, %c0_48, %c0_49] : memref<6x64x64xf32, #tpu.memory_space<vmem>>, vector<1x64x64xf32>
    %75 = vector.shape_cast %74 : vector<1x64x64xf32> to vector<64x64xf32>
    %cst_50 = arith.constant dense<0.000000e+00> : vector<8x64xf32>
    %76 = tpu.matmul %73, %75, %cst_50 {dimension_numbers = #tpu.dot_dimension_numbers<[1], [0], [0], [1], [0, 0, 1, 1], [], []>} : vector<8x64xf32>, vector<64x64xf32>, vector<8x64xf32> -> vector<8x64xf32>
    %77 = vector.extract_strided_slice %64 {offsets = [24, 0], sizes = [8, 64], strides = [1, 1]} : vector<32x64xf32> to vector<8x64xf32>
    %c3_51 = arith.constant 3 : index
    %c0_52 = arith.constant 0 : index
    %c0_53 = arith.constant 0 : index
    %78 = vector.load %arg8[%c3_51, %c0_52, %c0_53] : memref<6x64x64xf32, #tpu.memory_space<vmem>>, vector<1x64x64xf32>
    %79 = vector.shape_cast %78 : vector<1x64x64xf32> to vector<64x64xf32>
    %cst_54 = arith.constant dense<0.000000e+00> : vector<8x64xf32>
    %80 = tpu.matmul %77, %79, %cst_54 {dimension_numbers = #tpu.dot_dimension_numbers<[1], [0], [0], [1], [0, 0, 1, 1], [], []>} : vector<8x64xf32>, vector<64x64xf32>, vector<8x64xf32> -> vector<8x64xf32>
    %81 = vector.extract_strided_slice %64 {offsets = [8, 0], sizes = [8, 64], strides = [1, 1]} : vector<32x64xf32> to vector<8x64xf32>
    %c4_55 = arith.constant 4 : index
    %c0_56 = arith.constant 0 : index
    %c0_57 = arith.constant 0 : index
    %82 = vector.load %arg8[%c4_55, %c0_56, %c0_57] : memref<6x64x64xf32, #tpu.memory_space<vmem>>, vector<1x64x64xf32>
    %83 = vector.shape_cast %82 : vector<1x64x64xf32> to vector<64x64xf32>
    %cst_58 = arith.constant dense<0.000000e+00> : vector<8x64xf32>
    %84 = tpu.matmul %81, %83, %cst_58 {dimension_numbers = #tpu.dot_dimension_numbers<[1], [0], [0], [1], [0, 0, 1, 1], [], []>} : vector<8x64xf32>, vector<64x64xf32>, vector<8x64xf32> -> vector<8x64xf32>
    %85 = vector.extract_strided_slice %64 {offsets = [16, 0], sizes = [8, 64], strides = [1, 1]} : vector<32x64xf32> to vector<8x64xf32>
    %c5_59 = arith.constant 5 : index
    %c0_60 = arith.constant 0 : index
    %c0_61 = arith.constant 0 : index
    %86 = vector.load %arg8[%c5_59, %c0_60, %c0_61] : memref<6x64x64xf32, #tpu.memory_space<vmem>>, vector<1x64x64xf32>
    %87 = vector.shape_cast %86 : vector<1x64x64xf32> to vector<64x64xf32>
    %cst_62 = arith.constant dense<0.000000e+00> : vector<8x64xf32>
    %88 = tpu.matmul %85, %87, %cst_62 {dimension_numbers = #tpu.dot_dimension_numbers<[1], [0], [0], [1], [0, 0, 1, 1], [], []>} : vector<8x64xf32>, vector<64x64xf32>, vector<8x64xf32> -> vector<8x64xf32>
    %89 = tpu.concatenate %68, %72, %76, %80, %84, %88 in 0 : vector<8x64xf32>, vector<8x64xf32>, vector<8x64xf32>, vector<8x64xf32>, vector<8x64xf32>, vector<8x64xf32> -> vector<48x64xf32>
    %cst_63 = arith.constant dense<0.000000e+00> : vector<32x64xf32>
    %90 = tpu.matmul %21, %89, %cst_63 {dimension_numbers = #tpu.dot_dimension_numbers<[1], [0], [0], [1], [0, 0, 1, 1], [], []>} : vector<32x48xf32>, vector<48x64xf32>, vector<32x64xf32> -> vector<32x64xf32>
    %c0_64 = arith.constant 0 : index
    %c0_65 = arith.constant 0 : index
    %91 = vector.load %arg9[%c0_64, %c0_65] : memref<4x64xf32, #tpu.memory_space<vmem>>, vector<4x64xf32>
    %92 = vector.extract_strided_slice %91 {offsets = [0, 0], sizes = [1, 64], strides = [1, 1]} : vector<4x64xf32> to vector<1x64xf32>
    %93 = vector.shape_cast %92 : vector<1x64xf32> to vector<1x64xf32>
    %94 = vector.broadcast %93 : vector<1x64xf32> to vector<8x64xf32>
    %95 = vector.extract_strided_slice %91 {offsets = [1, 0], sizes = [1, 64], strides = [1, 1]} : vector<4x64xf32> to vector<1x64xf32>
    %96 = vector.shape_cast %95 : vector<1x64xf32> to vector<1x64xf32>
    %97 = vector.broadcast %96 : vector<1x64xf32> to vector<8x64xf32>
    %98 = vector.extract_strided_slice %91 {offsets = [2, 0], sizes = [1, 64], strides = [1, 1]} : vector<4x64xf32> to vector<1x64xf32>
    %99 = vector.shape_cast %98 : vector<1x64xf32> to vector<1x64xf32>
    %100 = vector.broadcast %99 : vector<1x64xf32> to vector<8x64xf32>
    %101 = vector.extract_strided_slice %91 {offsets = [3, 0], sizes = [1, 64], strides = [1, 1]} : vector<4x64xf32> to vector<1x64xf32>
    %102 = vector.shape_cast %101 : vector<1x64xf32> to vector<1x64xf32>
    %103 = vector.broadcast %102 : vector<1x64xf32> to vector<8x64xf32>
    %104 = tpu.concatenate %94, %97, %100, %103 in 0 : vector<8x64xf32>, vector<8x64xf32>, vector<8x64xf32>, vector<8x64xf32> -> vector<32x64xf32>
    %105 = arith.addf %90, %104 : vector<32x64xf32>
    %c0_66 = arith.constant 0 : index
    %c0_67 = arith.constant 0 : index
    %106 = vector.load %arg10[%c0_66, %c0_67] : memref<4x64xf32, #tpu.memory_space<vmem>>, vector<4x64xf32>
    %107 = vector.extract_strided_slice %106 {offsets = [0, 0], sizes = [1, 64], strides = [1, 1]} : vector<4x64xf32> to vector<1x64xf32>
    %108 = vector.shape_cast %107 : vector<1x64xf32> to vector<1x64xf32>
    %109 = vector.broadcast %108 : vector<1x64xf32> to vector<8x64xf32>
    %110 = vector.extract_strided_slice %106 {offsets = [1, 0], sizes = [1, 64], strides = [1, 1]} : vector<4x64xf32> to vector<1x64xf32>
    %111 = vector.shape_cast %110 : vector<1x64xf32> to vector<1x64xf32>
    %112 = vector.broadcast %111 : vector<1x64xf32> to vector<8x64xf32>
    %113 = vector.extract_strided_slice %106 {offsets = [2, 0], sizes = [1, 64], strides = [1, 1]} : vector<4x64xf32> to vector<1x64xf32>
    %114 = vector.shape_cast %113 : vector<1x64xf32> to vector<1x64xf32>
    %115 = vector.broadcast %114 : vector<1x64xf32> to vector<8x64xf32>
    %116 = vector.extract_strided_slice %106 {offsets = [3, 0], sizes = [1, 64], strides = [1, 1]} : vector<4x64xf32> to vector<1x64xf32>
    %117 = vector.shape_cast %116 : vector<1x64xf32> to vector<1x64xf32>
    %118 = vector.broadcast %117 : vector<1x64xf32> to vector<8x64xf32>
    %119 = tpu.concatenate %109, %112, %115, %118 in 0 : vector<8x64xf32>, vector<8x64xf32>, vector<8x64xf32>, vector<8x64xf32> -> vector<32x64xf32>
    %120 = arith.addf %105, %119 : vector<32x64xf32>
    %121 = tpu.iota {dimensions = array<i32: 1>} : vector<64x32xi32>
    %c0_68 = arith.constant 0 : index
    %c0_69 = arith.constant 0 : index
    %122 = vector.load %arg3[%c0_68, %c0_69] : memref<64x1xi32, #tpu.memory_space<vmem>>, vector<64x1xi32>
    %123 = vector.broadcast %122 : vector<64x1xi32> to vector<64x32xi32>
    %124 = arith.cmpi eq, %123, %121 : vector<64x32xi32>
    %125 = arith.extui %124 : vector<64x32xi1> to vector<64x32xi32>
    %126 = arith.sitofp %125 : vector<64x32xi32> to vector<64x32xf32>
    %c0_70 = arith.constant 0 : index
    %c0_71 = arith.constant 0 : index
    %127 = vector.load %arg11[%c0_70, %c0_71] : memref<8x64xf32, #tpu.memory_space<vmem>>, vector<8x64xf32>
    %128 = tpu.concatenate %127, %127, %127, %127, %127, %127, %127, %127 in 0 : vector<8x64xf32>, vector<8x64xf32>, vector<8x64xf32>, vector<8x64xf32>, vector<8x64xf32>, vector<8x64xf32>, vector<8x64xf32>, vector<8x64xf32> -> vector<64x64xf32>
    %cst_72 = arith.constant dense<0.000000e+00> : vector<64x64xf32>
    %129 = tpu.matmul %126, %120, %cst_72 {dimension_numbers = #tpu.dot_dimension_numbers<[1], [0], [0], [1], [0, 0, 1, 1], [], []>} : vector<64x32xf32>, vector<32x64xf32>, vector<64x64xf32> -> vector<64x64xf32>
    %130 = arith.addf %129, %128 : vector<64x64xf32>
    %131 = tpu.iota {dimensions = array<i32: 0>} : vector<64x64xi32>
    %132 = tpu.iota {dimensions = array<i32: 1>} : vector<64x64xi32>
    %c0_i32_73 = arith.constant 0 : i32
    %133 = vector.broadcast %c0_i32_73 : i32 to vector<64x64xi32>
    %134 = arith.cmpi sge, %131, %133 : vector<64x64xi32>
    %c8_i32 = arith.constant 8 : i32
    %135 = vector.broadcast %c8_i32 : i32 to vector<64x64xi32>
    %136 = arith.cmpi slt, %131, %135 : vector<64x64xi32>
    %137 = arith.andi %134, %136 : vector<64x64xi1>
    %c0_i32_74 = arith.constant 0 : i32
    %138 = vector.broadcast %c0_i32_74 : i32 to vector<64x64xi32>
    %139 = arith.cmpi sge, %132, %138 : vector<64x64xi32>
    %c0_i32_75 = arith.constant 0 : i32
    %140 = arith.addi %c0_i32_75, %4 : i32
    %141 = vector.broadcast %140 : i32 to vector<64x64xi32>
    %142 = arith.cmpi slt, %132, %141 : vector<64x64xi32>
    %143 = arith.andi %139, %142 : vector<64x64xi1>
    %144 = arith.andi %137, %143 : vector<64x64xi1>
    %c8_i32_76 = arith.constant 8 : i32
    %145 = vector.broadcast %c8_i32_76 : i32 to vector<64x64xi32>
    %146 = arith.cmpi sge, %131, %145 : vector<64x64xi32>
    %c16_i32 = arith.constant 16 : i32
    %147 = vector.broadcast %c16_i32 : i32 to vector<64x64xi32>
    %148 = arith.cmpi slt, %131, %147 : vector<64x64xi32>
    %149 = arith.andi %146, %148 : vector<64x64xi1>
    %c8_i32_77 = arith.constant 8 : i32
    %150 = vector.broadcast %c8_i32_77 : i32 to vector<64x64xi32>
    %151 = arith.cmpi sge, %132, %150 : vector<64x64xi32>
    %c8_i32_78 = arith.constant 8 : i32
    %152 = arith.addi %c8_i32_78, %5 : i32
    %153 = vector.broadcast %152 : i32 to vector<64x64xi32>
    %154 = arith.cmpi slt, %132, %153 : vector<64x64xi32>
    %155 = arith.andi %151, %154 : vector<64x64xi1>
    %156 = arith.andi %149, %155 : vector<64x64xi1>
    %157 = arith.ori %144, %156 : vector<64x64xi1>
    %c16_i32_79 = arith.constant 16 : i32
    %158 = vector.broadcast %c16_i32_79 : i32 to vector<64x64xi32>
    %159 = arith.cmpi sge, %131, %158 : vector<64x64xi32>
    %c24_i32 = arith.constant 24 : i32
    %160 = vector.broadcast %c24_i32 : i32 to vector<64x64xi32>
    %161 = arith.cmpi slt, %131, %160 : vector<64x64xi32>
    %162 = arith.andi %159, %161 : vector<64x64xi1>
    %c16_i32_80 = arith.constant 16 : i32
    %163 = vector.broadcast %c16_i32_80 : i32 to vector<64x64xi32>
    %164 = arith.cmpi sge, %132, %163 : vector<64x64xi32>
    %c16_i32_81 = arith.constant 16 : i32
    %165 = arith.addi %c16_i32_81, %6 : i32
    %166 = vector.broadcast %165 : i32 to vector<64x64xi32>
    %167 = arith.cmpi slt, %132, %166 : vector<64x64xi32>
    %168 = arith.andi %164, %167 : vector<64x64xi1>
    %169 = arith.andi %162, %168 : vector<64x64xi1>
    %170 = arith.ori %157, %169 : vector<64x64xi1>
    %c24_i32_82 = arith.constant 24 : i32
    %171 = vector.broadcast %c24_i32_82 : i32 to vector<64x64xi32>
    %172 = arith.cmpi sge, %131, %171 : vector<64x64xi32>
    %c32_i32 = arith.constant 32 : i32
    %173 = vector.broadcast %c32_i32 : i32 to vector<64x64xi32>
    %174 = arith.cmpi slt, %131, %173 : vector<64x64xi32>
    %175 = arith.andi %172, %174 : vector<64x64xi1>
    %c24_i32_83 = arith.constant 24 : i32
    %176 = vector.broadcast %c24_i32_83 : i32 to vector<64x64xi32>
    %177 = arith.cmpi sge, %132, %176 : vector<64x64xi32>
    %c24_i32_84 = arith.constant 24 : i32
    %178 = arith.addi %c24_i32_84, %7 : i32
    %179 = vector.broadcast %178 : i32 to vector<64x64xi32>
    %180 = arith.cmpi slt, %132, %179 : vector<64x64xi32>
    %181 = arith.andi %177, %180 : vector<64x64xi1>
    %182 = arith.andi %175, %181 : vector<64x64xi1>
    %183 = arith.ori %170, %182 : vector<64x64xi1>
    %c32_i32_85 = arith.constant 32 : i32
    %184 = vector.broadcast %c32_i32_85 : i32 to vector<64x64xi32>
    %185 = arith.cmpi sge, %131, %184 : vector<64x64xi32>
    %c40_i32 = arith.constant 40 : i32
    %186 = vector.broadcast %c40_i32 : i32 to vector<64x64xi32>
    %187 = arith.cmpi slt, %131, %186 : vector<64x64xi32>
    %188 = arith.andi %185, %187 : vector<64x64xi1>
    %c32_i32_86 = arith.constant 32 : i32
    %189 = vector.broadcast %c32_i32_86 : i32 to vector<64x64xi32>
    %190 = arith.cmpi sge, %132, %189 : vector<64x64xi32>
    %c32_i32_87 = arith.constant 32 : i32
    %191 = arith.addi %c32_i32_87, %8 : i32
    %192 = vector.broadcast %191 : i32 to vector<64x64xi32>
    %193 = arith.cmpi slt, %132, %192 : vector<64x64xi32>
    %194 = arith.andi %190, %193 : vector<64x64xi1>
    %195 = arith.andi %188, %194 : vector<64x64xi1>
    %196 = arith.ori %183, %195 : vector<64x64xi1>
    %c40_i32_88 = arith.constant 40 : i32
    %197 = vector.broadcast %c40_i32_88 : i32 to vector<64x64xi32>
    %198 = arith.cmpi sge, %131, %197 : vector<64x64xi32>
    %c48_i32 = arith.constant 48 : i32
    %199 = vector.broadcast %c48_i32 : i32 to vector<64x64xi32>
    %200 = arith.cmpi slt, %131, %199 : vector<64x64xi32>
    %201 = arith.andi %198, %200 : vector<64x64xi1>
    %c40_i32_89 = arith.constant 40 : i32
    %202 = vector.broadcast %c40_i32_89 : i32 to vector<64x64xi32>
    %203 = arith.cmpi sge, %132, %202 : vector<64x64xi32>
    %c40_i32_90 = arith.constant 40 : i32
    %204 = arith.addi %c40_i32_90, %9 : i32
    %205 = vector.broadcast %204 : i32 to vector<64x64xi32>
    %206 = arith.cmpi slt, %132, %205 : vector<64x64xi32>
    %207 = arith.andi %203, %206 : vector<64x64xi1>
    %208 = arith.andi %201, %207 : vector<64x64xi1>
    %209 = arith.ori %196, %208 : vector<64x64xi1>
    %c48_i32_91 = arith.constant 48 : i32
    %210 = vector.broadcast %c48_i32_91 : i32 to vector<64x64xi32>
    %211 = arith.cmpi sge, %131, %210 : vector<64x64xi32>
    %c56_i32 = arith.constant 56 : i32
    %212 = vector.broadcast %c56_i32 : i32 to vector<64x64xi32>
    %213 = arith.cmpi slt, %131, %212 : vector<64x64xi32>
    %214 = arith.andi %211, %213 : vector<64x64xi1>
    %c48_i32_92 = arith.constant 48 : i32
    %215 = vector.broadcast %c48_i32_92 : i32 to vector<64x64xi32>
    %216 = arith.cmpi sge, %132, %215 : vector<64x64xi32>
    %c48_i32_93 = arith.constant 48 : i32
    %217 = arith.addi %c48_i32_93, %10 : i32
    %218 = vector.broadcast %217 : i32 to vector<64x64xi32>
    %219 = arith.cmpi slt, %132, %218 : vector<64x64xi32>
    %220 = arith.andi %216, %219 : vector<64x64xi1>
    %221 = arith.andi %214, %220 : vector<64x64xi1>
    %222 = arith.ori %209, %221 : vector<64x64xi1>
    %c56_i32_94 = arith.constant 56 : i32
    %223 = vector.broadcast %c56_i32_94 : i32 to vector<64x64xi32>
    %224 = arith.cmpi sge, %131, %223 : vector<64x64xi32>
    %c64_i32 = arith.constant 64 : i32
    %225 = vector.broadcast %c64_i32 : i32 to vector<64x64xi32>
    %226 = arith.cmpi slt, %131, %225 : vector<64x64xi32>
    %227 = arith.andi %224, %226 : vector<64x64xi1>
    %c56_i32_95 = arith.constant 56 : i32
    %228 = vector.broadcast %c56_i32_95 : i32 to vector<64x64xi32>
    %229 = arith.cmpi sge, %132, %228 : vector<64x64xi32>
    %c56_i32_96 = arith.constant 56 : i32
    %230 = arith.addi %c56_i32_96, %11 : i32
    %231 = vector.broadcast %230 : i32 to vector<64x64xi32>
    %232 = arith.cmpi slt, %132, %231 : vector<64x64xi32>
    %233 = arith.andi %229, %232 : vector<64x64xi1>
    %234 = arith.andi %227, %233 : vector<64x64xi1>
    %235 = arith.ori %222, %234 : vector<64x64xi1>
    %cst_97 = arith.constant 0.000000e+00 : f32
    %cst_98 = arith.constant -1.000000e+30 : f32
    %236 = vector.broadcast %cst_97 : f32 to vector<64x64xf32>
    %237 = vector.broadcast %cst_98 : f32 to vector<64x64xf32>
    %238 = arith.select %235, %236, %237 : vector<64x64xi1>, vector<64x64xf32>
    %c0_99 = arith.constant 0 : index
    %c0_100 = arith.constant 0 : index
    %239 = vector.load %arg12[%c0_99, %c0_100] : memref<64x64xf32, #tpu.memory_space<vmem>>, vector<64x64xf32>
    %cst_101 = arith.constant dense<0.000000e+00> : vector<64x64xf32>
    %240 = tpu.matmul %130, %239, %cst_101 {dimension_numbers = #tpu.dot_dimension_numbers<[1], [0], [0], [1], [0, 0, 1, 1], [], []>} : vector<64x64xf32>, vector<64x64xf32>, vector<64x64xf32> -> vector<64x64xf32>
    %c0_102 = arith.constant 0 : index
    %c0_103 = arith.constant 0 : index
    %241 = vector.load %arg13[%c0_102, %c0_103] : memref<1x64xf32, #tpu.memory_space<vmem>>, vector<1x64xf32>
    %242 = vector.broadcast %241 : vector<1x64xf32> to vector<64x64xf32>
    %243 = arith.addf %240, %242 : vector<64x64xf32>
    %c0_104 = arith.constant 0 : index
    %c0_105 = arith.constant 0 : index
    %244 = vector.load %arg14[%c0_104, %c0_105] : memref<64x64xf32, #tpu.memory_space<vmem>>, vector<64x64xf32>
    %cst_106 = arith.constant dense<0.000000e+00> : vector<64x64xf32>
    %245 = tpu.matmul %130, %244, %cst_106 {dimension_numbers = #tpu.dot_dimension_numbers<[1], [0], [0], [1], [0, 0, 1, 1], [], []>} : vector<64x64xf32>, vector<64x64xf32>, vector<64x64xf32> -> vector<64x64xf32>
    %c0_107 = arith.constant 0 : index
    %c0_108 = arith.constant 0 : index
    %246 = vector.load %arg15[%c0_107, %c0_108] : memref<1x64xf32, #tpu.memory_space<vmem>>, vector<1x64xf32>
    %247 = vector.broadcast %246 : vector<1x64xf32> to vector<64x64xf32>
    %248 = arith.addf %245, %247 : vector<64x64xf32>
    %c0_109 = arith.constant 0 : index
    %c0_110 = arith.constant 0 : index
    %249 = vector.load %arg16[%c0_109, %c0_110] : memref<64x64xf32, #tpu.memory_space<vmem>>, vector<64x64xf32>
    %cst_111 = arith.constant dense<0.000000e+00> : vector<64x64xf32>
    %250 = tpu.matmul %130, %249, %cst_111 {dimension_numbers = #tpu.dot_dimension_numbers<[1], [0], [0], [1], [0, 0, 1, 1], [], []>} : vector<64x64xf32>, vector<64x64xf32>, vector<64x64xf32> -> vector<64x64xf32>
    %c0_112 = arith.constant 0 : index
    %c0_113 = arith.constant 0 : index
    %251 = vector.load %arg17[%c0_112, %c0_113] : memref<1x64xf32, #tpu.memory_space<vmem>>, vector<1x64xf32>
    %252 = vector.broadcast %251 : vector<1x64xf32> to vector<64x64xf32>
    %253 = arith.addf %250, %252 : vector<64x64xf32>
    %254 = tpu.iota {dimensions = array<i32: 1>} : vector<1x64xi32>
    %cst_114 = arith.constant 0.000000e+00 : f32
    %255 = vector.broadcast %cst_114 : f32 to vector<64x64xf32>
    %c0_i32_115 = arith.constant 0 : i32
    %256 = vector.broadcast %c0_i32_115 : i32 to vector<1x64xi32>
    %257 = arith.cmpi sge, %254, %256 : vector<1x64xi32>
    %c16_i32_116 = arith.constant 16 : i32
    %258 = vector.broadcast %c16_i32_116 : i32 to vector<1x64xi32>
    %259 = arith.cmpi slt, %254, %258 : vector<1x64xi32>
    %260 = arith.andi %257, %259 : vector<1x64xi1>
    %261 = arith.extui %260 : vector<1x64xi1> to vector<1x64xi32>
    %262 = arith.sitofp %261 : vector<1x64xi32> to vector<1x64xf32>
    %263 = vector.broadcast %262 : vector<1x64xf32> to vector<64x64xf32>
    %264 = arith.mulf %248, %263 : vector<64x64xf32>
    %cst_117 = arith.constant dense<0.000000e+00> : vector<64x64xf32>
    %265 = tpu.matmul %243, %264, %cst_117 {dimension_numbers = #tpu.dot_dimension_numbers<[1], [1], [0], [0], [0, 0, 1, 0], [], []>} : vector<64x64xf32>, vector<64x64xf32>, vector<64x64xf32> -> vector<64x64xf32>
    %cst_118 = arith.constant 2.500000e-01 : f32
    %266 = vector.broadcast %cst_118 : f32 to vector<64x64xf32>
    %267 = arith.mulf %265, %266 : vector<64x64xf32>
    %268 = arith.addf %267, %238 : vector<64x64xf32>
    %cst_119 = arith.constant dense<0xFF800000> : vector<64xf32>
    %269 = vector.multi_reduction <maximumf>, %268, %cst_119 [1] : vector<64x64xf32> to vector<64xf32>
    %270 = vector.shape_cast %269 : vector<64xf32> to vector<64x1xf32>
    %271 = vector.broadcast %270 : vector<64x1xf32> to vector<64x64xf32>
    %272 = arith.subf %268, %271 : vector<64x64xf32>
    %273 = math.exp %272 : vector<64x64xf32>
    %cst_120 = arith.constant dense<0.000000e+00> : vector<64xf32>
    %274 = vector.multi_reduction <add>, %273, %cst_120 [1] : vector<64x64xf32> to vector<64xf32>
    %275 = vector.shape_cast %274 : vector<64xf32> to vector<64x1xf32>
    %276 = tpu.reciprocal %275 {approx = true} : vector<64x1xf32> -> vector<64x1xf32>
    %277 = vector.broadcast %276 : vector<64x1xf32> to vector<64x64xf32>
    %278 = arith.mulf %273, %277 : vector<64x64xf32>
    %279 = vector.broadcast %262 : vector<1x64xf32> to vector<64x64xf32>
    %280 = arith.mulf %253, %279 : vector<64x64xf32>
    %cst_121 = arith.constant dense<0.000000e+00> : vector<64x64xf32>
    %281 = tpu.matmul %278, %280, %cst_121 {dimension_numbers = #tpu.dot_dimension_numbers<[1], [0], [0], [1], [0, 0, 1, 1], [], []>} : vector<64x64xf32>, vector<64x64xf32>, vector<64x64xf32> -> vector<64x64xf32>
    %282 = arith.addf %255, %281 : vector<64x64xf32>
    %c16_i32_122 = arith.constant 16 : i32
    %283 = vector.broadcast %c16_i32_122 : i32 to vector<1x64xi32>
    %284 = arith.cmpi sge, %254, %283 : vector<1x64xi32>
    %c32_i32_123 = arith.constant 32 : i32
    %285 = vector.broadcast %c32_i32_123 : i32 to vector<1x64xi32>
    %286 = arith.cmpi slt, %254, %285 : vector<1x64xi32>
    %287 = arith.andi %284, %286 : vector<1x64xi1>
    %288 = arith.extui %287 : vector<1x64xi1> to vector<1x64xi32>
    %289 = arith.sitofp %288 : vector<1x64xi32> to vector<1x64xf32>
    %290 = vector.broadcast %289 : vector<1x64xf32> to vector<64x64xf32>
    %291 = arith.mulf %248, %290 : vector<64x64xf32>
    %cst_124 = arith.constant dense<0.000000e+00> : vector<64x64xf32>
    %292 = tpu.matmul %243, %291, %cst_124 {dimension_numbers = #tpu.dot_dimension_numbers<[1], [1], [0], [0], [0, 0, 1, 0], [], []>} : vector<64x64xf32>, vector<64x64xf32>, vector<64x64xf32> -> vector<64x64xf32>
    %cst_125 = arith.constant 2.500000e-01 : f32
    %293 = vector.broadcast %cst_125 : f32 to vector<64x64xf32>
    %294 = arith.mulf %292, %293 : vector<64x64xf32>
    %295 = arith.addf %294, %238 : vector<64x64xf32>
    %cst_126 = arith.constant dense<0xFF800000> : vector<64xf32>
    %296 = vector.multi_reduction <maximumf>, %295, %cst_126 [1] : vector<64x64xf32> to vector<64xf32>
    %297 = vector.shape_cast %296 : vector<64xf32> to vector<64x1xf32>
    %298 = vector.broadcast %297 : vector<64x1xf32> to vector<64x64xf32>
    %299 = arith.subf %295, %298 : vector<64x64xf32>
    %300 = math.exp %299 : vector<64x64xf32>
    %cst_127 = arith.constant dense<0.000000e+00> : vector<64xf32>
    %301 = vector.multi_reduction <add>, %300, %cst_127 [1] : vector<64x64xf32> to vector<64xf32>
    %302 = vector.shape_cast %301 : vector<64xf32> to vector<64x1xf32>
    %303 = tpu.reciprocal %302 {approx = true} : vector<64x1xf32> -> vector<64x1xf32>
    %304 = vector.broadcast %303 : vector<64x1xf32> to vector<64x64xf32>
    %305 = arith.mulf %300, %304 : vector<64x64xf32>
    %306 = vector.broadcast %289 : vector<1x64xf32> to vector<64x64xf32>
    %307 = arith.mulf %253, %306 : vector<64x64xf32>
    %cst_128 = arith.constant dense<0.000000e+00> : vector<64x64xf32>
    %308 = tpu.matmul %305, %307, %cst_128 {dimension_numbers = #tpu.dot_dimension_numbers<[1], [0], [0], [1], [0, 0, 1, 1], [], []>} : vector<64x64xf32>, vector<64x64xf32>, vector<64x64xf32> -> vector<64x64xf32>
    %309 = arith.addf %282, %308 : vector<64x64xf32>
    %c32_i32_129 = arith.constant 32 : i32
    %310 = vector.broadcast %c32_i32_129 : i32 to vector<1x64xi32>
    %311 = arith.cmpi sge, %254, %310 : vector<1x64xi32>
    %c48_i32_130 = arith.constant 48 : i32
    %312 = vector.broadcast %c48_i32_130 : i32 to vector<1x64xi32>
    %313 = arith.cmpi slt, %254, %312 : vector<1x64xi32>
    %314 = arith.andi %311, %313 : vector<1x64xi1>
    %315 = arith.extui %314 : vector<1x64xi1> to vector<1x64xi32>
    %316 = arith.sitofp %315 : vector<1x64xi32> to vector<1x64xf32>
    %317 = vector.broadcast %316 : vector<1x64xf32> to vector<64x64xf32>
    %318 = arith.mulf %248, %317 : vector<64x64xf32>
    %cst_131 = arith.constant dense<0.000000e+00> : vector<64x64xf32>
    %319 = tpu.matmul %243, %318, %cst_131 {dimension_numbers = #tpu.dot_dimension_numbers<[1], [1], [0], [0], [0, 0, 1, 0], [], []>} : vector<64x64xf32>, vector<64x64xf32>, vector<64x64xf32> -> vector<64x64xf32>
    %cst_132 = arith.constant 2.500000e-01 : f32
    %320 = vector.broadcast %cst_132 : f32 to vector<64x64xf32>
    %321 = arith.mulf %319, %320 : vector<64x64xf32>
    %322 = arith.addf %321, %238 : vector<64x64xf32>
    %cst_133 = arith.constant dense<0xFF800000> : vector<64xf32>
    %323 = vector.multi_reduction <maximumf>, %322, %cst_133 [1] : vector<64x64xf32> to vector<64xf32>
    %324 = vector.shape_cast %323 : vector<64xf32> to vector<64x1xf32>
    %325 = vector.broadcast %324 : vector<64x1xf32> to vector<64x64xf32>
    %326 = arith.subf %322, %325 : vector<64x64xf32>
    %327 = math.exp %326 : vector<64x64xf32>
    %cst_134 = arith.constant dense<0.000000e+00> : vector<64xf32>
    %328 = vector.multi_reduction <add>, %327, %cst_134 [1] : vector<64x64xf32> to vector<64xf32>
    %329 = vector.shape_cast %328 : vector<64xf32> to vector<64x1xf32>
    %330 = tpu.reciprocal %329 {approx = true} : vector<64x1xf32> -> vector<64x1xf32>
    %331 = vector.broadcast %330 : vector<64x1xf32> to vector<64x64xf32>
    %332 = arith.mulf %327, %331 : vector<64x64xf32>
    %333 = vector.broadcast %316 : vector<1x64xf32> to vector<64x64xf32>
    %334 = arith.mulf %253, %333 : vector<64x64xf32>
    %cst_135 = arith.constant dense<0.000000e+00> : vector<64x64xf32>
    %335 = tpu.matmul %332, %334, %cst_135 {dimension_numbers = #tpu.dot_dimension_numbers<[1], [0], [0], [1], [0, 0, 1, 1], [], []>} : vector<64x64xf32>, vector<64x64xf32>, vector<64x64xf32> -> vector<64x64xf32>
    %336 = arith.addf %309, %335 : vector<64x64xf32>
    %c48_i32_136 = arith.constant 48 : i32
    %337 = vector.broadcast %c48_i32_136 : i32 to vector<1x64xi32>
    %338 = arith.cmpi sge, %254, %337 : vector<1x64xi32>
    %c64_i32_137 = arith.constant 64 : i32
    %339 = vector.broadcast %c64_i32_137 : i32 to vector<1x64xi32>
    %340 = arith.cmpi slt, %254, %339 : vector<1x64xi32>
    %341 = arith.andi %338, %340 : vector<1x64xi1>
    %342 = arith.extui %341 : vector<1x64xi1> to vector<1x64xi32>
    %343 = arith.sitofp %342 : vector<1x64xi32> to vector<1x64xf32>
    %344 = vector.broadcast %343 : vector<1x64xf32> to vector<64x64xf32>
    %345 = arith.mulf %248, %344 : vector<64x64xf32>
    %cst_138 = arith.constant dense<0.000000e+00> : vector<64x64xf32>
    %346 = tpu.matmul %243, %345, %cst_138 {dimension_numbers = #tpu.dot_dimension_numbers<[1], [1], [0], [0], [0, 0, 1, 0], [], []>} : vector<64x64xf32>, vector<64x64xf32>, vector<64x64xf32> -> vector<64x64xf32>
    %cst_139 = arith.constant 2.500000e-01 : f32
    %347 = vector.broadcast %cst_139 : f32 to vector<64x64xf32>
    %348 = arith.mulf %346, %347 : vector<64x64xf32>
    %349 = arith.addf %348, %238 : vector<64x64xf32>
    %cst_140 = arith.constant dense<0xFF800000> : vector<64xf32>
    %350 = vector.multi_reduction <maximumf>, %349, %cst_140 [1] : vector<64x64xf32> to vector<64xf32>
    %351 = vector.shape_cast %350 : vector<64xf32> to vector<64x1xf32>
    %352 = vector.broadcast %351 : vector<64x1xf32> to vector<64x64xf32>
    %353 = arith.subf %349, %352 : vector<64x64xf32>
    %354 = math.exp %353 : vector<64x64xf32>
    %cst_141 = arith.constant dense<0.000000e+00> : vector<64xf32>
    %355 = vector.multi_reduction <add>, %354, %cst_141 [1] : vector<64x64xf32> to vector<64xf32>
    %356 = vector.shape_cast %355 : vector<64xf32> to vector<64x1xf32>
    %357 = tpu.reciprocal %356 {approx = true} : vector<64x1xf32> -> vector<64x1xf32>
    %358 = vector.broadcast %357 : vector<64x1xf32> to vector<64x64xf32>
    %359 = arith.mulf %354, %358 : vector<64x64xf32>
    %360 = vector.broadcast %343 : vector<1x64xf32> to vector<64x64xf32>
    %361 = arith.mulf %253, %360 : vector<64x64xf32>
    %cst_142 = arith.constant dense<0.000000e+00> : vector<64x64xf32>
    %362 = tpu.matmul %359, %361, %cst_142 {dimension_numbers = #tpu.dot_dimension_numbers<[1], [0], [0], [1], [0, 0, 1, 1], [], []>} : vector<64x64xf32>, vector<64x64xf32>, vector<64x64xf32> -> vector<64x64xf32>
    %363 = arith.addf %336, %362 : vector<64x64xf32>
    %c0_143 = arith.constant 0 : index
    %c0_144 = arith.constant 0 : index
    %364 = vector.load %arg18[%c0_143, %c0_144] : memref<64x64xf32, #tpu.memory_space<vmem>>, vector<64x64xf32>
    %cst_145 = arith.constant dense<0.000000e+00> : vector<64x64xf32>
    %365 = tpu.matmul %363, %364, %cst_145 {dimension_numbers = #tpu.dot_dimension_numbers<[1], [0], [0], [1], [0, 0, 1, 1], [], []>} : vector<64x64xf32>, vector<64x64xf32>, vector<64x64xf32> -> vector<64x64xf32>
    %c0_146 = arith.constant 0 : index
    %c0_147 = arith.constant 0 : index
    %366 = vector.load %arg19[%c0_146, %c0_147] : memref<1x64xf32, #tpu.memory_space<vmem>>, vector<1x64xf32>
    %367 = vector.broadcast %366 : vector<1x64xf32> to vector<64x64xf32>
    %368 = arith.addf %365, %367 : vector<64x64xf32>
    %369 = arith.addf %130, %368 : vector<64x64xf32>
    %c0_148 = arith.constant 0 : index
    %c0_149 = arith.constant 0 : index
    %370 = vector.load %arg20[%c0_148, %c0_149] : memref<1x64xf32, #tpu.memory_space<vmem>>, vector<1x64xf32>
    %c0_150 = arith.constant 0 : index
    %c0_151 = arith.constant 0 : index
    %371 = vector.load %arg21[%c0_150, %c0_151] : memref<1x64xf32, #tpu.memory_space<vmem>>, vector<1x64xf32>
    %cst_152 = arith.constant dense<0.000000e+00> : vector<64xf32>
    %372 = vector.multi_reduction <add>, %369, %cst_152 [1] : vector<64x64xf32> to vector<64xf32>
    %373 = vector.shape_cast %372 : vector<64xf32> to vector<64x1xf32>
    %cst_153 = arith.constant 6.400000e+01 : f32
    %374 = vector.broadcast %cst_153 : f32 to vector<64x1xf32>
    %375 = arith.divf %373, %374 : vector<64x1xf32>
    %376 = vector.broadcast %375 : vector<64x1xf32> to vector<64x64xf32>
    %377 = arith.subf %369, %376 : vector<64x64xf32>
    %378 = arith.mulf %377, %377 : vector<64x64xf32>
    %cst_154 = arith.constant dense<0.000000e+00> : vector<64xf32>
    %379 = vector.multi_reduction <add>, %378, %cst_154 [1] : vector<64x64xf32> to vector<64xf32>
    %380 = vector.shape_cast %379 : vector<64xf32> to vector<64x1xf32>
    %cst_155 = arith.constant 6.400000e+01 : f32
    %381 = vector.broadcast %cst_155 : f32 to vector<64x1xf32>
    %382 = arith.divf %380, %381 : vector<64x1xf32>
    %383 = vector.broadcast %375 : vector<64x1xf32> to vector<64x64xf32>
    %384 = arith.subf %369, %383 : vector<64x64xf32>
    %cst_156 = arith.constant 9.99999974E-6 : f32
    %385 = vector.broadcast %cst_156 : f32 to vector<64x1xf32>
    %386 = arith.addf %382, %385 : vector<64x1xf32>
    %387 = math.rsqrt %386 : vector<64x1xf32>
    %388 = vector.broadcast %387 : vector<64x1xf32> to vector<64x64xf32>
    %389 = arith.mulf %384, %388 : vector<64x64xf32>
    %390 = vector.broadcast %370 : vector<1x64xf32> to vector<64x64xf32>
    %391 = arith.mulf %389, %390 : vector<64x64xf32>
    %392 = vector.broadcast %371 : vector<1x64xf32> to vector<64x64xf32>
    %393 = arith.addf %391, %392 : vector<64x64xf32>
    %c0_i32_157 = arith.constant 0 : i32
    %394 = tpu.memref_slice %arg31[%c0_i32_157] : memref<2x!tpu.dma_semaphore, #tpu.memory_space<semaphore_mem>> -> memref<1x!tpu.dma_semaphore, #tpu.memory_space<semaphore_mem>>
    %395 = tpu.memref_squeeze %394 : memref<1x!tpu.dma_semaphore, #tpu.memory_space<semaphore_mem>> -> memref<!tpu.dma_semaphore, #tpu.memory_space<semaphore_mem>>
    tpu.wait_dma2 semaphore(%395 : memref<!tpu.dma_semaphore, #tpu.memory_space<semaphore_mem>>) src(%arg22 : memref<64x2048xbf16, #tpu.memory_space<any>>) dst(%arg29 : memref<64x2048xbf16, #tpu.memory_space<vmem>>)
    %396 = arith.truncf %393 : vector<64x64xf32> to vector<64x64xbf16>
    %c0_158 = arith.constant 0 : index
    %c0_159 = arith.constant 0 : index
    %397 = vector.load %arg29[%c0_158, %c0_159] : memref<64x2048xbf16, #tpu.memory_space<vmem>>, vector<64x2048xbf16>
    %cst_160 = arith.constant dense<0.000000e+00> : vector<64x2048xf32>
    %398 = tpu.matmul %396, %397, %cst_160 {dimension_numbers = #tpu.dot_dimension_numbers<[1], [0], [0], [1], [0, 0, 1, 1], [], []>} : vector<64x64xbf16>, vector<64x2048xbf16>, vector<64x2048xf32> -> vector<64x2048xf32>
    %c0_161 = arith.constant 0 : index
    %c0_162 = arith.constant 0 : index
    %399 = vector.load %arg23[%c0_161, %c0_162] : memref<1x2048xf32, #tpu.memory_space<vmem>>, vector<1x2048xf32>
    %400 = vector.broadcast %399 : vector<1x2048xf32> to vector<64x2048xf32>
    %401 = arith.addf %398, %400 : vector<64x2048xf32>
    %cst_163 = arith.constant 0.000000e+00 : f32
    %402 = vector.broadcast %cst_163 : f32 to vector<64x2048xf32>
    %403 = arith.maximumf %401, %402 : vector<64x2048xf32>
    %c1_i32_164 = arith.constant 1 : i32
    %404 = tpu.memref_slice %arg31[%c1_i32_164] : memref<2x!tpu.dma_semaphore, #tpu.memory_space<semaphore_mem>> -> memref<1x!tpu.dma_semaphore, #tpu.memory_space<semaphore_mem>>
    %405 = tpu.memref_squeeze %404 : memref<1x!tpu.dma_semaphore, #tpu.memory_space<semaphore_mem>> -> memref<!tpu.dma_semaphore, #tpu.memory_space<semaphore_mem>>
    tpu.wait_dma2 semaphore(%405 : memref<!tpu.dma_semaphore, #tpu.memory_space<semaphore_mem>>) src(%arg24 : memref<2048x64xbf16, #tpu.memory_space<any>>) dst(%arg30 : memref<2048x64xbf16, #tpu.memory_space<vmem>>)
    %406 = arith.truncf %403 : vector<64x2048xf32> to vector<64x2048xbf16>
    %c0_165 = arith.constant 0 : index
    %c0_166 = arith.constant 0 : index
    %407 = vector.load %arg30[%c0_165, %c0_166] : memref<2048x64xbf16, #tpu.memory_space<vmem>>, vector<2048x64xbf16>
    %cst_167 = arith.constant dense<0.000000e+00> : vector<64x64xf32>
    %408 = tpu.matmul %406, %407, %cst_167 {dimension_numbers = #tpu.dot_dimension_numbers<[1], [0], [0], [1], [0, 0, 1, 1], [], []>} : vector<64x2048xbf16>, vector<2048x64xbf16>, vector<64x64xf32> -> vector<64x64xf32>
    %c0_168 = arith.constant 0 : index
    %c0_169 = arith.constant 0 : index
    %409 = vector.load %arg25[%c0_168, %c0_169] : memref<1x64xf32, #tpu.memory_space<vmem>>, vector<1x64xf32>
    %410 = vector.broadcast %409 : vector<1x64xf32> to vector<64x64xf32>
    %411 = arith.addf %408, %410 : vector<64x64xf32>
    %412 = arith.addf %393, %411 : vector<64x64xf32>
    %c0_170 = arith.constant 0 : index
    %c0_171 = arith.constant 0 : index
    %413 = vector.load %arg26[%c0_170, %c0_171] : memref<1x64xf32, #tpu.memory_space<vmem>>, vector<1x64xf32>
    %c0_172 = arith.constant 0 : index
    %c0_173 = arith.constant 0 : index
    %414 = vector.load %arg27[%c0_172, %c0_173] : memref<1x64xf32, #tpu.memory_space<vmem>>, vector<1x64xf32>
    %cst_174 = arith.constant dense<0.000000e+00> : vector<64xf32>
    %415 = vector.multi_reduction <add>, %412, %cst_174 [1] : vector<64x64xf32> to vector<64xf32>
    %416 = vector.shape_cast %415 : vector<64xf32> to vector<64x1xf32>
    %cst_175 = arith.constant 6.400000e+01 : f32
    %417 = vector.broadcast %cst_175 : f32 to vector<64x1xf32>
    %418 = arith.divf %416, %417 : vector<64x1xf32>
    %419 = vector.broadcast %418 : vector<64x1xf32> to vector<64x64xf32>
    %420 = arith.subf %412, %419 : vector<64x64xf32>
    %421 = arith.mulf %420, %420 : vector<64x64xf32>
    %cst_176 = arith.constant dense<0.000000e+00> : vector<64xf32>
    %422 = vector.multi_reduction <add>, %421, %cst_176 [1] : vector<64x64xf32> to vector<64xf32>
    %423 = vector.shape_cast %422 : vector<64xf32> to vector<64x1xf32>
    %cst_177 = arith.constant 6.400000e+01 : f32
    %424 = vector.broadcast %cst_177 : f32 to vector<64x1xf32>
    %425 = arith.divf %423, %424 : vector<64x1xf32>
    %426 = vector.broadcast %418 : vector<64x1xf32> to vector<64x64xf32>
    %427 = arith.subf %412, %426 : vector<64x64xf32>
    %cst_178 = arith.constant 9.99999974E-6 : f32
    %428 = vector.broadcast %cst_178 : f32 to vector<64x1xf32>
    %429 = arith.addf %425, %428 : vector<64x1xf32>
    %430 = math.rsqrt %429 : vector<64x1xf32>
    %431 = vector.broadcast %430 : vector<64x1xf32> to vector<64x64xf32>
    %432 = arith.mulf %427, %431 : vector<64x64xf32>
    %433 = vector.broadcast %413 : vector<1x64xf32> to vector<64x64xf32>
    %434 = arith.mulf %432, %433 : vector<64x64xf32>
    %435 = vector.broadcast %414 : vector<1x64xf32> to vector<64x64xf32>
    %436 = arith.addf %434, %435 : vector<64x64xf32>
    %437 = tpu.iota {dimensions = array<i32: 0>} : vector<8x64xi32>
    %438 = tpu.iota {dimensions = array<i32: 1>} : vector<8x64xi32>
    %c8_i32_179 = arith.constant 8 : i32
    %439 = vector.broadcast %c8_i32_179 : i32 to vector<8x64xi32>
    %440 = arith.muli %437, %439 : vector<8x64xi32>
    %441 = arith.cmpi eq, %438, %440 : vector<8x64xi32>
    %442 = arith.extui %441 : vector<8x64xi1> to vector<8x64xi32>
    %443 = arith.sitofp %442 : vector<8x64xi32> to vector<8x64xf32>
    %c0_i32_180 = arith.constant 0 : i32
    %444 = vector.broadcast %c0_i32_180 : i32 to vector<8x64xi32>
    %445 = arith.cmpi eq, %437, %444 : vector<8x64xi32>
    %c0_i32_181 = arith.constant 0 : i32
    %446 = arith.addi %c0_i32_181, %12 : i32
    %447 = vector.broadcast %446 : i32 to vector<8x64xi32>
    %448 = arith.cmpi eq, %438, %447 : vector<8x64xi32>
    %449 = arith.andi %445, %448 : vector<8x64xi1>
    %c1_i32_182 = arith.constant 1 : i32
    %450 = vector.broadcast %c1_i32_182 : i32 to vector<8x64xi32>
    %451 = arith.cmpi eq, %437, %450 : vector<8x64xi32>
    %c8_i32_183 = arith.constant 8 : i32
    %452 = arith.addi %c8_i32_183, %13 : i32
    %453 = vector.broadcast %452 : i32 to vector<8x64xi32>
    %454 = arith.cmpi eq, %438, %453 : vector<8x64xi32>
    %455 = arith.andi %451, %454 : vector<8x64xi1>
    %456 = arith.ori %449, %455 : vector<8x64xi1>
    %c2_i32 = arith.constant 2 : i32
    %457 = vector.broadcast %c2_i32 : i32 to vector<8x64xi32>
    %458 = arith.cmpi eq, %437, %457 : vector<8x64xi32>
    %c16_i32_184 = arith.constant 16 : i32
    %459 = arith.addi %c16_i32_184, %14 : i32
    %460 = vector.broadcast %459 : i32 to vector<8x64xi32>
    %461 = arith.cmpi eq, %438, %460 : vector<8x64xi32>
    %462 = arith.andi %458, %461 : vector<8x64xi1>
    %463 = arith.ori %456, %462 : vector<8x64xi1>
    %c3_i32 = arith.constant 3 : i32
    %464 = vector.broadcast %c3_i32 : i32 to vector<8x64xi32>
    %465 = arith.cmpi eq, %437, %464 : vector<8x64xi32>
    %c24_i32_185 = arith.constant 24 : i32
    %466 = arith.addi %c24_i32_185, %15 : i32
    %467 = vector.broadcast %466 : i32 to vector<8x64xi32>
    %468 = arith.cmpi eq, %438, %467 : vector<8x64xi32>
    %469 = arith.andi %465, %468 : vector<8x64xi1>
    %470 = arith.ori %463, %469 : vector<8x64xi1>
    %c4_i32 = arith.constant 4 : i32
    %471 = vector.broadcast %c4_i32 : i32 to vector<8x64xi32>
    %472 = arith.cmpi eq, %437, %471 : vector<8x64xi32>
    %c32_i32_186 = arith.constant 32 : i32
    %473 = arith.addi %c32_i32_186, %16 : i32
    %474 = vector.broadcast %473 : i32 to vector<8x64xi32>
    %475 = arith.cmpi eq, %438, %474 : vector<8x64xi32>
    %476 = arith.andi %472, %475 : vector<8x64xi1>
    %477 = arith.ori %470, %476 : vector<8x64xi1>
    %c5_i32 = arith.constant 5 : i32
    %478 = vector.broadcast %c5_i32 : i32 to vector<8x64xi32>
    %479 = arith.cmpi eq, %437, %478 : vector<8x64xi32>
    %c40_i32_187 = arith.constant 40 : i32
    %480 = arith.addi %c40_i32_187, %17 : i32
    %481 = vector.broadcast %480 : i32 to vector<8x64xi32>
    %482 = arith.cmpi eq, %438, %481 : vector<8x64xi32>
    %483 = arith.andi %479, %482 : vector<8x64xi1>
    %484 = arith.ori %477, %483 : vector<8x64xi1>
    %c6_i32 = arith.constant 6 : i32
    %485 = vector.broadcast %c6_i32 : i32 to vector<8x64xi32>
    %486 = arith.cmpi eq, %437, %485 : vector<8x64xi32>
    %c48_i32_188 = arith.constant 48 : i32
    %487 = arith.addi %c48_i32_188, %18 : i32
    %488 = vector.broadcast %487 : i32 to vector<8x64xi32>
    %489 = arith.cmpi eq, %438, %488 : vector<8x64xi32>
    %490 = arith.andi %486, %489 : vector<8x64xi1>
    %491 = arith.ori %484, %490 : vector<8x64xi1>
    %c7_i32 = arith.constant 7 : i32
    %492 = vector.broadcast %c7_i32 : i32 to vector<8x64xi32>
    %493 = arith.cmpi eq, %437, %492 : vector<8x64xi32>
    %c56_i32_189 = arith.constant 56 : i32
    %494 = arith.addi %c56_i32_189, %19 : i32
    %495 = vector.broadcast %494 : i32 to vector<8x64xi32>
    %496 = arith.cmpi eq, %438, %495 : vector<8x64xi32>
    %497 = arith.andi %493, %496 : vector<8x64xi1>
    %498 = arith.ori %491, %497 : vector<8x64xi1>
    %499 = arith.extui %498 : vector<8x64xi1> to vector<8x64xi32>
    %500 = arith.sitofp %499 : vector<8x64xi32> to vector<8x64xf32>
    %cst_190 = arith.constant dense<0.000000e+00> : vector<8x64xf32>
    %501 = tpu.matmul %443, %436, %cst_190 {dimension_numbers = #tpu.dot_dimension_numbers<[1], [0], [0], [1], [0, 0, 1, 1], [], []>} : vector<8x64xf32>, vector<64x64xf32>, vector<8x64xf32> -> vector<8x64xf32>
    %cst_191 = arith.constant dense<0.000000e+00> : vector<8x64xf32>
    %502 = tpu.matmul %500, %436, %cst_191 {dimension_numbers = #tpu.dot_dimension_numbers<[1], [0], [0], [1], [0, 0, 1, 1], [], []>} : vector<8x64xf32>, vector<64x64xf32>, vector<8x64xf32> -> vector<8x64xf32>
    %503 = tpu.iota {dimensions = array<i32: 1>} : vector<1x128xi32>
    %cst_192 = arith.constant 0.000000e+00 : f32
    %504 = vector.broadcast %cst_192 : f32 to vector<1x128xf32>
    %505 = vector.extract_strided_slice %501 {offsets = [0, 0], sizes = [4, 64], strides = [1, 1]} : vector<8x64xf32> to vector<4x64xf32>
    %506 = vector.extract_strided_slice %502 {offsets = [0, 0], sizes = [4, 64], strides = [1, 1]} : vector<8x64xf32> to vector<4x64xf32>
    %507 = arith.mulf %505, %506 : vector<4x64xf32>
    %cst_193 = arith.constant dense<0.000000e+00> : vector<4xf32>
    %508 = vector.multi_reduction <add>, %507, %cst_193 [1] : vector<4x64xf32> to vector<4xf32>
    %509 = vector.shape_cast %508 : vector<4xf32> to vector<4x1xf32>
    %cst_194 = arith.constant dense<0xFF800000> : vector<1xf32>
    %510 = vector.multi_reduction <maximumf>, %509, %cst_194 [0] : vector<4x1xf32> to vector<1xf32>
    %511 = vector.shape_cast %510 : vector<1xf32> to vector<1x1xf32>
    %512 = vector.broadcast %511 : vector<1x1xf32> to vector<4x1xf32>
    %513 = arith.subf %509, %512 : vector<4x1xf32>
    %514 = math.exp %513 : vector<4x1xf32>
    %cst_195 = arith.constant dense<0.000000e+00> : vector<1xf32>
    %515 = vector.multi_reduction <add>, %514, %cst_195 [0] : vector<4x1xf32> to vector<1xf32>
    %516 = vector.shape_cast %515 : vector<1xf32> to vector<1x1xf32>
    %517 = tpu.reciprocal %516 {approx = true} : vector<1x1xf32> -> vector<1x1xf32>
    %518 = vector.broadcast %517 : vector<1x1xf32> to vector<4x1xf32>
    %519 = arith.mulf %514, %518 : vector<4x1xf32>
    %520 = vector.broadcast %519 : vector<4x1xf32> to vector<4x64xf32>
    %521 = arith.mulf %520, %505 : vector<4x64xf32>
    %cst_196 = arith.constant dense<0.000000e+00> : vector<64xf32>
    %522 = vector.multi_reduction <add>, %521, %cst_196 [0] : vector<4x64xf32> to vector<64xf32>
    %523 = vector.shape_cast %522 : vector<64xf32> to vector<1x64xf32>
    %524 = vector.broadcast %519 : vector<4x1xf32> to vector<4x64xf32>
    %525 = arith.mulf %524, %506 : vector<4x64xf32>
    %cst_197 = arith.constant dense<0.000000e+00> : vector<64xf32>
    %526 = vector.multi_reduction <add>, %525, %cst_197 [0] : vector<4x64xf32> to vector<64xf32>
    %527 = vector.shape_cast %526 : vector<64xf32> to vector<1x64xf32>
    %528 = arith.mulf %523, %527 : vector<1x64xf32>
    %cst_198 = arith.constant dense<0.000000e+00> : vector<1xf32>
    %529 = vector.multi_reduction <add>, %528, %cst_198 [1] : vector<1x64xf32> to vector<1xf32>
    %530 = vector.shape_cast %529 : vector<1xf32> to vector<1x1xf32>
    %c0_i32_199 = arith.constant 0 : i32
    %531 = vector.broadcast %c0_i32_199 : i32 to vector<1x128xi32>
    %532 = arith.cmpi eq, %503, %531 : vector<1x128xi32>
    %533 = vector.shape_cast %530 : vector<1x1xf32> to vector<1x1xf32>
    %534 = vector.broadcast %533 : vector<1x1xf32> to vector<1x128xf32>
    %535 = arith.select %532, %534, %504 : vector<1x128xi1>, vector<1x128xf32>
    %536 = vector.extract_strided_slice %501 {offsets = [4, 0], sizes = [4, 64], strides = [1, 1]} : vector<8x64xf32> to vector<4x64xf32>
    %537 = vector.extract_strided_slice %502 {offsets = [4, 0], sizes = [4, 64], strides = [1, 1]} : vector<8x64xf32> to vector<4x64xf32>
    %538 = arith.mulf %536, %537 : vector<4x64xf32>
    %cst_200 = arith.constant dense<0.000000e+00> : vector<4xf32>
    %539 = vector.multi_reduction <add>, %538, %cst_200 [1] : vector<4x64xf32> to vector<4xf32>
    %540 = vector.shape_cast %539 : vector<4xf32> to vector<4x1xf32>
    %cst_201 = arith.constant dense<0xFF800000> : vector<1xf32>
    %541 = vector.multi_reduction <maximumf>, %540, %cst_201 [0] : vector<4x1xf32> to vector<1xf32>
    %542 = vector.shape_cast %541 : vector<1xf32> to vector<1x1xf32>
    %543 = vector.broadcast %542 : vector<1x1xf32> to vector<4x1xf32>
    %544 = arith.subf %540, %543 : vector<4x1xf32>
    %545 = math.exp %544 : vector<4x1xf32>
    %cst_202 = arith.constant dense<0.000000e+00> : vector<1xf32>
    %546 = vector.multi_reduction <add>, %545, %cst_202 [0] : vector<4x1xf32> to vector<1xf32>
    %547 = vector.shape_cast %546 : vector<1xf32> to vector<1x1xf32>
    %548 = tpu.reciprocal %547 {approx = true} : vector<1x1xf32> -> vector<1x1xf32>
    %549 = vector.broadcast %548 : vector<1x1xf32> to vector<4x1xf32>
    %550 = arith.mulf %545, %549 : vector<4x1xf32>
    %551 = vector.broadcast %550 : vector<4x1xf32> to vector<4x64xf32>
    %552 = arith.mulf %551, %536 : vector<4x64xf32>
    %cst_203 = arith.constant dense<0.000000e+00> : vector<64xf32>
    %553 = vector.multi_reduction <add>, %552, %cst_203 [0] : vector<4x64xf32> to vector<64xf32>
    %554 = vector.shape_cast %553 : vector<64xf32> to vector<1x64xf32>
    %555 = vector.broadcast %550 : vector<4x1xf32> to vector<4x64xf32>
    %556 = arith.mulf %555, %537 : vector<4x64xf32>
    %cst_204 = arith.constant dense<0.000000e+00> : vector<64xf32>
    %557 = vector.multi_reduction <add>, %556, %cst_204 [0] : vector<4x64xf32> to vector<64xf32>
    %558 = vector.shape_cast %557 : vector<64xf32> to vector<1x64xf32>
    %559 = arith.mulf %554, %558 : vector<1x64xf32>
    %cst_205 = arith.constant dense<0.000000e+00> : vector<1xf32>
    %560 = vector.multi_reduction <add>, %559, %cst_205 [1] : vector<1x64xf32> to vector<1xf32>
    %561 = vector.shape_cast %560 : vector<1xf32> to vector<1x1xf32>
    %c1_i32_206 = arith.constant 1 : i32
    %562 = vector.broadcast %c1_i32_206 : i32 to vector<1x128xi32>
    %563 = arith.cmpi eq, %503, %562 : vector<1x128xi32>
    %564 = vector.shape_cast %561 : vector<1x1xf32> to vector<1x1xf32>
    %565 = vector.broadcast %564 : vector<1x1xf32> to vector<1x128xf32>
    %566 = arith.select %563, %565, %535 : vector<1x128xi1>, vector<1x128xf32>
    %c0_207 = arith.constant 0 : index
    %c0_208 = arith.constant 0 : index
    %567 = vector.load %arg28[%c0_207, %c0_208] : memref<1x128xf32, #tpu.memory_space<vmem>>, vector<1x128xf32>
    tpu.vector_store %arg28[%c0_207, %c0_208], %566 {strides = array<i32>} : memref<1x128xf32, #tpu.memory_space<vmem>>, vector<1x128xf32>,
    return
  }
  func.func @transform_0(%arg0: i32, %arg1: memref<8xi32, #tpu.memory_space<smem>>, %arg2: memref<8xi32, #tpu.memory_space<smem>>) -> (i32, i32) {
    %c0_i32 = arith.constant 0 : i32
    %c0_i32_0 = arith.constant 0 : i32
    %c0_i32_1 = arith.constant 0 : i32
    return %c0_i32, %c0_i32_0 : i32, i32
  }
  func.func @transform_1(%arg0: i32, %arg1: memref<8xi32, #tpu.memory_space<smem>>, %arg2: memref<8xi32, #tpu.memory_space<smem>>) -> (i32, i32) {
    %c0_i32 = arith.constant 0 : i32
    %c0_i32_0 = arith.constant 0 : i32
    %c0_i32_1 = arith.constant 0 : i32
    return %c0_i32, %c0_i32_0 : i32, i32
  }
  func.func @transform_2(%arg0: i32, %arg1: memref<8xi32, #tpu.memory_space<smem>>, %arg2: memref<8xi32, #tpu.memory_space<smem>>) -> (i32, i32) {
    %c0_i32 = arith.constant 0 : i32
    %c0_i32_0 = arith.constant 0 : i32
    %c0_i32_1 = arith.constant 0 : i32
    return %c0_i32, %c0_i32_0 : i32, i32
  }
  func.func @transform_3(%arg0: i32, %arg1: memref<8xi32, #tpu.memory_space<smem>>, %arg2: memref<8xi32, #tpu.memory_space<smem>>) -> (i32, i32, i32) {
    %c0_i32 = arith.constant 0 : i32
    %c0_i32_0 = arith.constant 0 : i32
    %c0_i32_1 = arith.constant 0 : i32
    %c0_i32_2 = arith.constant 0 : i32
    return %c0_i32, %c0_i32_0, %c0_i32_1 : i32, i32, i32
  }
  func.func @transform_4(%arg0: i32, %arg1: memref<8xi32, #tpu.memory_space<smem>>, %arg2: memref<8xi32, #tpu.memory_space<smem>>) -> (i32, i32) {
    %c0_i32 = arith.constant 0 : i32
    %c0_i32_0 = arith.constant 0 : i32
    %c0_i32_1 = arith.constant 0 : i32
    return %c0_i32, %c0_i32_0 : i32, i32
  }
  func.func @transform_5(%arg0: i32, %arg1: memref<8xi32, #tpu.memory_space<smem>>, %arg2: memref<8xi32, #tpu.memory_space<smem>>) -> (i32, i32, i32) {
    %c0_i32 = arith.constant 0 : i32
    %c0_i32_0 = arith.constant 0 : i32
    %c0_i32_1 = arith.constant 0 : i32
    %c0_i32_2 = arith.constant 0 : i32
    return %c0_i32, %c0_i32_0, %c0_i32_1 : i32, i32, i32
  }
  func.func @transform_6(%arg0: i32, %arg1: memref<8xi32, #tpu.memory_space<smem>>, %arg2: memref<8xi32, #tpu.memory_space<smem>>) -> (i32, i32) {
    %c0_i32 = arith.constant 0 : i32
    %c0_i32_0 = arith.constant 0 : i32
    %c0_i32_1 = arith.constant 0 : i32
    return %c0_i32, %c0_i32_0 : i32, i32
  }
  func.func @transform_7(%arg0: i32, %arg1: memref<8xi32, #tpu.memory_space<smem>>, %arg2: memref<8xi32, #tpu.memory_space<smem>>) -> (i32, i32) {
    %c0_i32 = arith.constant 0 : i32
    %c0_i32_0 = arith.constant 0 : i32
    %c0_i32_1 = arith.constant 0 : i32
    return %c0_i32, %c0_i32_0 : i32, i32
  }
  func.func @transform_8(%arg0: i32, %arg1: memref<8xi32, #tpu.memory_space<smem>>, %arg2: memref<8xi32, #tpu.memory_space<smem>>) -> (i32, i32) {
    %c0_i32 = arith.constant 0 : i32
    %c0_i32_0 = arith.constant 0 : i32
    %c0_i32_1 = arith.constant 0 : i32
    return %c0_i32, %c0_i32_0 : i32, i32
  }
  func.func @transform_9(%arg0: i32, %arg1: memref<8xi32, #tpu.memory_space<smem>>, %arg2: memref<8xi32, #tpu.memory_space<smem>>) -> (i32, i32) {
    %c0_i32 = arith.constant 0 : i32
    %c0_i32_0 = arith.constant 0 : i32
    %c0_i32_1 = arith.constant 0 : i32
    return %c0_i32, %c0_i32_0 : i32, i32
  }
  func.func @transform_10(%arg0: i32, %arg1: memref<8xi32, #tpu.memory_space<smem>>, %arg2: memref<8xi32, #tpu.memory_space<smem>>) -> (i32, i32) {
    %c0_i32 = arith.constant 0 : i32
    %c0_i32_0 = arith.constant 0 : i32
    %c0_i32_1 = arith.constant 0 : i32
    return %c0_i32, %c0_i32_0 : i32, i32
  }
  func.func @transform_11(%arg0: i32, %arg1: memref<8xi32, #tpu.memory_space<smem>>, %arg2: memref<8xi32, #tpu.memory_space<smem>>) -> (i32, i32) {
    %c0_i32 = arith.constant 0 : i32
    %c0_i32_0 = arith.constant 0 : i32
    %c0_i32_1 = arith.constant 0 : i32
    return %c0_i32, %c0_i32_0 : i32, i32
  }
  func.func @transform_12(%arg0: i32, %arg1: memref<8xi32, #tpu.memory_space<smem>>, %arg2: memref<8xi32, #tpu.memory_space<smem>>) -> (i32, i32) {
    %c0_i32 = arith.constant 0 : i32
    %c0_i32_0 = arith.constant 0 : i32
    %c0_i32_1 = arith.constant 0 : i32
    return %c0_i32, %c0_i32_0 : i32, i32
  }
  func.func @transform_13(%arg0: i32, %arg1: memref<8xi32, #tpu.memory_space<smem>>, %arg2: memref<8xi32, #tpu.memory_space<smem>>) -> (i32, i32) {
    %c0_i32 = arith.constant 0 : i32
    %c0_i32_0 = arith.constant 0 : i32
    %c0_i32_1 = arith.constant 0 : i32
    return %c0_i32, %c0_i32_0 : i32, i32
  }
  func.func @transform_14(%arg0: i32, %arg1: memref<8xi32, #tpu.memory_space<smem>>, %arg2: memref<8xi32, #tpu.memory_space<smem>>) -> (i32, i32) {
    %c0_i32 = arith.constant 0 : i32
    %c0_i32_0 = arith.constant 0 : i32
    %c0_i32_1 = arith.constant 0 : i32
    return %c0_i32, %c0_i32_0 : i32, i32
  }
  func.func @transform_15(%arg0: i32, %arg1: memref<8xi32, #tpu.memory_space<smem>>, %arg2: memref<8xi32, #tpu.memory_space<smem>>) -> (i32, i32) {
    %c0_i32 = arith.constant 0 : i32
    %c0_i32_0 = arith.constant 0 : i32
    %c0_i32_1 = arith.constant 0 : i32
    return %c0_i32, %c0_i32_0 : i32, i32
  }
  func.func @transform_16(%arg0: i32, %arg1: memref<8xi32, #tpu.memory_space<smem>>, %arg2: memref<8xi32, #tpu.memory_space<smem>>) -> (i32, i32) {
    %c0_i32 = arith.constant 0 : i32
    %c0_i32_0 = arith.constant 0 : i32
    %c0_i32_1 = arith.constant 0 : i32
    return %c0_i32, %c0_i32_0 : i32, i32
  }
  func.func @transform_17(%arg0: i32, %arg1: memref<8xi32, #tpu.memory_space<smem>>, %arg2: memref<8xi32, #tpu.memory_space<smem>>) -> (i32, i32) {
    %c0_i32 = arith.constant 0 : i32
    %c0_i32_0 = arith.constant 0 : i32
    %c0_i32_1 = arith.constant 0 : i32
    return %c0_i32, %c0_i32_0 : i32, i32
  }
  func.func @transform_18(%arg0: i32, %arg1: memref<8xi32, #tpu.memory_space<smem>>, %arg2: memref<8xi32, #tpu.memory_space<smem>>) -> (i32, i32) {
    %c0_i32 = arith.constant 0 : i32
    %c0_i32_0 = arith.constant 0 : i32
    %c0_i32_1 = arith.constant 0 : i32
    return %c0_i32, %c0_i32_0 : i32, i32
  }
  func.func @transform_20(%arg0: i32, %arg1: memref<8xi32, #tpu.memory_space<smem>>, %arg2: memref<8xi32, #tpu.memory_space<smem>>) -> (i32, i32) {
    %c0_i32 = arith.constant 0 : i32
    %c0_i32_0 = arith.constant 0 : i32
    %c0_i32_1 = arith.constant 0 : i32
    return %c0_i32, %c0_i32_0 : i32, i32
  }
  func.func @transform_22(%arg0: i32, %arg1: memref<8xi32, #tpu.memory_space<smem>>, %arg2: memref<8xi32, #tpu.memory_space<smem>>) -> (i32, i32) {
    %c0_i32 = arith.constant 0 : i32
    %c0_i32_0 = arith.constant 0 : i32
    %c0_i32_1 = arith.constant 0 : i32
    return %c0_i32, %c0_i32_0 : i32, i32
  }
  func.func @transform_23(%arg0: i32, %arg1: memref<8xi32, #tpu.memory_space<smem>>, %arg2: memref<8xi32, #tpu.memory_space<smem>>) -> (i32, i32) {
    %c0_i32 = arith.constant 0 : i32
    %c0_i32_0 = arith.constant 0 : i32
    %c0_i32_1 = arith.constant 0 : i32
    return %c0_i32, %c0_i32_0 : i32, i32
  }
  func.func @transform_24(%arg0: i32, %arg1: memref<8xi32, #tpu.memory_space<smem>>, %arg2: memref<8xi32, #tpu.memory_space<smem>>) -> (i32, i32) {
    %c0_i32 = arith.constant 0 : i32
    %c0_i32_0 = arith.constant 0 : i32
    %c0_i32_1 = arith.constant 0 : i32
    return %c0_i32, %c0_i32_0 : i32, i32
  }
  func.func @transform_25(%arg0: i32, %arg1: memref<8xi32, #tpu.memory_space<smem>>, %arg2: memref<8xi32, #tpu.memory_space<smem>>) -> (i32, i32) {
    %c0_i32 = arith.constant 0 : i32
    %c0_i32_0 = arith.constant 0 : i32
    %c0_i32_1 = arith.constant 0 : i32
    return %c0_i32, %c0_i32_0 : i32, i32
  }
}

</mosaic_0001>

<llo_original>
// kernel: forward.1
$region0: #{forward.1}
  #allocation0 [shape = 'u32[]', space=smem, size = 0x4, offset = 0x4, fixed_abs, tag = 'smem constant byte address 0x4 - core index']
  #allocation1 [shape = 'u32[144,128]{1,0:T(1,128)}', space=vmem, size = 0x12000, scoped, tag = 'internal scratch']
  #allocation2 [shape = 'bf16[64,2048]{1,0:T(8,128)(2,1)}', space=vmem, size = 0x40000, scoped, tag = 'scratch operand']
  #allocation3 [shape = 'bf16[2048,64]{1,0:T(8,128)(2,1)}', space=vmem, size = 0x80000, scoped, tag = 'scratch operand']
  #allocation4 [shape = 's32[2]{0}', space=sflag, size = 0x8, scoped, tag = 'scratch operand']
  #allocation5 [shape = 's32[1]{0}', space=sflag, size = 0x4, scoped, tag = 'scoped memory for forward.1']
  #allocation6 [shape = 'u8[512]{0}', space=smem, size = 0x200, scoped, tag = 'prefetched SMEM operand 0']
  #allocation7 [shape = 'u8[512]{0}', space=smem, size = 0x200, scoped, tag = 'prefetched SMEM operand 1']
  #allocation8 [shape = 's32[]', space=sflag, size = 0x4, offset = 0, fixed_abs, tag = 'sflag constant byte address 0x0 - dummy sync flag']
  #allocation9 [shape = 's32[]', space=sflag, size = 0x4, offset = 0, fixed_abs, tag = 'sflag constant byte address 0x0 - dummy sync flag']
  %s0 = inlined_call_operand.vmem [shape: s32[8], index: 0, kind: input, shape index: {}]
  %s1 = inlined_call_operand.vmem [shape: s32[8], index: 1, kind: input, shape index: {}]
  %s2 = inlined_call_operand.vmem [shape: s32[64,1], index: 2, kind: input, shape index: {}]
  %s3 = inlined_call_operand.vmem [shape: f32[32,64], index: 3, kind: input, shape index: {}]
  %s4 = inlined_call_operand.vmem [shape: f32[32,48], index: 4, kind: input, shape index: {}]
  %s5 = inlined_call_operand.vmem [shape: f32[6,64,64], index: 5, kind: input, shape index: {}]
  %s6 = inlined_call_operand.vmem [shape: f32[4,64], index: 6, kind: input, shape index: {}]
  %s7 = inlined_call_operand.vmem [shape: f32[6,64,64], index: 7, kind: input, shape index: {}]
  %s8 = inlined_call_operand.vmem [shape: f32[4,64], index: 8, kind: input, shape index: {}]
  %s9 = inlined_call_operand.vmem [shape: f32[4,64], index: 9, kind: input, shape index: {}]
  %s10 = inlined_call_operand.vmem [shape: f32[8,64], index: 10, kind: input, shape index: {}]
  %s11 = inlined_call_operand.vmem [shape: f32[64,64], index: 11, kind: input, shape index: {}]
  %s12 = inlined_call_operand.vmem [shape: f32[1,64], index: 12, kind: input, shape index: {}]
  %s13 = inlined_call_operand.vmem [shape: f32[64,64], index: 13, kind: input, shape index: {}]
  %s14 = inlined_call_operand.vmem [shape: f32[1,64], index: 14, kind: input, shape index: {}]
  %s15 = inlined_call_operand.vmem [shape: f32[64,64], index: 15, kind: input, shape index: {}]
  %s16 = inlined_call_operand.vmem [shape: f32[1,64], index: 16, kind: input, shape index: {}]
  %s17 = inlined_call_operand.vmem [shape: f32[64,64], index: 17, kind: input, shape index: {}]
  %s18 = inlined_call_operand.vmem [shape: f32[1,64], index: 18, kind: input, shape index: {}]
  %s19 = inlined_call_operand.vmem [shape: f32[1,64], index: 19, kind: input, shape index: {}]
  %s20 = inlined_call_operand.vmem [shape: f32[1,64], index: 20, kind: input, shape index: {}]
  %s21 = inlined_call_operand.vmem [shape: bf16[64,2048], index: 21, kind: input, shape index: {}]
  %s22 = inlined_call_operand.vmem [shape: f32[1,2048], index: 22, kind: input, shape index: {}]
  %s23 = inlined_call_operand.vmem [shape: bf16[2048,64], index: 23, kind: input, shape index: {}]
  %s24 = inlined_call_operand.vmem [shape: f32[1,64], index: 24, kind: input, shape index: {}]
  %s25 = inlined_call_operand.vmem [shape: f32[1,64], index: 25, kind: input, shape index: {}]
  %s26 = inlined_call_operand.vmem [shape: f32[1,64], index: 26, kind: input, shape index: {}]
  %s27 = inlined_call_operand.vmem [shape: f32[1,128], index: 27, kind: output, shape index: {}]
  %s28 = sld [smem:[#allocation0]]
  $region170: #{forward.1} parent=0
    _
  %s30 = ssub.s32 1, %s28
  %s31 = scalar_select 0, %s30, %s28
  %s32 = sshll.u32 %s0, 4
  %s33 = int_to_ptr.vmem [resolvable:$true] %s32
  %35 = dma.vmem_to_smem %s33, 16, [#allocation6], [#allocation5]
  %s36 = sshll.u32 %s1, 4
  %s37 = int_to_ptr.vmem [resolvable:$true] %s36
  %39 = dma.vmem_to_smem %s37, 16, [#allocation7], [#allocation5]
  %40 = dma.done [#allocation5], 32
  %41 = sfence
  // Predicated region
  $region2: #{forward.1} parent=0 // pred_check
    _
  $region3: #{forward.1} parent=0 // pred_check_branch
    %43 = sbr.rel (0) target = $region5
  $region4: #{forward.1} parent=0 // pred_region
    _
  $region5: #{forward.1} parent=0 // pred_fallthru
    _
  // Predicated region
  $region6: #{forward.1} parent=0 // pred_check
    _
  $region7: #{forward.1} parent=0 // pred_check_branch
    %45 = sbr.rel (0) target = $region9
  $region8: #{forward.1} parent=0 // pred_region
    _
  $region9: #{forward.1} parent=0 // pred_fallthru
    _
  // Predicated region
  $region10: #{forward.1} parent=0 // pred_check
    _
  $region11: #{forward.1} parent=0 // pred_check_branch
    %47 = sbr.rel (0) target = $region13
  $region12: #{forward.1} parent=0 // pred_region
    _
  $region13: #{forward.1} parent=0 // pred_fallthru
    _
  // Predicated region
  $region14: #{forward.1} parent=0 // pred_check
    _
  $region15: #{forward.1} parent=0 // pred_check_branch
    %49 = sbr.rel (0) target = $region17
  $region16: #{forward.1} parent=0 // pred_region
    _
  $region17: #{forward.1} parent=0 // pred_fallthru
    _
  // Predicated region
  $region18: #{forward.1} parent=0 // pred_check
    _
  $region19: #{forward.1} parent=0 // pred_check_branch
    %51 = sbr.rel (0) target = $region21
  $region20: #{forward.1} parent=0 // pred_region
    _
  $region21: #{forward.1} parent=0 // pred_fallthru
    _
  // Predicated region
  $region22: #{forward.1} parent=0 // pred_check
    _
  $region23: #{forward.1} parent=0 // pred_check_branch
    %53 = sbr.rel (0) target = $region25
  $region24: #{forward.1} parent=0 // pred_region
    _
  $region25: #{forward.1} parent=0 // pred_fallthru
    _
  // Predicated region
  $region26: #{forward.1} parent=0 // pred_check
    _
  $region27: #{forward.1} parent=0 // pred_check_branch
    %55 = sbr.rel (0) target = $region29
  $region28: #{forward.1} parent=0 // pred_region
    _
  $region29: #{forward.1} parent=0 // pred_fallthru
    _
  // Predicated region
  $region30: #{forward.1} parent=0 // pred_check
    _
  $region31: #{forward.1} parent=0 // pred_check_branch
    %57 = sbr.rel (0) target = $region33
  $region32: #{forward.1} parent=0 // pred_region
    _
  $region33: #{forward.1} parent=0 // pred_fallthru
    _
  // Predicated region
  $region34: #{forward.1} parent=0 // pred_check
    _
  $region35: #{forward.1} parent=0 // pred_check_branch
    %59 = sbr.rel (0) target = $region37
  $region36: #{forward.1} parent=0 // pred_region
    _
  $region37: #{forward.1} parent=0 // pred_fallthru
    _
  // Predicated region
  $region38: #{forward.1} parent=0 // pred_check
    _
  $region39: #{forward.1} parent=0 // pred_check_branch
    %61 = sbr.rel (0) target = $region41
  $region40: #{forward.1} parent=0 // pred_region
    _
  $region41: #{forward.1} parent=0 // pred_fallthru
    _
  // Predicated region
  $region42: #{forward.1} parent=0 // pred_check
    _
  $region43: #{forward.1} parent=0 // pred_check_branch
    %63 = sbr.rel (0) target = $region45
  $region44: #{forward.1} parent=0 // pred_region
    _
  $region45: #{forward.1} parent=0 // pred_fallthru
    _
  // Predicated region
  $region46: #{forward.1} parent=0 // pred_check
    _
  $region47: #{forward.1} parent=0 // pred_check_branch
    %65 = sbr.rel (0) target = $region49
  $region48: #{forward.1} parent=0 // pred_region
    _
  $region49: #{forward.1} parent=0 // pred_fallthru
    _
  // Predicated region
  $region50: #{forward.1} parent=0 // pred_check
    _
  $region51: #{forward.1} parent=0 // pred_check_branch
    %67 = sbr.rel (0) target = $region53
  $region52: #{forward.1} parent=0 // pred_region
    _
  $region53: #{forward.1} parent=0 // pred_fallthru
    _
  // Predicated region
  $region54: #{forward.1} parent=0 // pred_check
    _
  $region55: #{forward.1} parent=0 // pred_check_branch
    %69 = sbr.rel (0) target = $region57
  $region56: #{forward.1} parent=0 // pred_region
    _
  $region57: #{forward.1} parent=0 // pred_fallthru
    _
  // Predicated region
  $region58: #{forward.1} parent=0 // pred_check
    _
  $region59: #{forward.1} parent=0 // pred_check_branch
    %71 = sbr.rel (0) target = $region61
  $region60: #{forward.1} parent=0 // pred_region
    _
  $region61: #{forward.1} parent=0 // pred_fallthru
    _
  // Predicated region
  $region62: #{forward.1} parent=0 // pred_check
    _
  $region63: #{forward.1} parent=0 // pred_check_branch
    %73 = sbr.rel (0) target = $region65
  $region64: #{forward.1} parent=0 // pred_region
    _
  $region65: #{forward.1} parent=0 // pred_fallthru
    _
  // Predicated region
  $region66: #{forward.1} parent=0 // pred_check
    _
  $region67: #{forward.1} parent=0 // pred_check_branch
    %75 = sbr.rel (0) target = $region69
  $region68: #{forward.1} parent=0 // pred_region
    _
  $region69: #{forward.1} parent=0 // pred_fallthru
    _
  // Predicated region
  $region70: #{forward.1} parent=0 // pred_check
    _
  $region71: #{forward.1} parent=0 // pred_check_branch
    %77 = sbr.rel (0) target = $region73
  $region72: #{forward.1} parent=0 // pred_region
    _
  $region73: #{forward.1} parent=0 // pred_fallthru
    _
  // Predicated region
  $region74: #{forward.1} parent=0 // pred_check
    _
  $region75: #{forward.1} parent=0 // pred_check_branch
    %79 = sbr.rel (0) target = $region77
  $region76: #{forward.1} parent=0 // pred_region
    _
  $region77: #{forward.1} parent=0 // pred_fallthru
    _
  // Predicated region
  $region78: #{forward.1} parent=0 // pred_check
    _
  $region79: #{forward.1} parent=0 // pred_check_branch
    %81 = sbr.rel (0) target = $region81
  $region80: #{forward.1} parent=0 // pred_region
    _
  $region81: #{forward.1} parent=0 // pred_fallthru
    _
  // Predicated region
  $region82: #{forward.1} parent=0 // pred_check
    _
  $region83: #{forward.1} parent=0 // pred_check_branch
    %83 = sbr.rel (0) target = $region85
  $region84: #{forward.1} parent=0 // pred_region
    _
  $region85: #{forward.1} parent=0 // pred_fallthru
    _
  // Predicated region
  $region86: #{forward.1} parent=0 // pred_check
    _
  $region87: #{forward.1} parent=0 // pred_check_branch
    %85 = sbr.rel (0) target = $region89
  $region88: #{forward.1} parent=0 // pred_region
    _
  $region89: #{forward.1} parent=0 // pred_fallthru
    _
  // Predicated region
  $region90: #{forward.1} parent=0 // pred_check
    _
  $region91: #{forward.1} parent=0 // pred_check_branch
    %87 = sbr.rel (0) target = $region93
  $region92: #{forward.1} parent=0 // pred_region
    _
  $region93: #{forward.1} parent=0 // pred_fallthru
    _
  %p90 = scmp.lt.u32.totalorder 512, 8
  %p91 = pneg %p90
  // Predicated region
  $region94: #{forward.1} parent=0 // pred_check
    _
  $region95: #{forward.1} parent=0 // pred_check_branch
    %93 = sbr.rel (%p90) target = $region97
  $region96: #{forward.1} parent=0 // pred_region
    %s109 = sand.u32 512, 7
    %p110 = scmp.eq.s32.totalorder %s109, 0
    // Predicated region
    $region109: #{forward.1} parent=96 // pred_check
      %p111 = pneg %p110
    $region110: #{forward.1} parent=96 // pred_check_branch
      %113 = sbr.rel (%p111) target = $region112
    $region111: #{forward.1} parent=96 // pred_region
      loop: start=0, step=1, limit=1
      $region113: #{forward.1} parent=111 // loop_pre_header
        _
      $region114: #{forward.1} parent=111 // loop_header
        %s115 = sphi 0, %s119
        %p116 = scmp.ge.s32.totalorder %s115, 1
        %s120 = sphi %s21, %s21
        %s121 = sphi [#allocation2], [#allocation2]
      $region115: #{forward.1} parent=111 // loop_header_branch
        %118 = sbr.rel (%p116) target = $region119
      $region116: #{forward.1} parent=111 // loop_body
        %v122 = vld [vmem:[%s120] sm:$0xff]
        %123 = vst [vmem:[%s121] sm:$0xff] %v122
        %v124 = vld [vmem:[%s120 + $0x8] sm:$0xff]
        %125 = vst [vmem:[%s121 + $0x8] sm:$0xff] %v124
        %v126 = vld [vmem:[%s120 + $0x10] sm:$0xff]
        %127 = vst [vmem:[%s121 + $0x10] sm:$0xff] %v126
        %v128 = vld [vmem:[%s120 + $0x18] sm:$0xff]
        %129 = vst [vmem:[%s121 + $0x18] sm:$0xff] %v128
        %v130 = vld [vmem:[%s120 + $0x20] sm:$0xff]
        %131 = vst [vmem:[%s121 + $0x20] sm:$0xff] %v130
        %v132 = vld [vmem:[%s120 + $0x28] sm:$0xff]
        %133 = vst [vmem:[%s121 + $0x28] sm:$0xff] %v132
        %v134 = vld [vmem:[%s120 + $0x30] sm:$0xff]
        %135 = vst [vmem:[%s121 + $0x30] sm:$0xff] %v134
        %v136 = vld [vmem:[%s120 + $0x38] sm:$0xff]
        %137 = vst [vmem:[%s121 + $0x38] sm:$0xff] %v136
        %v138 = vld [vmem:[%s120 + $0x40] sm:$0xff]
        %139 = vst [vmem:[%s121 + $0x40] sm:$0xff] %v138
        %v140 = vld [vmem:[%s120 + $0x48] sm:$0xff]
        %141 = vst [vmem:[%s121 + $0x48] sm:$0xff] %v140
        %v142 = vld [vmem:[%s120 + $0x50] sm:$0xff]
        %143 = vst [vmem:[%s121 + $0x50] sm:$0xff] %v142
        %v144 = vld [vmem:[%s120 + $0x58] sm:$0xff]
        %145 = vst [vmem:[%s121 + $0x58] sm:$0xff] %v144
        %v146 = vld [vmem:[%s120 + $0x60] sm:$0xff]
        %147 = vst [vmem:[%s121 + $0x60] sm:$0xff] %v146
        %v148 = vld [vmem:[%s120 + $0x68] sm:$0xff]
        %149 = vst [vmem:[%s121 + $0x68] sm:$0xff] %v148
        %v150 = vld [vmem:[%s120 + $0x70] sm:$0xff]
        %151 = vst [vmem:[%s121 + $0x70] sm:$0xff] %v150
        %v152 = vld [vmem:[%s120 + $0x78] sm:$0xff]
        %153 = vst [vmem:[%s121 + $0x78] sm:$0xff] %v152
        %v154 = vld [vmem:[%s120 + $0x80] sm:$0xff]
        %155 = vst [vmem:[%s121 + $0x80] sm:$0xff] %v154
        %v156 = vld [vmem:[%s120 + $0x88] sm:$0xff]
        %157 = vst [vmem:[%s121 + $0x88] sm:$0xff] %v156
        %v158 = vld [vmem:[%s120 + $0x90] sm:$0xff]
        %159 = vst [vmem:[%s121 + $0x90] sm:$0xff] %v158
        %v160 = vld [vmem:[%s120 + $0x98] sm:$0xff]
        %161 = vst [vmem:[%s121 + $0x98] sm:$0xff] %v160
        %v162 = vld [vmem:[%s120 + $0xa0] sm:$0xff]
        %163 = vst [vmem:[%s121 + $0xa0] sm:$0xff] %v162
        %v164 = vld [vmem:[%s120 + $0xa8] sm:$0xff]
        %165 = vst [vmem:[%s121 + $0xa8] sm:$0xff] %v164
        %v166 = vld [vmem:[%s120 + $0xb0] sm:$0xff]
        %167 = vst [vmem:[%s121 + $0xb0] sm:$0xff] %v166
        %v168 = vld [vmem:[%s120 + $0xb8] sm:$0xff]
        %169 = vst [vmem:[%s121 + $0xb8] sm:$0xff] %v168
        %v170 = vld [vmem:[%s120 + $0xc0] sm:$0xff]
        %171 = vst [vmem:[%s121 + $0xc0] sm:$0xff] %v170
        %v172 = vld [vmem:[%s120 + $0xc8] sm:$0xff]
        %173 = vst [vmem:[%s121 + $0xc8] sm:$0xff] %v172
        %v174 = vld [vmem:[%s120 + $0xd0] sm:$0xff]
        %175 = vst [vmem:[%s121 + $0xd0] sm:$0xff] %v174
        %v176 = vld [vmem:[%s120 + $0xd8] sm:$0xff]
        %177 = vst [vmem:[%s121 + $0xd8] sm:$0xff] %v176
        %v178 = vld [vmem:[%s120 + $0xe0] sm:$0xff]
        %179 = vst [vmem:[%s121 + $0xe0] sm:$0xff] %v178
        %v180 = vld [vmem:[%s120 + $0xe8] sm:$0xff]
        %181 = vst [vmem:[%s121 + $0xe8] sm:$0xff] %v180
        %v182 = vld [vmem:[%s120 + $0xf0] sm:$0xff]
        %183 = vst [vmem:[%s121 + $0xf0] sm:$0xff] %v182
        %v184 = vld [vmem:[%s120 + $0xf8] sm:$0xff]
        %185 = vst [vmem:[%s121 + $0xf8] sm:$0xff] %v184
        %v186 = vld [vmem:[%s120 + $0x100] sm:$0xff]
        %187 = vst [vmem:[%s121 + $0x100] sm:$0xff] %v186
        %v188 = vld [vmem:[%s120 + $0x108] sm:$0xff]
        %189 = vst [vmem:[%s121 + $0x108] sm:$0xff] %v188
        %v190 = vld [vmem:[%s120 + $0x110] sm:$0xff]
        %191 = vst [vmem:[%s121 + $0x110] sm:$0xff] %v190
        %v192 = vld [vmem:[%s120 + $0x118] sm:$0xff]
        %193 = vst [vmem:[%s121 + $0x118] sm:$0xff] %v192
        %v194 = vld [vmem:[%s120 + $0x120] sm:$0xff]
        %195 = vst [vmem:[%s121 + $0x120] sm:$0xff] %v194
        %v196 = vld [vmem:[%s120 + $0x128] sm:$0xff]
        %197 = vst [vmem:[%s121 + $0x128] sm:$0xff] %v196
        %v198 = vld [vmem:[%s120 + $0x130] sm:$0xff]
        %199 = vst [vmem:[%s121 + $0x130] sm:$0xff] %v198
        %v200 = vld [vmem:[%s120 + $0x138] sm:$0xff]
        %201 = vst [vmem:[%s121 + $0x138] sm:$0xff] %v200
        %v202 = vld [vmem:[%s120 + $0x140] sm:$0xff]
        %203 = vst [vmem:[%s121 + $0x140] sm:$0xff] %v202
        %v204 = vld [vmem:[%s120 + $0x148] sm:$0xff]
        %205 = vst [vmem:[%s121 + $0x148] sm:$0xff] %v204
        %v206 = vld [vmem:[%s120 + $0x150] sm:$0xff]
        %207 = vst [vmem:[%s121 + $0x150] sm:$0xff] %v206
        %v208 = vld [vmem:[%s120 + $0x158] sm:$0xff]
        %209 = vst [vmem:[%s121 + $0x158] sm:$0xff] %v208
        %v210 = vld [vmem:[%s120 + $0x160] sm:$0xff]
        %211 = vst [vmem:[%s121 + $0x160] sm:$0xff] %v210
        %v212 = vld [vmem:[%s120 + $0x168] sm:$0xff]
        %213 = vst [vmem:[%s121 + $0x168] sm:$0xff] %v212
        %v214 = vld [vmem:[%s120 + $0x170] sm:$0xff]
        %215 = vst [vmem:[%s121 + $0x170] sm:$0xff] %v214
        %v216 = vld [vmem:[%s120 + $0x178] sm:$0xff]
        %217 = vst [vmem:[%s121 + $0x178] sm:$0xff] %v216
        %v218 = vld [vmem:[%s120 + $0x180] sm:$0xff]
        %219 = vst [vmem:[%s121 + $0x180] sm:$0xff] %v218
        %v220 = vld [vmem:[%s120 + $0x188] sm:$0xff]
        %221 = vst [vmem:[%s121 + $0x188] sm:$0xff] %v220
        %v222 = vld [vmem:[%s120 + $0x190] sm:$0xff]
        %223 = vst [vmem:[%s121 + $0x190] sm:$0xff] %v222
        %v224 = vld [vmem:[%s120 + $0x198] sm:$0xff]
        %225 = vst [vmem:[%s121 + $0x198] sm:$0xff] %v224
        %v226 = vld [vmem:[%s120 + $0x1a0] sm:$0xff]
        %227 = vst [vmem:[%s121 + $0x1a0] sm:$0xff] %v226
        %v228 = vld [vmem:[%s120 + $0x1a8] sm:$0xff]
        %229 = vst [vmem:[%s121 + $0x1a8] sm:$0xff] %v228
        %v230 = vld [vmem:[%s120 + $0x1b0] sm:$0xff]
        %231 = vst [vmem:[%s121 + $0x1b0] sm:$0xff] %v230
        %v232 = vld [vmem:[%s120 + $0x1b8] sm:$0xff]
        %233 = vst [vmem:[%s121 + $0x1b8] sm:$0xff] %v232
        %v234 = vld [vmem:[%s120 + $0x1c0] sm:$0xff]
        %235 = vst [vmem:[%s121 + $0x1c0] sm:$0xff] %v234
        %v236 = vld [vmem:[%s120 + $0x1c8] sm:$0xff]
        %237 = vst [vmem:[%s121 + $0x1c8] sm:$0xff] %v236
        %v238 = vld [vmem:[%s120 + $0x1d0] sm:$0xff]
        %239 = vst [vmem:[%s121 + $0x1d0] sm:$0xff] %v238
        %v240 = vld [vmem:[%s120 + $0x1d8] sm:$0xff]
        %241 = vst [vmem:[%s121 + $0x1d8] sm:$0xff] %v240
        %v242 = vld [vmem:[%s120 + $0x1e0] sm:$0xff]
        %243 = vst [vmem:[%s121 + $0x1e0] sm:$0xff] %v242
        %v244 = vld [vmem:[%s120 + $0x1e8] sm:$0xff]
        %245 = vst [vmem:[%s121 + $0x1e8] sm:$0xff] %v244
        %v246 = vld [vmem:[%s120 + $0x1f0] sm:$0xff]
        %247 = vst [vmem:[%s121 + $0x1f0] sm:$0xff] %v246
        %v248 = vld [vmem:[%s120 + $0x1f8] sm:$0xff]
        %249 = vst [vmem:[%s121 + $0x1f8] sm:$0xff] %v248
      $region117: #{forward.1} parent=111 // loop_footer
        %s119 = sadd.s32 1, %s115
      $region118: #{forward.1} parent=111 // loop_footer_branch
        %114 = sbr.rel target = $region114
      $region119: #{forward.1} parent=111 // loop_exit
        _
    $region112: #{forward.1} parent=96 // pred_fallthru
      _
    %p250 = pneg %p110
    // Predicated region
    $region120: #{forward.1} parent=96 // pred_check
      _
    $region121: #{forward.1} parent=96 // pred_check_branch
      %252 = sbr.rel (%p110) target = $region123
    $region122: #{forward.1} parent=96 // pred_region
      %s253 = sand.u32 512, 7
    $region123: #{forward.1} parent=96 // pred_fallthru
      _
  $region97: #{forward.1} parent=0 // pred_fallthru
    _
  // Predicated region
  $region98: #{forward.1} parent=0 // pred_check
    %p94 = pneg %p90
  $region99: #{forward.1} parent=0 // pred_check_branch
    %96 = sbr.rel (%p94) target = $region101
  $region100: #{forward.1} parent=0 // pred_region
    %s97 = sshll.u32 1, 512
    %s98 = ssub.s32 %s97, 1
    loop: start=0, step=1, limit=1
    $region102: #{forward.1} parent=100 // loop_pre_header
      _
    $region103: #{forward.1} parent=100 // loop_header
      %s100 = sphi 0, %s104
      %p101 = scmp.ge.s32.totalorder %s100, 1
      %s105 = sphi %s21, %s21
      %s106 = sphi [#allocation2], [#allocation2]
    $region104: #{forward.1} parent=100 // loop_header_branch
      %103 = sbr.rel (%p101) target = $region108
    $region105: #{forward.1} parent=100 // loop_body
      %v107 = vld [vmem:[%s105] sm:%s98]
      %108 = vst [vmem:[%s106] sm:%s98] %v107
    $region106: #{forward.1} parent=100 // loop_footer
      %s104 = sadd.s32 1, %s100
    $region107: #{forward.1} parent=100 // loop_footer_branch
      %99 = sbr.rel target = $region103
    $region108: #{forward.1} parent=100 // loop_exit
      _
  $region101: #{forward.1} parent=0 // pred_fallthru
    _
  // Predicated region
  $region124: #{forward.1} parent=0 // pred_check
    _
  $region125: #{forward.1} parent=0 // pred_check_branch
    %256 = sbr.rel (0) target = $region127
  $region126: #{forward.1} parent=0 // pred_region
    %257 = vsyncadd [#allocation4], 8192
  $region127: #{forward.1} parent=0 // pred_fallthru
    _
  %s258 = scalar_lea.sflag [#allocation4], 1
  %p260 = scmp.lt.u32.totalorder 1024, 8
  %p261 = pneg %p260
  // Predicated region
  $region128: #{forward.1} parent=0 // pred_check
    _
  $region129: #{forward.1} parent=0 // pred_check_branch
    %263 = sbr.rel (%p260) target = $region131
  $region130: #{forward.1} parent=0 // pred_region
    %s279 = sand.u32 1024, 7
    %p280 = scmp.eq.s32.totalorder %s279, 0
    // Predicated region
    $region143: #{forward.1} parent=130 // pred_check
      %p281 = pneg %p280
    $region144: #{forward.1} parent=130 // pred_check_branch
      %283 = sbr.rel (%p281) target = $region146
    $region145: #{forward.1} parent=130 // pred_region
      loop: start=0, step=1, limit=1
      $region147: #{forward.1} parent=145 // loop_pre_header
        _
      $region148: #{forward.1} parent=145 // loop_header
        %s285 = sphi 0, %s289
        %p286 = scmp.ge.s32.totalorder %s285, 1
        %s290 = sphi %s23, %s23
        %s291 = sphi [#allocation3], [#allocation3]
      $region149: #{forward.1} parent=145 // loop_header_branch
        %288 = sbr.rel (%p286) target = $region153
      $region150: #{forward.1} parent=145 // loop_body
        %v292 = vld [vmem:[%s290] sm:$0xff]
        %293 = vst [vmem:[%s291] sm:$0xff] %v292
        %v294 = vld [vmem:[%s290 + $0x8] sm:$0xff]
        %295 = vst [vmem:[%s291 + $0x8] sm:$0xff] %v294
        %v296 = vld [vmem:[%s290 + $0x10] sm:$0xff]
        %297 = vst [vmem:[%s291 + $0x10] sm:$0xff] %v296
        %v298 = vld [vmem:[%s290 + $0x18] sm:$0xff]
        %299 = vst [vmem:[%s291 + $0x18] sm:$0xff] %v298
        %v300 = vld [vmem:[%s290 + $0x20] sm:$0xff]
        %301 = vst [vmem:[%s291 + $0x20] sm:$0xff] %v300
        %v302 = vld [vmem:[%s290 + $0x28] sm:$0xff]
        %303 = vst [vmem:[%s291 + $0x28] sm:$0xff] %v302
        %v304 = vld [vmem:[%s290 + $0x30] sm:$0xff]
        %305 = vst [vmem:[%s291 + $0x30] sm:$0xff] %v304
        %v306 = vld [vmem:[%s290 + $0x38] sm:$0xff]
        %307 = vst [vmem:[%s291 + $0x38] sm:$0xff] %v306
        %v308 = vld [vmem:[%s290 + $0x40] sm:$0xff]
        %309 = vst [vmem:[%s291 + $0x40] sm:$0xff] %v308
        %v310 = vld [vmem:[%s290 + $0x48] sm:$0xff]
        %311 = vst [vmem:[%s291 + $0x48] sm:$0xff] %v310
        %v312 = vld [vmem:[%s290 + $0x50] sm:$0xff]
        %313 = vst [vmem:[%s291 + $0x50] sm:$0xff] %v312
        %v314 = vld [vmem:[%s290 + $0x58] sm:$0xff]
        %315 = vst [vmem:[%s291 + $0x58] sm:$0xff] %v314
        %v316 = vld [vmem:[%s290 + $0x60] sm:$0xff]
        %317 = vst [vmem:[%s291 + $0x60] sm:$0xff] %v316
        %v318 = vld [vmem:[%s290 + $0x68] sm:$0xff]
        %319 = vst [vmem:[%s291 + $0x68] sm:$0xff] %v318
        %v320 = vld [vmem:[%s290 + $0x70] sm:$0xff]
        %321 = vst [vmem:[%s291 + $0x70] sm:$0xff] %v320
        %v322 = vld [vmem:[%s290 + $0x78] sm:$0xff]
        %323 = vst [vmem:[%s291 + $0x78] sm:$0xff] %v322
        %v324 = vld [vmem:[%s290 + $0x80] sm:$0xff]
        %325 = vst [vmem:[%s291 + $0x80] sm:$0xff] %v324
        %v326 = vld [vmem:[%s290 + $0x88] sm:$0xff]
        %327 = vst [vmem:[%s291 + $0x88] sm:$0xff] %v326
        %v328 = vld [vmem:[%s290 + $0x90] sm:$0xff]
        %329 = vst [vmem:[%s291 + $0x90] sm:$0xff] %v328
        %v330 = vld [vmem:[%s290 + $0x98] sm:$0xff]
        %331 = vst [vmem:[%s291 + $0x98] sm:$0xff] %v330
        %v332 = vld [vmem:[%s290 + $0xa0] sm:$0xff]
        %333 = vst [vmem:[%s291 + $0xa0] sm:$0xff] %v332
        %v334 = vld [vmem:[%s290 + $0xa8] sm:$0xff]
        %335 = vst [vmem:[%s291 + $0xa8] sm:$0xff] %v334
        %v336 = vld [vmem:[%s290 + $0xb0] sm:$0xff]
        %337 = vst [vmem:[%s291 + $0xb0] sm:$0xff] %v336
        %v338 = vld [vmem:[%s290 + $0xb8] sm:$0xff]
        %339 = vst [vmem:[%s291 + $0xb8] sm:$0xff] %v338
        %v340 = vld [vmem:[%s290 + $0xc0] sm:$0xff]
        %341 = vst [vmem:[%s291 + $0xc0] sm:$0xff] %v340
        %v342 = vld [vmem:[%s290 + $0xc8] sm:$0xff]
        %343 = vst [vmem:[%s291 + $0xc8] sm:$0xff] %v342
        %v344 = vld [vmem:[%s290 + $0xd0] sm:$0xff]
        %345 = vst [vmem:[%s291 + $0xd0] sm:$0xff] %v344
        %v346 = vld [vmem:[%s290 + $0xd8] sm:$0xff]
        %347 = vst [vmem:[%s291 + $0xd8] sm:$0xff] %v346
        %v348 = vld [vmem:[%s290 + $0xe0] sm:$0xff]
        %349 = vst [vmem:[%s291 + $0xe0] sm:$0xff] %v348
        %v350 = vld [vmem:[%s290 + $0xe8] sm:$0xff]
        %351 = vst [vmem:[%s291 + $0xe8] sm:$0xff] %v350
        %v352 = vld [vmem:[%s290 + $0xf0] sm:$0xff]
        %353 = vst [vmem:[%s291 + $0xf0] sm:$0xff] %v352
        %v354 = vld [vmem:[%s290 + $0xf8] sm:$0xff]
        %355 = vst [vmem:[%s291 + $0xf8] sm:$0xff] %v354
        %v356 = vld [vmem:[%s290 + $0x100] sm:$0xff]
        %357 = vst [vmem:[%s291 + $0x100] sm:$0xff] %v356
        %v358 = vld [vmem:[%s290 + $0x108] sm:$0xff]
        %359 = vst [vmem:[%s291 + $0x108] sm:$0xff] %v358
        %v360 = vld [vmem:[%s290 + $0x110] sm:$0xff]
        %361 = vst [vmem:[%s291 + $0x110] sm:$0xff] %v360
        %v362 = vld [vmem:[%s290 + $0x118] sm:$0xff]
        %363 = vst [vmem:[%s291 + $0x118] sm:$0xff] %v362
        %v364 = vld [vmem:[%s290 + $0x120] sm:$0xff]
        %365 = vst [vmem:[%s291 + $0x120] sm:$0xff] %v364
        %v366 = vld [vmem:[%s290 + $0x128] sm:$0xff]
        %367 = vst [vmem:[%s291 + $0x128] sm:$0xff] %v366
        %v368 = vld [vmem:[%s290 + $0x130] sm:$0xff]
        %369 = vst [vmem:[%s291 + $0x130] sm:$0xff] %v368
        %v370 = vld [vmem:[%s290 + $0x138] sm:$0xff]
        %371 = vst [vmem:[%s291 + $0x138] sm:$0xff] %v370
        %v372 = vld [vmem:[%s290 + $0x140] sm:$0xff]
        %373 = vst [vmem:[%s291 + $0x140] sm:$0xff] %v372
        %v374 = vld [vmem:[%s290 + $0x148] sm:$0xff]
        %375 = vst [vmem:[%s291 + $0x148] sm:$0xff] %v374
        %v376 = vld [vmem:[%s290 + $0x150] sm:$0xff]
        %377 = vst [vmem:[%s291 + $0x150] sm:$0xff] %v376
        %v378 = vld [vmem:[%s290 + $0x158] sm:$0xff]
        %379 = vst [vmem:[%s291 + $0x158] sm:$0xff] %v378
        %v380 = vld [vmem:[%s290 + $0x160] sm:$0xff]
        %381 = vst [vmem:[%s291 + $0x160] sm:$0xff] %v380
        %v382 = vld [vmem:[%s290 + $0x168] sm:$0xff]
        %383 = vst [vmem:[%s291 + $0x168] sm:$0xff] %v382
        %v384 = vld [vmem:[%s290 + $0x170] sm:$0xff]
        %385 = vst [vmem:[%s291 + $0x170] sm:$0xff] %v384
        %v386 = vld [vmem:[%s290 + $0x178] sm:$0xff]
        %387 = vst [vmem:[%s291 + $0x178] sm:$0xff] %v386
        %v388 = vld [vmem:[%s290 + $0x180] sm:$0xff]
        %389 = vst [vmem:[%s291 + $0x180] sm:$0xff] %v388
        %v390 = vld [vmem:[%s290 + $0x188] sm:$0xff]
        %391 = vst [vmem:[%s291 + $0x188] sm:$0xff] %v390
        %v392 = vld [vmem:[%s290 + $0x190] sm:$0xff]
        %393 = vst [vmem:[%s291 + $0x190] sm:$0xff] %v392
        %v394 = vld [vmem:[%s290 + $0x198] sm:$0xff]
        %395 = vst [vmem:[%s291 + $0x198] sm:$0xff] %v394
        %v396 = vld [vmem:[%s290 + $0x1a0] sm:$0xff]
        %397 = vst [vmem:[%s291 + $0x1a0] sm:$0xff] %v396
        %v398 = vld [vmem:[%s290 + $0x1a8] sm:$0xff]
        %399 = vst [vmem:[%s291 + $0x1a8] sm:$0xff] %v398
        %v400 = vld [vmem:[%s290 + $0x1b0] sm:$0xff]
        %401 = vst [vmem:[%s291 + $0x1b0] sm:$0xff] %v400
        %v402 = vld [vmem:[%s290 + $0x1b8] sm:$0xff]
        %403 = vst [vmem:[%s291 + $0x1b8] sm:$0xff] %v402
        %v404 = vld [vmem:[%s290 + $0x1c0] sm:$0xff]
        %405 = vst [vmem:[%s291 + $0x1c0] sm:$0xff] %v404
        %v406 = vld [vmem:[%s290 + $0x1c8] sm:$0xff]
        %407 = vst [vmem:[%s291 + $0x1c8] sm:$0xff] %v406
        %v408 = vld [vmem:[%s290 + $0x1d0] sm:$0xff]
        %409 = vst [vmem:[%s291 + $0x1d0] sm:$0xff] %v408
        %v410 = vld [vmem:[%s290 + $0x1d8] sm:$0xff]
        %411 = vst [vmem:[%s291 + $0x1d8] sm:$0xff] %v410
        %v412 = vld [vmem:[%s290 + $0x1e0] sm:$0xff]
        %413 = vst [vmem:[%s291 + $0x1e0] sm:$0xff] %v412
        %v414 = vld [vmem:[%s290 + $0x1e8] sm:$0xff]
        %415 = vst [vmem:[%s291 + $0x1e8] sm:$0xff] %v414
        %v416 = vld [vmem:[%s290 + $0x1f0] sm:$0xff]
        %417 = vst [vmem:[%s291 + $0x1f0] sm:$0xff] %v416
        %v418 = vld [vmem:[%s290 + $0x1f8] sm:$0xff]
        %419 = vst [vmem:[%s291 + $0x1f8] sm:$0xff] %v418
        %v420 = vld [vmem:[%s290 + $0x200] sm:$0xff]
        %421 = vst [vmem:[%s291 + $0x200] sm:$0xff] %v420
        %v422 = vld [vmem:[%s290 + $0x208] sm:$0xff]
        %423 = vst [vmem:[%s291 + $0x208] sm:$0xff] %v422
        %v424 = vld [vmem:[%s290 + $0x210] sm:$0xff]
        %425 = vst [vmem:[%s291 + $0x210] sm:$0xff] %v424
        %v426 = vld [vmem:[%s290 + $0x218] sm:$0xff]
        %427 = vst [vmem:[%s291 + $0x218] sm:$0xff] %v426
        %v428 = vld [vmem:[%s290 + $0x220] sm:$0xff]
        %429 = vst [vmem:[%s291 + $0x220] sm:$0xff] %v428
        %v430 = vld [vmem:[%s290 + $0x228] sm:$0xff]
        %431 = vst [vmem:[%s291 + $0x228] sm:$0xff] %v430
        %v432 = vld [vmem:[%s290 + $0x230] sm:$0xff]
        %433 = vst [vmem:[%s291 + $0x230] sm:$0xff] %v432
        %v434 = vld [vmem:[%s290 + $0x238] sm:$0xff]
        %435 = vst [vmem:[%s291 + $0x238] sm:$0xff] %v434
        %v436 = vld [vmem:[%s290 + $0x240] sm:$0xff]
        %437 = vst [vmem:[%s291 + $0x240] sm:$0xff] %v436
        %v438 = vld [vmem:[%s290 + $0x248] sm:$0xff]
        %439 = vst [vmem:[%s291 + $0x248] sm:$0xff] %v438
        %v440 = vld [vmem:[%s290 + $0x250] sm:$0xff]
        %441 = vst [vmem:[%s291 + $0x250] sm:$0xff] %v440
        %v442 = vld [vmem:[%s290 + $0x258] sm:$0xff]
        %443 = vst [vmem:[%s291 + $0x258] sm:$0xff] %v442
        %v444 = vld [vmem:[%s290 + $0x260] sm:$0xff]
        %445 = vst [vmem:[%s291 + $0x260] sm:$0xff] %v444
        %v446 = vld [vmem:[%s290 + $0x268] sm:$0xff]
        %447 = vst [vmem:[%s291 + $0x268] sm:$0xff] %v446
        %v448 = vld [vmem:[%s290 + $0x270] sm:$0xff]
        %449 = vst [vmem:[%s291 + $0x270] sm:$0xff] %v448
        %v450 = vld [vmem:[%s290 + $0x278] sm:$0xff]
        %451 = vst [vmem:[%s291 + $0x278] sm:$0xff] %v450
        %v452 = vld [vmem:[%s290 + $0x280] sm:$0xff]
        %453 = vst [vmem:[%s291 + $0x280] sm:$0xff] %v452
        %v454 = vld [vmem:[%s290 + $0x288] sm:$0xff]
        %455 = vst [vmem:[%s291 + $0x288] sm:$0xff] %v454
        %v456 = vld [vmem:[%s290 + $0x290] sm:$0xff]
        %457 = vst [vmem:[%s291 + $0x290] sm:$0xff] %v456
        %v458 = vld [vmem:[%s290 + $0x298] sm:$0xff]
        %459 = vst [vmem:[%s291 + $0x298] sm:$0xff] %v458
        %v460 = vld [vmem:[%s290 + $0x2a0] sm:$0xff]
        %461 = vst [vmem:[%s291 + $0x2a0] sm:$0xff] %v460
        %v462 = vld [vmem:[%s290 + $0x2a8] sm:$0xff]
        %463 = vst [vmem:[%s291 + $0x2a8] sm:$0xff] %v462
        %v464 = vld [vmem:[%s290 + $0x2b0] sm:$0xff]
        %465 = vst [vmem:[%s291 + $0x2b0] sm:$0xff] %v464
        %v466 = vld [vmem:[%s290 + $0x2b8] sm:$0xff]
        %467 = vst [vmem:[%s291 + $0x2b8] sm:$0xff] %v466
        %v468 = vld [vmem:[%s290 + $0x2c0] sm:$0xff]
        %469 = vst [vmem:[%s291 + $0x2c0] sm:$0xff] %v468
        %v470 = vld [vmem:[%s290 + $0x2c8] sm:$0xff]
        %471 = vst [vmem:[%s291 + $0x2c8] sm:$0xff] %v470
        %v472 = vld [vmem:[%s290 + $0x2d0] sm:$0xff]
        %473 = vst [vmem:[%s291 + $0x2d0] sm:$0xff] %v472
        %v474 = vld [vmem:[%s290 + $0x2d8] sm:$0xff]
        %475 = vst [vmem:[%s291 + $0x2d8] sm:$0xff] %v474
        %v476 = vld [vmem:[%s290 + $0x2e0] sm:$0xff]
        %477 = vst [vmem:[%s291 + $0x2e0] sm:$0xff] %v476
        %v478 = vld [vmem:[%s290 + $0x2e8] sm:$0xff]
        %479 = vst [vmem:[%s291 + $0x2e8] sm:$0xff] %v478
        %v480 = vld [vmem:[%s290 + $0x2f0] sm:$0xff]
        %481 = vst [vmem:[%s291 + $0x2f0] sm:$0xff] %v480
        %v482 = vld [vmem:[%s290 + $0x2f8] sm:$0xff]
        %483 = vst [vmem:[%s291 + $0x2f8] sm:$0xff] %v482
        %v484 = vld [vmem:[%s290 + $0x300] sm:$0xff]
        %485 = vst [vmem:[%s291 + $0x300] sm:$0xff] %v484
        %v486 = vld [vmem:[%s290 + $0x308] sm:$0xff]
        %487 = vst [vmem:[%s291 + $0x308] sm:$0xff] %v486
        %v488 = vld [vmem:[%s290 + $0x310] sm:$0xff]
        %489 = vst [vmem:[%s291 + $0x310] sm:$0xff] %v488
        %v490 = vld [vmem:[%s290 + $0x318] sm:$0xff]
        %491 = vst [vmem:[%s291 + $0x318] sm:$0xff] %v490
        %v492 = vld [vmem:[%s290 + $0x320] sm:$0xff]
        %493 = vst [vmem:[%s291 + $0x320] sm:$0xff] %v492
        %v494 = vld [vmem:[%s290 + $0x328] sm:$0xff]
        %495 = vst [vmem:[%s291 + $0x328] sm:$0xff] %v494
        %v496 = vld [vmem:[%s290 + $0x330] sm:$0xff]
        %497 = vst [vmem:[%s291 + $0x330] sm:$0xff] %v496
        %v498 = vld [vmem:[%s290 + $0x338] sm:$0xff]
        %499 = vst [vmem:[%s291 + $0x338] sm:$0xff] %v498
        %v500 = vld [vmem:[%s290 + $0x340] sm:$0xff]
        %501 = vst [vmem:[%s291 + $0x340] sm:$0xff] %v500
        %v502 = vld [vmem:[%s290 + $0x348] sm:$0xff]
        %503 = vst [vmem:[%s291 + $0x348] sm:$0xff] %v502
        %v504 = vld [vmem:[%s290 + $0x350] sm:$0xff]
        %505 = vst [vmem:[%s291 + $0x350] sm:$0xff] %v504
        %v506 = vld [vmem:[%s290 + $0x358] sm:$0xff]
        %507 = vst [vmem:[%s291 + $0x358] sm:$0xff] %v506
        %v508 = vld [vmem:[%s290 + $0x360] sm:$0xff]
        %509 = vst [vmem:[%s291 + $0x360] sm:$0xff] %v508
        %v510 = vld [vmem:[%s290 + $0x368] sm:$0xff]
        %511 = vst [vmem:[%s291 + $0x368] sm:$0xff] %v510
        %v512 = vld [vmem:[%s290 + $0x370] sm:$0xff]
        %513 = vst [vmem:[%s291 + $0x370] sm:$0xff] %v512
        %v514 = vld [vmem:[%s290 + $0x378] sm:$0xff]
        %515 = vst [vmem:[%s291 + $0x378] sm:$0xff] %v514
        %v516 = vld [vmem:[%s290 + $0x380] sm:$0xff]
        %517 = vst [vmem:[%s291 + $0x380] sm:$0xff] %v516
        %v518 = vld [vmem:[%s290 + $0x388] sm:$0xff]
        %519 = vst [vmem:[%s291 + $0x388] sm:$0xff] %v518
        %v520 = vld [vmem:[%s290 + $0x390] sm:$0xff]
        %521 = vst [vmem:[%s291 + $0x390] sm:$0xff] %v520
        %v522 = vld [vmem:[%s290 + $0x398] sm:$0xff]
        %523 = vst [vmem:[%s291 + $0x398] sm:$0xff] %v522
        %v524 = vld [vmem:[%s290 + $0x3a0] sm:$0xff]
        %525 = vst [vmem:[%s291 + $0x3a0] sm:$0xff] %v524
        %v526 = vld [vmem:[%s290 + $0x3a8] sm:$0xff]
        %527 = vst [vmem:[%s291 + $0x3a8] sm:$0xff] %v526
        %v528 = vld [vmem:[%s290 + $0x3b0] sm:$0xff]
        %529 = vst [vmem:[%s291 + $0x3b0] sm:$0xff] %v528
        %v530 = vld [vmem:[%s290 + $0x3b8] sm:$0xff]
        %531 = vst [vmem:[%s291 + $0x3b8] sm:$0xff] %v530
        %v532 = vld [vmem:[%s290 + $0x3c0] sm:$0xff]
        %533 = vst [vmem:[%s291 + $0x3c0] sm:$0xff] %v532
        %v534 = vld [vmem:[%s290 + $0x3c8] sm:$0xff]
        %535 = vst [vmem:[%s291 + $0x3c8] sm:$0xff] %v534
        %v536 = vld [vmem:[%s290 + $0x3d0] sm:$0xff]
        %537 = vst [vmem:[%s291 + $0x3d0] sm:$0xff] %v536
        %v538 = vld [vmem:[%s290 + $0x3d8] sm:$0xff]
        %539 = vst [vmem:[%s291 + $0x3d8] sm:$0xff] %v538
        %v540 = vld [vmem:[%s290 + $0x3e0] sm:$0xff]
        %541 = vst [vmem:[%s291 + $0x3e0] sm:$0xff] %v540
        %v542 = vld [vmem:[%s290 + $0x3e8] sm:$0xff]
        %543 = vst [vmem:[%s291 + $0x3e8] sm:$0xff] %v542
        %v544 = vld [vmem:[%s290 + $0x3f0] sm:$0xff]
        %545 = vst [vmem:[%s291 + $0x3f0] sm:$0xff] %v544
        %v546 = vld [vmem:[%s290 + $0x3f8] sm:$0xff]
        %547 = vst [vmem:[%s291 + $0x3f8] sm:$0xff] %v546
      $region151: #{forward.1} parent=145 // loop_footer
        %s289 = sadd.s32 1, %s285
      $region152: #{forward.1} parent=145 // loop_footer_branch
        %284 = sbr.rel target = $region148
      $region153: #{forward.1} parent=145 // loop_exit
        _
    $region146: #{forward.1} parent=130 // pred_fallthru
      _
    %p548 = pneg %p280
    // Predicated region
    $region154: #{forward.1} parent=130 // pred_check
      _
    $region155: #{forward.1} parent=130 // pred_check_branch
      %550 = sbr.rel (%p280) target = $region157
    $region156: #{forward.1} parent=130 // pred_region
      %s551 = sand.u32 1024, 7
    $region157: #{forward.1} parent=130 // pred_fallthru
      _
  $region131: #{forward.1} parent=0 // pred_fallthru
    _
  // Predicated region
  $region132: #{forward.1} parent=0 // pred_check
    %p264 = pneg %p260
  $region133: #{forward.1} parent=0 // pred_check_branch
    %266 = sbr.rel (%p264) target = $region135
  $region134: #{forward.1} parent=0 // pred_region
    %s267 = sshll.u32 1, 1024
    %s268 = ssub.s32 %s267, 1
    loop: start=0, step=1, limit=1
    $region136: #{forward.1} parent=134 // loop_pre_header
      _
    $region137: #{forward.1} parent=134 // loop_header
      %s270 = sphi 0, %s274
      %p271 = scmp.ge.s32.totalorder %s270, 1
      %s275 = sphi %s23, %s23
      %s276 = sphi [#allocation3], [#allocation3]
    $region138: #{forward.1} parent=134 // loop_header_branch
      %273 = sbr.rel (%p271) target = $region142
    $region139: #{forward.1} parent=134 // loop_body
      %v277 = vld [vmem:[%s275] sm:%s268]
      %278 = vst [vmem:[%s276] sm:%s268] %v277
    $region140: #{forward.1} parent=134 // loop_footer
      %s274 = sadd.s32 1, %s270
    $region141: #{forward.1} parent=134 // loop_footer_branch
      %269 = sbr.rel target = $region137
    $region142: #{forward.1} parent=134 // loop_exit
      _
  $region135: #{forward.1} parent=0 // pred_fallthru
    _
  // Predicated region
  $region158: #{forward.1} parent=0 // pred_check
    _
  $region159: #{forward.1} parent=0 // pred_check_branch
    %554 = sbr.rel (0) target = $region161
  $region160: #{forward.1} parent=0 // pred_region
    %555 = vsyncadd %s258, 16384
  $region161: #{forward.1} parent=0 // pred_fallthru
    _
  %s556 = sld [smem:[#allocation6]]
  %s557 = sld [smem:[#allocation6 + $0x1]]
  %s558 = sld [smem:[#allocation6 + $0x2]]
  %s559 = sld [smem:[#allocation6 + $0x3]]
  %s560 = sld [smem:[#allocation6 + $0x4]]
  %s561 = sld [smem:[#allocation6 + $0x5]]
  %s562 = sld [smem:[#allocation6 + $0x6]]
  %s563 = sld [smem:[#allocation6 + $0x7]]
  %s564 = sld [smem:[#allocation7]]
  %s565 = sld [smem:[#allocation7 + $0x1]]
  %s566 = sld [smem:[#allocation7 + $0x2]]
  %s567 = sld [smem:[#allocation7 + $0x3]]
  %s568 = sld [smem:[#allocation7 + $0x4]]
  %s569 = sld [smem:[#allocation7 + $0x5]]
  %s570 = sld [smem:[#allocation7 + $0x6]]
  %s571 = sld [smem:[#allocation7 + $0x7]]
  %v572 = vld [vmem:[%s3] sm:$0xff]
  %v573 = vld [vmem:[%s3 + $0x8] sm:$0xff]
  %v574 = vld [vmem:[%s3 + $0x10] sm:$0xff]
  %v575 = vld [vmem:[%s3 + $0x18] sm:$0xff]
  %v576 = vld [vmem:[%s4] sm:$0xff]
  %v577 = vld [vmem:[%s4 + $0x8] sm:$0xff]
  %v578 = vld [vmem:[%s4 + $0x10] sm:$0xff]
  %v579 = vld [vmem:[%s4 + $0x18] sm:$0xff]
  %v580 = vld [vmem:[%s5] sm:$0xff]
  %v581 = vld [vmem:[%s5 + $0x8] sm:$0xff]
  %v582 = vld [vmem:[%s5 + $0x10] sm:$0xff]
  %v583 = vld [vmem:[%s5 + $0x18] sm:$0xff]
  %v584 = vld [vmem:[%s5 + $0x20] sm:$0xff]
  %v585 = vld [vmem:[%s5 + $0x28] sm:$0xff]
  %v586 = vld [vmem:[%s5 + $0x30] sm:$0xff]
  %v587 = vld [vmem:[%s5 + $0x38] sm:$0xff]
  %vm588 = vcmask 523264
  %v590 = vsel %vm588, %v572, 0
  %592 = vmatprep.subr.mxu0 0.0
  %593 = vmatpush1.msra.mxu0 0.0
  %594 = vmatprep.subr.mxu0 0.0
  %595 = vmatpush1.msra.mxu0 0.0
  %596 = vmatprep.subr.mxu0 0.0
  %597 = vmatpush1.msra.mxu0 0.0
  %598 = vmatprep.subr.mxu0 0.0
  %599 = vmatpush1.msra.mxu0 0.0
  %600 = vmatprep.subr.mxu0 0.0
  %601 = vmatpush1.msra.mxu0 0.0
  %602 = vmatprep.subr.mxu0 0.0
  %603 = vmatpush1.msra.mxu0 0.0
  %604 = vmatprep.subr.mxu0 0.0
  %605 = vmatpush1.msra.mxu0 0.0
  %606 = vmatprep.subr.mxu0 0.0
  %607 = vmatpush1.msra.mxu0 0.0
  %608 = vmatprep.subr.mxu0 0.0
  %609 = vmatpush1.msra.mxu0 %v587
  %610 = vmatprep.subr.mxu0 0.0
  %611 = vmatpush1.msra.mxu0 %v586
  %612 = vmatprep.subr.mxu0 0.0
  %613 = vmatpush1.msra.mxu0 %v585
  %614 = vmatprep.subr.mxu0 0.0
  %615 = vmatpush1.msra.mxu0 %v584
  %616 = vmatprep.subr.mxu0 0.0
  %617 = vmatpush1.msra.mxu0 %v583
  %618 = vmatprep.subr.mxu0 0.0
  %619 = vmatpush1.msra.mxu0 %v582
  %620 = vmatprep.subr.mxu0 0.0
  %621 = vmatpush1.msra.mxu0 %v581
  %622 = vmatprep.subr.mxu0 0.0
  %623 = vmatpush1.msra.mxu0 %v580
  %624 = vmatprep.subr.mxu0 0.0
  %625 = vmatpush2.msra.mxu0 0.0
  %626 = vmatprep.subr.mxu0 0.0
  %627 = vmatpush2.msra.mxu0 0.0
  %628 = vmatprep.subr.mxu0 0.0
  %629 = vmatpush2.msra.mxu0 0.0
  %630 = vmatprep.subr.mxu0 0.0
  %631 = vmatpush2.msra.mxu0 0.0
  %632 = vmatprep.subr.mxu0 0.0
  %633 = vmatpush2.msra.mxu0 0.0
  %634 = vmatprep.subr.mxu0 0.0
  %635 = vmatpush2.msra.mxu0 0.0
  %636 = vmatprep.subr.mxu0 0.0
  %637 = vmatpush2.msra.mxu0 0.0
  %638 = vmatprep.subr.mxu0 0.0
  %639 = vmatpush2.msra.mxu0 0.0
  %640 = vmatprep.subr.mxu0 0.0
  %641 = vmatpush2.msra.mxu0 0.0
  %642 = vmatprep.subr.mxu0 0.0
  %643 = vmatpush2.msra.mxu0 0.0
  %644 = vmatprep.subr.mxu0 0.0
  %645 = vmatpush2.msra.mxu0 0.0
  %646 = vmatprep.subr.mxu0 0.0
  %647 = vmatpush2.msra.mxu0 0.0
  %648 = vmatprep.subr.mxu0 0.0
  %649 = vmatpush2.msra.mxu0 0.0
  %650 = vmatprep.subr.mxu0 0.0
  %651 = vmatpush2.msra.mxu0 0.0
  %652 = vmatprep.subr.mxu0 0.0
  %653 = vmatpush2.msra.mxu0 0.0
  %654 = vmatprep.subr.mxu0 0.0
  %655 = vmatpush2.msra.mxu0 0.0
  %656 = vmatprep.mubr.f32.mxu0 0.0
  %657 = vmatmul.mubr.f32.gmra.mxu0 %v590
  %v658 = vpop.f32.mrf.mxu0
  %v659 = vadd.f32 0.0, %v658
  %v660 = vpop.f32.mrf.mxu0
  %661 = vdwg.mxu0
  %s662 = scalar_lea.vmem %s5, 64
  %v663 = vld [vmem:[%s662] sm:$0xff]
  %v664 = vld [vmem:[%s662 + $0x8] sm:$0xff]
  %v665 = vld [vmem:[%s662 + $0x10] sm:$0xff]
  %v666 = vld [vmem:[%s662 + $0x18] sm:$0xff]
  %v667 = vld [vmem:[%s662 + $0x20] sm:$0xff]
  %v668 = vld [vmem:[%s662 + $0x28] sm:$0xff]
  %v669 = vld [vmem:[%s662 + $0x30] sm:$0xff]
  %v670 = vld [vmem:[%s662 + $0x38] sm:$0xff]
  %v672 = vsel %vm588, %v573, 0
  %674 = vmatprep.subr.mxu0 0.0
  %675 = vmatpush1.msra.mxu0 0.0
  %676 = vmatprep.subr.mxu0 0.0
  %677 = vmatpush1.msra.mxu0 0.0
  %678 = vmatprep.subr.mxu0 0.0
  %679 = vmatpush1.msra.mxu0 0.0
  %680 = vmatprep.subr.mxu0 0.0
  %681 = vmatpush1.msra.mxu0 0.0
  %682 = vmatprep.subr.mxu0 0.0
  %683 = vmatpush1.msra.mxu0 0.0
  %684 = vmatprep.subr.mxu0 0.0
  %685 = vmatpush1.msra.mxu0 0.0
  %686 = vmatprep.subr.mxu0 0.0
  %687 = vmatpush1.msra.mxu0 0.0
  %688 = vmatprep.subr.mxu0 0.0
  %689 = vmatpush1.msra.mxu0 0.0
  %690 = vmatprep.subr.mxu0 0.0
  %691 = vmatpush1.msra.mxu0 %v670
  %692 = vmatprep.subr.mxu0 0.0
  %693 = vmatpush1.msra.mxu0 %v669
  %694 = vmatprep.subr.mxu0 0.0
  %695 = vmatpush1.msra.mxu0 %v668
  %696 = vmatprep.subr.mxu0 0.0
  %697 = vmatpush1.msra.mxu0 %v667
  %698 = vmatprep.subr.mxu0 0.0
  %699 = vmatpush1.msra.mxu0 %v666
  %700 = vmatprep.subr.mxu0 0.0
  %701 = vmatpush1.msra.mxu0 %v665
  %702 = vmatprep.subr.mxu0 0.0
  %703 = vmatpush1.msra.mxu0 %v664
  %704 = vmatprep.subr.mxu0 0.0
  %705 = vmatpush1.msra.mxu0 %v663
  %706 = vmatprep.subr.mxu0 0.0
  %707 = vmatpush2.msra.mxu0 0.0
  %708 = vmatprep.subr.mxu0 0.0
  %709 = vmatpush2.msra.mxu0 0.0
  %710 = vmatprep.subr.mxu0 0.0
  %711 = vmatpush2.msra.mxu0 0.0
  %712 = vmatprep.subr.mxu0 0.0
  %713 = vmatpush2.msra.mxu0 0.0
  %714 = vmatprep.subr.mxu0 0.0
  %715 = vmatpush2.msra.mxu0 0.0
  %716 = vmatprep.subr.mxu0 0.0
  %717 = vmatpush2.msra.mxu0 0.0
  %718 = vmatprep.subr.mxu0 0.0
  %719 = vmatpush2.msra.mxu0 0.0
  %720 = vmatprep.subr.mxu0 0.0
  %721 = vmatpush2.msra.mxu0 0.0
  %722 = vmatprep.subr.mxu0 0.0
  %723 = vmatpush2.msra.mxu0 0.0
  %724 = vmatprep.subr.mxu0 0.0
  %725 = vmatpush2.msra.mxu0 0.0
  %726 = vmatprep.subr.mxu0 0.0
  %727 = vmatpush2.msra.mxu0 0.0
  %728 = vmatprep.subr.mxu0 0.0
  %729 = vmatpush2.msra.mxu0 0.0
  %730 = vmatprep.subr.mxu0 0.0
  %731 = vmatpush2.msra.mxu0 0.0
  %732 = vmatprep.subr.mxu0 0.0
  %733 = vmatpush2.msra.mxu0 0.0
  %734 = vmatprep.subr.mxu0 0.0
  %735 = vmatpush2.msra.mxu0 0.0
  %736 = vmatprep.subr.mxu0 0.0
  %737 = vmatpush2.msra.mxu0 0.0
  %738 = vmatprep.mubr.f32.mxu0 0.0
  %739 = vmatmul.mubr.f32.gmra.mxu0 %v672
  %v740 = vpop.f32.mrf.mxu0
  %v741 = vadd.f32 0.0, %v740
  %v742 = vpop.f32.mrf.mxu0
  %743 = vdwg.mxu0
  %s744 = scalar_lea.vmem %s5, 128
  %v745 = vld [vmem:[%s744] sm:$0xff]
  %v746 = vld [vmem:[%s744 + $0x8] sm:$0xff]
  %v747 = vld [vmem:[%s744 + $0x10] sm:$0xff]
  %v748 = vld [vmem:[%s744 + $0x18] sm:$0xff]
  %v749 = vld [vmem:[%s744 + $0x20] sm:$0xff]
  %v750 = vld [vmem:[%s744 + $0x28] sm:$0xff]
  %v751 = vld [vmem:[%s744 + $0x30] sm:$0xff]
  %v752 = vld [vmem:[%s744 + $0x38] sm:$0xff]
  %753 = vmatprep.subr.mxu0 0.0
  %754 = vmatpush1.msra.mxu0 0.0
  %755 = vmatprep.subr.mxu0 0.0
  %756 = vmatpush1.msra.mxu0 0.0
  %757 = vmatprep.subr.mxu0 0.0
  %758 = vmatpush1.msra.mxu0 0.0
  %759 = vmatprep.subr.mxu0 0.0
  %760 = vmatpush1.msra.mxu0 0.0
  %761 = vmatprep.subr.mxu0 0.0
  %762 = vmatpush1.msra.mxu0 0.0
  %763 = vmatprep.subr.mxu0 0.0
  %764 = vmatpush1.msra.mxu0 0.0
  %765 = vmatprep.subr.mxu0 0.0
  %766 = vmatpush1.msra.mxu0 0.0
  %767 = vmatprep.subr.mxu0 0.0
  %768 = vmatpush1.msra.mxu0 0.0
  %769 = vmatprep.subr.mxu0 0.0
  %770 = vmatpush1.msra.mxu0 %v752
  %771 = vmatprep.subr.mxu0 0.0
  %772 = vmatpush1.msra.mxu0 %v751
  %773 = vmatprep.subr.mxu0 0.0
  %774 = vmatpush1.msra.mxu0 %v750
  %775 = vmatprep.subr.mxu0 0.0
  %776 = vmatpush1.msra.mxu0 %v749
  %777 = vmatprep.subr.mxu0 0.0
  %778 = vmatpush1.msra.mxu0 %v748
  %779 = vmatprep.subr.mxu0 0.0
  %780 = vmatpush1.msra.mxu0 %v747
  %781 = vmatprep.subr.mxu0 0.0
  %782 = vmatpush1.msra.mxu0 %v746
  %783 = vmatprep.subr.mxu0 0.0
  %784 = vmatpush1.msra.mxu0 %v745
  %785 = vmatprep.subr.mxu0 0.0
  %786 = vmatpush2.msra.mxu0 0.0
  %787 = vmatprep.subr.mxu0 0.0
  %788 = vmatpush2.msra.mxu0 0.0
  %789 = vmatprep.subr.mxu0 0.0
  %790 = vmatpush2.msra.mxu0 0.0
  %791 = vmatprep.subr.mxu0 0.0
  %792 = vmatpush2.msra.mxu0 0.0
  %793 = vmatprep.subr.mxu0 0.0
  %794 = vmatpush2.msra.mxu0 0.0
  %795 = vmatprep.subr.mxu0 0.0
  %796 = vmatpush2.msra.mxu0 0.0
  %797 = vmatprep.subr.mxu0 0.0
  %798 = vmatpush2.msra.mxu0 0.0
  %799 = vmatprep.subr.mxu0 0.0
  %800 = vmatpush2.msra.mxu0 0.0
  %801 = vmatprep.subr.mxu0 0.0
  %802 = vmatpush2.msra.mxu0 0.0
  %803 = vmatprep.subr.mxu0 0.0
  %804 = vmatpush2.msra.mxu0 0.0
  %805 = vmatprep.subr.mxu0 0.0
  %806 = vmatpush2.msra.mxu0 0.0
  %807 = vmatprep.subr.mxu0 0.0
  %808 = vmatpush2.msra.mxu0 0.0
  %809 = vmatprep.subr.mxu0 0.0
  %810 = vmatpush2.msra.mxu0 0.0
  %811 = vmatprep.subr.mxu0 0.0
  %812 = vmatpush2.msra.mxu0 0.0
  %813 = vmatprep.subr.mxu0 0.0
  %814 = vmatpush2.msra.mxu0 0.0
  %815 = vmatprep.subr.mxu0 0.0
  %816 = vmatpush2.msra.mxu0 0.0
  %817 = vmatprep.mubr.f32.mxu0 0.0
  %818 = vmatmul.mubr.f32.gmra.mxu0 %v672
  %v819 = vpop.f32.mrf.mxu0
  %v820 = vadd.f32 0.0, %v819
  %v821 = vpop.f32.mrf.mxu0
  %822 = vdwg.mxu0
  %s823 = scalar_lea.vmem %s5, 192
  %v824 = vld [vmem:[%s823] sm:$0xff]
  %v825 = vld [vmem:[%s823 + $0x8] sm:$0xff]
  %v826 = vld [vmem:[%s823 + $0x10] sm:$0xff]
  %v827 = vld [vmem:[%s823 + $0x18] sm:$0xff]
  %v828 = vld [vmem:[%s823 + $0x20] sm:$0xff]
  %v829 = vld [vmem:[%s823 + $0x28] sm:$0xff]
  %v830 = vld [vmem:[%s823 + $0x30] sm:$0xff]
  %v831 = vld [vmem:[%s823 + $0x38] sm:$0xff]
  %v833 = vsel %vm588, %v575, 0
  %835 = vmatprep.subr.mxu0 0.0
  %836 = vmatpush1.msra.mxu0 0.0
  %837 = vmatprep.subr.mxu0 0.0
  %838 = vmatpush1.msra.mxu0 0.0
  %839 = vmatprep.subr.mxu0 0.0
  %840 = vmatpush1.msra.mxu0 0.0
  %841 = vmatprep.subr.mxu0 0.0
  %842 = vmatpush1.msra.mxu0 0.0
  %843 = vmatprep.subr.mxu0 0.0
  %844 = vmatpush1.msra.mxu0 0.0
  %845 = vmatprep.subr.mxu0 0.0
  %846 = vmatpush1.msra.mxu0 0.0
  %847 = vmatprep.subr.mxu0 0.0
  %848 = vmatpush1.msra.mxu0 0.0
  %849 = vmatprep.subr.mxu0 0.0
  %850 = vmatpush1.msra.mxu0 0.0
  %851 = vmatprep.subr.mxu0 0.0
  %852 = vmatpush1.msra.mxu0 %v831
  %853 = vmatprep.subr.mxu0 0.0
  %854 = vmatpush1.msra.mxu0 %v830
  %855 = vmatprep.subr.mxu0 0.0
  %856 = vmatpush1.msra.mxu0 %v829
  %857 = vmatprep.subr.mxu0 0.0
  %858 = vmatpush1.msra.mxu0 %v828
  %859 = vmatprep.subr.mxu0 0.0
  %860 = vmatpush1.msra.mxu0 %v827
  %861 = vmatprep.subr.mxu0 0.0
  %862 = vmatpush1.msra.mxu0 %v826
  %863 = vmatprep.subr.mxu0 0.0
  %864 = vmatpush1.msra.mxu0 %v825
  %865 = vmatprep.subr.mxu0 0.0
  %866 = vmatpush1.msra.mxu0 %v824
  %867 = vmatprep.subr.mxu0 0.0
  %868 = vmatpush2.msra.mxu0 0.0
  %869 = vmatprep.subr.mxu0 0.0
  %870 = vmatpush2.msra.mxu0 0.0
  %871 = vmatprep.subr.mxu0 0.0
  %872 = vmatpush2.msra.mxu0 0.0
  %873 = vmatprep.subr.mxu0 0.0
  %874 = vmatpush2.msra.mxu0 0.0
  %875 = vmatprep.subr.mxu0 0.0
  %876 = vmatpush2.msra.mxu0 0.0
  %877 = vmatprep.subr.mxu0 0.0
  %878 = vmatpush2.msra.mxu0 0.0
  %879 = vmatprep.subr.mxu0 0.0
  %880 = vmatpush2.msra.mxu0 0.0
  %881 = vmatprep.subr.mxu0 0.0
  %882 = vmatpush2.msra.mxu0 0.0
  %883 = vmatprep.subr.mxu0 0.0
  %884 = vmatpush2.msra.mxu0 0.0
  %885 = vmatprep.subr.mxu0 0.0
  %886 = vmatpush2.msra.mxu0 0.0
  %887 = vmatprep.subr.mxu0 0.0
  %888 = vmatpush2.msra.mxu0 0.0
  %889 = vmatprep.subr.mxu0 0.0
  %890 = vmatpush2.msra.mxu0 0.0
  %891 = vmatprep.subr.mxu0 0.0
  %892 = vmatpush2.msra.mxu0 0.0
  %893 = vmatprep.subr.mxu0 0.0
  %894 = vmatpush2.msra.mxu0 0.0
  %895 = vmatprep.subr.mxu0 0.0
  %896 = vmatpush2.msra.mxu0 0.0
  %897 = vmatprep.subr.mxu0 0.0
  %898 = vmatpush2.msra.mxu0 0.0
  %899 = vmatprep.mubr.f32.mxu0 0.0
  %900 = vmatmul.mubr.f32.gmra.mxu0 %v833
  %v901 = vpop.f32.mrf.mxu0
  %v902 = vadd.f32 0.0, %v901
  %v903 = vpop.f32.mrf.mxu0
  %904 = vdwg.mxu0
  %s905 = scalar_lea.vmem %s5, 256
  %v906 = vld [vmem:[%s905] sm:$0xff]
  %v907 = vld [vmem:[%s905 + $0x8] sm:$0xff]
  %v908 = vld [vmem:[%s905 + $0x10] sm:$0xff]
  %v909 = vld [vmem:[%s905 + $0x18] sm:$0xff]
  %v910 = vld [vmem:[%s905 + $0x20] sm:$0xff]
  %v911 = vld [vmem:[%s905 + $0x28] sm:$0xff]
  %v912 = vld [vmem:[%s905 + $0x30] sm:$0xff]
  %v913 = vld [vmem:[%s905 + $0x38] sm:$0xff]
  %914 = vmatprep.subr.mxu0 0.0
  %915 = vmatpush1.msra.mxu0 0.0
  %916 = vmatprep.subr.mxu0 0.0
  %917 = vmatpush1.msra.mxu0 0.0
  %918 = vmatprep.subr.mxu0 0.0
  %919 = vmatpush1.msra.mxu0 0.0
  %920 = vmatprep.subr.mxu0 0.0
  %921 = vmatpush1.msra.mxu0 0.0
  %922 = vmatprep.subr.mxu0 0.0
  %923 = vmatpush1.msra.mxu0 0.0
  %924 = vmatprep.subr.mxu0 0.0
  %925 = vmatpush1.msra.mxu0 0.0
  %926 = vmatprep.subr.mxu0 0.0
  %927 = vmatpush1.msra.mxu0 0.0
  %928 = vmatprep.subr.mxu0 0.0
  %929 = vmatpush1.msra.mxu0 0.0
  %930 = vmatprep.subr.mxu0 0.0
  %931 = vmatpush1.msra.mxu0 %v913
  %932 = vmatprep.subr.mxu0 0.0
  %933 = vmatpush1.msra.mxu0 %v912
  %934 = vmatprep.subr.mxu0 0.0
  %935 = vmatpush1.msra.mxu0 %v911
  %936 = vmatprep.subr.mxu0 0.0
  %937 = vmatpush1.msra.mxu0 %v910
  %938 = vmatprep.subr.mxu0 0.0
  %939 = vmatpush1.msra.mxu0 %v909
  %940 = vmatprep.subr.mxu0 0.0
  %941 = vmatpush1.msra.mxu0 %v908
  %942 = vmatprep.subr.mxu0 0.0
  %943 = vmatpush1.msra.mxu0 %v907
  %944 = vmatprep.subr.mxu0 0.0
  %945 = vmatpush1.msra.mxu0 %v906
  %946 = vmatprep.subr.mxu0 0.0
  %947 = vmatpush2.msra.mxu0 0.0
  %948 = vmatprep.subr.mxu0 0.0
  %949 = vmatpush2.msra.mxu0 0.0
  %950 = vmatprep.subr.mxu0 0.0
  %951 = vmatpush2.msra.mxu0 0.0
  %952 = vmatprep.subr.mxu0 0.0
  %953 = vmatpush2.msra.mxu0 0.0
  %954 = vmatprep.subr.mxu0 0.0
  %955 = vmatpush2.msra.mxu0 0.0
  %956 = vmatprep.subr.mxu0 0.0
  %957 = vmatpush2.msra.mxu0 0.0
  %958 = vmatprep.subr.mxu0 0.0
  %959 = vmatpush2.msra.mxu0 0.0
  %960 = vmatprep.subr.mxu0 0.0
  %961 = vmatpush2.msra.mxu0 0.0
  %962 = vmatprep.subr.mxu0 0.0
  %963 = vmatpush2.msra.mxu0 0.0
  %964 = vmatprep.subr.mxu0 0.0
  %965 = vmatpush2.msra.mxu0 0.0
  %966 = vmatprep.subr.mxu0 0.0
  %967 = vmatpush2.msra.mxu0 0.0
  %968 = vmatprep.subr.mxu0 0.0
  %969 = vmatpush2.msra.mxu0 0.0
  %970 = vmatprep.subr.mxu0 0.0
  %971 = vmatpush2.msra.mxu0 0.0
  %972 = vmatprep.subr.mxu0 0.0
  %973 = vmatpush2.msra.mxu0 0.0
  %974 = vmatprep.subr.mxu0 0.0
  %975 = vmatpush2.msra.mxu0 0.0
  %976 = vmatprep.subr.mxu0 0.0
  %977 = vmatpush2.msra.mxu0 0.0
  %978 = vmatprep.mubr.f32.mxu0 0.0
  %979 = vmatmul.mubr.f32.gmra.mxu0 %v672
  %v980 = vpop.f32.mrf.mxu0
  %v981 = vadd.f32 0.0, %v980
  %v982 = vpop.f32.mrf.mxu0
  %983 = vdwg.mxu0
  %s984 = scalar_lea.vmem %s5, 320
  %v985 = vld [vmem:[%s984] sm:$0xff]
  %v986 = vld [vmem:[%s984 + $0x8] sm:$0xff]
  %v987 = vld [vmem:[%s984 + $0x10] sm:$0xff]
  %v988 = vld [vmem:[%s984 + $0x18] sm:$0xff]
  %v989 = vld [vmem:[%s984 + $0x20] sm:$0xff]
  %v990 = vld [vmem:[%s984 + $0x28] sm:$0xff]
  %v991 = vld [vmem:[%s984 + $0x30] sm:$0xff]
  %v992 = vld [vmem:[%s984 + $0x38] sm:$0xff]
  %v994 = vsel %vm588, %v574, 0
  %996 = vmatprep.subr.mxu0 0.0
  %997 = vmatpush1.msra.mxu0 0.0
  %998 = vmatprep.subr.mxu0 0.0
  %999 = vmatpush1.msra.mxu0 0.0
  %1000 = vmatprep.subr.mxu0 0.0
  %1001 = vmatpush1.msra.mxu0 0.0
  %1002 = vmatprep.subr.mxu0 0.0
  %1003 = vmatpush1.msra.mxu0 0.0
  %1004 = vmatprep.subr.mxu0 0.0
  %1005 = vmatpush1.msra.mxu0 0.0
  %1006 = vmatprep.subr.mxu0 0.0
  %1007 = vmatpush1.msra.mxu0 0.0
  %1008 = vmatprep.subr.mxu0 0.0
  %1009 = vmatpush1.msra.mxu0 0.0
  %1010 = vmatprep.subr.mxu0 0.0
  %1011 = vmatpush1.msra.mxu0 0.0
  %1012 = vmatprep.subr.mxu0 0.0
  %1013 = vmatpush1.msra.mxu0 %v992
  %1014 = vmatprep.subr.mxu0 0.0
  %1015 = vmatpush1.msra.mxu0 %v991
  %1016 = vmatprep.subr.mxu0 0.0
  %1017 = vmatpush1.msra.mxu0 %v990
  %1018 = vmatprep.subr.mxu0 0.0
  %1019 = vmatpush1.msra.mxu0 %v989
  %1020 = vmatprep.subr.mxu0 0.0
  %1021 = vmatpush1.msra.mxu0 %v988
  %1022 = vmatprep.subr.mxu0 0.0
  %1023 = vmatpush1.msra.mxu0 %v987
  %1024 = vmatprep.subr.mxu0 0.0
  %1025 = vmatpush1.msra.mxu0 %v986
  %1026 = vmatprep.subr.mxu0 0.0
  %1027 = vmatpush1.msra.mxu0 %v985
  %1028 = vmatprep.subr.mxu0 0.0
  %1029 = vmatpush2.msra.mxu0 0.0
  %1030 = vmatprep.subr.mxu0 0.0
  %1031 = vmatpush2.msra.mxu0 0.0
  %1032 = vmatprep.subr.mxu0 0.0
  %1033 = vmatpush2.msra.mxu0 0.0
  %1034 = vmatprep.subr.mxu0 0.0
  %1035 = vmatpush2.msra.mxu0 0.0
  %1036 = vmatprep.subr.mxu0 0.0
  %1037 = vmatpush2.msra.mxu0 0.0
  %1038 = vmatprep.subr.mxu0 0.0
  %1039 = vmatpush2.msra.mxu0 0.0
  %1040 = vmatprep.subr.mxu0 0.0
  %1041 = vmatpush2.msra.mxu0 0.0
  %1042 = vmatprep.subr.mxu0 0.0
  %1043 = vmatpush2.msra.mxu0 0.0
  %1044 = vmatprep.subr.mxu0 0.0
  %1045 = vmatpush2.msra.mxu0 0.0
  %1046 = vmatprep.subr.mxu0 0.0
  %1047 = vmatpush2.msra.mxu0 0.0
  %1048 = vmatprep.subr.mxu0 0.0
  %1049 = vmatpush2.msra.mxu0 0.0
  %1050 = vmatprep.subr.mxu0 0.0
  %1051 = vmatpush2.msra.mxu0 0.0
  %1052 = vmatprep.subr.mxu0 0.0
  %1053 = vmatpush2.msra.mxu0 0.0
  %1054 = vmatprep.subr.mxu0 0.0
  %1055 = vmatpush2.msra.mxu0 0.0
  %1056 = vmatprep.subr.mxu0 0.0
  %1057 = vmatpush2.msra.mxu0 0.0
  %1058 = vmatprep.subr.mxu0 0.0
  %1059 = vmatpush2.msra.mxu0 0.0
  %1060 = vmatprep.mubr.f32.mxu0 0.0
  %1061 = vmatmul.mubr.f32.gmra.mxu0 %v994
  %v1062 = vpop.f32.mrf.mxu0
  %v1063 = vadd.f32 0.0, %v1062
  %v1064 = vpop.f32.mrf.mxu0
  %1065 = vdwg.mxu0
  %v1066 = vld [vmem:[%s6] sm:$0xf]
  %v1067 = vlaneseq
  %v1068 = vshrl.u32 %v1067, 7
  %v1069 = vsub.s32 0, %v1068
  %v1070 = vrot.slane %v1066, %v1069
  %v1071 = vlaneseq
  %v1072 = vshrl.u32 %v1071, 7
  %v1073 = vsub.s32 1, %v1072
  %v1074 = vrot.slane %v1066, %v1073
  %v1075 = vlaneseq
  %v1076 = vshrl.u32 %v1075, 7
  %v1077 = vsub.s32 2, %v1076
  %v1078 = vrot.slane %v1066, %v1077
  %v1079 = vlaneseq
  %v1080 = vshrl.u32 %v1079, 7
  %v1081 = vsub.s32 3, %v1080
  %v1082 = vrot.slane %v1066, %v1081
  %vm1083 = vcmask 392192
  %v1085 = vsel %vm1083, %v576, 0
  %v1088 = vsel %vm1083, %v577, 0
  %v1091 = vsel %vm1083, %v578, 0
  %v1094 = vsel %vm1083, %v579, 0
  %1096 = vmatprep.subr.mxu0 0.0
  %1097 = vmatpush1.msra.mxu0 0.0
  %1098 = vmatprep.subr.mxu0 0.0
  %1099 = vmatpush1.msra.mxu0 0.0
  %1100 = vmatprep.subr.mxu0 0.0
  %1101 = vmatpush1.msra.mxu0 0.0
  %1102 = vmatprep.subr.mxu0 0.0
  %1103 = vmatpush1.msra.mxu0 0.0
  %1104 = vmatprep.subr.mxu0 0.0
  %1105 = vmatpush1.msra.mxu0 0.0
  %1106 = vmatprep.subr.mxu0 0.0
  %1107 = vmatpush1.msra.mxu0 0.0
  %1108 = vmatprep.subr.mxu0 0.0
  %1109 = vmatpush1.msra.mxu0 0.0
  %1110 = vmatprep.subr.mxu0 0.0
  %1111 = vmatpush1.msra.mxu0 0.0
  %1112 = vmatprep.subr.mxu0 0.0
  %1113 = vmatpush1.msra.mxu0 0.0
  %1114 = vmatprep.subr.mxu0 0.0
  %1115 = vmatpush1.msra.mxu0 0.0
  %1116 = vmatprep.subr.mxu0 0.0
  %1117 = vmatpush1.msra.mxu0 %v1063
  %1118 = vmatprep.subr.mxu0 0.0
  %1119 = vmatpush1.msra.mxu0 %v981
  %1120 = vmatprep.subr.mxu0 0.0
  %1121 = vmatpush1.msra.mxu0 %v902
  %1122 = vmatprep.subr.mxu0 0.0
  %1123 = vmatpush1.msra.mxu0 %v820
  %1124 = vmatprep.subr.mxu0 0.0
  %1125 = vmatpush1.msra.mxu0 %v741
  %1126 = vmatprep.subr.mxu0 0.0
  %1127 = vmatpush1.msra.mxu0 %v659
  %1128 = vmatprep.subr.mxu0 0.0
  %1129 = vmatpush2.msra.mxu0 0.0
  %1130 = vmatprep.subr.mxu0 0.0
  %1131 = vmatpush2.msra.mxu0 0.0
  %1132 = vmatprep.subr.mxu0 0.0
  %1133 = vmatpush2.msra.mxu0 0.0
  %1134 = vmatprep.subr.mxu0 0.0
  %1135 = vmatpush2.msra.mxu0 0.0
  %1136 = vmatprep.subr.mxu0 0.0
  %1137 = vmatpush2.msra.mxu0 0.0
  %1138 = vmatprep.subr.mxu0 0.0
  %1139 = vmatpush2.msra.mxu0 0.0
  %1140 = vmatprep.subr.mxu0 0.0
  %1141 = vmatpush2.msra.mxu0 0.0
  %1142 = vmatprep.subr.mxu0 0.0
  %1143 = vmatpush2.msra.mxu0 0.0
  %1144 = vmatprep.subr.mxu0 0.0
  %1145 = vmatpush2.msra.mxu0 0.0
  %1146 = vmatprep.subr.mxu0 0.0
  %1147 = vmatpush2.msra.mxu0 0.0
  %1148 = vmatprep.subr.mxu0 0.0
  %1149 = vmatpush2.msra.mxu0 0.0
  %1150 = vmatprep.subr.mxu0 0.0
  %1151 = vmatpush2.msra.mxu0 0.0
  %1152 = vmatprep.subr.mxu0 0.0
  %1153 = vmatpush2.msra.mxu0 0.0
  %1154 = vmatprep.subr.mxu0 0.0
  %1155 = vmatpush2.msra.mxu0 0.0
  %1156 = vmatprep.subr.mxu0 0.0
  %1157 = vmatpush2.msra.mxu0 0.0
  %1158 = vmatprep.subr.mxu0 0.0
  %1159 = vmatpush2.msra.mxu0 0.0
  %1160 = vmatprep.mubr.f32.mxu0 0.0
  %1161 = vmatmul.mubr.f32.gmra.mxu0 %v1085
  %v1162 = vpop.f32.mrf.mxu0
  %v1163 = vadd.f32 %v1070, %v1162
  %v1164 = vpop.f32.mrf.mxu0
  %1165 = vmatprep.mubr.f32.mxu0 0.0
  %1166 = vmatmul.mubr.f32.gmra.mxu0 %v1088
  %v1167 = vpop.f32.mrf.mxu0
  %v1168 = vadd.f32 %v1074, %v1167
  %v1169 = vpop.f32.mrf.mxu0
  %1170 = vmatprep.mubr.f32.mxu0 0.0
  %1171 = vmatmul.mubr.f32.gmra.mxu0 %v1091
  %v1172 = vpop.f32.mrf.mxu0
  %v1173 = vadd.f32 %v1078, %v1172
  %v1174 = vpop.f32.mrf.mxu0
  %1175 = vmatprep.mubr.f32.mxu0 0.0
  %1176 = vmatmul.mubr.f32.gmra.mxu0 %v1094
  %v1177 = vpop.f32.mrf.mxu0
  %v1178 = vadd.f32 %v1082, %v1177
  %v1179 = vpop.f32.mrf.mxu0
  %1180 = vdwg.mxu0
  %v1181 = vmax.f32 %v1163, 0.0
  %v1182 = vmax.f32 %v1168, 0.0
  %v1183 = vmax.f32 %v1173, 0.0
  %v1184 = vmax.f32 %v1178, 0.0
  %v1185 = vld [vmem:[%s7] sm:$0xff]
  %v1186 = vld [vmem:[%s7 + $0x8] sm:$0xff]
  %v1187 = vld [vmem:[%s7 + $0x10] sm:$0xff]
  %v1188 = vld [vmem:[%s7 + $0x18] sm:$0xff]
  %v1189 = vld [vmem:[%s7 + $0x20] sm:$0xff]
  %v1190 = vld [vmem:[%s7 + $0x28] sm:$0xff]
  %v1191 = vld [vmem:[%s7 + $0x30] sm:$0xff]
  %v1192 = vld [vmem:[%s7 + $0x38] sm:$0xff]
  %v1194 = vsel %vm588, %v1181, 0
  %1196 = vmatprep.subr.mxu0 0.0
  %1197 = vmatpush1.msra.mxu0 0.0
  %1198 = vmatprep.subr.mxu0 0.0
  %1199 = vmatpush1.msra.mxu0 0.0
  %1200 = vmatprep.subr.mxu0 0.0
  %1201 = vmatpush1.msra.mxu0 0.0
  %1202 = vmatprep.subr.mxu0 0.0
  %1203 = vmatpush1.msra.mxu0 0.0
  %1204 = vmatprep.subr.mxu0 0.0
  %1205 = vmatpush1.msra.mxu0 0.0
  %1206 = vmatprep.subr.mxu0 0.0
  %1207 = vmatpush1.msra.mxu0 0.0
  %1208 = vmatprep.subr.mxu0 0.0
  %1209 = vmatpush1.msra.mxu0 0.0
  %1210 = vmatprep.subr.mxu0 0.0
  %1211 = vmatpush1.msra.mxu0 0.0
  %1212 = vmatprep.subr.mxu0 0.0
  %1213 = vmatpush1.msra.mxu0 %v1192
  %1214 = vmatprep.subr.mxu0 0.0
  %1215 = vmatpush1.msra.mxu0 %v1191
  %1216 = vmatprep.subr.mxu0 0.0
  %1217 = vmatpush1.msra.mxu0 %v1190
  %1218 = vmatprep.subr.mxu0 0.0
  %1219 = vmatpush1.msra.mxu0 %v1189
  %1220 = vmatprep.subr.mxu0 0.0
  %1221 = vmatpush1.msra.mxu0 %v1188
  %1222 = vmatprep.subr.mxu0 0.0
  %1223 = vmatpush1.msra.mxu0 %v1187
  %1224 = vmatprep.subr.mxu0 0.0
  %1225 = vmatpush1.msra.mxu0 %v1186
  %1226 = vmatprep.subr.mxu0 0.0
  %1227 = vmatpush1.msra.mxu0 %v1185
  %1228 = vmatprep.subr.mxu0 0.0
  %1229 = vmatpush2.msra.mxu0 0.0
  %1230 = vmatprep.subr.mxu0 0.0
  %1231 = vmatpush2.msra.mxu0 0.0
  %1232 = vmatprep.subr.mxu0 0.0
  %1233 = vmatpush2.msra.mxu0 0.0
  %1234 = vmatprep.subr.mxu0 0.0
  %1235 = vmatpush2.msra.mxu0 0.0
  %1236 = vmatprep.subr.mxu0 0.0
  %1237 = vmatpush2.msra.mxu0 0.0
  %1238 = vmatprep.subr.mxu0 0.0
  %1239 = vmatpush2.msra.mxu0 0.0
  %1240 = vmatprep.subr.mxu0 0.0
  %1241 = vmatpush2.msra.mxu0 0.0
  %1242 = vmatprep.subr.mxu0 0.0
  %1243 = vmatpush2.msra.mxu0 0.0
  %1244 = vmatprep.subr.mxu0 0.0
  %1245 = vmatpush2.msra.mxu0 0.0
  %1246 = vmatprep.subr.mxu0 0.0
  %1247 = vmatpush2.msra.mxu0 0.0
  %1248 = vmatprep.subr.mxu0 0.0
  %1249 = vmatpush2.msra.mxu0 0.0
  %1250 = vmatprep.subr.mxu0 0.0
  %1251 = vmatpush2.msra.mxu0 0.0
  %1252 = vmatprep.subr.mxu0 0.0
  %1253 = vmatpush2.msra.mxu0 0.0
  %1254 = vmatprep.subr.mxu0 0.0
  %1255 = vmatpush2.msra.mxu0 0.0
  %1256 = vmatprep.subr.mxu0 0.0
  %1257 = vmatpush2.msra.mxu0 0.0
  %1258 = vmatprep.subr.mxu0 0.0
  %1259 = vmatpush2.msra.mxu0 0.0
  %1260 = vmatprep.mubr.f32.mxu0 0.0
  %1261 = vmatmul.mubr.f32.gmra.mxu0 %v1194
  %v1262 = vpop.f32.mrf.mxu0
  %v1263 = vadd.f32 0.0, %v1262
  %v1264 = vpop.f32.mrf.mxu0
  %1265 = vdwg.mxu0
  %s1266 = scalar_lea.vmem %s7, 64
  %v1267 = vld [vmem:[%s1266] sm:$0xff]
  %v1268 = vld [vmem:[%s1266 + $0x8] sm:$0xff]
  %v1269 = vld [vmem:[%s1266 + $0x10] sm:$0xff]
  %v1270 = vld [vmem:[%s1266 + $0x18] sm:$0xff]
  %v1271 = vld [vmem:[%s1266 + $0x20] sm:$0xff]
  %v1272 = vld [vmem:[%s1266 + $0x28] sm:$0xff]
  %v1273 = vld [vmem:[%s1266 + $0x30] sm:$0xff]
  %v1274 = vld [vmem:[%s1266 + $0x38] sm:$0xff]
  %v1276 = vsel %vm588, %v1182, 0
  %1278 = vmatprep.subr.mxu0 0.0
  %1279 = vmatpush1.msra.mxu0 0.0
  %1280 = vmatprep.subr.mxu0 0.0
  %1281 = vmatpush1.msra.mxu0 0.0
  %1282 = vmatprep.subr.mxu0 0.0
  %1283 = vmatpush1.msra.mxu0 0.0
  %1284 = vmatprep.subr.mxu0 0.0
  %1285 = vmatpush1.msra.mxu0 0.0
  %1286 = vmatprep.subr.mxu0 0.0
  %1287 = vmatpush1.msra.mxu0 0.0
  %1288 = vmatprep.subr.mxu0 0.0
  %1289 = vmatpush1.msra.mxu0 0.0
  %1290 = vmatprep.subr.mxu0 0.0
  %1291 = vmatpush1.msra.mxu0 0.0
  %1292 = vmatprep.subr.mxu0 0.0
  %1293 = vmatpush1.msra.mxu0 0.0
  %1294 = vmatprep.subr.mxu0 0.0
  %1295 = vmatpush1.msra.mxu0 %v1274
  %1296 = vmatprep.subr.mxu0 0.0
  %1297 = vmatpush1.msra.mxu0 %v1273
  %1298 = vmatprep.subr.mxu0 0.0
  %1299 = vmatpush1.msra.mxu0 %v1272
  %1300 = vmatprep.subr.mxu0 0.0
  %1301 = vmatpush1.msra.mxu0 %v1271
  %1302 = vmatprep.subr.mxu0 0.0
  %1303 = vmatpush1.msra.mxu0 %v1270
  %1304 = vmatprep.subr.mxu0 0.0
  %1305 = vmatpush1.msra.mxu0 %v1269
  %1306 = vmatprep.subr.mxu0 0.0
  %1307 = vmatpush1.msra.mxu0 %v1268
  %1308 = vmatprep.subr.mxu0 0.0
  %1309 = vmatpush1.msra.mxu0 %v1267
  %1310 = vmatprep.subr.mxu0 0.0
  %1311 = vmatpush2.msra.mxu0 0.0
  %1312 = vmatprep.subr.mxu0 0.0
  %1313 = vmatpush2.msra.mxu0 0.0
  %1314 = vmatprep.subr.mxu0 0.0
  %1315 = vmatpush2.msra.mxu0 0.0
  %1316 = vmatprep.subr.mxu0 0.0
  %1317 = vmatpush2.msra.mxu0 0.0
  %1318 = vmatprep.subr.mxu0 0.0
  %1319 = vmatpush2.msra.mxu0 0.0
  %1320 = vmatprep.subr.mxu0 0.0
  %1321 = vmatpush2.msra.mxu0 0.0
  %1322 = vmatprep.subr.mxu0 0.0
  %1323 = vmatpush2.msra.mxu0 0.0
  %1324 = vmatprep.subr.mxu0 0.0
  %1325 = vmatpush2.msra.mxu0 0.0
  %1326 = vmatprep.subr.mxu0 0.0
  %1327 = vmatpush2.msra.mxu0 0.0
  %1328 = vmatprep.subr.mxu0 0.0
  %1329 = vmatpush2.msra.mxu0 0.0
  %1330 = vmatprep.subr.mxu0 0.0
  %1331 = vmatpush2.msra.mxu0 0.0
  %1332 = vmatprep.subr.mxu0 0.0
  %1333 = vmatpush2.msra.mxu0 0.0
  %1334 = vmatprep.subr.mxu0 0.0
  %1335 = vmatpush2.msra.mxu0 0.0
  %1336 = vmatprep.subr.mxu0 0.0
  %1337 = vmatpush2.msra.mxu0 0.0
  %1338 = vmatprep.subr.mxu0 0.0
  %1339 = vmatpush2.msra.mxu0 0.0
  %1340 = vmatprep.subr.mxu0 0.0
  %1341 = vmatpush2.msra.mxu0 0.0
  %1342 = vmatprep.mubr.f32.mxu0 0.0
  %1343 = vmatmul.mubr.f32.gmra.mxu0 %v1276
  %v1344 = vpop.f32.mrf.mxu0
  %v1345 = vadd.f32 0.0, %v1344
  %v1346 = vpop.f32.mrf.mxu0
  %1347 = vdwg.mxu0
  %s1348 = scalar_lea.vmem %s7, 128
  %v1349 = vld [vmem:[%s1348] sm:$0xff]
  %v1350 = vld [vmem:[%s1348 + $0x8] sm:$0xff]
  %v1351 = vld [vmem:[%s1348 + $0x10] sm:$0xff]
  %v1352 = vld [vmem:[%s1348 + $0x18] sm:$0xff]
  %v1353 = vld [vmem:[%s1348 + $0x20] sm:$0xff]
  %v1354 = vld [vmem:[%s1348 + $0x28] sm:$0xff]
  %v1355 = vld [vmem:[%s1348 + $0x30] sm:$0xff]
  %v1356 = vld [vmem:[%s1348 + $0x38] sm:$0xff]
  %1357 = vmatprep.subr.mxu0 0.0
  %1358 = vmatpush1.msra.mxu0 0.0
  %1359 = vmatprep.subr.mxu0 0.0
  %1360 = vmatpush1.msra.mxu0 0.0
  %1361 = vmatprep.subr.mxu0 0.0
  %1362 = vmatpush1.msra.mxu0 0.0
  %1363 = vmatprep.subr.mxu0 0.0
  %1364 = vmatpush1.msra.mxu0 0.0
  %1365 = vmatprep.subr.mxu0 0.0
  %1366 = vmatpush1.msra.mxu0 0.0
  %1367 = vmatprep.subr.mxu0 0.0
  %1368 = vmatpush1.msra.mxu0 0.0
  %1369 = vmatprep.subr.mxu0 0.0
  %1370 = vmatpush1.msra.mxu0 0.0
  %1371 = vmatprep.subr.mxu0 0.0
  %1372 = vmatpush1.msra.mxu0 0.0
  %1373 = vmatprep.subr.mxu0 0.0
  %1374 = vmatpush1.msra.mxu0 %v1356
  %1375 = vmatprep.subr.mxu0 0.0
  %1376 = vmatpush1.msra.mxu0 %v1355
  %1377 = vmatprep.subr.mxu0 0.0
  %1378 = vmatpush1.msra.mxu0 %v1354
  %1379 = vmatprep.subr.mxu0 0.0
  %1380 = vmatpush1.msra.mxu0 %v1353
  %1381 = vmatprep.subr.mxu0 0.0
  %1382 = vmatpush1.msra.mxu0 %v1352
  %1383 = vmatprep.subr.mxu0 0.0
  %1384 = vmatpush1.msra.mxu0 %v1351
  %1385 = vmatprep.subr.mxu0 0.0
  %1386 = vmatpush1.msra.mxu0 %v1350
  %1387 = vmatprep.subr.mxu0 0.0
  %1388 = vmatpush1.msra.mxu0 %v1349
  %1389 = vmatprep.subr.mxu0 0.0
  %1390 = vmatpush2.msra.mxu0 0.0
  %1391 = vmatprep.subr.mxu0 0.0
  %1392 = vmatpush2.msra.mxu0 0.0
  %1393 = vmatprep.subr.mxu0 0.0
  %1394 = vmatpush2.msra.mxu0 0.0
  %1395 = vmatprep.subr.mxu0 0.0
  %1396 = vmatpush2.msra.mxu0 0.0
  %1397 = vmatprep.subr.mxu0 0.0
  %1398 = vmatpush2.msra.mxu0 0.0
  %1399 = vmatprep.subr.mxu0 0.0
  %1400 = vmatpush2.msra.mxu0 0.0
  %1401 = vmatprep.subr.mxu0 0.0
  %1402 = vmatpush2.msra.mxu0 0.0
  %1403 = vmatprep.subr.mxu0 0.0
  %1404 = vmatpush2.msra.mxu0 0.0
  %1405 = vmatprep.subr.mxu0 0.0
  %1406 = vmatpush2.msra.mxu0 0.0
  %1407 = vmatprep.subr.mxu0 0.0
  %1408 = vmatpush2.msra.mxu0 0.0
  %1409 = vmatprep.subr.mxu0 0.0
  %1410 = vmatpush2.msra.mxu0 0.0
  %1411 = vmatprep.subr.mxu0 0.0
  %1412 = vmatpush2.msra.mxu0 0.0
  %1413 = vmatprep.subr.mxu0 0.0
  %1414 = vmatpush2.msra.mxu0 0.0
  %1415 = vmatprep.subr.mxu0 0.0
  %1416 = vmatpush2.msra.mxu0 0.0
  %1417 = vmatprep.subr.mxu0 0.0
  %1418 = vmatpush2.msra.mxu0 0.0
  %1419 = vmatprep.subr.mxu0 0.0
  %1420 = vmatpush2.msra.mxu0 0.0
  %1421 = vmatprep.mubr.f32.mxu0 0.0
  %1422 = vmatmul.mubr.f32.gmra.mxu0 %v1276
  %v1423 = vpop.f32.mrf.mxu0
  %v1424 = vadd.f32 0.0, %v1423
  %v1425 = vpop.f32.mrf.mxu0
  %1426 = vdwg.mxu0
  %s1427 = scalar_lea.vmem %s7, 192
  %v1428 = vld [vmem:[%s1427] sm:$0xff]
  %v1429 = vld [vmem:[%s1427 + $0x8] sm:$0xff]
  %v1430 = vld [vmem:[%s1427 + $0x10] sm:$0xff]
  %v1431 = vld [vmem:[%s1427 + $0x18] sm:$0xff]
  %v1432 = vld [vmem:[%s1427 + $0x20] sm:$0xff]
  %v1433 = vld [vmem:[%s1427 + $0x28] sm:$0xff]
  %v1434 = vld [vmem:[%s1427 + $0x30] sm:$0xff]
  %v1435 = vld [vmem:[%s1427 + $0x38] sm:$0xff]
  %v1437 = vsel %vm588, %v1184, 0
  %1439 = vmatprep.subr.mxu0 0.0
  %1440 = vmatpush1.msra.mxu0 0.0
  %1441 = vmatprep.subr.mxu0 0.0
  %1442 = vmatpush1.msra.mxu0 0.0
  %1443 = vmatprep.subr.mxu0 0.0
  %1444 = vmatpush1.msra.mxu0 0.0
  %1445 = vmatprep.subr.mxu0 0.0
  %1446 = vmatpush1.msra.mxu0 0.0
  %1447 = vmatprep.subr.mxu0 0.0
  %1448 = vmatpush1.msra.mxu0 0.0
  %1449 = vmatprep.subr.mxu0 0.0
  %1450 = vmatpush1.msra.mxu0 0.0
  %1451 = vmatprep.subr.mxu0 0.0
  %1452 = vmatpush1.msra.mxu0 0.0
  %1453 = vmatprep.subr.mxu0 0.0
  %1454 = vmatpush1.msra.mxu0 0.0
  %1455 = vmatprep.subr.mxu0 0.0
  %1456 = vmatpush1.msra.mxu0 %v1435
  %1457 = vmatprep.subr.mxu0 0.0
  %1458 = vmatpush1.msra.mxu0 %v1434
  %1459 = vmatprep.subr.mxu0 0.0
  %1460 = vmatpush1.msra.mxu0 %v1433
  %1461 = vmatprep.subr.mxu0 0.0
  %1462 = vmatpush1.msra.mxu0 %v1432
  %1463 = vmatprep.subr.mxu0 0.0
  %1464 = vmatpush1.msra.mxu0 %v1431
  %1465 = vmatprep.subr.mxu0 0.0
  %1466 = vmatpush1.msra.mxu0 %v1430
  %1467 = vmatprep.subr.mxu0 0.0
  %1468 = vmatpush1.msra.mxu0 %v1429
  %1469 = vmatprep.subr.mxu0 0.0
  %1470 = vmatpush1.msra.mxu0 %v1428
  %1471 = vmatprep.subr.mxu0 0.0
  %1472 = vmatpush2.msra.mxu0 0.0
  %1473 = vmatprep.subr.mxu0 0.0
  %1474 = vmatpush2.msra.mxu0 0.0
  %1475 = vmatprep.subr.mxu0 0.0
  %1476 = vmatpush2.msra.mxu0 0.0
  %1477 = vmatprep.subr.mxu0 0.0
  %1478 = vmatpush2.msra.mxu0 0.0
  %1479 = vmatprep.subr.mxu0 0.0
  %1480 = vmatpush2.msra.mxu0 0.0
  %1481 = vmatprep.subr.mxu0 0.0
  %1482 = vmatpush2.msra.mxu0 0.0
  %1483 = vmatprep.subr.mxu0 0.0
  %1484 = vmatpush2.msra.mxu0 0.0
  %1485 = vmatprep.subr.mxu0 0.0
  %1486 = vmatpush2.msra.mxu0 0.0
  %1487 = vmatprep.subr.mxu0 0.0
  %1488 = vmatpush2.msra.mxu0 0.0
  %1489 = vmatprep.subr.mxu0 0.0
  %1490 = vmatpush2.msra.mxu0 0.0
  %1491 = vmatprep.subr.mxu0 0.0
  %1492 = vmatpush2.msra.mxu0 0.0
  %1493 = vmatprep.subr.mxu0 0.0
  %1494 = vmatpush2.msra.mxu0 0.0
  %1495 = vmatprep.subr.mxu0 0.0
  %1496 = vmatpush2.msra.mxu0 0.0
  %1497 = vmatprep.subr.mxu0 0.0
  %1498 = vmatpush2.msra.mxu0 0.0
  %1499 = vmatprep.subr.mxu0 0.0
  %1500 = vmatpush2.msra.mxu0 0.0
  %1501 = vmatprep.subr.mxu0 0.0
  %1502 = vmatpush2.msra.mxu0 0.0
  %1503 = vmatprep.mubr.f32.mxu0 0.0
  %1504 = vmatmul.mubr.f32.gmra.mxu0 %v1437
  %v1505 = vpop.f32.mrf.mxu0
  %v1506 = vadd.f32 0.0, %v1505
  %v1507 = vpop.f32.mrf.mxu0
  %1508 = vdwg.mxu0
  %s1509 = scalar_lea.vmem %s7, 256
  %v1510 = vld [vmem:[%s1509] sm:$0xff]
  %v1511 = vld [vmem:[%s1509 + $0x8] sm:$0xff]
  %v1512 = vld [vmem:[%s1509 + $0x10] sm:$0xff]
  %v1513 = vld [vmem:[%s1509 + $0x18] sm:$0xff]
  %v1514 = vld [vmem:[%s1509 + $0x20] sm:$0xff]
  %v1515 = vld [vmem:[%s1509 + $0x28] sm:$0xff]
  %v1516 = vld [vmem:[%s1509 + $0x30] sm:$0xff]
  %v1517 = vld [vmem:[%s1509 + $0x38] sm:$0xff]
  %1518 = vmatprep.subr.mxu0 0.0
  %1519 = vmatpush1.msra.mxu0 0.0
  %1520 = vmatprep.subr.mxu0 0.0
  %1521 = vmatpush1.msra.mxu0 0.0
  %1522 = vmatprep.subr.mxu0 0.0
  %1523 = vmatpush1.msra.mxu0 0.0
  %1524 = vmatprep.subr.mxu0 0.0
  %1525 = vmatpush1.msra.mxu0 0.0
  %1526 = vmatprep.subr.mxu0 0.0
  %1527 = vmatpush1.msra.mxu0 0.0
  %1528 = vmatprep.subr.mxu0 0.0
  %1529 = vmatpush1.msra.mxu0 0.0
  %1530 = vmatprep.subr.mxu0 0.0
  %1531 = vmatpush1.msra.mxu0 0.0
  %1532 = vmatprep.subr.mxu0 0.0
  %1533 = vmatpush1.msra.mxu0 0.0
  %1534 = vmatprep.subr.mxu0 0.0
  %1535 = vmatpush1.msra.mxu0 %v1517
  %1536 = vmatprep.subr.mxu0 0.0
  %1537 = vmatpush1.msra.mxu0 %v1516
  %1538 = vmatprep.subr.mxu0 0.0
  %1539 = vmatpush1.msra.mxu0 %v1515
  %1540 = vmatprep.subr.mxu0 0.0
  %1541 = vmatpush1.msra.mxu0 %v1514
  %1542 = vmatprep.subr.mxu0 0.0
  %1543 = vmatpush1.msra.mxu0 %v1513
  %1544 = vmatprep.subr.mxu0 0.0
  %1545 = vmatpush1.msra.mxu0 %v1512
  %1546 = vmatprep.subr.mxu0 0.0
  %1547 = vmatpush1.msra.mxu0 %v1511
  %1548 = vmatprep.subr.mxu0 0.0
  %1549 = vmatpush1.msra.mxu0 %v1510
  %1550 = vmatprep.subr.mxu0 0.0
  %1551 = vmatpush2.msra.mxu0 0.0
  %1552 = vmatprep.subr.mxu0 0.0
  %1553 = vmatpush2.msra.mxu0 0.0
  %1554 = vmatprep.subr.mxu0 0.0
  %1555 = vmatpush2.msra.mxu0 0.0
  %1556 = vmatprep.subr.mxu0 0.0
  %1557 = vmatpush2.msra.mxu0 0.0
  %1558 = vmatprep.subr.mxu0 0.0
  %1559 = vmatpush2.msra.mxu0 0.0
  %1560 = vmatprep.subr.mxu0 0.0
  %1561 = vmatpush2.msra.mxu0 0.0
  %1562 = vmatprep.subr.mxu0 0.0
  %1563 = vmatpush2.msra.mxu0 0.0
  %1564 = vmatprep.subr.mxu0 0.0
  %1565 = vmatpush2.msra.mxu0 0.0
  %1566 = vmatprep.subr.mxu0 0.0
  %1567 = vmatpush2.msra.mxu0 0.0
  %1568 = vmatprep.subr.mxu0 0.0
  %1569 = vmatpush2.msra.mxu0 0.0
  %1570 = vmatprep.subr.mxu0 0.0
  %1571 = vmatpush2.msra.mxu0 0.0
  %1572 = vmatprep.subr.mxu0 0.0
  %1573 = vmatpush2.msra.mxu0 0.0
  %1574 = vmatprep.subr.mxu0 0.0
  %1575 = vmatpush2.msra.mxu0 0.0
  %1576 = vmatprep.subr.mxu0 0.0
  %1577 = vmatpush2.msra.mxu0 0.0
  %1578 = vmatprep.subr.mxu0 0.0
  %1579 = vmatpush2.msra.mxu0 0.0
  %1580 = vmatprep.subr.mxu0 0.0
  %1581 = vmatpush2.msra.mxu0 0.0
  %1582 = vmatprep.mubr.f32.mxu0 0.0
  %1583 = vmatmul.mubr.f32.gmra.mxu0 %v1276
  %v1584 = vpop.f32.mrf.mxu0
  %v1585 = vadd.f32 0.0, %v1584
  %v1586 = vpop.f32.mrf.mxu0
  %1587 = vdwg.mxu0
  %s1588 = scalar_lea.vmem %s7, 320
  %v1589 = vld [vmem:[%s1588] sm:$0xff]
  %v1590 = vld [vmem:[%s1588 + $0x8] sm:$0xff]
  %v1591 = vld [vmem:[%s1588 + $0x10] sm:$0xff]
  %v1592 = vld [vmem:[%s1588 + $0x18] sm:$0xff]
  %v1593 = vld [vmem:[%s1588 + $0x20] sm:$0xff]
  %v1594 = vld [vmem:[%s1588 + $0x28] sm:$0xff]
  %v1595 = vld [vmem:[%s1588 + $0x30] sm:$0xff]
  %v1596 = vld [vmem:[%s1588 + $0x38] sm:$0xff]
  %v1598 = vsel %vm588, %v1183, 0
  %1600 = vmatprep.subr.mxu0 0.0
  %1601 = vmatpush1.msra.mxu0 0.0
  %1602 = vmatprep.subr.mxu0 0.0
  %1603 = vmatpush1.msra.mxu0 0.0
  %1604 = vmatprep.subr.mxu0 0.0
  %1605 = vmatpush1.msra.mxu0 0.0
  %1606 = vmatprep.subr.mxu0 0.0
  %1607 = vmatpush1.msra.mxu0 0.0
  %1608 = vmatprep.subr.mxu0 0.0
  %1609 = vmatpush1.msra.mxu0 0.0
  %1610 = vmatprep.subr.mxu0 0.0
  %1611 = vmatpush1.msra.mxu0 0.0
  %1612 = vmatprep.subr.mxu0 0.0
  %1613 = vmatpush1.msra.mxu0 0.0
  %1614 = vmatprep.subr.mxu0 0.0
  %1615 = vmatpush1.msra.mxu0 0.0
  %1616 = vmatprep.subr.mxu0 0.0
  %1617 = vmatpush1.msra.mxu0 %v1596
  %1618 = vmatprep.subr.mxu0 0.0
  %1619 = vmatpush1.msra.mxu0 %v1595
  %1620 = vmatprep.subr.mxu0 0.0
  %1621 = vmatpush1.msra.mxu0 %v1594
  %1622 = vmatprep.subr.mxu0 0.0
  %1623 = vmatpush1.msra.mxu0 %v1593
  %1624 = vmatprep.subr.mxu0 0.0
  %1625 = vmatpush1.msra.mxu0 %v1592
  %1626 = vmatprep.subr.mxu0 0.0
  %1627 = vmatpush1.msra.mxu0 %v1591
  %1628 = vmatprep.subr.mxu0 0.0
  %1629 = vmatpush1.msra.mxu0 %v1590
  %1630 = vmatprep.subr.mxu0 0.0
  %1631 = vmatpush1.msra.mxu0 %v1589
  %1632 = vmatprep.subr.mxu0 0.0
  %1633 = vmatpush2.msra.mxu0 0.0
  %1634 = vmatprep.subr.mxu0 0.0
  %1635 = vmatpush2.msra.mxu0 0.0
  %1636 = vmatprep.subr.mxu0 0.0
  %1637 = vmatpush2.msra.mxu0 0.0
  %1638 = vmatprep.subr.mxu0 0.0
  %1639 = vmatpush2.msra.mxu0 0.0
  %1640 = vmatprep.subr.mxu0 0.0
  %1641 = vmatpush2.msra.mxu0 0.0
  %1642 = vmatprep.subr.mxu0 0.0
  %1643 = vmatpush2.msra.mxu0 0.0
  %1644 = vmatprep.subr.mxu0 0.0
  %1645 = vmatpush2.msra.mxu0 0.0
  %1646 = vmatprep.subr.mxu0 0.0
  %1647 = vmatpush2.msra.mxu0 0.0
  %1648 = vmatprep.subr.mxu0 0.0
  %1649 = vmatpush2.msra.mxu0 0.0
  %1650 = vmatprep.subr.mxu0 0.0
  %1651 = vmatpush2.msra.mxu0 0.0
  %1652 = vmatprep.subr.mxu0 0.0
  %1653 = vmatpush2.msra.mxu0 0.0
  %1654 = vmatprep.subr.mxu0 0.0
  %1655 = vmatpush2.msra.mxu0 0.0
  %1656 = vmatprep.subr.mxu0 0.0
  %1657 = vmatpush2.msra.mxu0 0.0
  %1658 = vmatprep.subr.mxu0 0.0
  %1659 = vmatpush2.msra.mxu0 0.0
  %1660 = vmatprep.subr.mxu0 0.0
  %1661 = vmatpush2.msra.mxu0 0.0
  %1662 = vmatprep.subr.mxu0 0.0
  %1663 = vmatpush2.msra.mxu0 0.0
  %1664 = vmatprep.mubr.f32.mxu0 0.0
  %1665 = vmatmul.mubr.f32.gmra.mxu0 %v1598
  %v1666 = vpop.f32.mrf.mxu0
  %v1667 = vadd.f32 0.0, %v1666
  %v1668 = vpop.f32.mrf.mxu0
  %1669 = vdwg.mxu0
  %v1670 = vld [vmem:[%s8] sm:$0xf]
  %v1671 = vlaneseq
  %v1672 = vshrl.u32 %v1671, 7
  %v1673 = vsub.s32 0, %v1672
  %v1674 = vrot.slane %v1670, %v1673
  %v1675 = vlaneseq
  %v1676 = vshrl.u32 %v1675, 7
  %v1677 = vsub.s32 1, %v1676
  %v1678 = vrot.slane %v1670, %v1677
  %v1679 = vlaneseq
  %v1680 = vshrl.u32 %v1679, 7
  %v1681 = vsub.s32 2, %v1680
  %v1682 = vrot.slane %v1670, %v1681
  %v1683 = vlaneseq
  %v1684 = vshrl.u32 %v1683, 7
  %v1685 = vsub.s32 3, %v1684
  %v1686 = vrot.slane %v1670, %v1685
  %1687 = vmatprep.subr.mxu0 0.0
  %1688 = vmatpush1.msra.mxu0 0.0
  %1689 = vmatprep.subr.mxu0 0.0
  %1690 = vmatpush1.msra.mxu0 0.0
  %1691 = vmatprep.subr.mxu0 0.0
  %1692 = vmatpush1.msra.mxu0 0.0
  %1693 = vmatprep.subr.mxu0 0.0
  %1694 = vmatpush1.msra.mxu0 0.0
  %1695 = vmatprep.subr.mxu0 0.0
  %1696 = vmatpush1.msra.mxu0 0.0
  %1697 = vmatprep.subr.mxu0 0.0
  %1698 = vmatpush1.msra.mxu0 0.0
  %1699 = vmatprep.subr.mxu0 0.0
  %1700 = vmatpush1.msra.mxu0 0.0
  %1701 = vmatprep.subr.mxu0 0.0
  %1702 = vmatpush1.msra.mxu0 0.0
  %1703 = vmatprep.subr.mxu0 0.0
  %1704 = vmatpush1.msra.mxu0 0.0
  %1705 = vmatprep.subr.mxu0 0.0
  %1706 = vmatpush1.msra.mxu0 0.0
  %1707 = vmatprep.subr.mxu0 0.0
  %1708 = vmatpush1.msra.mxu0 %v1667
  %1709 = vmatprep.subr.mxu0 0.0
  %1710 = vmatpush1.msra.mxu0 %v1585
  %1711 = vmatprep.subr.mxu0 0.0
  %1712 = vmatpush1.msra.mxu0 %v1506
  %1713 = vmatprep.subr.mxu0 0.0
  %1714 = vmatpush1.msra.mxu0 %v1424
  %1715 = vmatprep.subr.mxu0 0.0
  %1716 = vmatpush1.msra.mxu0 %v1345
  %1717 = vmatprep.subr.mxu0 0.0
  %1718 = vmatpush1.msra.mxu0 %v1263
  %1719 = vmatprep.subr.mxu0 0.0
  %1720 = vmatpush2.msra.mxu0 0.0
  %1721 = vmatprep.subr.mxu0 0.0
  %1722 = vmatpush2.msra.mxu0 0.0
  %1723 = vmatprep.subr.mxu0 0.0
  %1724 = vmatpush2.msra.mxu0 0.0
  %1725 = vmatprep.subr.mxu0 0.0
  %1726 = vmatpush2.msra.mxu0 0.0
  %1727 = vmatprep.subr.mxu0 0.0
  %1728 = vmatpush2.msra.mxu0 0.0
  %1729 = vmatprep.subr.mxu0 0.0
  %1730 = vmatpush2.msra.mxu0 0.0
  %1731 = vmatprep.subr.mxu0 0.0
  %1732 = vmatpush2.msra.mxu0 0.0
  %1733 = vmatprep.subr.mxu0 0.0
  %1734 = vmatpush2.msra.mxu0 0.0
  %1735 = vmatprep.subr.mxu0 0.0
  %1736 = vmatpush2.msra.mxu0 0.0
  %1737 = vmatprep.subr.mxu0 0.0
  %1738 = vmatpush2.msra.mxu0 0.0
  %1739 = vmatprep.subr.mxu0 0.0
  %1740 = vmatpush2.msra.mxu0 0.0
  %1741 = vmatprep.subr.mxu0 0.0
  %1742 = vmatpush2.msra.mxu0 0.0
  %1743 = vmatprep.subr.mxu0 0.0
  %1744 = vmatpush2.msra.mxu0 0.0
  %1745 = vmatprep.subr.mxu0 0.0
  %1746 = vmatpush2.msra.mxu0 0.0
  %1747 = vmatprep.subr.mxu0 0.0
  %1748 = vmatpush2.msra.mxu0 0.0
  %1749 = vmatprep.subr.mxu0 0.0
  %1750 = vmatpush2.msra.mxu0 0.0
  %1751 = vmatprep.mubr.f32.mxu0 0.0
  %1752 = vmatmul.mubr.f32.gmra.mxu0 %v1085
  %v1753 = vpop.f32.mrf.mxu0
  %v1754 = vadd.f32 %v1674, %v1753
  %v1755 = vpop.f32.mrf.mxu0
  %1756 = vmatprep.mubr.f32.mxu0 0.0
  %1757 = vmatmul.mubr.f32.gmra.mxu0 %v1088
  %v1758 = vpop.f32.mrf.mxu0
  %v1759 = vadd.f32 %v1678, %v1758
  %v1760 = vpop.f32.mrf.mxu0
  %1761 = vmatprep.mubr.f32.mxu0 0.0
  %1762 = vmatmul.mubr.f32.gmra.mxu0 %v1091
  %v1763 = vpop.f32.mrf.mxu0
  %v1764 = vadd.f32 %v1682, %v1763
  %v1765 = vpop.f32.mrf.mxu0
  %1766 = vmatprep.mubr.f32.mxu0 0.0
  %1767 = vmatmul.mubr.f32.gmra.mxu0 %v1094
  %v1768 = vpop.f32.mrf.mxu0
  %v1769 = vadd.f32 %v1686, %v1768
  %v1770 = vpop.f32.mrf.mxu0
  %1771 = vdwg.mxu0
  %v1772 = vld [vmem:[%s9] sm:$0xf]
  %v1773 = vlaneseq
  %v1774 = vshrl.u32 %v1773, 7
  %v1775 = vsub.s32 0, %v1774
  %v1776 = vrot.slane %v1772, %v1775
  %v1777 = vlaneseq
  %v1778 = vshrl.u32 %v1777, 7
  %v1779 = vsub.s32 1, %v1778
  %v1780 = vrot.slane %v1772, %v1779
  %v1781 = vlaneseq
  %v1782 = vshrl.u32 %v1781, 7
  %v1783 = vsub.s32 2, %v1782
  %v1784 = vrot.slane %v1772, %v1783
  %v1785 = vlaneseq
  %v1786 = vshrl.u32 %v1785, 7
  %v1787 = vsub.s32 3, %v1786
  %v1788 = vrot.slane %v1772, %v1787
  %v1789 = vadd.f32 %v1754, %v1776
  %v1790 = vadd.f32 %v1759, %v1780
  %v1791 = vadd.f32 %v1764, %v1784
  %v1792 = vadd.f32 %v1769, %v1788
  %v1793 = vlaneseq
  %v1794 = vand.u32 %v1793, 127
  %v1795 = vld [vmem:[%s2] sm:$0xff]
  %v1796 = vld [vmem:[%s2 + $0x8] sm:$0xff]
  %v1797 = vld [vmem:[%s2 + $0x10] sm:$0xff]
  %v1798 = vld [vmem:[%s2 + $0x18] sm:$0xff]
  %v1799 = vld [vmem:[%s2 + $0x20] sm:$0xff]
  %v1800 = vld [vmem:[%s2 + $0x28] sm:$0xff]
  %v1801 = vld [vmem:[%s2 + $0x30] sm:$0xff]
  %v1802 = vld [vmem:[%s2 + $0x38] sm:$0xff]
  %1803 = vset.pattern.permute.xlu0 0
  %1804 = vperm.xlu0 %1803, %v1795
  %v1805 = vpop.permute.xlu0 %1804
  %1806 = vset.pattern.permute.xlu0 0
  %1807 = vperm.xlu0 %1806, %v1796
  %v1808 = vpop.permute.xlu0 %1807
  %1809 = vset.pattern.permute.xlu0 0
  %1810 = vperm.xlu0 %1809, %v1797
  %v1811 = vpop.permute.xlu0 %1810
  %1812 = vset.pattern.permute.xlu0 0
  %1813 = vperm.xlu0 %1812, %v1798
  %v1814 = vpop.permute.xlu0 %1813
  %1815 = vset.pattern.permute.xlu0 0
  %1816 = vperm.xlu0 %1815, %v1799
  %v1817 = vpop.permute.xlu0 %1816
  %1818 = vset.pattern.permute.xlu0 0
  %1819 = vperm.xlu0 %1818, %v1800
  %v1820 = vpop.permute.xlu0 %1819
  %1821 = vset.pattern.permute.xlu0 0
  %1822 = vperm.xlu0 %1821, %v1801
  %v1823 = vpop.permute.xlu0 %1822
  %1824 = vset.pattern.permute.xlu0 0
  %1825 = vperm.xlu0 %1824, %v1802
  %v1826 = vpop.permute.xlu0 %1825
  %vm1827 = vcmp.eq.s32.totalorder %v1805, %v1794
  %vm1828 = vcmp.eq.s32.totalorder %v1808, %v1794
  %vm1829 = vcmp.eq.s32.totalorder %v1811, %v1794
  %vm1830 = vcmp.eq.s32.totalorder %v1814, %v1794
  %vm1831 = vcmp.eq.s32.totalorder %v1817, %v1794
  %vm1832 = vcmp.eq.s32.totalorder %v1820, %v1794
  %vm1833 = vcmp.eq.s32.totalorder %v1823, %v1794
  %vm1834 = vcmp.eq.s32.totalorder %v1826, %v1794
  %v1835 = vsel %vm1827, 1, 0
  %v1836 = vsel %vm1828, 1, 0
  %v1837 = vsel %vm1829, 1, 0
  %v1838 = vsel %vm1830, 1, 0
  %v1839 = vsel %vm1831, 1, 0
  %v1840 = vsel %vm1832, 1, 0
  %v1841 = vsel %vm1833, 1, 0
  %v1842 = vsel %vm1834, 1, 0
  %v1843 = vcvt.s32.f32 %v1835
  %v1844 = vcvt.s32.f32 %v1836
  %v1845 = vcvt.s32.f32 %v1837
  %v1846 = vcvt.s32.f32 %v1838
  %v1847 = vcvt.s32.f32 %v1839
  %v1848 = vcvt.s32.f32 %v1840
  %v1849 = vcvt.s32.f32 %v1841
  %v1850 = vcvt.s32.f32 %v1842
  %v1851 = vld [vmem:[%s10] sm:$0xff]
  %vm1852 = vcmask 261120
  %v1854 = vsel %vm1852, %v1843, 0
  %v1857 = vsel %vm1852, %v1844, 0
  %v1860 = vsel %vm1852, %v1845, 0
  %v1863 = vsel %vm1852, %v1846, 0
  %v1866 = vsel %vm1852, %v1847, 0
  %v1869 = vsel %vm1852, %v1848, 0
  %v1872 = vsel %vm1852, %v1849, 0
  %v1875 = vsel %vm1852, %v1850, 0
  %1877 = vmatprep.subr.mxu0 0.0
  %1878 = vmatpush1.msra.mxu0 0.0
  %1879 = vmatprep.subr.mxu0 0.0
  %1880 = vmatpush1.msra.mxu0 0.0
  %1881 = vmatprep.subr.mxu0 0.0
  %1882 = vmatpush1.msra.mxu0 0.0
  %1883 = vmatprep.subr.mxu0 0.0
  %1884 = vmatpush1.msra.mxu0 0.0
  %1885 = vmatprep.subr.mxu0 0.0
  %1886 = vmatpush1.msra.mxu0 0.0
  %1887 = vmatprep.subr.mxu0 0.0
  %1888 = vmatpush1.msra.mxu0 0.0
  %1889 = vmatprep.subr.mxu0 0.0
  %1890 = vmatpush1.msra.mxu0 0.0
  %1891 = vmatprep.subr.mxu0 0.0
  %1892 = vmatpush1.msra.mxu0 0.0
  %1893 = vmatprep.subr.mxu0 0.0
  %1894 = vmatpush1.msra.mxu0 0.0
  %1895 = vmatprep.subr.mxu0 0.0
  %1896 = vmatpush1.msra.mxu0 0.0
  %1897 = vmatprep.subr.mxu0 0.0
  %1898 = vmatpush1.msra.mxu0 0.0
  %1899 = vmatprep.subr.mxu0 0.0
  %1900 = vmatpush1.msra.mxu0 0.0
  %1901 = vmatprep.subr.mxu0 0.0
  %1902 = vmatpush1.msra.mxu0 %v1792
  %1903 = vmatprep.subr.mxu0 0.0
  %1904 = vmatpush1.msra.mxu0 %v1791
  %1905 = vmatprep.subr.mxu0 0.0
  %1906 = vmatpush1.msra.mxu0 %v1790
  %1907 = vmatprep.subr.mxu0 0.0
  %1908 = vmatpush1.msra.mxu0 %v1789
  %1909 = vmatprep.subr.mxu0 0.0
  %1910 = vmatpush2.msra.mxu0 0.0
  %1911 = vmatprep.subr.mxu0 0.0
  %1912 = vmatpush2.msra.mxu0 0.0
  %1913 = vmatprep.subr.mxu0 0.0
  %1914 = vmatpush2.msra.mxu0 0.0
  %1915 = vmatprep.subr.mxu0 0.0
  %1916 = vmatpush2.msra.mxu0 0.0
  %1917 = vmatprep.subr.mxu0 0.0
  %1918 = vmatpush2.msra.mxu0 0.0
  %1919 = vmatprep.subr.mxu0 0.0
  %1920 = vmatpush2.msra.mxu0 0.0
  %1921 = vmatprep.subr.mxu0 0.0
  %1922 = vmatpush2.msra.mxu0 0.0
  %1923 = vmatprep.subr.mxu0 0.0
  %1924 = vmatpush2.msra.mxu0 0.0
  %1925 = vmatprep.subr.mxu0 0.0
  %1926 = vmatpush2.msra.mxu0 0.0
  %1927 = vmatprep.subr.mxu0 0.0
  %1928 = vmatpush2.msra.mxu0 0.0
  %1929 = vmatprep.subr.mxu0 0.0
  %1930 = vmatpush2.msra.mxu0 0.0
  %1931 = vmatprep.subr.mxu0 0.0
  %1932 = vmatpush2.msra.mxu0 0.0
  %1933 = vmatprep.subr.mxu0 0.0
  %1934 = vmatpush2.msra.mxu0 0.0
  %1935 = vmatprep.subr.mxu0 0.0
  %1936 = vmatpush2.msra.mxu0 0.0
  %1937 = vmatprep.subr.mxu0 0.0
  %1938 = vmatpush2.msra.mxu0 0.0
  %1939 = vmatprep.subr.mxu0 0.0
  %1940 = vmatpush2.msra.mxu0 0.0
  %1941 = vmatprep.mubr.f32.mxu0 0.0
  %1942 = vmatmul.mubr.f32.gmra.mxu0 %v1854
  %v1943 = vpop.f32.mrf.mxu0
  %v1944 = vadd.f32 %v1851, %v1943
  %v1945 = vpop.f32.mrf.mxu0
  %1946 = vmatprep.mubr.f32.mxu0 0.0
  %1947 = vmatmul.mubr.f32.gmra.mxu0 %v1857
  %v1948 = vpop.f32.mrf.mxu0
  %v1949 = vadd.f32 %v1851, %v1948
  %v1950 = vpop.f32.mrf.mxu0
  %1951 = vmatprep.mubr.f32.mxu0 0.0
  %1952 = vmatmul.mubr.f32.gmra.mxu0 %v1860
  %v1953 = vpop.f32.mrf.mxu0
  %v1954 = vadd.f32 %v1851, %v1953
  %v1955 = vpop.f32.mrf.mxu0
  %1956 = vmatprep.mubr.f32.mxu0 0.0
  %1957 = vmatmul.mubr.f32.gmra.mxu0 %v1863
  %v1958 = vpop.f32.mrf.mxu0
  %v1959 = vadd.f32 %v1851, %v1958
  %v1960 = vpop.f32.mrf.mxu0
  %1961 = vmatprep.mubr.f32.mxu0 0.0
  %1962 = vmatmul.mubr.f32.gmra.mxu0 %v1866
  %v1963 = vpop.f32.mrf.mxu0
  %v1964 = vadd.f32 %v1851, %v1963
  %v1965 = vpop.f32.mrf.mxu0
  %1966 = vmatprep.mubr.f32.mxu0 0.0
  %1967 = vmatmul.mubr.f32.gmra.mxu0 %v1869
  %v1968 = vpop.f32.mrf.mxu0
  %v1969 = vadd.f32 %v1851, %v1968
  %v1970 = vpop.f32.mrf.mxu0
  %1971 = vmatprep.mubr.f32.mxu0 0.0
  %1972 = vmatmul.mubr.f32.gmra.mxu0 %v1872
  %v1973 = vpop.f32.mrf.mxu0
  %v1974 = vadd.f32 %v1851, %v1973
  %v1975 = vpop.f32.mrf.mxu0
  %1976 = vmatprep.mubr.f32.mxu0 0.0
  %1977 = vmatmul.mubr.f32.gmra.mxu0 %v1875
  %v1978 = vpop.f32.mrf.mxu0
  %v1979 = vadd.f32 %v1851, %v1978
  %v1980 = vpop.f32.mrf.mxu0
  %1981 = vdwg.mxu0
  %v1982 = vlaneseq
  %v1983 = vshrl.u32 %v1982, 7
  %v1984 = vadd.s32 %v1983, 8
  %v1985 = vadd.s32 %v1983, 16
  %v1986 = vadd.s32 %v1983, 24
  %v1987 = vadd.s32 %v1983, 32
  %v1988 = vadd.s32 %v1983, 40
  %v1989 = vadd.s32 %v1983, 48
  %v1990 = vadd.s32 %v1983, 56
  %vm1991 = vcmp.ge.s32.totalorder %v1983, 0
  %vm1992 = vcmp.ge.s32.totalorder %v1984, 0
  %vm1993 = vcmp.ge.s32.totalorder %v1985, 0
  %vm1994 = vcmp.ge.s32.totalorder %v1986, 0
  %vm1995 = vcmp.ge.s32.totalorder %v1987, 0
  %vm1996 = vcmp.ge.s32.totalorder %v1988, 0
  %vm1997 = vcmp.ge.s32.totalorder %v1989, 0
  %vm1998 = vcmp.ge.s32.totalorder %v1990, 0
  %vm1999 = vcmp.lt.s32.totalorder %v1983, 8
  %vm2000 = vcmp.lt.s32.totalorder %v1984, 8
  %vm2001 = vcmp.lt.s32.totalorder %v1985, 8
  %vm2002 = vcmp.lt.s32.totalorder %v1986, 8
  %vm2003 = vcmp.lt.s32.totalorder %v1987, 8
  %vm2004 = vcmp.lt.s32.totalorder %v1988, 8
  %vm2005 = vcmp.lt.s32.totalorder %v1989, 8
  %vm2006 = vcmp.lt.s32.totalorder %v1990, 8
  %vm2007 = vmand %vm1991, %vm1999
  %vm2008 = vmand %vm1992, %vm2000
  %vm2009 = vmand %vm1993, %vm2001
  %vm2010 = vmand %vm1994, %vm2002
  %vm2011 = vmand %vm1995, %vm2003
  %vm2012 = vmand %vm1996, %vm2004
  %vm2013 = vmand %vm1997, %vm2005
  %vm2014 = vmand %vm1998, %vm2006
  %vm2015 = vcmp.ge.s32.totalorder %v1794, 0
  %v2016 = vstv %s556
  %vm2017 = vcmp.lt.s32.totalorder %v1794, %v2016
  %vm2018 = vmand %vm2015, %vm2017
  %vm2019 = vmand %vm2007, %vm2018
  %vm2020 = vmand %vm2008, %vm2018
  %vm2021 = vmand %vm2009, %vm2018
  %vm2022 = vmand %vm2010, %vm2018
  %vm2023 = vmand %vm2011, %vm2018
  %vm2024 = vmand %vm2012, %vm2018
  %vm2025 = vmand %vm2013, %vm2018
  %vm2026 = vmand %vm2014, %vm2018
  %vm2027 = vcmp.ge.s32.totalorder %v1983, 8
  %vm2028 = vcmp.ge.s32.totalorder %v1984, 8
  %vm2029 = vcmp.ge.s32.totalorder %v1985, 8
  %vm2030 = vcmp.ge.s32.totalorder %v1986, 8
  %vm2031 = vcmp.ge.s32.totalorder %v1987, 8
  %vm2032 = vcmp.ge.s32.totalorder %v1988, 8
  %vm2033 = vcmp.ge.s32.totalorder %v1989, 8
  %vm2034 = vcmp.ge.s32.totalorder %v1990, 8
  %vm2035 = vcmp.lt.s32.totalorder %v1983, 16
  %vm2036 = vcmp.lt.s32.totalorder %v1984, 16
  %vm2037 = vcmp.lt.s32.totalorder %v1985, 16
  %vm2038 = vcmp.lt.s32.totalorder %v1986, 16
  %vm2039 = vcmp.lt.s32.totalorder %v1987, 16
  %vm2040 = vcmp.lt.s32.totalorder %v1988, 16
  %vm2041 = vcmp.lt.s32.totalorder %v1989, 16
  %vm2042 = vcmp.lt.s32.totalorder %v1990, 16
  %vm2043 = vmand %vm2027, %vm2035
  %vm2044 = vmand %vm2028, %vm2036
  %vm2045 = vmand %vm2029, %vm2037
  %vm2046 = vmand %vm2030, %vm2038
  %vm2047 = vmand %vm2031, %vm2039
  %vm2048 = vmand %vm2032, %vm2040
  %vm2049 = vmand %vm2033, %vm2041
  %vm2050 = vmand %vm2034, %vm2042
  %vm2051 = vcmp.ge.s32.totalorder %v1794, 8
  %s2052 = sadd.s32 %s557, 8
  %v2053 = vstv %s2052
  %vm2054 = vcmp.lt.s32.totalorder %v1794, %v2053
  %vm2055 = vmand %vm2051, %vm2054
  %vm2056 = vmand %vm2043, %vm2055
  %vm2057 = vmand %vm2044, %vm2055
  %vm2058 = vmand %vm2045, %vm2055
  %vm2059 = vmand %vm2046, %vm2055
  %vm2060 = vmand %vm2047, %vm2055
  %vm2061 = vmand %vm2048, %vm2055
  %vm2062 = vmand %vm2049, %vm2055
  %vm2063 = vmand %vm2050, %vm2055
  %vm2064 = vmor %vm2019, %vm2056
  %vm2065 = vmor %vm2020, %vm2057
  %vm2066 = vmor %vm2021, %vm2058
  %vm2067 = vmor %vm2022, %vm2059
  %vm2068 = vmor %vm2023, %vm2060
  %vm2069 = vmor %vm2024, %vm2061
  %vm2070 = vmor %vm2025, %vm2062
  %vm2071 = vmor %vm2026, %vm2063
  %vm2072 = vcmp.ge.s32.totalorder %v1983, 16
  %vm2073 = vcmp.ge.s32.totalorder %v1984, 16
  %vm2074 = vcmp.ge.s32.totalorder %v1985, 16
  %vm2075 = vcmp.ge.s32.totalorder %v1986, 16
  %vm2076 = vcmp.ge.s32.totalorder %v1987, 16
  %vm2077 = vcmp.ge.s32.totalorder %v1988, 16
  %vm2078 = vcmp.ge.s32.totalorder %v1989, 16
  %vm2079 = vcmp.ge.s32.totalorder %v1990, 16
  %vm2080 = vcmp.lt.s32.totalorder %v1983, 24
  %vm2081 = vcmp.lt.s32.totalorder %v1984, 24
  %vm2082 = vcmp.lt.s32.totalorder %v1985, 24
  %vm2083 = vcmp.lt.s32.totalorder %v1986, 24
  %vm2084 = vcmp.lt.s32.totalorder %v1987, 24
  %vm2085 = vcmp.lt.s32.totalorder %v1988, 24
  %vm2086 = vcmp.lt.s32.totalorder %v1989, 24
  %vm2087 = vcmp.lt.s32.totalorder %v1990, 24
  %vm2088 = vmand %vm2072, %vm2080
  %vm2089 = vmand %vm2073, %vm2081
  %vm2090 = vmand %vm2074, %vm2082
  %vm2091 = vmand %vm2075, %vm2083
  %vm2092 = vmand %vm2076, %vm2084
  %vm2093 = vmand %vm2077, %vm2085
  %vm2094 = vmand %vm2078, %vm2086
  %vm2095 = vmand %vm2079, %vm2087
  %vm2096 = vcmp.ge.s32.totalorder %v1794, 16
  %s2097 = sadd.s32 %s558, 16
  %v2098 = vstv %s2097
  %vm2099 = vcmp.lt.s32.totalorder %v1794, %v2098
  %vm2100 = vmand %vm2096, %vm2099
  %vm2101 = vmand %vm2088, %vm2100
  %vm2102 = vmand %vm2089, %vm2100
  %vm2103 = vmand %vm2090, %vm2100
  %vm2104 = vmand %vm2091, %vm2100
  %vm2105 = vmand %vm2092, %vm2100
  %vm2106 = vmand %vm2093, %vm2100
  %vm2107 = vmand %vm2094, %vm2100
  %vm2108 = vmand %vm2095, %vm2100
  %vm2109 = vmor %vm2064, %vm2101
  %vm2110 = vmor %vm2065, %vm2102
  %vm2111 = vmor %vm2066, %vm2103
  %vm2112 = vmor %vm2067, %vm2104
  %vm2113 = vmor %vm2068, %vm2105
  %vm2114 = vmor %vm2069, %vm2106
  %vm2115 = vmor %vm2070, %vm2107
  %vm2116 = vmor %vm2071, %vm2108
  %vm2117 = vcmp.ge.s32.totalorder %v1983, 24
  %vm2118 = vcmp.ge.s32.totalorder %v1984, 24
  %vm2119 = vcmp.ge.s32.totalorder %v1985, 24
  %vm2120 = vcmp.ge.s32.totalorder %v1986, 24
  %vm2121 = vcmp.ge.s32.totalorder %v1987, 24
  %vm2122 = vcmp.ge.s32.totalorder %v1988, 24
  %vm2123 = vcmp.ge.s32.totalorder %v1989, 24
  %vm2124 = vcmp.ge.s32.totalorder %v1990, 24
  %vm2125 = vcmp.lt.s32.totalorder %v1983, 32
  %vm2126 = vcmp.lt.s32.totalorder %v1984, 32
  %vm2127 = vcmp.lt.s32.totalorder %v1985, 32
  %vm2128 = vcmp.lt.s32.totalorder %v1986, 32
  %vm2129 = vcmp.lt.s32.totalorder %v1987, 32
  %vm2130 = vcmp.lt.s32.totalorder %v1988, 32
  %vm2131 = vcmp.lt.s32.totalorder %v1989, 32
  %vm2132 = vcmp.lt.s32.totalorder %v1990, 32
  %vm2133 = vmand %vm2117, %vm2125
  %vm2134 = vmand %vm2118, %vm2126
  %vm2135 = vmand %vm2119, %vm2127
  %vm2136 = vmand %vm2120, %vm2128
  %vm2137 = vmand %vm2121, %vm2129
  %vm2138 = vmand %vm2122, %vm2130
  %vm2139 = vmand %vm2123, %vm2131
  %vm2140 = vmand %vm2124, %vm2132
  %vm2141 = vcmp.ge.s32.totalorder %v1794, 24
  %s2142 = sadd.s32 %s559, 24
  %v2143 = vstv %s2142
  %vm2144 = vcmp.lt.s32.totalorder %v1794, %v2143
  %vm2145 = vmand %vm2141, %vm2144
  %vm2146 = vmand %vm2133, %vm2145
  %vm2147 = vmand %vm2134, %vm2145
  %vm2148 = vmand %vm2135, %vm2145
  %vm2149 = vmand %vm2136, %vm2145
  %vm2150 = vmand %vm2137, %vm2145
  %vm2151 = vmand %vm2138, %vm2145
  %vm2152 = vmand %vm2139, %vm2145
  %vm2153 = vmand %vm2140, %vm2145
  %vm2154 = vmor %vm2109, %vm2146
  %vm2155 = vmor %vm2110, %vm2147
  %vm2156 = vmor %vm2111, %vm2148
  %vm2157 = vmor %vm2112, %vm2149
  %vm2158 = vmor %vm2113, %vm2150
  %vm2159 = vmor %vm2114, %vm2151
  %vm2160 = vmor %vm2115, %vm2152
  %vm2161 = vmor %vm2116, %vm2153
  %vm2162 = vcmp.ge.s32.totalorder %v1983, 32
  %vm2163 = vcmp.ge.s32.totalorder %v1984, 32
  %vm2164 = vcmp.ge.s32.totalorder %v1985, 32
  %vm2165 = vcmp.ge.s32.totalorder %v1986, 32
  %vm2166 = vcmp.ge.s32.totalorder %v1987, 32
  %vm2167 = vcmp.ge.s32.totalorder %v1988, 32
  %vm2168 = vcmp.ge.s32.totalorder %v1989, 32
  %vm2169 = vcmp.ge.s32.totalorder %v1990, 32
  %vm2170 = vcmp.lt.s32.totalorder %v1983, 40
  %vm2171 = vcmp.lt.s32.totalorder %v1984, 40
  %vm2172 = vcmp.lt.s32.totalorder %v1985, 40
  %vm2173 = vcmp.lt.s32.totalorder %v1986, 40
  %vm2174 = vcmp.lt.s32.totalorder %v1987, 40
  %vm2175 = vcmp.lt.s32.totalorder %v1988, 40
  %vm2176 = vcmp.lt.s32.totalorder %v1989, 40
  %vm2177 = vcmp.lt.s32.totalorder %v1990, 40
  %vm2178 = vmand %vm2162, %vm2170
  %vm2179 = vmand %vm2163, %vm2171
  %vm2180 = vmand %vm2164, %vm2172
  %vm2181 = vmand %vm2165, %vm2173
  %vm2182 = vmand %vm2166, %vm2174
  %vm2183 = vmand %vm2167, %vm2175
  %vm2184 = vmand %vm2168, %vm2176
  %vm2185 = vmand %vm2169, %vm2177
  %vm2186 = vcmp.ge.s32.totalorder %v1794, 32
  %s2187 = sadd.s32 %s560, 32
  %v2188 = vstv %s2187
  %vm2189 = vcmp.lt.s32.totalorder %v1794, %v2188
  %vm2190 = vmand %vm2186, %vm2189
  %vm2191 = vmand %vm2178, %vm2190
  %vm2192 = vmand %vm2179, %vm2190
  %vm2193 = vmand %vm2180, %vm2190
  %vm2194 = vmand %vm2181, %vm2190
  %vm2195 = vmand %vm2182, %vm2190
  %vm2196 = vmand %vm2183, %vm2190
  %vm2197 = vmand %vm2184, %vm2190
  %vm2198 = vmand %vm2185, %vm2190
  %vm2199 = vmor %vm2154, %vm2191
  %vm2200 = vmor %vm2155, %vm2192
  %vm2201 = vmor %vm2156, %vm2193
  %vm2202 = vmor %vm2157, %vm2194
  %vm2203 = vmor %vm2158, %vm2195
  %vm2204 = vmor %vm2159, %vm2196
  %vm2205 = vmor %vm2160, %vm2197
  %vm2206 = vmor %vm2161, %vm2198
  %vm2207 = vcmp.ge.s32.totalorder %v1983, 40
  %vm2208 = vcmp.ge.s32.totalorder %v1984, 40
  %vm2209 = vcmp.ge.s32.totalorder %v1985, 40
  %vm2210 = vcmp.ge.s32.totalorder %v1986, 40
  %vm2211 = vcmp.ge.s32.totalorder %v1987, 40
  %vm2212 = vcmp.ge.s32.totalorder %v1988, 40
  %vm2213 = vcmp.ge.s32.totalorder %v1989, 40
  %vm2214 = vcmp.ge.s32.totalorder %v1990, 40
  %vm2215 = vcmp.lt.s32.totalorder %v1983, 48
  %vm2216 = vcmp.lt.s32.totalorder %v1984, 48
  %vm2217 = vcmp.lt.s32.totalorder %v1985, 48
  %vm2218 = vcmp.lt.s32.totalorder %v1986, 48
  %vm2219 = vcmp.lt.s32.totalorder %v1987, 48
  %vm2220 = vcmp.lt.s32.totalorder %v1988, 48
  %vm2221 = vcmp.lt.s32.totalorder %v1989, 48
  %vm2222 = vcmp.lt.s32.totalorder %v1990, 48
  %vm2223 = vmand %vm2207, %vm2215
  %vm2224 = vmand %vm2208, %vm2216
  %vm2225 = vmand %vm2209, %vm2217
  %vm2226 = vmand %vm2210, %vm2218
  %vm2227 = vmand %vm2211, %vm2219
  %vm2228 = vmand %vm2212, %vm2220
  %vm2229 = vmand %vm2213, %vm2221
  %vm2230 = vmand %vm2214, %vm2222
  %vm2231 = vcmp.ge.s32.totalorder %v1794, 40
  %s2232 = sadd.s32 %s561, 40
  %v2233 = vstv %s2232
  %vm2234 = vcmp.lt.s32.totalorder %v1794, %v2233
  %vm2235 = vmand %vm2231, %vm2234
  %vm2236 = vmand %vm2223, %vm2235
  %vm2237 = vmand %vm2224, %vm2235
  %vm2238 = vmand %vm2225, %vm2235
  %vm2239 = vmand %vm2226, %vm2235
  %vm2240 = vmand %vm2227, %vm2235
  %vm2241 = vmand %vm2228, %vm2235
  %vm2242 = vmand %vm2229, %vm2235
  %vm2243 = vmand %vm2230, %vm2235
  %vm2244 = vmor %vm2199, %vm2236
  %vm2245 = vmor %vm2200, %vm2237
  %vm2246 = vmor %vm2201, %vm2238
  %vm2247 = vmor %vm2202, %vm2239
  %vm2248 = vmor %vm2203, %vm2240
  %vm2249 = vmor %vm2204, %vm2241
  %vm2250 = vmor %vm2205, %vm2242
  %vm2251 = vmor %vm2206, %vm2243
  %vm2252 = vcmp.ge.s32.totalorder %v1983, 48
  %vm2253 = vcmp.ge.s32.totalorder %v1984, 48
  %vm2254 = vcmp.ge.s32.totalorder %v1985, 48
  %vm2255 = vcmp.ge.s32.totalorder %v1986, 48
  %vm2256 = vcmp.ge.s32.totalorder %v1987, 48
  %vm2257 = vcmp.ge.s32.totalorder %v1988, 48
  %vm2258 = vcmp.ge.s32.totalorder %v1989, 48
  %vm2259 = vcmp.ge.s32.totalorder %v1990, 48
  %vm2260 = vcmp.lt.s32.totalorder %v1983, 56
  %vm2261 = vcmp.lt.s32.totalorder %v1984, 56
  %vm2262 = vcmp.lt.s32.totalorder %v1985, 56
  %vm2263 = vcmp.lt.s32.totalorder %v1986, 56
  %vm2264 = vcmp.lt.s32.totalorder %v1987, 56
  %vm2265 = vcmp.lt.s32.totalorder %v1988, 56
  %vm2266 = vcmp.lt.s32.totalorder %v1989, 56
  %vm2267 = vcmp.lt.s32.totalorder %v1990, 56
  %vm2268 = vmand %vm2252, %vm2260
  %vm2269 = vmand %vm2253, %vm2261
  %vm2270 = vmand %vm2254, %vm2262
  %vm2271 = vmand %vm2255, %vm2263
  %vm2272 = vmand %vm2256, %vm2264
  %vm2273 = vmand %vm2257, %vm2265
  %vm2274 = vmand %vm2258, %vm2266
  %vm2275 = vmand %vm2259, %vm2267
  %vm2276 = vcmp.ge.s32.totalorder %v1794, 48
  %s2277 = sadd.s32 %s562, 48
  %v2278 = vstv %s2277
  %vm2279 = vcmp.lt.s32.totalorder %v1794, %v2278
  %vm2280 = vmand %vm2276, %vm2279
  %vm2281 = vmand %vm2268, %vm2280
  %vm2282 = vmand %vm2269, %vm2280
  %vm2283 = vmand %vm2270, %vm2280
  %vm2284 = vmand %vm2271, %vm2280
  %vm2285 = vmand %vm2272, %vm2280
  %vm2286 = vmand %vm2273, %vm2280
  %vm2287 = vmand %vm2274, %vm2280
  %vm2288 = vmand %vm2275, %vm2280
  %vm2289 = vmor %vm2244, %vm2281
  %vm2290 = vmor %vm2245, %vm2282
  %vm2291 = vmor %vm2246, %vm2283
  %vm2292 = vmor %vm2247, %vm2284
  %vm2293 = vmor %vm2248, %vm2285
  %vm2294 = vmor %vm2249, %vm2286
  %vm2295 = vmor %vm2250, %vm2287
  %vm2296 = vmor %vm2251, %vm2288
  %vm2297 = vcmp.ge.s32.totalorder %v1983, 56
  %vm2298 = vcmp.ge.s32.totalorder %v1984, 56
  %vm2299 = vcmp.ge.s32.totalorder %v1985, 56
  %vm2300 = vcmp.ge.s32.totalorder %v1986, 56
  %vm2301 = vcmp.ge.s32.totalorder %v1987, 56
  %vm2302 = vcmp.ge.s32.totalorder %v1988, 56
  %vm2303 = vcmp.ge.s32.totalorder %v1989, 56
  %vm2304 = vcmp.ge.s32.totalorder %v1990, 56
  %vm2305 = vcmp.lt.s32.totalorder %v1983, 64
  %vm2306 = vcmp.lt.s32.totalorder %v1984, 64
  %vm2307 = vcmp.lt.s32.totalorder %v1985, 64
  %vm2308 = vcmp.lt.s32.totalorder %v1986, 64
  %vm2309 = vcmp.lt.s32.totalorder %v1987, 64
  %vm2310 = vcmp.lt.s32.totalorder %v1988, 64
  %vm2311 = vcmp.lt.s32.totalorder %v1989, 64
  %vm2312 = vcmp.lt.s32.totalorder %v1990, 64
  %vm2313 = vmand %vm2297, %vm2305
  %vm2314 = vmand %vm2298, %vm2306
  %vm2315 = vmand %vm2299, %vm2307
  %vm2316 = vmand %vm2300, %vm2308
  %vm2317 = vmand %vm2301, %vm2309
  %vm2318 = vmand %vm2302, %vm2310
  %vm2319 = vmand %vm2303, %vm2311
  %vm2320 = vmand %vm2304, %vm2312
  %vm2321 = vcmp.ge.s32.totalorder %v1794, 56
  %s2322 = sadd.s32 %s563, 56
  %v2323 = vstv %s2322
  %vm2324 = vcmp.lt.s32.totalorder %v1794, %v2323
  %vm2325 = vmand %vm2321, %vm2324
  %vm2326 = vmand %vm2313, %vm2325
  %vm2327 = vmand %vm2314, %vm2325
  %vm2328 = vmand %vm2315, %vm2325
  %vm2329 = vmand %vm2316, %vm2325
  %vm2330 = vmand %vm2317, %vm2325
  %vm2331 = vmand %vm2318, %vm2325
  %vm2332 = vmand %vm2319, %vm2325
  %vm2333 = vmand %vm2320, %vm2325
  %vm2334 = vmor %vm2289, %vm2326
  %vm2335 = vmor %vm2290, %vm2327
  %vm2336 = vmor %vm2291, %vm2328
  %vm2337 = vmor %vm2292, %vm2329
  %vm2338 = vmor %vm2293, %vm2330
  %vm2339 = vmor %vm2294, %vm2331
  %vm2340 = vmor %vm2295, %vm2332
  %vm2341 = vmor %vm2296, %vm2333
  %v2342 = vsel %vm2334, 0.0, -1e+30
  %v2343 = vsel %vm2335, 0.0, -1e+30
  %v2344 = vsel %vm2336, 0.0, -1e+30
  %v2345 = vsel %vm2337, 0.0, -1e+30
  %v2346 = vsel %vm2338, 0.0, -1e+30
  %v2347 = vsel %vm2339, 0.0, -1e+30
  %v2348 = vsel %vm2340, 0.0, -1e+30
  %v2349 = vsel %vm2341, 0.0, -1e+30
  %v2350 = vld [vmem:[%s11] sm:$0xff]
  %v2351 = vld [vmem:[%s11 + $0x8] sm:$0xff]
  %v2352 = vld [vmem:[%s11 + $0x10] sm:$0xff]
  %v2353 = vld [vmem:[%s11 + $0x18] sm:$0xff]
  %v2354 = vld [vmem:[%s11 + $0x20] sm:$0xff]
  %v2355 = vld [vmem:[%s11 + $0x28] sm:$0xff]
  %v2356 = vld [vmem:[%s11 + $0x30] sm:$0xff]
  %v2357 = vld [vmem:[%s11 + $0x38] sm:$0xff]
  %v2358 = vld [vmem:[%s12] sm:$0x1]
  %v2360 = vlaneseq
  %v2361 = vshrl.u32 %v2360, 7
  %v2362 = vsub.s32 0, %v2361
  %v2363 = vrot.slane %v2358, %v2362
  %v2366 = vsel %vm588, %v1944, 0
  %v2369 = vsel %vm588, %v1949, 0
  %v2372 = vsel %vm588, %v1954, 0
  %v2375 = vsel %vm588, %v1959, 0
  %v2378 = vsel %vm588, %v1964, 0
  %v2381 = vsel %vm588, %v1969, 0
  %v2384 = vsel %vm588, %v1974, 0
  %v2387 = vsel %vm588, %v1979, 0
  %2389 = vmatprep.subr.mxu0 0.0
  %2390 = vmatpush1.msra.mxu0 0.0
  %2391 = vmatprep.subr.mxu0 0.0
  %2392 = vmatpush1.msra.mxu0 0.0
  %2393 = vmatprep.subr.mxu0 0.0
  %2394 = vmatpush1.msra.mxu0 0.0
  %2395 = vmatprep.subr.mxu0 0.0
  %2396 = vmatpush1.msra.mxu0 0.0
  %2397 = vmatprep.subr.mxu0 0.0
  %2398 = vmatpush1.msra.mxu0 0.0
  %2399 = vmatprep.subr.mxu0 0.0
  %2400 = vmatpush1.msra.mxu0 0.0
  %2401 = vmatprep.subr.mxu0 0.0
  %2402 = vmatpush1.msra.mxu0 0.0
  %2403 = vmatprep.subr.mxu0 0.0
  %2404 = vmatpush1.msra.mxu0 0.0
  %2405 = vmatprep.subr.mxu0 0.0
  %2406 = vmatpush1.msra.mxu0 %v2357
  %2407 = vmatprep.subr.mxu0 0.0
  %2408 = vmatpush1.msra.mxu0 %v2356
  %2409 = vmatprep.subr.mxu0 0.0
  %2410 = vmatpush1.msra.mxu0 %v2355
  %2411 = vmatprep.subr.mxu0 0.0
  %2412 = vmatpush1.msra.mxu0 %v2354
  %2413 = vmatprep.subr.mxu0 0.0
  %2414 = vmatpush1.msra.mxu0 %v2353
  %2415 = vmatprep.subr.mxu0 0.0
  %2416 = vmatpush1.msra.mxu0 %v2352
  %2417 = vmatprep.subr.mxu0 0.0
  %2418 = vmatpush1.msra.mxu0 %v2351
  %2419 = vmatprep.subr.mxu0 0.0
  %2420 = vmatpush1.msra.mxu0 %v2350
  %2421 = vmatprep.subr.mxu0 0.0
  %2422 = vmatpush2.msra.mxu0 0.0
  %2423 = vmatprep.subr.mxu0 0.0
  %2424 = vmatpush2.msra.mxu0 0.0
  %2425 = vmatprep.subr.mxu0 0.0
  %2426 = vmatpush2.msra.mxu0 0.0
  %2427 = vmatprep.subr.mxu0 0.0
  %2428 = vmatpush2.msra.mxu0 0.0
  %2429 = vmatprep.subr.mxu0 0.0
  %2430 = vmatpush2.msra.mxu0 0.0
  %2431 = vmatprep.subr.mxu0 0.0
  %2432 = vmatpush2.msra.mxu0 0.0
  %2433 = vmatprep.subr.mxu0 0.0
  %2434 = vmatpush2.msra.mxu0 0.0
  %2435 = vmatprep.subr.mxu0 0.0
  %2436 = vmatpush2.msra.mxu0 0.0
  %2437 = vmatprep.subr.mxu0 0.0
  %2438 = vmatpush2.msra.mxu0 0.0
  %2439 = vmatprep.subr.mxu0 0.0
  %2440 = vmatpush2.msra.mxu0 0.0
  %2441 = vmatprep.subr.mxu0 0.0
  %2442 = vmatpush2.msra.mxu0 0.0
  %2443 = vmatprep.subr.mxu0 0.0
  %2444 = vmatpush2.msra.mxu0 0.0
  %2445 = vmatprep.subr.mxu0 0.0
  %2446 = vmatpush2.msra.mxu0 0.0
  %2447 = vmatprep.subr.mxu0 0.0
  %2448 = vmatpush2.msra.mxu0 0.0
  %2449 = vmatprep.subr.mxu0 0.0
  %2450 = vmatpush2.msra.mxu0 0.0
  %2451 = vmatprep.subr.mxu0 0.0
  %2452 = vmatpush2.msra.mxu0 0.0
  %2453 = vmatprep.mubr.f32.mxu0 0.0
  %2454 = vmatmul.mubr.f32.gmra.mxu0 %v2366
  %v2455 = vpop.f32.mrf.mxu0
  %v2456 = vadd.f32 %v2363, %v2455
  %v2457 = vpop.f32.mrf.mxu0
  %2458 = vmatprep.mubr.f32.mxu0 0.0
  %2459 = vmatmul.mubr.f32.gmra.mxu0 %v2369
  %v2460 = vpop.f32.mrf.mxu0
  %v2461 = vadd.f32 %v2363, %v2460
  %v2462 = vpop.f32.mrf.mxu0
  %2463 = vmatprep.mubr.f32.mxu0 0.0
  %2464 = vmatmul.mubr.f32.gmra.mxu0 %v2372
  %v2465 = vpop.f32.mrf.mxu0
  %v2466 = vadd.f32 %v2363, %v2465
  %v2467 = vpop.f32.mrf.mxu0
  %2468 = vmatprep.mubr.f32.mxu0 0.0
  %2469 = vmatmul.mubr.f32.gmra.mxu0 %v2375
  %v2470 = vpop.f32.mrf.mxu0
  %v2471 = vadd.f32 %v2363, %v2470
  %v2472 = vpop.f32.mrf.mxu0
  %2473 = vmatprep.mubr.f32.mxu0 0.0
  %2474 = vmatmul.mubr.f32.gmra.mxu0 %v2378
  %v2475 = vpop.f32.mrf.mxu0
  %v2476 = vadd.f32 %v2363, %v2475
  %v2477 = vpop.f32.mrf.mxu0
  %2478 = vmatprep.mubr.f32.mxu0 0.0
  %2479 = vmatmul.mubr.f32.gmra.mxu0 %v2381
  %v2480 = vpop.f32.mrf.mxu0
  %v2481 = vadd.f32 %v2363, %v2480
  %v2482 = vpop.f32.mrf.mxu0
  %2483 = vmatprep.mubr.f32.mxu0 0.0
  %2484 = vmatmul.mubr.f32.gmra.mxu0 %v2384
  %v2485 = vpop.f32.mrf.mxu0
  %v2486 = vadd.f32 %v2363, %v2485
  %v2487 = vpop.f32.mrf.mxu0
  %2488 = vmatprep.mubr.f32.mxu0 0.0
  %2489 = vmatmul.mubr.f32.gmra.mxu0 %v2387
  %v2490 = vpop.f32.mrf.mxu0
  %v2491 = vadd.f32 %v2363, %v2490
  %v2492 = vpop.f32.mrf.mxu0
  %2493 = vdwg.mxu0
  %v2494 = vld [vmem:[%s13] sm:$0xff]
  %v2495 = vld [vmem:[%s13 + $0x8] sm:$0xff]
  %v2496 = vld [vmem:[%s13 + $0x10] sm:$0xff]
  %v2497 = vld [vmem:[%s13 + $0x18] sm:$0xff]
  %v2498 = vld [vmem:[%s13 + $0x20] sm:$0xff]
  %v2499 = vld [vmem:[%s13 + $0x28] sm:$0xff]
  %v2500 = vld [vmem:[%s13 + $0x30] sm:$0xff]
  %v2501 = vld [vmem:[%s13 + $0x38] sm:$0xff]
  %v2502 = vld [vmem:[%s14] sm:$0x1]
  %v2504 = vlaneseq
  %v2505 = vshrl.u32 %v2504, 7
  %v2506 = vsub.s32 0, %v2505
  %v2507 = vrot.slane %v2502, %v2506
  %2509 = vmatprep.subr.mxu0 0.0
  %2510 = vmatpush1.msra.mxu0 0.0
  %2511 = vmatprep.subr.mxu0 0.0
  %2512 = vmatpush1.msra.mxu0 0.0
  %2513 = vmatprep.subr.mxu0 0.0
  %2514 = vmatpush1.msra.mxu0 0.0
  %2515 = vmatprep.subr.mxu0 0.0
  %2516 = vmatpush1.msra.mxu0 0.0
  %2517 = vmatprep.subr.mxu0 0.0
  %2518 = vmatpush1.msra.mxu0 0.0
  %2519 = vmatprep.subr.mxu0 0.0
  %2520 = vmatpush1.msra.mxu0 0.0
  %2521 = vmatprep.subr.mxu0 0.0
  %2522 = vmatpush1.msra.mxu0 0.0
  %2523 = vmatprep.subr.mxu0 0.0
  %2524 = vmatpush1.msra.mxu0 0.0
  %2525 = vmatprep.subr.mxu0 0.0
  %2526 = vmatpush1.msra.mxu0 %v2501
  %2527 = vmatprep.subr.mxu0 0.0
  %2528 = vmatpush1.msra.mxu0 %v2500
  %2529 = vmatprep.subr.mxu0 0.0
  %2530 = vmatpush1.msra.mxu0 %v2499
  %2531 = vmatprep.subr.mxu0 0.0
  %2532 = vmatpush1.msra.mxu0 %v2498
  %2533 = vmatprep.subr.mxu0 0.0
  %2534 = vmatpush1.msra.mxu0 %v2497
  %2535 = vmatprep.subr.mxu0 0.0
  %2536 = vmatpush1.msra.mxu0 %v2496
  %2537 = vmatprep.subr.mxu0 0.0
  %2538 = vmatpush1.msra.mxu0 %v2495
  %2539 = vmatprep.subr.mxu0 0.0
  %2540 = vmatpush1.msra.mxu0 %v2494
  %2541 = vmatprep.subr.mxu0 0.0
  %2542 = vmatpush2.msra.mxu0 0.0
  %2543 = vmatprep.subr.mxu0 0.0
  %2544 = vmatpush2.msra.mxu0 0.0
  %2545 = vmatprep.subr.mxu0 0.0
  %2546 = vmatpush2.msra.mxu0 0.0
  %2547 = vmatprep.subr.mxu0 0.0
  %2548 = vmatpush2.msra.mxu0 0.0
  %2549 = vmatprep.subr.mxu0 0.0
  %2550 = vmatpush2.msra.mxu0 0.0
  %2551 = vmatprep.subr.mxu0 0.0
  %2552 = vmatpush2.msra.mxu0 0.0
  %2553 = vmatprep.subr.mxu0 0.0
  %2554 = vmatpush2.msra.mxu0 0.0
  %2555 = vmatprep.subr.mxu0 0.0
  %2556 = vmatpush2.msra.mxu0 0.0
  %2557 = vmatprep.subr.mxu0 0.0
  %2558 = vmatpush2.msra.mxu0 0.0
  %2559 = vmatprep.subr.mxu0 0.0
  %2560 = vmatpush2.msra.mxu0 0.0
  %2561 = vmatprep.subr.mxu0 0.0
  %2562 = vmatpush2.msra.mxu0 0.0
  %2563 = vmatprep.subr.mxu0 0.0
  %2564 = vmatpush2.msra.mxu0 0.0
  %2565 = vmatprep.subr.mxu0 0.0
  %2566 = vmatpush2.msra.mxu0 0.0
  %2567 = vmatprep.subr.mxu0 0.0
  %2568 = vmatpush2.msra.mxu0 0.0
  %2569 = vmatprep.subr.mxu0 0.0
  %2570 = vmatpush2.msra.mxu0 0.0
  %2571 = vmatprep.subr.mxu0 0.0
  %2572 = vmatpush2.msra.mxu0 0.0
  %2573 = vmatprep.mubr.f32.mxu0 0.0
  %2574 = vmatmul.mubr.f32.gmra.mxu0 %v2366
  %v2575 = vpop.f32.mrf.mxu0
  %v2576 = vadd.f32 %v2507, %v2575
  %v2577 = vpop.f32.mrf.mxu0
  %2578 = vmatprep.mubr.f32.mxu0 0.0
  %2579 = vmatmul.mubr.f32.gmra.mxu0 %v2369
  %v2580 = vpop.f32.mrf.mxu0
  %v2581 = vadd.f32 %v2507, %v2580
  %v2582 = vpop.f32.mrf.mxu0
  %2583 = vmatprep.mubr.f32.mxu0 0.0
  %2584 = vmatmul.mubr.f32.gmra.mxu0 %v2372
  %v2585 = vpop.f32.mrf.mxu0
  %v2586 = vadd.f32 %v2507, %v2585
  %v2587 = vpop.f32.mrf.mxu0
  %2588 = vmatprep.mubr.f32.mxu0 0.0
  %2589 = vmatmul.mubr.f32.gmra.mxu0 %v2375
  %v2590 = vpop.f32.mrf.mxu0
  %v2591 = vadd.f32 %v2507, %v2590
  %v2592 = vpop.f32.mrf.mxu0
  %2593 = vmatprep.mubr.f32.mxu0 0.0
  %2594 = vmatmul.mubr.f32.gmra.mxu0 %v2378
  %v2595 = vpop.f32.mrf.mxu0
  %v2596 = vadd.f32 %v2507, %v2595
  %v2597 = vpop.f32.mrf.mxu0
  %2598 = vmatprep.mubr.f32.mxu0 0.0
  %2599 = vmatmul.mubr.f32.gmra.mxu0 %v2381
  %v2600 = vpop.f32.mrf.mxu0
  %v2601 = vadd.f32 %v2507, %v2600
  %v2602 = vpop.f32.mrf.mxu0
  %2603 = vmatprep.mubr.f32.mxu0 0.0
  %2604 = vmatmul.mubr.f32.gmra.mxu0 %v2384
  %v2605 = vpop.f32.mrf.mxu0
  %v2606 = vadd.f32 %v2507, %v2605
  %v2607 = vpop.f32.mrf.mxu0
  %2608 = vmatprep.mubr.f32.mxu0 0.0
  %2609 = vmatmul.mubr.f32.gmra.mxu0 %v2387
  %v2610 = vpop.f32.mrf.mxu0
  %v2611 = vadd.f32 %v2507, %v2610
  %v2612 = vpop.f32.mrf.mxu0
  %2613 = vdwg.mxu0
  %v2614 = vld [vmem:[%s15] sm:$0xff]
  %v2615 = vld [vmem:[%s15 + $0x8] sm:$0xff]
  %v2616 = vld [vmem:[%s15 + $0x10] sm:$0xff]
  %v2617 = vld [vmem:[%s15 + $0x18] sm:$0xff]
  %v2618 = vld [vmem:[%s15 + $0x20] sm:$0xff]
  %v2619 = vld [vmem:[%s15 + $0x28] sm:$0xff]
  %v2620 = vld [vmem:[%s15 + $0x30] sm:$0xff]
  %v2621 = vld [vmem:[%s15 + $0x38] sm:$0xff]
  %v2622 = vld [vmem:[%s16] sm:$0x1]
  %v2624 = vlaneseq
  %v2625 = vshrl.u32 %v2624, 7
  %v2626 = vsub.s32 0, %v2625
  %v2627 = vrot.slane %v2622, %v2626
  %2629 = vmatprep.subr.mxu0 0.0
  %2630 = vmatpush1.msra.mxu0 0.0
  %2631 = vmatprep.subr.mxu0 0.0
  %2632 = vmatpush1.msra.mxu0 0.0
  %2633 = vmatprep.subr.mxu0 0.0
  %2634 = vmatpush1.msra.mxu0 0.0
  %2635 = vmatprep.subr.mxu0 0.0
  %2636 = vmatpush1.msra.mxu0 0.0
  %2637 = vmatprep.subr.mxu0 0.0
  %2638 = vmatpush1.msra.mxu0 0.0
  %2639 = vmatprep.subr.mxu0 0.0
  %2640 = vmatpush1.msra.mxu0 0.0
  %2641 = vmatprep.subr.mxu0 0.0
  %2642 = vmatpush1.msra.mxu0 0.0
  %2643 = vmatprep.subr.mxu0 0.0
  %2644 = vmatpush1.msra.mxu0 0.0
  %2645 = vmatprep.subr.mxu0 0.0
  %2646 = vmatpush1.msra.mxu0 %v2621
  %2647 = vmatprep.subr.mxu0 0.0
  %2648 = vmatpush1.msra.mxu0 %v2620
  %2649 = vmatprep.subr.mxu0 0.0
  %2650 = vmatpush1.msra.mxu0 %v2619
  %2651 = vmatprep.subr.mxu0 0.0
  %2652 = vmatpush1.msra.mxu0 %v2618
  %2653 = vmatprep.subr.mxu0 0.0
  %2654 = vmatpush1.msra.mxu0 %v2617
  %2655 = vmatprep.subr.mxu0 0.0
  %2656 = vmatpush1.msra.mxu0 %v2616
  %2657 = vmatprep.subr.mxu0 0.0
  %2658 = vmatpush1.msra.mxu0 %v2615
  %2659 = vmatprep.subr.mxu0 0.0
  %2660 = vmatpush1.msra.mxu0 %v2614
  %2661 = vmatprep.subr.mxu0 0.0
  %2662 = vmatpush2.msra.mxu0 0.0
  %2663 = vmatprep.subr.mxu0 0.0
  %2664 = vmatpush2.msra.mxu0 0.0
  %2665 = vmatprep.subr.mxu0 0.0
  %2666 = vmatpush2.msra.mxu0 0.0
  %2667 = vmatprep.subr.mxu0 0.0
  %2668 = vmatpush2.msra.mxu0 0.0
  %2669 = vmatprep.subr.mxu0 0.0
  %2670 = vmatpush2.msra.mxu0 0.0
  %2671 = vmatprep.subr.mxu0 0.0
  %2672 = vmatpush2.msra.mxu0 0.0
  %2673 = vmatprep.subr.mxu0 0.0
  %2674 = vmatpush2.msra.mxu0 0.0
  %2675 = vmatprep.subr.mxu0 0.0
  %2676 = vmatpush2.msra.mxu0 0.0
  %2677 = vmatprep.subr.mxu0 0.0
  %2678 = vmatpush2.msra.mxu0 0.0
  %2679 = vmatprep.subr.mxu0 0.0
  %2680 = vmatpush2.msra.mxu0 0.0
  %2681 = vmatprep.subr.mxu0 0.0
  %2682 = vmatpush2.msra.mxu0 0.0
  %2683 = vmatprep.subr.mxu0 0.0
  %2684 = vmatpush2.msra.mxu0 0.0
  %2685 = vmatprep.subr.mxu0 0.0
  %2686 = vmatpush2.msra.mxu0 0.0
  %2687 = vmatprep.subr.mxu0 0.0
  %2688 = vmatpush2.msra.mxu0 0.0
  %2689 = vmatprep.subr.mxu0 0.0
  %2690 = vmatpush2.msra.mxu0 0.0
  %2691 = vmatprep.subr.mxu0 0.0
  %2692 = vmatpush2.msra.mxu0 0.0
  %2693 = vmatprep.mubr.f32.mxu0 0.0
  %2694 = vmatmul.mubr.f32.gmra.mxu0 %v2366
  %v2695 = vpop.f32.mrf.mxu0
  %v2696 = vadd.f32 %v2627, %v2695
  %v2697 = vpop.f32.mrf.mxu0
  %2698 = vmatprep.mubr.f32.mxu0 0.0
  %2699 = vmatmul.mubr.f32.gmra.mxu0 %v2369
  %v2700 = vpop.f32.mrf.mxu0
  %v2701 = vadd.f32 %v2627, %v2700
  %v2702 = vpop.f32.mrf.mxu0
  %2703 = vmatprep.mubr.f32.mxu0 0.0
  %2704 = vmatmul.mubr.f32.gmra.mxu0 %v2372
  %v2705 = vpop.f32.mrf.mxu0
  %v2706 = vadd.f32 %v2627, %v2705
  %v2707 = vpop.f32.mrf.mxu0
  %2708 = vmatprep.mubr.f32.mxu0 0.0
  %2709 = vmatmul.mubr.f32.gmra.mxu0 %v2375
  %v2710 = vpop.f32.mrf.mxu0
  %v2711 = vadd.f32 %v2627, %v2710
  %v2712 = vpop.f32.mrf.mxu0
  %2713 = vmatprep.mubr.f32.mxu0 0.0
  %2714 = vmatmul.mubr.f32.gmra.mxu0 %v2378
  %v2715 = vpop.f32.mrf.mxu0
  %v2716 = vadd.f32 %v2627, %v2715
  %v2717 = vpop.f32.mrf.mxu0
  %2718 = vmatprep.mubr.f32.mxu0 0.0
  %2719 = vmatmul.mubr.f32.gmra.mxu0 %v2381
  %v2720 = vpop.f32.mrf.mxu0
  %v2721 = vadd.f32 %v2627, %v2720
  %v2722 = vpop.f32.mrf.mxu0
  %2723 = vmatprep.mubr.f32.mxu0 0.0
  %2724 = vmatmul.mubr.f32.gmra.mxu0 %v2384
  %v2725 = vpop.f32.mrf.mxu0
  %v2726 = vadd.f32 %v2627, %v2725
  %v2727 = vpop.f32.mrf.mxu0
  %2728 = vmatprep.mubr.f32.mxu0 0.0
  %2729 = vmatmul.mubr.f32.gmra.mxu0 %v2387
  %v2730 = vpop.f32.mrf.mxu0
  %v2731 = vadd.f32 %v2627, %v2730
  %v2732 = vpop.f32.mrf.mxu0
  %2733 = vdwg.mxu0
  %vm2734 = vcmp.lt.s32.totalorder %v1794, 16
  %vm2735 = vmand %vm2015, %vm2734
  %v2736 = vsel %vm2735, 1, 0
  %v2737 = vcvt.s32.f32 %v2736
  %v2738 = vmul.f32 %v2576, %v2737
  %v2739 = vmul.f32 %v2581, %v2737
  %v2740 = vmul.f32 %v2586, %v2737
  %v2741 = vmul.f32 %v2591, %v2737
  %v2742 = vmul.f32 %v2596, %v2737
  %v2743 = vmul.f32 %v2601, %v2737
  %v2744 = vmul.f32 %v2606, %v2737
  %v2745 = vmul.f32 %v2611, %v2737
  %v2747 = vsel %vm588, %v2456, 0
  %v2750 = vsel %vm588, %v2461, 0
  %v2753 = vsel %vm588, %v2466, 0
  %v2756 = vsel %vm588, %v2471, 0
  %v2759 = vsel %vm588, %v2476, 0
  %v2762 = vsel %vm588, %v2481, 0
  %v2765 = vsel %vm588, %v2486, 0
  %v2768 = vsel %vm588, %v2491, 0
  %v2771 = vsel %vm588, %v2738, 0
  %v2774 = vsel %vm588, %v2739, 0
  %v2777 = vsel %vm588, %v2740, 0
  %v2780 = vsel %vm588, %v2741, 0
  %v2783 = vsel %vm588, %v2742, 0
  %v2786 = vsel %vm588, %v2743, 0
  %v2789 = vsel %vm588, %v2744, 0
  %v2792 = vsel %vm588, %v2745, 0
  %2794 = vmatprep.subr.mxu0 0.0
  %2795 = vmatpush1.xpose.msra.mxu0 0.0
  %2796 = vmatprep.subr.mxu0 0.0
  %2797 = vmatpush1.xpose.msra.mxu0 0.0
  %2798 = vmatprep.subr.mxu0 0.0
  %2799 = vmatpush1.xpose.msra.mxu0 0.0
  %2800 = vmatprep.subr.mxu0 0.0
  %2801 = vmatpush1.xpose.msra.mxu0 0.0
  %2802 = vmatprep.subr.mxu0 0.0
  %2803 = vmatpush1.xpose.msra.mxu0 0.0
  %2804 = vmatprep.subr.mxu0 0.0
  %2805 = vmatpush1.xpose.msra.mxu0 0.0
  %2806 = vmatprep.subr.mxu0 0.0
  %2807 = vmatpush1.xpose.msra.mxu0 0.0
  %2808 = vmatprep.subr.mxu0 0.0
  %2809 = vmatpush1.xpose.msra.mxu0 0.0
  %2810 = vmatprep.subr.mxu0 0.0
  %2811 = vmatpush1.xpose.msra.mxu0 %v2792
  %2812 = vmatprep.subr.mxu0 0.0
  %2813 = vmatpush1.xpose.msra.mxu0 %v2789
  %2814 = vmatprep.subr.mxu0 0.0
  %2815 = vmatpush1.xpose.msra.mxu0 %v2786
  %2816 = vmatprep.subr.mxu0 0.0
  %2817 = vmatpush1.xpose.msra.mxu0 %v2783
  %2818 = vmatprep.subr.mxu0 0.0
  %2819 = vmatpush1.xpose.msra.mxu0 %v2780
  %2820 = vmatprep.subr.mxu0 0.0
  %2821 = vmatpush1.xpose.msra.mxu0 %v2777
  %2822 = vmatprep.subr.mxu0 0.0
  %2823 = vmatpush1.xpose.msra.mxu0 %v2774
  %2824 = vmatprep.subr.mxu0 0.0
  %2825 = vmatpush1.xpose.msra.mxu0 %v2771
  %2826 = vmatprep.subr.mxu0 0.0
  %2827 = vmatpush2.xpose.msra.mxu0 0.0
  %2828 = vmatprep.subr.mxu0 0.0
  %2829 = vmatpush2.xpose.msra.mxu0 0.0
  %2830 = vmatprep.subr.mxu0 0.0
  %2831 = vmatpush2.xpose.msra.mxu0 0.0
  %2832 = vmatprep.subr.mxu0 0.0
  %2833 = vmatpush2.xpose.msra.mxu0 0.0
  %2834 = vmatprep.subr.mxu0 0.0
  %2835 = vmatpush2.xpose.msra.mxu0 0.0
  %2836 = vmatprep.subr.mxu0 0.0
  %2837 = vmatpush2.xpose.msra.mxu0 0.0
  %2838 = vmatprep.subr.mxu0 0.0
  %2839 = vmatpush2.xpose.msra.mxu0 0.0
  %2840 = vmatprep.subr.mxu0 0.0
  %2841 = vmatpush2.xpose.msra.mxu0 0.0
  %2842 = vmatprep.subr.mxu0 0.0
  %2843 = vmatpush2.xpose.msra.mxu0 0.0
  %2844 = vmatprep.subr.mxu0 0.0
  %2845 = vmatpush2.xpose.msra.mxu0 0.0
  %2846 = vmatprep.subr.mxu0 0.0
  %2847 = vmatpush2.xpose.msra.mxu0 0.0
  %2848 = vmatprep.subr.mxu0 0.0
  %2849 = vmatpush2.xpose.msra.mxu0 0.0
  %2850 = vmatprep.subr.mxu0 0.0
  %2851 = vmatpush2.xpose.msra.mxu0 0.0
  %2852 = vmatprep.subr.mxu0 0.0
  %2853 = vmatpush2.xpose.msra.mxu0 0.0
  %2854 = vmatprep.subr.mxu0 0.0
  %2855 = vmatpush2.xpose.msra.mxu0 0.0
  %2856 = vmatprep.subr.mxu0 0.0
  %2857 = vmatpush2.xpose.msra.mxu0 0.0
  %2858 = vmatprep.mubr.f32.mxu0 0.0
  %2859 = vmatmul.mubr.f32.gmra.mxu0 %v2747
  %v2860 = vpop.f32.mrf.mxu0
  %v2861 = vadd.f32 0.0, %v2860
  %v2862 = vpop.f32.mrf.mxu0
  %2863 = vmatprep.mubr.f32.mxu0 0.0
  %2864 = vmatmul.mubr.f32.gmra.mxu0 %v2750
  %v2865 = vpop.f32.mrf.mxu0
  %v2866 = vadd.f32 0.0, %v2865
  %v2867 = vpop.f32.mrf.mxu0
  %2868 = vmatprep.mubr.f32.mxu0 0.0
  %2869 = vmatmul.mubr.f32.gmra.mxu0 %v2753
  %v2870 = vpop.f32.mrf.mxu0
  %v2871 = vadd.f32 0.0, %v2870
  %v2872 = vpop.f32.mrf.mxu0
  %2873 = vmatprep.mubr.f32.mxu0 0.0
  %2874 = vmatmul.mubr.f32.gmra.mxu0 %v2756
  %v2875 = vpop.f32.mrf.mxu0
  %v2876 = vadd.f32 0.0, %v2875
  %v2877 = vpop.f32.mrf.mxu0
  %2878 = vmatprep.mubr.f32.mxu0 0.0
  %2879 = vmatmul.mubr.f32.gmra.mxu0 %v2759
  %v2880 = vpop.f32.mrf.mxu0
  %v2881 = vadd.f32 0.0, %v2880
  %v2882 = vpop.f32.mrf.mxu0
  %2883 = vmatprep.mubr.f32.mxu0 0.0
  %2884 = vmatmul.mubr.f32.gmra.mxu0 %v2762
  %v2885 = vpop.f32.mrf.mxu0
  %v2886 = vadd.f32 0.0, %v2885
  %v2887 = vpop.f32.mrf.mxu0
  %2888 = vmatprep.mubr.f32.mxu0 0.0
  %2889 = vmatmul.mubr.f32.gmra.mxu0 %v2765
  %v2890 = vpop.f32.mrf.mxu0
  %v2891 = vadd.f32 0.0, %v2890
  %v2892 = vpop.f32.mrf.mxu0
  %2893 = vmatprep.mubr.f32.mxu0 0.0
  %2894 = vmatmul.mubr.f32.gmra.mxu0 %v2768
  %v2895 = vpop.f32.mrf.mxu0
  %v2896 = vadd.f32 0.0, %v2895
  %v2897 = vpop.f32.mrf.mxu0
  %2898 = vdwg.mxu0
  %v2899 = vmul.f32 %v2861, 0.25
  %v2900 = vmul.f32 %v2866, 0.25
  %v2901 = vmul.f32 %v2871, 0.25
  %v2902 = vmul.f32 %v2876, 0.25
  %v2903 = vmul.f32 %v2881, 0.25
  %v2904 = vmul.f32 %v2886, 0.25
  %v2905 = vmul.f32 %v2891, 0.25
  %v2906 = vmul.f32 %v2896, 0.25
  %v2907 = vadd.f32 %v2899, %v2342
  %v2908 = vadd.f32 %v2900, %v2343
  %v2909 = vadd.f32 %v2901, %v2344
  %v2910 = vadd.f32 %v2902, %v2345
  %v2911 = vadd.f32 %v2903, %v2346
  %v2912 = vadd.f32 %v2904, %v2347
  %v2913 = vadd.f32 %v2905, %v2348
  %v2914 = vadd.f32 %v2906, %v2349
  %v2915 = vsel %vm588, %v2907, -inf
  %2916 = vmax.xlane.f32.xlu0 %v2915
  %v2917 = vpop.xlane.xlu0 %2916
  %v2918 = vsel %vm588, %v2908, -inf
  %2919 = vmax.xlane.f32.xlu0 %v2918
  %v2920 = vpop.xlane.xlu0 %2919
  %v2921 = vsel %vm588, %v2909, -inf
  %2922 = vmax.xlane.f32.xlu0 %v2921
  %v2923 = vpop.xlane.xlu0 %2922
  %v2924 = vsel %vm588, %v2910, -inf
  %2925 = vmax.xlane.f32.xlu0 %v2924
  %v2926 = vpop.xlane.xlu0 %2925
  %v2927 = vsel %vm588, %v2911, -inf
  %2928 = vmax.xlane.f32.xlu0 %v2927
  %v2929 = vpop.xlane.xlu0 %2928
  %v2930 = vsel %vm588, %v2912, -inf
  %2931 = vmax.xlane.f32.xlu0 %v2930
  %v2932 = vpop.xlane.xlu0 %2931
  %v2933 = vsel %vm588, %v2913, -inf
  %2934 = vmax.xlane.f32.xlu0 %v2933
  %v2935 = vpop.xlane.xlu0 %2934
  %v2936 = vsel %vm588, %v2914, -inf
  %2937 = vmax.xlane.f32.xlu0 %v2936
  %v2938 = vpop.xlane.xlu0 %2937
  %v2939 = vsub.f32 %v2907, %v2917
  %v2940 = vsub.f32 %v2908, %v2920
  %v2941 = vsub.f32 %v2909, %v2923
  %v2942 = vsub.f32 %v2910, %v2926
  %v2943 = vsub.f32 %v2911, %v2929
  %v2944 = vsub.f32 %v2912, %v2932
  %v2945 = vsub.f32 %v2913, %v2935
  %v2946 = vsub.f32 %v2914, %v2938
  %v2947 = vmul.f32 %v2939, 1.442695
  %v2948 = vpow.pop %v2947
  %v2949 = vmul.f32 %v2940, 1.442695
  %v2950 = vpow.pop %v2949
  %v2951 = vmul.f32 %v2941, 1.442695
  %v2952 = vpow.pop %v2951
  %v2953 = vmul.f32 %v2942, 1.442695
  %v2954 = vpow.pop %v2953
  %v2955 = vmul.f32 %v2943, 1.442695
  %v2956 = vpow.pop %v2955
  %v2957 = vmul.f32 %v2944, 1.442695
  %v2958 = vpow.pop %v2957
  %v2959 = vmul.f32 %v2945, 1.442695
  %v2960 = vpow.pop %v2959
  %v2961 = vmul.f32 %v2946, 1.442695
  %v2962 = vpow.pop %v2961
  %v2963 = vsel %vm588, %v2948, 0.0
  %2964 = vadd.xlane.f32.xlu0 %v2963
  %v2965 = vpop.xlane.xlu0 %2964
  %v2966 = vsel %vm588, %v2950, 0.0
  %2967 = vadd.xlane.f32.xlu0 %v2966
  %v2968 = vpop.xlane.xlu0 %2967
  %v2969 = vsel %vm588, %v2952, 0.0
  %2970 = vadd.xlane.f32.xlu0 %v2969
  %v2971 = vpop.xlane.xlu0 %2970
  %v2972 = vsel %vm588, %v2954, 0.0
  %2973 = vadd.xlane.f32.xlu0 %v2972
  %v2974 = vpop.xlane.xlu0 %2973
  %v2975 = vsel %vm588, %v2956, 0.0
  %2976 = vadd.xlane.f32.xlu0 %v2975
  %v2977 = vpop.xlane.xlu0 %2976
  %v2978 = vsel %vm588, %v2958, 0.0
  %2979 = vadd.xlane.f32.xlu0 %v2978
  %v2980 = vpop.xlane.xlu0 %2979
  %v2981 = vsel %vm588, %v2960, 0.0
  %2982 = vadd.xlane.f32.xlu0 %v2981
  %v2983 = vpop.xlane.xlu0 %2982
  %v2984 = vsel %vm588, %v2962, 0.0
  %2985 = vadd.xlane.f32.xlu0 %v2984
  %v2986 = vpop.xlane.xlu0 %2985
  %v2987 = vrcp.pop %v2965
  %v2988 = vrcp.pop %v2968
  %v2989 = vrcp.pop %v2971
  %v2990 = vrcp.pop %v2974
  %v2991 = vrcp.pop %v2977
  %v2992 = vrcp.pop %v2980
  %v2993 = vrcp.pop %v2983
  %v2994 = vrcp.pop %v2986
  %v2995 = vmul.f32 %v2948, %v2987
  %v2996 = vmul.f32 %v2950, %v2988
  %v2997 = vmul.f32 %v2952, %v2989
  %v2998 = vmul.f32 %v2954, %v2990
  %v2999 = vmul.f32 %v2956, %v2991
  %v3000 = vmul.f32 %v2958, %v2992
  %v3001 = vmul.f32 %v2960, %v2993
  %v3002 = vmul.f32 %v2962, %v2994
  %v3003 = vmul.f32 %v2696, %v2737
  %v3004 = vmul.f32 %v2701, %v2737
  %v3005 = vmul.f32 %v2706, %v2737
  %v3006 = vmul.f32 %v2711, %v2737
  %v3007 = vmul.f32 %v2716, %v2737
  %v3008 = vmul.f32 %v2721, %v2737
  %v3009 = vmul.f32 %v2726, %v2737
  %v3010 = vmul.f32 %v2731, %v2737
  %vm3011 = vcmp.lt.s32.totalorder %v1794, 32
  %vm3012 = vmand %vm2096, %vm3011
  %v3013 = vsel %vm3012, 1, 0
  %v3014 = vcvt.s32.f32 %v3013
  %v3015 = vmul.f32 %v2576, %v3014
  %v3016 = vmul.f32 %v2581, %v3014
  %v3017 = vmul.f32 %v2586, %v3014
  %v3018 = vmul.f32 %v2591, %v3014
  %v3019 = vmul.f32 %v2596, %v3014
  %v3020 = vmul.f32 %v2601, %v3014
  %v3021 = vmul.f32 %v2606, %v3014
  %v3022 = vmul.f32 %v2611, %v3014
  %v3024 = vsel %vm588, %v3015, 0
  %v3027 = vsel %vm588, %v3016, 0
  %v3030 = vsel %vm588, %v3017, 0
  %v3033 = vsel %vm588, %v3018, 0
  %v3036 = vsel %vm588, %v3019, 0
  %v3039 = vsel %vm588, %v3020, 0
  %v3042 = vsel %vm588, %v3021, 0
  %v3045 = vsel %vm588, %v3022, 0
  %3047 = vmatprep.subr.mxu0 0.0
  %3048 = vmatpush1.xpose.msra.mxu0 0.0
  %3049 = vmatprep.subr.mxu0 0.0
  %3050 = vmatpush1.xpose.msra.mxu0 0.0
  %3051 = vmatprep.subr.mxu0 0.0
  %3052 = vmatpush1.xpose.msra.mxu0 0.0
  %3053 = vmatprep.subr.mxu0 0.0
  %3054 = vmatpush1.xpose.msra.mxu0 0.0
  %3055 = vmatprep.subr.mxu0 0.0
  %3056 = vmatpush1.xpose.msra.mxu0 0.0
  %3057 = vmatprep.subr.mxu0 0.0
  %3058 = vmatpush1.xpose.msra.mxu0 0.0
  %3059 = vmatprep.subr.mxu0 0.0
  %3060 = vmatpush1.xpose.msra.mxu0 0.0
  %3061 = vmatprep.subr.mxu0 0.0
  %3062 = vmatpush1.xpose.msra.mxu0 0.0
  %3063 = vmatprep.subr.mxu0 0.0
  %3064 = vmatpush1.xpose.msra.mxu0 %v3045
  %3065 = vmatprep.subr.mxu0 0.0
  %3066 = vmatpush1.xpose.msra.mxu0 %v3042
  %3067 = vmatprep.subr.mxu0 0.0
  %3068 = vmatpush1.xpose.msra.mxu0 %v3039
  %3069 = vmatprep.subr.mxu0 0.0
  %3070 = vmatpush1.xpose.msra.mxu0 %v3036
  %3071 = vmatprep.subr.mxu0 0.0
  %3072 = vmatpush1.xpose.msra.mxu0 %v3033
  %3073 = vmatprep.subr.mxu0 0.0
  %3074 = vmatpush1.xpose.msra.mxu0 %v3030
  %3075 = vmatprep.subr.mxu0 0.0
  %3076 = vmatpush1.xpose.msra.mxu0 %v3027
  %3077 = vmatprep.subr.mxu0 0.0
  %3078 = vmatpush1.xpose.msra.mxu0 %v3024
  %3079 = vmatprep.subr.mxu0 0.0
  %3080 = vmatpush2.xpose.msra.mxu0 0.0
  %3081 = vmatprep.subr.mxu0 0.0
  %3082 = vmatpush2.xpose.msra.mxu0 0.0
  %3083 = vmatprep.subr.mxu0 0.0
  %3084 = vmatpush2.xpose.msra.mxu0 0.0
  %3085 = vmatprep.subr.mxu0 0.0
  %3086 = vmatpush2.xpose.msra.mxu0 0.0
  %3087 = vmatprep.subr.mxu0 0.0
  %3088 = vmatpush2.xpose.msra.mxu0 0.0
  %3089 = vmatprep.subr.mxu0 0.0
  %3090 = vmatpush2.xpose.msra.mxu0 0.0
  %3091 = vmatprep.subr.mxu0 0.0
  %3092 = vmatpush2.xpose.msra.mxu0 0.0
  %3093 = vmatprep.subr.mxu0 0.0
  %3094 = vmatpush2.xpose.msra.mxu0 0.0
  %3095 = vmatprep.subr.mxu0 0.0
  %3096 = vmatpush2.xpose.msra.mxu0 0.0
  %3097 = vmatprep.subr.mxu0 0.0
  %3098 = vmatpush2.xpose.msra.mxu0 0.0
  %3099 = vmatprep.subr.mxu0 0.0
  %3100 = vmatpush2.xpose.msra.mxu0 0.0
  %3101 = vmatprep.subr.mxu0 0.0
  %3102 = vmatpush2.xpose.msra.mxu0 0.0
  %3103 = vmatprep.subr.mxu0 0.0
  %3104 = vmatpush2.xpose.msra.mxu0 0.0
  %3105 = vmatprep.subr.mxu0 0.0
  %3106 = vmatpush2.xpose.msra.mxu0 0.0
  %3107 = vmatprep.subr.mxu0 0.0
  %3108 = vmatpush2.xpose.msra.mxu0 0.0
  %3109 = vmatprep.subr.mxu0 0.0
  %3110 = vmatpush2.xpose.msra.mxu0 0.0
  %3111 = vmatprep.mubr.f32.mxu0 0.0
  %3112 = vmatmul.mubr.f32.gmra.mxu0 %v2747
  %v3113 = vpop.f32.mrf.mxu0
  %v3114 = vadd.f32 0.0, %v3113
  %v3115 = vpop.f32.mrf.mxu0
  %3116 = vmatprep.mubr.f32.mxu0 0.0
  %3117 = vmatmul.mubr.f32.gmra.mxu0 %v2750
  %v3118 = vpop.f32.mrf.mxu0
  %v3119 = vadd.f32 0.0, %v3118
  %v3120 = vpop.f32.mrf.mxu0
  %3121 = vmatprep.mubr.f32.mxu0 0.0
  %3122 = vmatmul.mubr.f32.gmra.mxu0 %v2753
  %v3123 = vpop.f32.mrf.mxu0
  %v3124 = vadd.f32 0.0, %v3123
  %v3125 = vpop.f32.mrf.mxu0
  %3126 = vmatprep.mubr.f32.mxu0 0.0
  %3127 = vmatmul.mubr.f32.gmra.mxu0 %v2756
  %v3128 = vpop.f32.mrf.mxu0
  %v3129 = vadd.f32 0.0, %v3128
  %v3130 = vpop.f32.mrf.mxu0
  %3131 = vmatprep.mubr.f32.mxu0 0.0
  %3132 = vmatmul.mubr.f32.gmra.mxu0 %v2759
  %v3133 = vpop.f32.mrf.mxu0
  %v3134 = vadd.f32 0.0, %v3133
  %v3135 = vpop.f32.mrf.mxu0
  %3136 = vmatprep.mubr.f32.mxu0 0.0
  %3137 = vmatmul.mubr.f32.gmra.mxu0 %v2762
  %v3138 = vpop.f32.mrf.mxu0
  %v3139 = vadd.f32 0.0, %v3138
  %v3140 = vpop.f32.mrf.mxu0
  %3141 = vmatprep.mubr.f32.mxu0 0.0
  %3142 = vmatmul.mubr.f32.gmra.mxu0 %v2765
  %v3143 = vpop.f32.mrf.mxu0
  %v3144 = vadd.f32 0.0, %v3143
  %v3145 = vpop.f32.mrf.mxu0
  %3146 = vmatprep.mubr.f32.mxu0 0.0
  %3147 = vmatmul.mubr.f32.gmra.mxu0 %v2768
  %v3148 = vpop.f32.mrf.mxu0
  %v3149 = vadd.f32 0.0, %v3148
  %v3150 = vpop.f32.mrf.mxu0
  %3151 = vdwg.mxu0
  %v3152 = vmul.f32 %v3114, 0.25
  %v3153 = vmul.f32 %v3119, 0.25
  %v3154 = vmul.f32 %v3124, 0.25
  %v3155 = vmul.f32 %v3129, 0.25
  %v3156 = vmul.f32 %v3134, 0.25
  %v3157 = vmul.f32 %v3139, 0.25
  %v3158 = vmul.f32 %v3144, 0.25
  %v3159 = vmul.f32 %v3149, 0.25
  %v3160 = vadd.f32 %v3152, %v2342
  %v3161 = vadd.f32 %v3153, %v2343
  %v3162 = vadd.f32 %v3154, %v2344
  %v3163 = vadd.f32 %v3155, %v2345
  %v3164 = vadd.f32 %v3156, %v2346
  %v3165 = vadd.f32 %v3157, %v2347
  %v3166 = vadd.f32 %v3158, %v2348
  %v3167 = vadd.f32 %v3159, %v2349
  %v3168 = vsel %vm588, %v3160, -inf
  %3169 = vmax.xlane.f32.xlu0 %v3168
  %v3170 = vpop.xlane.xlu0 %3169
  %v3171 = vsel %vm588, %v3161, -inf
  %3172 = vmax.xlane.f32.xlu0 %v3171
  %v3173 = vpop.xlane.xlu0 %3172
  %v3174 = vsel %vm588, %v3162, -inf
  %3175 = vmax.xlane.f32.xlu0 %v3174
  %v3176 = vpop.xlane.xlu0 %3175
  %v3177 = vsel %vm588, %v3163, -inf
  %3178 = vmax.xlane.f32.xlu0 %v3177
  %v3179 = vpop.xlane.xlu0 %3178
  %v3180 = vsel %vm588, %v3164, -inf
  %3181 = vmax.xlane.f32.xlu0 %v3180
  %v3182 = vpop.xlane.xlu0 %3181
  %v3183 = vsel %vm588, %v3165, -inf
  %3184 = vmax.xlane.f32.xlu0 %v3183
  %v3185 = vpop.xlane.xlu0 %3184
  %v3186 = vsel %vm588, %v3166, -inf
  %3187 = vmax.xlane.f32.xlu0 %v3186
  %v3188 = vpop.xlane.xlu0 %3187
  %v3189 = vsel %vm588, %v3167, -inf
  %3190 = vmax.xlane.f32.xlu0 %v3189
  %v3191 = vpop.xlane.xlu0 %3190
  %v3192 = vsub.f32 %v3160, %v3170
  %v3193 = vsub.f32 %v3161, %v3173
  %v3194 = vsub.f32 %v3162, %v3176
  %v3195 = vsub.f32 %v3163, %v3179
  %v3196 = vsub.f32 %v3164, %v3182
  %v3197 = vsub.f32 %v3165, %v3185
  %v3198 = vsub.f32 %v3166, %v3188
  %v3199 = vsub.f32 %v3167, %v3191
  %v3200 = vmul.f32 %v3192, 1.442695
  %v3201 = vpow.pop %v3200
  %v3202 = vmul.f32 %v3193, 1.442695
  %v3203 = vpow.pop %v3202
  %v3204 = vmul.f32 %v3194, 1.442695
  %v3205 = vpow.pop %v3204
  %v3206 = vmul.f32 %v3195, 1.442695
  %v3207 = vpow.pop %v3206
  %v3208 = vmul.f32 %v3196, 1.442695
  %v3209 = vpow.pop %v3208
  %v3210 = vmul.f32 %v3197, 1.442695
  %v3211 = vpow.pop %v3210
  %v3212 = vmul.f32 %v3198, 1.442695
  %v3213 = vpow.pop %v3212
  %v3214 = vmul.f32 %v3199, 1.442695
  %v3215 = vpow.pop %v3214
  %v3216 = vsel %vm588, %v3201, 0.0
  %3217 = vadd.xlane.f32.xlu0 %v3216
  %v3218 = vpop.xlane.xlu0 %3217
  %v3219 = vsel %vm588, %v3203, 0.0
  %3220 = vadd.xlane.f32.xlu0 %v3219
  %v3221 = vpop.xlane.xlu0 %3220
  %v3222 = vsel %vm588, %v3205, 0.0
  %3223 = vadd.xlane.f32.xlu0 %v3222
  %v3224 = vpop.xlane.xlu0 %3223
  %v3225 = vsel %vm588, %v3207, 0.0
  %3226 = vadd.xlane.f32.xlu0 %v3225
  %v3227 = vpop.xlane.xlu0 %3226
  %v3228 = vsel %vm588, %v3209, 0.0
  %3229 = vadd.xlane.f32.xlu0 %v3228
  %v3230 = vpop.xlane.xlu0 %3229
  %v3231 = vsel %vm588, %v3211, 0.0
  %3232 = vadd.xlane.f32.xlu0 %v3231
  %v3233 = vpop.xlane.xlu0 %3232
  %v3234 = vsel %vm588, %v3213, 0.0
  %3235 = vadd.xlane.f32.xlu0 %v3234
  %v3236 = vpop.xlane.xlu0 %3235
  %v3237 = vsel %vm588, %v3215, 0.0
  %3238 = vadd.xlane.f32.xlu0 %v3237
  %v3239 = vpop.xlane.xlu0 %3238
  %v3240 = vrcp.pop %v3218
  %v3241 = vrcp.pop %v3221
  %v3242 = vrcp.pop %v3224
  %v3243 = vrcp.pop %v3227
  %v3244 = vrcp.pop %v3230
  %v3245 = vrcp.pop %v3233
  %v3246 = vrcp.pop %v3236
  %v3247 = vrcp.pop %v3239
  %v3248 = vmul.f32 %v3201, %v3240
  %v3249 = vmul.f32 %v3203, %v3241
  %v3250 = vmul.f32 %v3205, %v3242
  %v3251 = vmul.f32 %v3207, %v3243
  %v3252 = vmul.f32 %v3209, %v3244
  %v3253 = vmul.f32 %v3211, %v3245
  %v3254 = vmul.f32 %v3213, %v3246
  %v3255 = vmul.f32 %v3215, %v3247
  %v3256 = vmul.f32 %v2696, %v3014
  %v3257 = vmul.f32 %v2701, %v3014
  %v3258 = vmul.f32 %v2706, %v3014
  %v3259 = vmul.f32 %v2711, %v3014
  %v3260 = vmul.f32 %v2716, %v3014
  %v3261 = vmul.f32 %v2721, %v3014
  %v3262 = vmul.f32 %v2726, %v3014
  %v3263 = vmul.f32 %v2731, %v3014
  %v3265 = vsel %vm588, %v3248, 0
  %v3268 = vsel %vm588, %v3249, 0
  %v3271 = vsel %vm588, %v3250, 0
  %v3274 = vsel %vm588, %v3251, 0
  %v3277 = vsel %vm588, %v3252, 0
  %v3280 = vsel %vm588, %v3253, 0
  %v3283 = vsel %vm588, %v3254, 0
  %v3286 = vsel %vm588, %v3255, 0
  %3288 = vmatprep.subr.mxu0 0.0
  %3289 = vmatpush1.msra.mxu0 0.0
  %3290 = vmatprep.subr.mxu0 0.0
  %3291 = vmatpush1.msra.mxu0 0.0
  %3292 = vmatprep.subr.mxu0 0.0
  %3293 = vmatpush1.msra.mxu0 0.0
  %3294 = vmatprep.subr.mxu0 0.0
  %3295 = vmatpush1.msra.mxu0 0.0
  %3296 = vmatprep.subr.mxu0 0.0
  %3297 = vmatpush1.msra.mxu0 0.0
  %3298 = vmatprep.subr.mxu0 0.0
  %3299 = vmatpush1.msra.mxu0 0.0
  %3300 = vmatprep.subr.mxu0 0.0
  %3301 = vmatpush1.msra.mxu0 0.0
  %3302 = vmatprep.subr.mxu0 0.0
  %3303 = vmatpush1.msra.mxu0 0.0
  %3304 = vmatprep.subr.mxu0 0.0
  %3305 = vmatpush1.msra.mxu0 %v3263
  %3306 = vmatprep.subr.mxu0 0.0
  %3307 = vmatpush1.msra.mxu0 %v3262
  %3308 = vmatprep.subr.mxu0 0.0
  %3309 = vmatpush1.msra.mxu0 %v3261
  %3310 = vmatprep.subr.mxu0 0.0
  %3311 = vmatpush1.msra.mxu0 %v3260
  %3312 = vmatprep.subr.mxu0 0.0
  %3313 = vmatpush1.msra.mxu0 %v3259
  %3314 = vmatprep.subr.mxu0 0.0
  %3315 = vmatpush1.msra.mxu0 %v3258
  %3316 = vmatprep.subr.mxu0 0.0
  %3317 = vmatpush1.msra.mxu0 %v3257
  %3318 = vmatprep.subr.mxu0 0.0
  %3319 = vmatpush1.msra.mxu0 %v3256
  %3320 = vmatprep.subr.mxu0 0.0
  %3321 = vmatpush2.msra.mxu0 0.0
  %3322 = vmatprep.subr.mxu0 0.0
  %3323 = vmatpush2.msra.mxu0 0.0
  %3324 = vmatprep.subr.mxu0 0.0
  %3325 = vmatpush2.msra.mxu0 0.0
  %3326 = vmatprep.subr.mxu0 0.0
  %3327 = vmatpush2.msra.mxu0 0.0
  %3328 = vmatprep.subr.mxu0 0.0
  %3329 = vmatpush2.msra.mxu0 0.0
  %3330 = vmatprep.subr.mxu0 0.0
  %3331 = vmatpush2.msra.mxu0 0.0
  %3332 = vmatprep.subr.mxu0 0.0
  %3333 = vmatpush2.msra.mxu0 0.0
  %3334 = vmatprep.subr.mxu0 0.0
  %3335 = vmatpush2.msra.mxu0 0.0
  %3336 = vmatprep.subr.mxu0 0.0
  %3337 = vmatpush2.msra.mxu0 0.0
  %3338 = vmatprep.subr.mxu0 0.0
  %3339 = vmatpush2.msra.mxu0 0.0
  %3340 = vmatprep.subr.mxu0 0.0
  %3341 = vmatpush2.msra.mxu0 0.0
  %3342 = vmatprep.subr.mxu0 0.0
  %3343 = vmatpush2.msra.mxu0 0.0
  %3344 = vmatprep.subr.mxu0 0.0
  %3345 = vmatpush2.msra.mxu0 0.0
  %3346 = vmatprep.subr.mxu0 0.0
  %3347 = vmatpush2.msra.mxu0 0.0
  %3348 = vmatprep.subr.mxu0 0.0
  %3349 = vmatpush2.msra.mxu0 0.0
  %3350 = vmatprep.subr.mxu0 0.0
  %3351 = vmatpush2.msra.mxu0 0.0
  %3352 = vmatprep.mubr.f32.mxu0 0.0
  %3353 = vmatmul.mubr.f32.gmra.mxu0 %v3265
  %v3354 = vpop.f32.mrf.mxu0
  %v3355 = vadd.f32 0.0, %v3354
  %v3356 = vpop.f32.mrf.mxu0
  %3357 = vmatprep.mubr.f32.mxu0 0.0
  %3358 = vmatmul.mubr.f32.gmra.mxu0 %v3268
  %v3359 = vpop.f32.mrf.mxu0
  %v3360 = vadd.f32 0.0, %v3359
  %v3361 = vpop.f32.mrf.mxu0
  %3362 = vmatprep.mubr.f32.mxu0 0.0
  %3363 = vmatmul.mubr.f32.gmra.mxu0 %v3271
  %v3364 = vpop.f32.mrf.mxu0
  %v3365 = vadd.f32 0.0, %v3364
  %v3366 = vpop.f32.mrf.mxu0
  %3367 = vmatprep.mubr.f32.mxu0 0.0
  %3368 = vmatmul.mubr.f32.gmra.mxu0 %v3274
  %v3369 = vpop.f32.mrf.mxu0
  %v3370 = vadd.f32 0.0, %v3369
  %v3371 = vpop.f32.mrf.mxu0
  %3372 = vmatprep.mubr.f32.mxu0 0.0
  %3373 = vmatmul.mubr.f32.gmra.mxu0 %v3277
  %v3374 = vpop.f32.mrf.mxu0
  %v3375 = vadd.f32 0.0, %v3374
  %v3376 = vpop.f32.mrf.mxu0
  %3377 = vmatprep.mubr.f32.mxu0 0.0
  %3378 = vmatmul.mubr.f32.gmra.mxu0 %v3280
  %v3379 = vpop.f32.mrf.mxu0
  %v3380 = vadd.f32 0.0, %v3379
  %v3381 = vpop.f32.mrf.mxu0
  %3382 = vmatprep.mubr.f32.mxu0 0.0
  %3383 = vmatmul.mubr.f32.gmra.mxu0 %v3283
  %v3384 = vpop.f32.mrf.mxu0
  %v3385 = vadd.f32 0.0, %v3384
  %v3386 = vpop.f32.mrf.mxu0
  %3387 = vmatprep.mubr.f32.mxu0 0.0
  %3388 = vmatmul.mubr.f32.gmra.mxu0 %v3286
  %v3389 = vpop.f32.mrf.mxu0
  %v3390 = vadd.f32 0.0, %v3389
  %v3391 = vpop.f32.mrf.mxu0
  %3392 = vdwg.mxu0
  %v3394 = vsel %vm588, %v2995, 0
  %v3397 = vsel %vm588, %v2996, 0
  %v3400 = vsel %vm588, %v2997, 0
  %v3403 = vsel %vm588, %v2998, 0
  %v3406 = vsel %vm588, %v2999, 0
  %v3409 = vsel %vm588, %v3000, 0
  %v3412 = vsel %vm588, %v3001, 0
  %v3415 = vsel %vm588, %v3002, 0
  %3417 = vmatprep.subr.mxu0 0.0
  %3418 = vmatpush1.msra.mxu0 0.0
  %3419 = vmatprep.subr.mxu0 0.0
  %3420 = vmatpush1.msra.mxu0 0.0
  %3421 = vmatprep.subr.mxu0 0.0
  %3422 = vmatpush1.msra.mxu0 0.0
  %3423 = vmatprep.subr.mxu0 0.0
  %3424 = vmatpush1.msra.mxu0 0.0
  %3425 = vmatprep.subr.mxu0 0.0
  %3426 = vmatpush1.msra.mxu0 0.0
  %3427 = vmatprep.subr.mxu0 0.0
  %3428 = vmatpush1.msra.mxu0 0.0
  %3429 = vmatprep.subr.mxu0 0.0
  %3430 = vmatpush1.msra.mxu0 0.0
  %3431 = vmatprep.subr.mxu0 0.0
  %3432 = vmatpush1.msra.mxu0 0.0
  %3433 = vmatprep.subr.mxu0 0.0
  %3434 = vmatpush1.msra.mxu0 %v3010
  %3435 = vmatprep.subr.mxu0 0.0
  %3436 = vmatpush1.msra.mxu0 %v3009
  %3437 = vmatprep.subr.mxu0 0.0
  %3438 = vmatpush1.msra.mxu0 %v3008
  %3439 = vmatprep.subr.mxu0 0.0
  %3440 = vmatpush1.msra.mxu0 %v3007
  %3441 = vmatprep.subr.mxu0 0.0
  %3442 = vmatpush1.msra.mxu0 %v3006
  %3443 = vmatprep.subr.mxu0 0.0
  %3444 = vmatpush1.msra.mxu0 %v3005
  %3445 = vmatprep.subr.mxu0 0.0
  %3446 = vmatpush1.msra.mxu0 %v3004
  %3447 = vmatprep.subr.mxu0 0.0
  %3448 = vmatpush1.msra.mxu0 %v3003
  %3449 = vmatprep.subr.mxu0 0.0
  %3450 = vmatpush2.msra.mxu0 0.0
  %3451 = vmatprep.subr.mxu0 0.0
  %3452 = vmatpush2.msra.mxu0 0.0
  %3453 = vmatprep.subr.mxu0 0.0
  %3454 = vmatpush2.msra.mxu0 0.0
  %3455 = vmatprep.subr.mxu0 0.0
  %3456 = vmatpush2.msra.mxu0 0.0
  %3457 = vmatprep.subr.mxu0 0.0
  %3458 = vmatpush2.msra.mxu0 0.0
  %3459 = vmatprep.subr.mxu0 0.0
  %3460 = vmatpush2.msra.mxu0 0.0
  %3461 = vmatprep.subr.mxu0 0.0
  %3462 = vmatpush2.msra.mxu0 0.0
  %3463 = vmatprep.subr.mxu0 0.0
  %3464 = vmatpush2.msra.mxu0 0.0
  %3465 = vmatprep.subr.mxu0 0.0
  %3466 = vmatpush2.msra.mxu0 0.0
  %3467 = vmatprep.subr.mxu0 0.0
  %3468 = vmatpush2.msra.mxu0 0.0
  %3469 = vmatprep.subr.mxu0 0.0
  %3470 = vmatpush2.msra.mxu0 0.0
  %3471 = vmatprep.subr.mxu0 0.0
  %3472 = vmatpush2.msra.mxu0 0.0
  %3473 = vmatprep.subr.mxu0 0.0
  %3474 = vmatpush2.msra.mxu0 0.0
  %3475 = vmatprep.subr.mxu0 0.0
  %3476 = vmatpush2.msra.mxu0 0.0
  %3477 = vmatprep.subr.mxu0 0.0
  %3478 = vmatpush2.msra.mxu0 0.0
  %3479 = vmatprep.subr.mxu0 0.0
  %3480 = vmatpush2.msra.mxu0 0.0
  %3481 = vmatprep.mubr.f32.mxu0 0.0
  %3482 = vmatmul.mubr.f32.gmra.mxu0 %v3394
  %v3483 = vpop.f32.mrf.mxu0
  %v3484 = vadd.f32 %v3355, %v3483
  %v3485 = vpop.f32.mrf.mxu0
  %3486 = vmatprep.mubr.f32.mxu0 0.0
  %3487 = vmatmul.mubr.f32.gmra.mxu0 %v3397
  %v3488 = vpop.f32.mrf.mxu0
  %v3489 = vadd.f32 %v3360, %v3488
  %v3490 = vpop.f32.mrf.mxu0
  %3491 = vmatprep.mubr.f32.mxu0 0.0
  %3492 = vmatmul.mubr.f32.gmra.mxu0 %v3400
  %v3493 = vpop.f32.mrf.mxu0
  %v3494 = vadd.f32 %v3365, %v3493
  %v3495 = vpop.f32.mrf.mxu0
  %3496 = vmatprep.mubr.f32.mxu0 0.0
  %3497 = vmatmul.mubr.f32.gmra.mxu0 %v3403
  %v3498 = vpop.f32.mrf.mxu0
  %v3499 = vadd.f32 %v3370, %v3498
  %v3500 = vpop.f32.mrf.mxu0
  %3501 = vmatprep.mubr.f32.mxu0 0.0
  %3502 = vmatmul.mubr.f32.gmra.mxu0 %v3406
  %v3503 = vpop.f32.mrf.mxu0
  %v3504 = vadd.f32 %v3375, %v3503
  %v3505 = vpop.f32.mrf.mxu0
  %3506 = vmatprep.mubr.f32.mxu0 0.0
  %3507 = vmatmul.mubr.f32.gmra.mxu0 %v3409
  %v3508 = vpop.f32.mrf.mxu0
  %v3509 = vadd.f32 %v3380, %v3508
  %v3510 = vpop.f32.mrf.mxu0
  %3511 = vmatprep.mubr.f32.mxu0 0.0
  %3512 = vmatmul.mubr.f32.gmra.mxu0 %v3412
  %v3513 = vpop.f32.mrf.mxu0
  %v3514 = vadd.f32 %v3385, %v3513
  %v3515 = vpop.f32.mrf.mxu0
  %3516 = vmatprep.mubr.f32.mxu0 0.0
  %3517 = vmatmul.mubr.f32.gmra.mxu0 %v3415
  %v3518 = vpop.f32.mrf.mxu0
  %v3519 = vadd.f32 %v3390, %v3518
  %v3520 = vpop.f32.mrf.mxu0
  %3521 = vdwg.mxu0
  %vm3522 = vcmp.lt.s32.totalorder %v1794, 48
  %vm3523 = vmand %vm2186, %vm3522
  %v3524 = vsel %vm3523, 1, 0
  %v3525 = vcvt.s32.f32 %v3524
  %v3526 = vmul.f32 %v2576, %v3525
  %v3527 = vmul.f32 %v2581, %v3525
  %v3528 = vmul.f32 %v2586, %v3525
  %v3529 = vmul.f32 %v2591, %v3525
  %v3530 = vmul.f32 %v2596, %v3525
  %v3531 = vmul.f32 %v2601, %v3525
  %v3532 = vmul.f32 %v2606, %v3525
  %v3533 = vmul.f32 %v2611, %v3525
  %v3535 = vsel %vm588, %v3526, 0
  %v3538 = vsel %vm588, %v3527, 0
  %v3541 = vsel %vm588, %v3528, 0
  %v3544 = vsel %vm588, %v3529, 0
  %v3547 = vsel %vm588, %v3530, 0
  %v3550 = vsel %vm588, %v3531, 0
  %v3553 = vsel %vm588, %v3532, 0
  %v3556 = vsel %vm588, %v3533, 0
  %3558 = vmatprep.subr.mxu0 0.0
  %3559 = vmatpush1.xpose.msra.mxu0 0.0
  %3560 = vmatprep.subr.mxu0 0.0
  %3561 = vmatpush1.xpose.msra.mxu0 0.0
  %3562 = vmatprep.subr.mxu0 0.0
  %3563 = vmatpush1.xpose.msra.mxu0 0.0
  %3564 = vmatprep.subr.mxu0 0.0
  %3565 = vmatpush1.xpose.msra.mxu0 0.0
  %3566 = vmatprep.subr.mxu0 0.0
  %3567 = vmatpush1.xpose.msra.mxu0 0.0
  %3568 = vmatprep.subr.mxu0 0.0
  %3569 = vmatpush1.xpose.msra.mxu0 0.0
  %3570 = vmatprep.subr.mxu0 0.0
  %3571 = vmatpush1.xpose.msra.mxu0 0.0
  %3572 = vmatprep.subr.mxu0 0.0
  %3573 = vmatpush1.xpose.msra.mxu0 0.0
  %3574 = vmatprep.subr.mxu0 0.0
  %3575 = vmatpush1.xpose.msra.mxu0 %v3556
  %3576 = vmatprep.subr.mxu0 0.0
  %3577 = vmatpush1.xpose.msra.mxu0 %v3553
  %3578 = vmatprep.subr.mxu0 0.0
  %3579 = vmatpush1.xpose.msra.mxu0 %v3550
  %3580 = vmatprep.subr.mxu0 0.0
  %3581 = vmatpush1.xpose.msra.mxu0 %v3547
  %3582 = vmatprep.subr.mxu0 0.0
  %3583 = vmatpush1.xpose.msra.mxu0 %v3544
  %3584 = vmatprep.subr.mxu0 0.0
  %3585 = vmatpush1.xpose.msra.mxu0 %v3541
  %3586 = vmatprep.subr.mxu0 0.0
  %3587 = vmatpush1.xpose.msra.mxu0 %v3538
  %3588 = vmatprep.subr.mxu0 0.0
  %3589 = vmatpush1.xpose.msra.mxu0 %v3535
  %3590 = vmatprep.subr.mxu0 0.0
  %3591 = vmatpush2.xpose.msra.mxu0 0.0
  %3592 = vmatprep.subr.mxu0 0.0
  %3593 = vmatpush2.xpose.msra.mxu0 0.0
  %3594 = vmatprep.subr.mxu0 0.0
  %3595 = vmatpush2.xpose.msra.mxu0 0.0
  %3596 = vmatprep.subr.mxu0 0.0
  %3597 = vmatpush2.xpose.msra.mxu0 0.0
  %3598 = vmatprep.subr.mxu0 0.0
  %3599 = vmatpush2.xpose.msra.mxu0 0.0
  %3600 = vmatprep.subr.mxu0 0.0
  %3601 = vmatpush2.xpose.msra.mxu0 0.0
  %3602 = vmatprep.subr.mxu0 0.0
  %3603 = vmatpush2.xpose.msra.mxu0 0.0
  %3604 = vmatprep.subr.mxu0 0.0
  %3605 = vmatpush2.xpose.msra.mxu0 0.0
  %3606 = vmatprep.subr.mxu0 0.0
  %3607 = vmatpush2.xpose.msra.mxu0 0.0
  %3608 = vmatprep.subr.mxu0 0.0
  %3609 = vmatpush2.xpose.msra.mxu0 0.0
  %3610 = vmatprep.subr.mxu0 0.0
  %3611 = vmatpush2.xpose.msra.mxu0 0.0
  %3612 = vmatprep.subr.mxu0 0.0
  %3613 = vmatpush2.xpose.msra.mxu0 0.0
  %3614 = vmatprep.subr.mxu0 0.0
  %3615 = vmatpush2.xpose.msra.mxu0 0.0
  %3616 = vmatprep.subr.mxu0 0.0
  %3617 = vmatpush2.xpose.msra.mxu0 0.0
  %3618 = vmatprep.subr.mxu0 0.0
  %3619 = vmatpush2.xpose.msra.mxu0 0.0
  %3620 = vmatprep.subr.mxu0 0.0
  %3621 = vmatpush2.xpose.msra.mxu0 0.0
  %3622 = vmatprep.mubr.f32.mxu0 0.0
  %3623 = vmatmul.mubr.f32.gmra.mxu0 %v2747
  %v3624 = vpop.f32.mrf.mxu0
  %v3625 = vadd.f32 0.0, %v3624
  %v3626 = vpop.f32.mrf.mxu0
  %3627 = vmatprep.mubr.f32.mxu0 0.0
  %3628 = vmatmul.mubr.f32.gmra.mxu0 %v2750
  %v3629 = vpop.f32.mrf.mxu0
  %v3630 = vadd.f32 0.0, %v3629
  %v3631 = vpop.f32.mrf.mxu0
  %3632 = vmatprep.mubr.f32.mxu0 0.0
  %3633 = vmatmul.mubr.f32.gmra.mxu0 %v2753
  %v3634 = vpop.f32.mrf.mxu0
  %v3635 = vadd.f32 0.0, %v3634
  %v3636 = vpop.f32.mrf.mxu0
  %3637 = vmatprep.mubr.f32.mxu0 0.0
  %3638 = vmatmul.mubr.f32.gmra.mxu0 %v2756
  %v3639 = vpop.f32.mrf.mxu0
  %v3640 = vadd.f32 0.0, %v3639
  %v3641 = vpop.f32.mrf.mxu0
  %3642 = vmatprep.mubr.f32.mxu0 0.0
  %3643 = vmatmul.mubr.f32.gmra.mxu0 %v2759
  %v3644 = vpop.f32.mrf.mxu0
  %v3645 = vadd.f32 0.0, %v3644
  %v3646 = vpop.f32.mrf.mxu0
  %3647 = vmatprep.mubr.f32.mxu0 0.0
  %3648 = vmatmul.mubr.f32.gmra.mxu0 %v2762
  %v3649 = vpop.f32.mrf.mxu0
  %v3650 = vadd.f32 0.0, %v3649
  %v3651 = vpop.f32.mrf.mxu0
  %3652 = vmatprep.mubr.f32.mxu0 0.0
  %3653 = vmatmul.mubr.f32.gmra.mxu0 %v2765
  %v3654 = vpop.f32.mrf.mxu0
  %v3655 = vadd.f32 0.0, %v3654
  %v3656 = vpop.f32.mrf.mxu0
  %3657 = vmatprep.mubr.f32.mxu0 0.0
  %3658 = vmatmul.mubr.f32.gmra.mxu0 %v2768
  %v3659 = vpop.f32.mrf.mxu0
  %v3660 = vadd.f32 0.0, %v3659
  %v3661 = vpop.f32.mrf.mxu0
  %3662 = vdwg.mxu0
  %v3663 = vmul.f32 %v3625, 0.25
  %v3664 = vmul.f32 %v3630, 0.25
  %v3665 = vmul.f32 %v3635, 0.25
  %v3666 = vmul.f32 %v3640, 0.25
  %v3667 = vmul.f32 %v3645, 0.25
  %v3668 = vmul.f32 %v3650, 0.25
  %v3669 = vmul.f32 %v3655, 0.25
  %v3670 = vmul.f32 %v3660, 0.25
  %v3671 = vadd.f32 %v3663, %v2342
  %v3672 = vadd.f32 %v3664, %v2343
  %v3673 = vadd.f32 %v3665, %v2344
  %v3674 = vadd.f32 %v3666, %v2345
  %v3675 = vadd.f32 %v3667, %v2346
  %v3676 = vadd.f32 %v3668, %v2347
  %v3677 = vadd.f32 %v3669, %v2348
  %v3678 = vadd.f32 %v3670, %v2349
  %v3679 = vsel %vm588, %v3671, -inf
  %3680 = vmax.xlane.f32.xlu0 %v3679
  %v3681 = vpop.xlane.xlu0 %3680
  %v3682 = vsel %vm588, %v3672, -inf
  %3683 = vmax.xlane.f32.xlu0 %v3682
  %v3684 = vpop.xlane.xlu0 %3683
  %v3685 = vsel %vm588, %v3673, -inf
  %3686 = vmax.xlane.f32.xlu0 %v3685
  %v3687 = vpop.xlane.xlu0 %3686
  %v3688 = vsel %vm588, %v3674, -inf
  %3689 = vmax.xlane.f32.xlu0 %v3688
  %v3690 = vpop.xlane.xlu0 %3689
  %v3691 = vsel %vm588, %v3675, -inf
  %3692 = vmax.xlane.f32.xlu0 %v3691
  %v3693 = vpop.xlane.xlu0 %3692
  %v3694 = vsel %vm588, %v3676, -inf
  %3695 = vmax.xlane.f32.xlu0 %v3694
  %v3696 = vpop.xlane.xlu0 %3695
  %v3697 = vsel %vm588, %v3677, -inf
  %3698 = vmax.xlane.f32.xlu0 %v3697
  %v3699 = vpop.xlane.xlu0 %3698
  %v3700 = vsel %vm588, %v3678, -inf
  %3701 = vmax.xlane.f32.xlu0 %v3700
  %v3702 = vpop.xlane.xlu0 %3701
  %v3703 = vsub.f32 %v3671, %v3681
  %v3704 = vsub.f32 %v3672, %v3684
  %v3705 = vsub.f32 %v3673, %v3687
  %v3706 = vsub.f32 %v3674, %v3690
  %v3707 = vsub.f32 %v3675, %v3693
  %v3708 = vsub.f32 %v3676, %v3696
  %v3709 = vsub.f32 %v3677, %v3699
  %v3710 = vsub.f32 %v3678, %v3702
  %v3711 = vmul.f32 %v3703, 1.442695
  %v3712 = vpow.pop %v3711
  %v3713 = vmul.f32 %v3704, 1.442695
  %v3714 = vpow.pop %v3713
  %v3715 = vmul.f32 %v3705, 1.442695
  %v3716 = vpow.pop %v3715
  %v3717 = vmul.f32 %v3706, 1.442695
  %v3718 = vpow.pop %v3717
  %v3719 = vmul.f32 %v3707, 1.442695
  %v3720 = vpow.pop %v3719
  %v3721 = vmul.f32 %v3708, 1.442695
  %v3722 = vpow.pop %v3721
  %v3723 = vmul.f32 %v3709, 1.442695
  %v3724 = vpow.pop %v3723
  %v3725 = vmul.f32 %v3710, 1.442695
  %v3726 = vpow.pop %v3725
  %v3727 = vsel %vm588, %v3712, 0.0
  %3728 = vadd.xlane.f32.xlu0 %v3727
  %v3729 = vpop.xlane.xlu0 %3728
  %v3730 = vsel %vm588, %v3714, 0.0
  %3731 = vadd.xlane.f32.xlu0 %v3730
  %v3732 = vpop.xlane.xlu0 %3731
  %v3733 = vsel %vm588, %v3716, 0.0
  %3734 = vadd.xlane.f32.xlu0 %v3733
  %v3735 = vpop.xlane.xlu0 %3734
  %v3736 = vsel %vm588, %v3718, 0.0
  %3737 = vadd.xlane.f32.xlu0 %v3736
  %v3738 = vpop.xlane.xlu0 %3737
  %v3739 = vsel %vm588, %v3720, 0.0
  %3740 = vadd.xlane.f32.xlu0 %v3739
  %v3741 = vpop.xlane.xlu0 %3740
  %v3742 = vsel %vm588, %v3722, 0.0
  %3743 = vadd.xlane.f32.xlu0 %v3742
  %v3744 = vpop.xlane.xlu0 %3743
  %v3745 = vsel %vm588, %v3724, 0.0
  %3746 = vadd.xlane.f32.xlu0 %v3745
  %v3747 = vpop.xlane.xlu0 %3746
  %v3748 = vsel %vm588, %v3726, 0.0
  %3749 = vadd.xlane.f32.xlu0 %v3748
  %v3750 = vpop.xlane.xlu0 %3749
  %v3751 = vrcp.pop %v3729
  %v3752 = vrcp.pop %v3732
  %v3753 = vrcp.pop %v3735
  %v3754 = vrcp.pop %v3738
  %v3755 = vrcp.pop %v3741
  %v3756 = vrcp.pop %v3744
  %v3757 = vrcp.pop %v3747
  %v3758 = vrcp.pop %v3750
  %v3759 = vmul.f32 %v3712, %v3751
  %v3760 = vmul.f32 %v3714, %v3752
  %v3761 = vmul.f32 %v3716, %v3753
  %v3762 = vmul.f32 %v3718, %v3754
  %v3763 = vmul.f32 %v3720, %v3755
  %v3764 = vmul.f32 %v3722, %v3756
  %v3765 = vmul.f32 %v3724, %v3757
  %v3766 = vmul.f32 %v3726, %v3758
  %v3767 = vmul.f32 %v2696, %v3525
  %v3768 = vmul.f32 %v2701, %v3525
  %v3769 = vmul.f32 %v2706, %v3525
  %v3770 = vmul.f32 %v2711, %v3525
  %v3771 = vmul.f32 %v2716, %v3525
  %v3772 = vmul.f32 %v2721, %v3525
  %v3773 = vmul.f32 %v2726, %v3525
  %v3774 = vmul.f32 %v2731, %v3525
  %v3776 = vsel %vm588, %v3759, 0
  %v3779 = vsel %vm588, %v3760, 0
  %v3782 = vsel %vm588, %v3761, 0
  %v3785 = vsel %vm588, %v3762, 0
  %v3788 = vsel %vm588, %v3763, 0
  %v3791 = vsel %vm588, %v3764, 0
  %v3794 = vsel %vm588, %v3765, 0
  %v3797 = vsel %vm588, %v3766, 0
  %3799 = vmatprep.subr.mxu0 0.0
  %3800 = vmatpush1.msra.mxu0 0.0
  %3801 = vmatprep.subr.mxu0 0.0
  %3802 = vmatpush1.msra.mxu0 0.0
  %3803 = vmatprep.subr.mxu0 0.0
  %3804 = vmatpush1.msra.mxu0 0.0
  %3805 = vmatprep.subr.mxu0 0.0
  %3806 = vmatpush1.msra.mxu0 0.0
  %3807 = vmatprep.subr.mxu0 0.0
  %3808 = vmatpush1.msra.mxu0 0.0
  %3809 = vmatprep.subr.mxu0 0.0
  %3810 = vmatpush1.msra.mxu0 0.0
  %3811 = vmatprep.subr.mxu0 0.0
  %3812 = vmatpush1.msra.mxu0 0.0
  %3813 = vmatprep.subr.mxu0 0.0
  %3814 = vmatpush1.msra.mxu0 0.0
  %3815 = vmatprep.subr.mxu0 0.0
  %3816 = vmatpush1.msra.mxu0 %v3774
  %3817 = vmatprep.subr.mxu0 0.0
  %3818 = vmatpush1.msra.mxu0 %v3773
  %3819 = vmatprep.subr.mxu0 0.0
  %3820 = vmatpush1.msra.mxu0 %v3772
  %3821 = vmatprep.subr.mxu0 0.0
  %3822 = vmatpush1.msra.mxu0 %v3771
  %3823 = vmatprep.subr.mxu0 0.0
  %3824 = vmatpush1.msra.mxu0 %v3770
  %3825 = vmatprep.subr.mxu0 0.0
  %3826 = vmatpush1.msra.mxu0 %v3769
  %3827 = vmatprep.subr.mxu0 0.0
  %3828 = vmatpush1.msra.mxu0 %v3768
  %3829 = vmatprep.subr.mxu0 0.0
  %3830 = vmatpush1.msra.mxu0 %v3767
  %3831 = vmatprep.subr.mxu0 0.0
  %3832 = vmatpush2.msra.mxu0 0.0
  %3833 = vmatprep.subr.mxu0 0.0
  %3834 = vmatpush2.msra.mxu0 0.0
  %3835 = vmatprep.subr.mxu0 0.0
  %3836 = vmatpush2.msra.mxu0 0.0
  %3837 = vmatprep.subr.mxu0 0.0
  %3838 = vmatpush2.msra.mxu0 0.0
  %3839 = vmatprep.subr.mxu0 0.0
  %3840 = vmatpush2.msra.mxu0 0.0
  %3841 = vmatprep.subr.mxu0 0.0
  %3842 = vmatpush2.msra.mxu0 0.0
  %3843 = vmatprep.subr.mxu0 0.0
  %3844 = vmatpush2.msra.mxu0 0.0
  %3845 = vmatprep.subr.mxu0 0.0
  %3846 = vmatpush2.msra.mxu0 0.0
  %3847 = vmatprep.subr.mxu0 0.0
  %3848 = vmatpush2.msra.mxu0 0.0
  %3849 = vmatprep.subr.mxu0 0.0
  %3850 = vmatpush2.msra.mxu0 0.0
  %3851 = vmatprep.subr.mxu0 0.0
  %3852 = vmatpush2.msra.mxu0 0.0
  %3853 = vmatprep.subr.mxu0 0.0
  %3854 = vmatpush2.msra.mxu0 0.0
  %3855 = vmatprep.subr.mxu0 0.0
  %3856 = vmatpush2.msra.mxu0 0.0
  %3857 = vmatprep.subr.mxu0 0.0
  %3858 = vmatpush2.msra.mxu0 0.0
  %3859 = vmatprep.subr.mxu0 0.0
  %3860 = vmatpush2.msra.mxu0 0.0
  %3861 = vmatprep.subr.mxu0 0.0
  %3862 = vmatpush2.msra.mxu0 0.0
  %3863 = vmatprep.mubr.f32.mxu0 0.0
  %3864 = vmatmul.mubr.f32.gmra.mxu0 %v3776
  %v3865 = vpop.f32.mrf.mxu0
  %v3866 = vadd.f32 0.0, %v3865
  %v3867 = vpop.f32.mrf.mxu0
  %3868 = vmatprep.mubr.f32.mxu0 0.0
  %3869 = vmatmul.mubr.f32.gmra.mxu0 %v3779
  %v3870 = vpop.f32.mrf.mxu0
  %v3871 = vadd.f32 0.0, %v3870
  %v3872 = vpop.f32.mrf.mxu0
  %3873 = vmatprep.mubr.f32.mxu0 0.0
  %3874 = vmatmul.mubr.f32.gmra.mxu0 %v3782
  %v3875 = vpop.f32.mrf.mxu0
  %v3876 = vadd.f32 0.0, %v3875
  %v3877 = vpop.f32.mrf.mxu0
  %3878 = vmatprep.mubr.f32.mxu0 0.0
  %3879 = vmatmul.mubr.f32.gmra.mxu0 %v3785
  %v3880 = vpop.f32.mrf.mxu0
  %v3881 = vadd.f32 0.0, %v3880
  %v3882 = vpop.f32.mrf.mxu0
  %3883 = vmatprep.mubr.f32.mxu0 0.0
  %3884 = vmatmul.mubr.f32.gmra.mxu0 %v3788
  %v3885 = vpop.f32.mrf.mxu0
  %v3886 = vadd.f32 0.0, %v3885
  %v3887 = vpop.f32.mrf.mxu0
  %3888 = vmatprep.mubr.f32.mxu0 0.0
  %3889 = vmatmul.mubr.f32.gmra.mxu0 %v3791
  %v3890 = vpop.f32.mrf.mxu0
  %v3891 = vadd.f32 0.0, %v3890
  %v3892 = vpop.f32.mrf.mxu0
  %3893 = vmatprep.mubr.f32.mxu0 0.0
  %3894 = vmatmul.mubr.f32.gmra.mxu0 %v3794
  %v3895 = vpop.f32.mrf.mxu0
  %v3896 = vadd.f32 0.0, %v3895
  %v3897 = vpop.f32.mrf.mxu0
  %3898 = vmatprep.mubr.f32.mxu0 0.0
  %3899 = vmatmul.mubr.f32.gmra.mxu0 %v3797
  %v3900 = vpop.f32.mrf.mxu0
  %v3901 = vadd.f32 0.0, %v3900
  %v3902 = vpop.f32.mrf.mxu0
  %3903 = vdwg.mxu0
  %v3904 = vadd.f32 %v3484, %v3866
  %v3905 = vadd.f32 %v3489, %v3871
  %v3906 = vadd.f32 %v3494, %v3876
  %v3907 = vadd.f32 %v3499, %v3881
  %v3908 = vadd.f32 %v3504, %v3886
  %v3909 = vadd.f32 %v3509, %v3891
  %v3910 = vadd.f32 %v3514, %v3896
  %v3911 = vadd.f32 %v3519, %v3901
  %vm3912 = vcmp.lt.s32.totalorder %v1794, 64
  %vm3913 = vmand %vm2276, %vm3912
  %v3914 = vsel %vm3913, 1, 0
  %v3915 = vcvt.s32.f32 %v3914
  %v3916 = vmul.f32 %v2576, %v3915
  %v3917 = vmul.f32 %v2581, %v3915
  %v3918 = vmul.f32 %v2586, %v3915
  %v3919 = vmul.f32 %v2591, %v3915
  %v3920 = vmul.f32 %v2596, %v3915
  %v3921 = vmul.f32 %v2601, %v3915
  %v3922 = vmul.f32 %v2606, %v3915
  %v3923 = vmul.f32 %v2611, %v3915
  %v3925 = vsel %vm588, %v3916, 0
  %v3928 = vsel %vm588, %v3917, 0
  %v3931 = vsel %vm588, %v3918, 0
  %v3934 = vsel %vm588, %v3919, 0
  %v3937 = vsel %vm588, %v3920, 0
  %v3940 = vsel %vm588, %v3921, 0
  %v3943 = vsel %vm588, %v3922, 0
  %v3946 = vsel %vm588, %v3923, 0
  %3948 = vmatprep.subr.mxu0 0.0
  %3949 = vmatpush1.xpose.msra.mxu0 0.0
  %3950 = vmatprep.subr.mxu0 0.0
  %3951 = vmatpush1.xpose.msra.mxu0 0.0
  %3952 = vmatprep.subr.mxu0 0.0
  %3953 = vmatpush1.xpose.msra.mxu0 0.0
  %3954 = vmatprep.subr.mxu0 0.0
  %3955 = vmatpush1.xpose.msra.mxu0 0.0
  %3956 = vmatprep.subr.mxu0 0.0
  %3957 = vmatpush1.xpose.msra.mxu0 0.0
  %3958 = vmatprep.subr.mxu0 0.0
  %3959 = vmatpush1.xpose.msra.mxu0 0.0
  %3960 = vmatprep.subr.mxu0 0.0
  %3961 = vmatpush1.xpose.msra.mxu0 0.0
  %3962 = vmatprep.subr.mxu0 0.0
  %3963 = vmatpush1.xpose.msra.mxu0 0.0
  %3964 = vmatprep.subr.mxu0 0.0
  %3965 = vmatpush1.xpose.msra.mxu0 %v3946
  %3966 = vmatprep.subr.mxu0 0.0
  %3967 = vmatpush1.xpose.msra.mxu0 %v3943
  %3968 = vmatprep.subr.mxu0 0.0
  %3969 = vmatpush1.xpose.msra.mxu0 %v3940
  %3970 = vmatprep.subr.mxu0 0.0
  %3971 = vmatpush1.xpose.msra.mxu0 %v3937
  %3972 = vmatprep.subr.mxu0 0.0
  %3973 = vmatpush1.xpose.msra.mxu0 %v3934
  %3974 = vmatprep.subr.mxu0 0.0
  %3975 = vmatpush1.xpose.msra.mxu0 %v3931
  %3976 = vmatprep.subr.mxu0 0.0
  %3977 = vmatpush1.xpose.msra.mxu0 %v3928
  %3978 = vmatprep.subr.mxu0 0.0
  %3979 = vmatpush1.xpose.msra.mxu0 %v3925
  %3980 = vmatprep.subr.mxu0 0.0
  %3981 = vmatpush2.xpose.msra.mxu0 0.0
  %3982 = vmatprep.subr.mxu0 0.0
  %3983 = vmatpush2.xpose.msra.mxu0 0.0
  %3984 = vmatprep.subr.mxu0 0.0
  %3985 = vmatpush2.xpose.msra.mxu0 0.0
  %3986 = vmatprep.subr.mxu0 0.0
  %3987 = vmatpush2.xpose.msra.mxu0 0.0
  %3988 = vmatprep.subr.mxu0 0.0
  %3989 = vmatpush2.xpose.msra.mxu0 0.0
  %3990 = vmatprep.subr.mxu0 0.0
  %3991 = vmatpush2.xpose.msra.mxu0 0.0
  %3992 = vmatprep.subr.mxu0 0.0
  %3993 = vmatpush2.xpose.msra.mxu0 0.0
  %3994 = vmatprep.subr.mxu0 0.0
  %3995 = vmatpush2.xpose.msra.mxu0 0.0
  %3996 = vmatprep.subr.mxu0 0.0
  %3997 = vmatpush2.xpose.msra.mxu0 0.0
  %3998 = vmatprep.subr.mxu0 0.0
  %3999 = vmatpush2.xpose.msra.mxu0 0.0
  %4000 = vmatprep.subr.mxu0 0.0
  %4001 = vmatpush2.xpose.msra.mxu0 0.0
  %4002 = vmatprep.subr.mxu0 0.0
  %4003 = vmatpush2.xpose.msra.mxu0 0.0
  %4004 = vmatprep.subr.mxu0 0.0
  %4005 = vmatpush2.xpose.msra.mxu0 0.0
  %4006 = vmatprep.subr.mxu0 0.0
  %4007 = vmatpush2.xpose.msra.mxu0 0.0
  %4008 = vmatprep.subr.mxu0 0.0
  %4009 = vmatpush2.xpose.msra.mxu0 0.0
  %4010 = vmatprep.subr.mxu0 0.0
  %4011 = vmatpush2.xpose.msra.mxu0 0.0
  %4012 = vmatprep.mubr.f32.mxu0 0.0
  %4013 = vmatmul.mubr.f32.gmra.mxu0 %v2747
  %v4014 = vpop.f32.mrf.mxu0
  %v4015 = vadd.f32 0.0, %v4014
  %v4016 = vpop.f32.mrf.mxu0
  %4017 = vmatprep.mubr.f32.mxu0 0.0
  %4018 = vmatmul.mubr.f32.gmra.mxu0 %v2750
  %v4019 = vpop.f32.mrf.mxu0
  %v4020 = vadd.f32 0.0, %v4019
  %v4021 = vpop.f32.mrf.mxu0
  %4022 = vmatprep.mubr.f32.mxu0 0.0
  %4023 = vmatmul.mubr.f32.gmra.mxu0 %v2753
  %v4024 = vpop.f32.mrf.mxu0
  %v4025 = vadd.f32 0.0, %v4024
  %v4026 = vpop.f32.mrf.mxu0
  %4027 = vmatprep.mubr.f32.mxu0 0.0
  %4028 = vmatmul.mubr.f32.gmra.mxu0 %v2756
  %v4029 = vpop.f32.mrf.mxu0
  %v4030 = vadd.f32 0.0, %v4029
  %v4031 = vpop.f32.mrf.mxu0
  %4032 = vmatprep.mubr.f32.mxu0 0.0
  %4033 = vmatmul.mubr.f32.gmra.mxu0 %v2759
  %v4034 = vpop.f32.mrf.mxu0
  %v4035 = vadd.f32 0.0, %v4034
  %v4036 = vpop.f32.mrf.mxu0
  %4037 = vmatprep.mubr.f32.mxu0 0.0
  %4038 = vmatmul.mubr.f32.gmra.mxu0 %v2762
  %v4039 = vpop.f32.mrf.mxu0
  %v4040 = vadd.f32 0.0, %v4039
  %v4041 = vpop.f32.mrf.mxu0
  %4042 = vmatprep.mubr.f32.mxu0 0.0
  %4043 = vmatmul.mubr.f32.gmra.mxu0 %v2765
  %v4044 = vpop.f32.mrf.mxu0
  %v4045 = vadd.f32 0.0, %v4044
  %v4046 = vpop.f32.mrf.mxu0
  %4047 = vmatprep.mubr.f32.mxu0 0.0
  %4048 = vmatmul.mubr.f32.gmra.mxu0 %v2768
  %v4049 = vpop.f32.mrf.mxu0
  %v4050 = vadd.f32 0.0, %v4049
  %v4051 = vpop.f32.mrf.mxu0
  %4052 = vdwg.mxu0
  %v4053 = vmul.f32 %v4015, 0.25
  %v4054 = vmul.f32 %v4020, 0.25
  %v4055 = vmul.f32 %v4025, 0.25
  %v4056 = vmul.f32 %v4030, 0.25
  %v4057 = vmul.f32 %v4035, 0.25
  %v4058 = vmul.f32 %v4040, 0.25
  %v4059 = vmul.f32 %v4045, 0.25
  %v4060 = vmul.f32 %v4050, 0.25
  %v4061 = vadd.f32 %v4053, %v2342
  %v4062 = vadd.f32 %v4054, %v2343
  %v4063 = vadd.f32 %v4055, %v2344
  %v4064 = vadd.f32 %v4056, %v2345
  %v4065 = vadd.f32 %v4057, %v2346
  %v4066 = vadd.f32 %v4058, %v2347
  %v4067 = vadd.f32 %v4059, %v2348
  %v4068 = vadd.f32 %v4060, %v2349
  %v4069 = vsel %vm588, %v4061, -inf
  %4070 = vmax.xlane.f32.xlu0 %v4069
  %v4071 = vpop.xlane.xlu0 %4070
  %v4072 = vsel %vm588, %v4062, -inf
  %4073 = vmax.xlane.f32.xlu0 %v4072
  %v4074 = vpop.xlane.xlu0 %4073
  %v4075 = vsel %vm588, %v4063, -inf
  %4076 = vmax.xlane.f32.xlu0 %v4075
  %v4077 = vpop.xlane.xlu0 %4076
  %v4078 = vsel %vm588, %v4064, -inf
  %4079 = vmax.xlane.f32.xlu0 %v4078
  %v4080 = vpop.xlane.xlu0 %4079
  %v4081 = vsel %vm588, %v4065, -inf
  %4082 = vmax.xlane.f32.xlu0 %v4081
  %v4083 = vpop.xlane.xlu0 %4082
  %v4084 = vsel %vm588, %v4066, -inf
  %4085 = vmax.xlane.f32.xlu0 %v4084
  %v4086 = vpop.xlane.xlu0 %4085
  %v4087 = vsel %vm588, %v4067, -inf
  %4088 = vmax.xlane.f32.xlu0 %v4087
  %v4089 = vpop.xlane.xlu0 %4088
  %v4090 = vsel %vm588, %v4068, -inf
  %4091 = vmax.xlane.f32.xlu0 %v4090
  %v4092 = vpop.xlane.xlu0 %4091
  %v4093 = vsub.f32 %v4061, %v4071
  %v4094 = vsub.f32 %v4062, %v4074
  %v4095 = vsub.f32 %v4063, %v4077
  %v4096 = vsub.f32 %v4064, %v4080
  %v4097 = vsub.f32 %v4065, %v4083
  %v4098 = vsub.f32 %v4066, %v4086
  %v4099 = vsub.f32 %v4067, %v4089
  %v4100 = vsub.f32 %v4068, %v4092
  %v4101 = vmul.f32 %v4093, 1.442695
  %v4102 = vpow.pop %v4101
  %v4103 = vmul.f32 %v4094, 1.442695
  %v4104 = vpow.pop %v4103
  %v4105 = vmul.f32 %v4095, 1.442695
  %v4106 = vpow.pop %v4105
  %v4107 = vmul.f32 %v4096, 1.442695
  %v4108 = vpow.pop %v4107
  %v4109 = vmul.f32 %v4097, 1.442695
  %v4110 = vpow.pop %v4109
  %v4111 = vmul.f32 %v4098, 1.442695
  %v4112 = vpow.pop %v4111
  %v4113 = vmul.f32 %v4099, 1.442695
  %v4114 = vpow.pop %v4113
  %v4115 = vmul.f32 %v4100, 1.442695
  %v4116 = vpow.pop %v4115
  %v4117 = vsel %vm588, %v4102, 0.0
  %4118 = vadd.xlane.f32.xlu0 %v4117
  %v4119 = vpop.xlane.xlu0 %4118
  %v4120 = vsel %vm588, %v4104, 0.0
  %4121 = vadd.xlane.f32.xlu0 %v4120
  %v4122 = vpop.xlane.xlu0 %4121
  %v4123 = vsel %vm588, %v4106, 0.0
  %4124 = vadd.xlane.f32.xlu0 %v4123
  %v4125 = vpop.xlane.xlu0 %4124
  %v4126 = vsel %vm588, %v4108, 0.0
  %4127 = vadd.xlane.f32.xlu0 %v4126
  %v4128 = vpop.xlane.xlu0 %4127
  %v4129 = vsel %vm588, %v4110, 0.0
  %4130 = vadd.xlane.f32.xlu0 %v4129
  %v4131 = vpop.xlane.xlu0 %4130
  %v4132 = vsel %vm588, %v4112, 0.0
  %4133 = vadd.xlane.f32.xlu0 %v4132
  %v4134 = vpop.xlane.xlu0 %4133
  %v4135 = vsel %vm588, %v4114, 0.0
  %4136 = vadd.xlane.f32.xlu0 %v4135
  %v4137 = vpop.xlane.xlu0 %4136
  %v4138 = vsel %vm588, %v4116, 0.0
  %4139 = vadd.xlane.f32.xlu0 %v4138
  %v4140 = vpop.xlane.xlu0 %4139
  %v4141 = vrcp.pop %v4119
  %v4142 = vrcp.pop %v4122
  %v4143 = vrcp.pop %v4125
  %v4144 = vrcp.pop %v4128
  %v4145 = vrcp.pop %v4131
  %v4146 = vrcp.pop %v4134
  %v4147 = vrcp.pop %v4137
  %v4148 = vrcp.pop %v4140
  %v4149 = vmul.f32 %v4102, %v4141
  %v4150 = vmul.f32 %v4104, %v4142
  %v4151 = vmul.f32 %v4106, %v4143
  %v4152 = vmul.f32 %v4108, %v4144
  %v4153 = vmul.f32 %v4110, %v4145
  %v4154 = vmul.f32 %v4112, %v4146
  %v4155 = vmul.f32 %v4114, %v4147
  %v4156 = vmul.f32 %v4116, %v4148
  %v4157 = vmul.f32 %v2696, %v3915
  %v4158 = vmul.f32 %v2701, %v3915
  %v4159 = vmul.f32 %v2706, %v3915
  %v4160 = vmul.f32 %v2711, %v3915
  %v4161 = vmul.f32 %v2716, %v3915
  %v4162 = vmul.f32 %v2721, %v3915
  %v4163 = vmul.f32 %v2726, %v3915
  %v4164 = vmul.f32 %v2731, %v3915
  %v4166 = vsel %vm588, %v4149, 0
  %v4169 = vsel %vm588, %v4150, 0
  %v4172 = vsel %vm588, %v4151, 0
  %v4175 = vsel %vm588, %v4152, 0
  %v4178 = vsel %vm588, %v4153, 0
  %v4181 = vsel %vm588, %v4154, 0
  %v4184 = vsel %vm588, %v4155, 0
  %v4187 = vsel %vm588, %v4156, 0
  %4189 = vmatprep.subr.mxu0 0.0
  %4190 = vmatpush1.msra.mxu0 0.0
  %4191 = vmatprep.subr.mxu0 0.0
  %4192 = vmatpush1.msra.mxu0 0.0
  %4193 = vmatprep.subr.mxu0 0.0
  %4194 = vmatpush1.msra.mxu0 0.0
  %4195 = vmatprep.subr.mxu0 0.0
  %4196 = vmatpush1.msra.mxu0 0.0
  %4197 = vmatprep.subr.mxu0 0.0
  %4198 = vmatpush1.msra.mxu0 0.0
  %4199 = vmatprep.subr.mxu0 0.0
  %4200 = vmatpush1.msra.mxu0 0.0
  %4201 = vmatprep.subr.mxu0 0.0
  %4202 = vmatpush1.msra.mxu0 0.0
  %4203 = vmatprep.subr.mxu0 0.0
  %4204 = vmatpush1.msra.mxu0 0.0
  %4205 = vmatprep.subr.mxu0 0.0
  %4206 = vmatpush1.msra.mxu0 %v4164
  %4207 = vmatprep.subr.mxu0 0.0
  %4208 = vmatpush1.msra.mxu0 %v4163
  %4209 = vmatprep.subr.mxu0 0.0
  %4210 = vmatpush1.msra.mxu0 %v4162
  %4211 = vmatprep.subr.mxu0 0.0
  %4212 = vmatpush1.msra.mxu0 %v4161
  %4213 = vmatprep.subr.mxu0 0.0
  %4214 = vmatpush1.msra.mxu0 %v4160
  %4215 = vmatprep.subr.mxu0 0.0
  %4216 = vmatpush1.msra.mxu0 %v4159
  %4217 = vmatprep.subr.mxu0 0.0
  %4218 = vmatpush1.msra.mxu0 %v4158
  %4219 = vmatprep.subr.mxu0 0.0
  %4220 = vmatpush1.msra.mxu0 %v4157
  %4221 = vmatprep.subr.mxu0 0.0
  %4222 = vmatpush2.msra.mxu0 0.0
  %4223 = vmatprep.subr.mxu0 0.0
  %4224 = vmatpush2.msra.mxu0 0.0
  %4225 = vmatprep.subr.mxu0 0.0
  %4226 = vmatpush2.msra.mxu0 0.0
  %4227 = vmatprep.subr.mxu0 0.0
  %4228 = vmatpush2.msra.mxu0 0.0
  %4229 = vmatprep.subr.mxu0 0.0
  %4230 = vmatpush2.msra.mxu0 0.0
  %4231 = vmatprep.subr.mxu0 0.0
  %4232 = vmatpush2.msra.mxu0 0.0
  %4233 = vmatprep.subr.mxu0 0.0
  %4234 = vmatpush2.msra.mxu0 0.0
  %4235 = vmatprep.subr.mxu0 0.0
  %4236 = vmatpush2.msra.mxu0 0.0
  %4237 = vmatprep.subr.mxu0 0.0
  %4238 = vmatpush2.msra.mxu0 0.0
  %4239 = vmatprep.subr.mxu0 0.0
  %4240 = vmatpush2.msra.mxu0 0.0
  %4241 = vmatprep.subr.mxu0 0.0
  %4242 = vmatpush2.msra.mxu0 0.0
  %4243 = vmatprep.subr.mxu0 0.0
  %4244 = vmatpush2.msra.mxu0 0.0
  %4245 = vmatprep.subr.mxu0 0.0
  %4246 = vmatpush2.msra.mxu0 0.0
  %4247 = vmatprep.subr.mxu0 0.0
  %4248 = vmatpush2.msra.mxu0 0.0
  %4249 = vmatprep.subr.mxu0 0.0
  %4250 = vmatpush2.msra.mxu0 0.0
  %4251 = vmatprep.subr.mxu0 0.0
  %4252 = vmatpush2.msra.mxu0 0.0
  %4253 = vmatprep.mubr.f32.mxu0 0.0
  %4254 = vmatmul.mubr.f32.gmra.mxu0 %v4166
  %v4255 = vpop.f32.mrf.mxu0
  %v4256 = vadd.f32 0.0, %v4255
  %v4257 = vpop.f32.mrf.mxu0
  %4258 = vmatprep.mubr.f32.mxu0 0.0
  %4259 = vmatmul.mubr.f32.gmra.mxu0 %v4169
  %v4260 = vpop.f32.mrf.mxu0
  %v4261 = vadd.f32 0.0, %v4260
  %v4262 = vpop.f32.mrf.mxu0
  %4263 = vmatprep.mubr.f32.mxu0 0.0
  %4264 = vmatmul.mubr.f32.gmra.mxu0 %v4172
  %v4265 = vpop.f32.mrf.mxu0
  %v4266 = vadd.f32 0.0, %v4265
  %v4267 = vpop.f32.mrf.mxu0
  %4268 = vmatprep.mubr.f32.mxu0 0.0
  %4269 = vmatmul.mubr.f32.gmra.mxu0 %v4175
  %v4270 = vpop.f32.mrf.mxu0
  %v4271 = vadd.f32 0.0, %v4270
  %v4272 = vpop.f32.mrf.mxu0
  %4273 = vmatprep.mubr.f32.mxu0 0.0
  %4274 = vmatmul.mubr.f32.gmra.mxu0 %v4178
  %v4275 = vpop.f32.mrf.mxu0
  %v4276 = vadd.f32 0.0, %v4275
  %v4277 = vpop.f32.mrf.mxu0
  %4278 = vmatprep.mubr.f32.mxu0 0.0
  %4279 = vmatmul.mubr.f32.gmra.mxu0 %v4181
  %v4280 = vpop.f32.mrf.mxu0
  %v4281 = vadd.f32 0.0, %v4280
  %v4282 = vpop.f32.mrf.mxu0
  %4283 = vmatprep.mubr.f32.mxu0 0.0
  %4284 = vmatmul.mubr.f32.gmra.mxu0 %v4184
  %v4285 = vpop.f32.mrf.mxu0
  %v4286 = vadd.f32 0.0, %v4285
  %v4287 = vpop.f32.mrf.mxu0
  %4288 = vmatprep.mubr.f32.mxu0 0.0
  %4289 = vmatmul.mubr.f32.gmra.mxu0 %v4187
  %v4290 = vpop.f32.mrf.mxu0
  %v4291 = vadd.f32 0.0, %v4290
  %v4292 = vpop.f32.mrf.mxu0
  %4293 = vdwg.mxu0
  %v4294 = vadd.f32 %v3904, %v4256
  %v4295 = vadd.f32 %v3905, %v4261
  %v4296 = vadd.f32 %v3906, %v4266
  %v4297 = vadd.f32 %v3907, %v4271
  %v4298 = vadd.f32 %v3908, %v4276
  %v4299 = vadd.f32 %v3909, %v4281
  %v4300 = vadd.f32 %v3910, %v4286
  %v4301 = vadd.f32 %v3911, %v4291
  %v4302 = vld [vmem:[%s17] sm:$0xff]
  %v4303 = vld [vmem:[%s17 + $0x8] sm:$0xff]
  %v4304 = vld [vmem:[%s17 + $0x10] sm:$0xff]
  %v4305 = vld [vmem:[%s17 + $0x18] sm:$0xff]
  %v4306 = vld [vmem:[%s17 + $0x20] sm:$0xff]
  %v4307 = vld [vmem:[%s17 + $0x28] sm:$0xff]
  %v4308 = vld [vmem:[%s17 + $0x30] sm:$0xff]
  %v4309 = vld [vmem:[%s17 + $0x38] sm:$0xff]
  %v4310 = vld [vmem:[%s18] sm:$0x1]
  %v4312 = vlaneseq
  %v4313 = vshrl.u32 %v4312, 7
  %v4314 = vsub.s32 0, %v4313
  %v4315 = vrot.slane %v4310, %v4314
  %v4318 = vsel %vm588, %v4294, 0
  %v4321 = vsel %vm588, %v4295, 0
  %v4324 = vsel %vm588, %v4296, 0
  %v4327 = vsel %vm588, %v4297, 0
  %v4330 = vsel %vm588, %v4298, 0
  %v4333 = vsel %vm588, %v4299, 0
  %v4336 = vsel %vm588, %v4300, 0
  %v4339 = vsel %vm588, %v4301, 0
  %4341 = vmatprep.subr.mxu0 0.0
  %4342 = vmatpush1.msra.mxu0 0.0
  %4343 = vmatprep.subr.mxu0 0.0
  %4344 = vmatpush1.msra.mxu0 0.0
  %4345 = vmatprep.subr.mxu0 0.0
  %4346 = vmatpush1.msra.mxu0 0.0
  %4347 = vmatprep.subr.mxu0 0.0
  %4348 = vmatpush1.msra.mxu0 0.0
  %4349 = vmatprep.subr.mxu0 0.0
  %4350 = vmatpush1.msra.mxu0 0.0
  %4351 = vmatprep.subr.mxu0 0.0
  %4352 = vmatpush1.msra.mxu0 0.0
  %4353 = vmatprep.subr.mxu0 0.0
  %4354 = vmatpush1.msra.mxu0 0.0
  %4355 = vmatprep.subr.mxu0 0.0
  %4356 = vmatpush1.msra.mxu0 0.0
  %4357 = vmatprep.subr.mxu0 0.0
  %4358 = vmatpush1.msra.mxu0 %v4309
  %4359 = vmatprep.subr.mxu0 0.0
  %4360 = vmatpush1.msra.mxu0 %v4308
  %4361 = vmatprep.subr.mxu0 0.0
  %4362 = vmatpush1.msra.mxu0 %v4307
  %4363 = vmatprep.subr.mxu0 0.0
  %4364 = vmatpush1.msra.mxu0 %v4306
  %4365 = vmatprep.subr.mxu0 0.0
  %4366 = vmatpush1.msra.mxu0 %v4305
  %4367 = vmatprep.subr.mxu0 0.0
  %4368 = vmatpush1.msra.mxu0 %v4304
  %4369 = vmatprep.subr.mxu0 0.0
  %4370 = vmatpush1.msra.mxu0 %v4303
  %4371 = vmatprep.subr.mxu0 0.0
  %4372 = vmatpush1.msra.mxu0 %v4302
  %4373 = vmatprep.subr.mxu0 0.0
  %4374 = vmatpush2.msra.mxu0 0.0
  %4375 = vmatprep.subr.mxu0 0.0
  %4376 = vmatpush2.msra.mxu0 0.0
  %4377 = vmatprep.subr.mxu0 0.0
  %4378 = vmatpush2.msra.mxu0 0.0
  %4379 = vmatprep.subr.mxu0 0.0
  %4380 = vmatpush2.msra.mxu0 0.0
  %4381 = vmatprep.subr.mxu0 0.0
  %4382 = vmatpush2.msra.mxu0 0.0
  %4383 = vmatprep.subr.mxu0 0.0
  %4384 = vmatpush2.msra.mxu0 0.0
  %4385 = vmatprep.subr.mxu0 0.0
  %4386 = vmatpush2.msra.mxu0 0.0
  %4387 = vmatprep.subr.mxu0 0.0
  %4388 = vmatpush2.msra.mxu0 0.0
  %4389 = vmatprep.subr.mxu0 0.0
  %4390 = vmatpush2.msra.mxu0 0.0
  %4391 = vmatprep.subr.mxu0 0.0
  %4392 = vmatpush2.msra.mxu0 0.0
  %4393 = vmatprep.subr.mxu0 0.0
  %4394 = vmatpush2.msra.mxu0 0.0
  %4395 = vmatprep.subr.mxu0 0.0
  %4396 = vmatpush2.msra.mxu0 0.0
  %4397 = vmatprep.subr.mxu0 0.0
  %4398 = vmatpush2.msra.mxu0 0.0
  %4399 = vmatprep.subr.mxu0 0.0
  %4400 = vmatpush2.msra.mxu0 0.0
  %4401 = vmatprep.subr.mxu0 0.0
  %4402 = vmatpush2.msra.mxu0 0.0
  %4403 = vmatprep.subr.mxu0 0.0
  %4404 = vmatpush2.msra.mxu0 0.0
  %4405 = vmatprep.mubr.f32.mxu0 0.0
  %4406 = vmatmul.mubr.f32.gmra.mxu0 %v4318
  %v4407 = vpop.f32.mrf.mxu0
  %v4408 = vadd.f32 %v4315, %v4407
  %v4409 = vpop.f32.mrf.mxu0
  %4410 = vmatprep.mubr.f32.mxu0 0.0
  %4411 = vmatmul.mubr.f32.gmra.mxu0 %v4321
  %v4412 = vpop.f32.mrf.mxu0
  %v4413 = vadd.f32 %v4315, %v4412
  %v4414 = vpop.f32.mrf.mxu0
  %4415 = vmatprep.mubr.f32.mxu0 0.0
  %4416 = vmatmul.mubr.f32.gmra.mxu0 %v4324
  %v4417 = vpop.f32.mrf.mxu0
  %v4418 = vadd.f32 %v4315, %v4417
  %v4419 = vpop.f32.mrf.mxu0
  %4420 = vmatprep.mubr.f32.mxu0 0.0
  %4421 = vmatmul.mubr.f32.gmra.mxu0 %v4327
  %v4422 = vpop.f32.mrf.mxu0
  %v4423 = vadd.f32 %v4315, %v4422
  %v4424 = vpop.f32.mrf.mxu0
  %4425 = vmatprep.mubr.f32.mxu0 0.0
  %4426 = vmatmul.mubr.f32.gmra.mxu0 %v4330
  %v4427 = vpop.f32.mrf.mxu0
  %v4428 = vadd.f32 %v4315, %v4427
  %v4429 = vpop.f32.mrf.mxu0
  %4430 = vmatprep.mubr.f32.mxu0 0.0
  %4431 = vmatmul.mubr.f32.gmra.mxu0 %v4333
  %v4432 = vpop.f32.mrf.mxu0
  %v4433 = vadd.f32 %v4315, %v4432
  %v4434 = vpop.f32.mrf.mxu0
  %4435 = vmatprep.mubr.f32.mxu0 0.0
  %4436 = vmatmul.mubr.f32.gmra.mxu0 %v4336
  %v4437 = vpop.f32.mrf.mxu0
  %v4438 = vadd.f32 %v4315, %v4437
  %v4439 = vpop.f32.mrf.mxu0
  %4440 = vmatprep.mubr.f32.mxu0 0.0
  %4441 = vmatmul.mubr.f32.gmra.mxu0 %v4339
  %v4442 = vpop.f32.mrf.mxu0
  %v4443 = vadd.f32 %v4315, %v4442
  %v4444 = vpop.f32.mrf.mxu0
  %4445 = vdwg.mxu0
  %v4446 = vadd.f32 %v1944, %v4408
  %v4447 = vadd.f32 %v1949, %v4413
  %v4448 = vadd.f32 %v1954, %v4418
  %v4449 = vadd.f32 %v1959, %v4423
  %v4450 = vadd.f32 %v1964, %v4428
  %v4451 = vadd.f32 %v1969, %v4433
  %v4452 = vadd.f32 %v1974, %v4438
  %v4453 = vadd.f32 %v1979, %v4443
  %v4454 = vld [vmem:[%s19] sm:$0x1]
  %v4455 = vld [vmem:[%s20] sm:$0x1]
  %v4456 = vsel %vm588, %v4446, 0.0
  %4457 = vadd.xlane.f32.xlu0 %v4456
  %v4458 = vpop.xlane.xlu0 %4457
  %v4459 = vsel %vm588, %v4447, 0.0
  %4460 = vadd.xlane.f32.xlu0 %v4459
  %v4461 = vpop.xlane.xlu0 %4460
  %v4462 = vsel %vm588, %v4448, 0.0
  %4463 = vadd.xlane.f32.xlu0 %v4462
  %v4464 = vpop.xlane.xlu0 %4463
  %v4465 = vsel %vm588, %v4449, 0.0
  %4466 = vadd.xlane.f32.xlu0 %v4465
  %v4467 = vpop.xlane.xlu0 %4466
  %v4468 = vsel %vm588, %v4450, 0.0
  %4469 = vadd.xlane.f32.xlu0 %v4468
  %v4470 = vpop.xlane.xlu0 %4469
  %v4471 = vsel %vm588, %v4451, 0.0
  %4472 = vadd.xlane.f32.xlu0 %v4471
  %v4473 = vpop.xlane.xlu0 %4472
  %v4474 = vsel %vm588, %v4452, 0.0
  %4475 = vadd.xlane.f32.xlu0 %v4474
  %v4476 = vpop.xlane.xlu0 %4475
  %v4477 = vsel %vm588, %v4453, 0.0
  %4478 = vadd.xlane.f32.xlu0 %v4477
  %v4479 = vpop.xlane.xlu0 %4478
  %v4480 = vrcp.pop 64.0
  %v4481 = vmul.f32 %v4458, %v4480
  %v4482 = vmul.f32 %v4461, %v4480
  %v4483 = vmul.f32 %v4464, %v4480
  %v4484 = vmul.f32 %v4467, %v4480
  %v4485 = vmul.f32 %v4470, %v4480
  %v4486 = vmul.f32 %v4473, %v4480
  %v4487 = vmul.f32 %v4476, %v4480
  %v4488 = vmul.f32 %v4479, %v4480
  %v4489 = vsub.f32 %v4446, %v4481
  %v4490 = vsub.f32 %v4447, %v4482
  %v4491 = vsub.f32 %v4448, %v4483
  %v4492 = vsub.f32 %v4449, %v4484
  %v4493 = vsub.f32 %v4450, %v4485
  %v4494 = vsub.f32 %v4451, %v4486
  %v4495 = vsub.f32 %v4452, %v4487
  %v4496 = vsub.f32 %v4453, %v4488
  %v4497 = vmul.f32 %v4489, %v4489
  %v4498 = vmul.f32 %v4490, %v4490
  %v4499 = vmul.f32 %v4491, %v4491
  %v4500 = vmul.f32 %v4492, %v4492
  %v4501 = vmul.f32 %v4493, %v4493
  %v4502 = vmul.f32 %v4494, %v4494
  %v4503 = vmul.f32 %v4495, %v4495
  %v4504 = vmul.f32 %v4496, %v4496
  %v4505 = vsel %vm588, %v4497, 0.0
  %4506 = vadd.xlane.f32.xlu0 %v4505
  %v4507 = vpop.xlane.xlu0 %4506
  %v4508 = vsel %vm588, %v4498, 0.0
  %4509 = vadd.xlane.f32.xlu0 %v4508
  %v4510 = vpop.xlane.xlu0 %4509
  %v4511 = vsel %vm588, %v4499, 0.0
  %4512 = vadd.xlane.f32.xlu0 %v4511
  %v4513 = vpop.xlane.xlu0 %4512
  %v4514 = vsel %vm588, %v4500, 0.0
  %4515 = vadd.xlane.f32.xlu0 %v4514
  %v4516 = vpop.xlane.xlu0 %4515
  %v4517 = vsel %vm588, %v4501, 0.0
  %4518 = vadd.xlane.f32.xlu0 %v4517
  %v4519 = vpop.xlane.xlu0 %4518
  %v4520 = vsel %vm588, %v4502, 0.0
  %4521 = vadd.xlane.f32.xlu0 %v4520
  %v4522 = vpop.xlane.xlu0 %4521
  %v4523 = vsel %vm588, %v4503, 0.0
  %4524 = vadd.xlane.f32.xlu0 %v4523
  %v4525 = vpop.xlane.xlu0 %4524
  %v4526 = vsel %vm588, %v4504, 0.0
  %4527 = vadd.xlane.f32.xlu0 %v4526
  %v4528 = vpop.xlane.xlu0 %4527
  %v4529 = vmul.f32 %v4507, %v4480
  %v4530 = vmul.f32 %v4510, %v4480
  %v4531 = vmul.f32 %v4513, %v4480
  %v4532 = vmul.f32 %v4516, %v4480
  %v4533 = vmul.f32 %v4519, %v4480
  %v4534 = vmul.f32 %v4522, %v4480
  %v4535 = vmul.f32 %v4525, %v4480
  %v4536 = vmul.f32 %v4528, %v4480
  %v4537 = vadd.f32 %v4529, 1e-05
  %v4538 = vadd.f32 %v4530, 1e-05
  %v4539 = vadd.f32 %v4531, 1e-05
  %v4540 = vadd.f32 %v4532, 1e-05
  %v4541 = vadd.f32 %v4533, 1e-05
  %v4542 = vadd.f32 %v4534, 1e-05
  %v4543 = vadd.f32 %v4535, 1e-05
  %v4544 = vadd.f32 %v4536, 1e-05
  %v4545 = vrsqrt.pop %v4537
  %v4546 = vrsqrt.pop %v4538
  %v4547 = vrsqrt.pop %v4539
  %v4548 = vrsqrt.pop %v4540
  %v4549 = vrsqrt.pop %v4541
  %v4550 = vrsqrt.pop %v4542
  %v4551 = vrsqrt.pop %v4543
  %v4552 = vrsqrt.pop %v4544
  %v4553 = vmul.f32 %v4489, %v4545
  %v4554 = vmul.f32 %v4490, %v4546
  %v4555 = vmul.f32 %v4491, %v4547
  %v4556 = vmul.f32 %v4492, %v4548
  %v4557 = vmul.f32 %v4493, %v4549
  %v4558 = vmul.f32 %v4494, %v4550
  %v4559 = vmul.f32 %v4495, %v4551
  %v4560 = vmul.f32 %v4496, %v4552
  %v4562 = vlaneseq
  %v4563 = vshrl.u32 %v4562, 7
  %v4564 = vsub.s32 0, %v4563
  %v4565 = vrot.slane %v4454, %v4564
  %v4567 = vmul.f32 %v4553, %v4565
  %v4568 = vmul.f32 %v4554, %v4565
  %v4569 = vmul.f32 %v4555, %v4565
  %v4570 = vmul.f32 %v4556, %v4565
  %v4571 = vmul.f32 %v4557, %v4565
  %v4572 = vmul.f32 %v4558, %v4565
  %v4573 = vmul.f32 %v4559, %v4565
  %v4574 = vmul.f32 %v4560, %v4565
  %v4576 = vlaneseq
  %v4577 = vshrl.u32 %v4576, 7
  %v4578 = vsub.s32 0, %v4577
  %v4579 = vrot.slane %v4455, %v4578
  %v4581 = vadd.f32 %v4567, %v4579
  %v4582 = vadd.f32 %v4568, %v4579
  %v4583 = vadd.f32 %v4569, %v4579
  %v4584 = vadd.f32 %v4570, %v4579
  %v4585 = vadd.f32 %v4571, %v4579
  %v4586 = vadd.f32 %v4572, %v4579
  %v4587 = vadd.f32 %v4573, %v4579
  %v4588 = vadd.f32 %v4574, %v4579
  %s4589 = smul.u32 4, 8
  %s4590 = smul.u32 %s4589, 16
  %s4591 = sshll.u32 %s4590, 4
  %4592 = dma.done [#allocation4], %s4591
  %v4593 = vpack.c.bf16 %v4582, %v4581
  %v4594 = vpack.c.bf16 %v4584, %v4583
  %v4595 = vpack.c.bf16 %v4586, %v4585
  %v4596 = vpack.c.bf16 %v4588, %v4587
  %v4597 = vld [vmem:[#allocation2] sm:$0xff]
  %v4598 = vld [vmem:[#allocation2 + $0x8] sm:$0xff]
  %v4599 = vld [vmem:[#allocation2 + $0x10] sm:$0xff]
  %v4600 = vld [vmem:[#allocation2 + $0x18] sm:$0xff]
  %v4601 = vld [vmem:[#allocation2 + $0x20] sm:$0xff]
  %v4602 = vld [vmem:[#allocation2 + $0x28] sm:$0xff]
  %v4603 = vld [vmem:[#allocation2 + $0x30] sm:$0xff]
  %v4604 = vld [vmem:[#allocation2 + $0x38] sm:$0xff]
  %v4605 = vld [vmem:[#allocation2 + $0x40] sm:$0xff]
  %v4606 = vld [vmem:[#allocation2 + $0x48] sm:$0xff]
  %v4607 = vld [vmem:[#allocation2 + $0x50] sm:$0xff]
  %v4608 = vld [vmem:[#allocation2 + $0x58] sm:$0xff]
  %v4609 = vld [vmem:[#allocation2 + $0x60] sm:$0xff]
  %v4610 = vld [vmem:[#allocation2 + $0x68] sm:$0xff]
  %v4611 = vld [vmem:[#allocation2 + $0x70] sm:$0xff]
  %v4612 = vld [vmem:[#allocation2 + $0x78] sm:$0xff]
  %v4613 = vld [vmem:[#allocation2 + $0x80] sm:$0xff]
  %v4614 = vld [vmem:[#allocation2 + $0x88] sm:$0xff]
  %v4615 = vld [vmem:[#allocation2 + $0x90] sm:$0xff]
  %v4616 = vld [vmem:[#allocation2 + $0x98] sm:$0xff]
  %v4617 = vld [vmem:[#allocation2 + $0xa0] sm:$0xff]
  %v4618 = vld [vmem:[#allocation2 + $0xa8] sm:$0xff]
  %v4619 = vld [vmem:[#allocation2 + $0xb0] sm:$0xff]
  %v4620 = vld [vmem:[#allocation2 + $0xb8] sm:$0xff]
  %v4621 = vld [vmem:[#allocation2 + $0xc0] sm:$0xff]
  %v4622 = vld [vmem:[#allocation2 + $0xc8] sm:$0xff]
  %v4623 = vld [vmem:[#allocation2 + $0xd0] sm:$0xff]
  %v4624 = vld [vmem:[#allocation2 + $0xd8] sm:$0xff]
  %v4625 = vld [vmem:[#allocation2 + $0xe0] sm:$0xff]
  %v4626 = vld [vmem:[#allocation2 + $0xe8] sm:$0xff]
  %v4627 = vld [vmem:[#allocation2 + $0xf0] sm:$0xff]
  %v4628 = vld [vmem:[#allocation2 + $0xf8] sm:$0xff]
  %v4629 = vld [vmem:[#allocation2 + $0x100] sm:$0xff]
  %v4630 = vld [vmem:[#allocation2 + $0x108] sm:$0xff]
  %v4631 = vld [vmem:[#allocation2 + $0x110] sm:$0xff]
  %v4632 = vld [vmem:[#allocation2 + $0x118] sm:$0xff]
  %v4633 = vld [vmem:[#allocation2 + $0x120] sm:$0xff]
  %v4634 = vld [vmem:[#allocation2 + $0x128] sm:$0xff]
  %v4635 = vld [vmem:[#allocation2 + $0x130] sm:$0xff]
  %v4636 = vld [vmem:[#allocation2 + $0x138] sm:$0xff]
  %v4637 = vld [vmem:[#allocation2 + $0x140] sm:$0xff]
  %v4638 = vld [vmem:[#allocation2 + $0x148] sm:$0xff]
  %v4639 = vld [vmem:[#allocation2 + $0x150] sm:$0xff]
  %v4640 = vld [vmem:[#allocation2 + $0x158] sm:$0xff]
  %v4641 = vld [vmem:[#allocation2 + $0x160] sm:$0xff]
  %v4642 = vld [vmem:[#allocation2 + $0x168] sm:$0xff]
  %v4643 = vld [vmem:[#allocation2 + $0x170] sm:$0xff]
  %v4644 = vld [vmem:[#allocation2 + $0x178] sm:$0xff]
  %v4645 = vld [vmem:[#allocation2 + $0x180] sm:$0xff]
  %v4646 = vld [vmem:[#allocation2 + $0x188] sm:$0xff]
  %v4647 = vld [vmem:[#allocation2 + $0x190] sm:$0xff]
  %v4648 = vld [vmem:[#allocation2 + $0x198] sm:$0xff]
  %v4649 = vld [vmem:[#allocation2 + $0x1a0] sm:$0xff]
  %v4650 = vld [vmem:[#allocation2 + $0x1a8] sm:$0xff]
  %v4651 = vld [vmem:[#allocation2 + $0x1b0] sm:$0xff]
  %v4652 = vld [vmem:[#allocation2 + $0x1b8] sm:$0xff]
  %v4653 = vld [vmem:[#allocation2 + $0x1c0] sm:$0xff]
  %v4654 = vld [vmem:[#allocation2 + $0x1c8] sm:$0xff]
  %v4655 = vld [vmem:[#allocation2 + $0x1d0] sm:$0xff]
  %v4656 = vld [vmem:[#allocation2 + $0x1d8] sm:$0xff]
  %v4657 = vld [vmem:[#allocation2 + $0x1e0] sm:$0xff]
  %v4658 = vld [vmem:[#allocation2 + $0x1e8] sm:$0xff]
  %v4659 = vld [vmem:[#allocation2 + $0x1f0] sm:$0xff]
  %v4660 = vld [vmem:[#allocation2 + $0x1f8] sm:$0xff]
  %v4661 = vld [vmem:[%s22] sm:$0xff]
  %v4662 = vld [vmem:[%s22 + $0x8] sm:$0xff]
  %v4665 = vlaneseq
  %v4666 = vshrl.u32 %v4665, 7
  %v4667 = vsub.s32 0, %v4666
  %v4668 = vrot.slane %v4661, %v4667
  %v4669 = vlaneseq
  %v4670 = vshrl.u32 %v4669, 7
  %v4671 = vsub.s32 1, %v4670
  %v4672 = vrot.slane %v4661, %v4671
  %v4673 = vlaneseq
  %v4674 = vshrl.u32 %v4673, 7
  %v4675 = vsub.s32 2, %v4674
  %v4676 = vrot.slane %v4661, %v4675
  %v4677 = vlaneseq
  %v4678 = vshrl.u32 %v4677, 7
  %v4679 = vsub.s32 3, %v4678
  %v4680 = vrot.slane %v4661, %v4679
  %v4681 = vlaneseq
  %v4682 = vshrl.u32 %v4681, 7
  %v4683 = vsub.s32 4, %v4682
  %v4684 = vrot.slane %v4661, %v4683
  %v4685 = vlaneseq
  %v4686 = vshrl.u32 %v4685, 7
  %v4687 = vsub.s32 5, %v4686
  %v4688 = vrot.slane %v4661, %v4687
  %v4689 = vlaneseq
  %v4690 = vshrl.u32 %v4689, 7
  %v4691 = vsub.s32 6, %v4690
  %v4692 = vrot.slane %v4661, %v4691
  %v4693 = vlaneseq
  %v4694 = vshrl.u32 %v4693, 7
  %v4695 = vsub.s32 7, %v4694
  %v4696 = vrot.slane %v4661, %v4695
  %v4697 = vlaneseq
  %v4698 = vshrl.u32 %v4697, 7
  %v4699 = vsub.s32 0, %v4698
  %v4700 = vrot.slane %v4662, %v4699
  %v4701 = vlaneseq
  %v4702 = vshrl.u32 %v4701, 7
  %v4703 = vsub.s32 1, %v4702
  %v4704 = vrot.slane %v4662, %v4703
  %v4705 = vlaneseq
  %v4706 = vshrl.u32 %v4705, 7
  %v4707 = vsub.s32 2, %v4706
  %v4708 = vrot.slane %v4662, %v4707
  %v4709 = vlaneseq
  %v4710 = vshrl.u32 %v4709, 7
  %v4711 = vsub.s32 3, %v4710
  %v4712 = vrot.slane %v4662, %v4711
  %v4713 = vlaneseq
  %v4714 = vshrl.u32 %v4713, 7
  %v4715 = vsub.s32 4, %v4714
  %v4716 = vrot.slane %v4662, %v4715
  %v4717 = vlaneseq
  %v4718 = vshrl.u32 %v4717, 7
  %v4719 = vsub.s32 5, %v4718
  %v4720 = vrot.slane %v4662, %v4719
  %v4721 = vlaneseq
  %v4722 = vshrl.u32 %v4721, 7
  %v4723 = vsub.s32 6, %v4722
  %v4724 = vrot.slane %v4662, %v4723
  %v4725 = vlaneseq
  %v4726 = vshrl.u32 %v4725, 7
  %v4727 = vsub.s32 7, %v4726
  %v4728 = vrot.slane %v4662, %v4727
  %v4809 = vunpack.c.l.b16 %v4597
  %v4810 = vunpack.c.h.b16 %v4597
  %v4811 = vunpack.c.l.b16 %v4598
  %v4812 = vunpack.c.h.b16 %v4598
  %v4813 = vunpack.c.l.b16 %v4599
  %v4814 = vunpack.c.h.b16 %v4599
  %v4815 = vunpack.c.l.b16 %v4600
  %v4816 = vunpack.c.h.b16 %v4600
  %v4817 = vunpack.c.l.b16 %v4601
  %v4818 = vunpack.c.h.b16 %v4601
  %v4819 = vunpack.c.l.b16 %v4602
  %v4820 = vunpack.c.h.b16 %v4602
  %v4821 = vunpack.c.l.b16 %v4603
  %v4822 = vunpack.c.h.b16 %v4603
  %v4823 = vunpack.c.l.b16 %v4604
  %v4824 = vunpack.c.h.b16 %v4604
  %v4825 = vunpack.c.l.b16 %v4605
  %v4826 = vunpack.c.h.b16 %v4605
  %v4827 = vunpack.c.l.b16 %v4606
  %v4828 = vunpack.c.h.b16 %v4606
  %v4829 = vunpack.c.l.b16 %v4607
  %v4830 = vunpack.c.h.b16 %v4607
  %v4831 = vunpack.c.l.b16 %v4608
  %v4832 = vunpack.c.h.b16 %v4608
  %v4833 = vunpack.c.l.b16 %v4609
  %v4834 = vunpack.c.h.b16 %v4609
  %v4835 = vunpack.c.l.b16 %v4610
  %v4836 = vunpack.c.h.b16 %v4610
  %v4837 = vunpack.c.l.b16 %v4611
  %v4838 = vunpack.c.h.b16 %v4611
  %v4839 = vunpack.c.l.b16 %v4612
  %v4840 = vunpack.c.h.b16 %v4612
  %v4841 = vunpack.c.l.b16 %v4613
  %v4842 = vunpack.c.h.b16 %v4613
  %v4843 = vunpack.c.l.b16 %v4614
  %v4844 = vunpack.c.h.b16 %v4614
  %v4845 = vunpack.c.l.b16 %v4615
  %v4846 = vunpack.c.h.b16 %v4615
  %v4847 = vunpack.c.l.b16 %v4616
  %v4848 = vunpack.c.h.b16 %v4616
  %v4849 = vunpack.c.l.b16 %v4617
  %v4850 = vunpack.c.h.b16 %v4617
  %v4851 = vunpack.c.l.b16 %v4618
  %v4852 = vunpack.c.h.b16 %v4618
  %v4853 = vunpack.c.l.b16 %v4619
  %v4854 = vunpack.c.h.b16 %v4619
  %v4855 = vunpack.c.l.b16 %v4620
  %v4856 = vunpack.c.h.b16 %v4620
  %v4857 = vunpack.c.l.b16 %v4621
  %v4858 = vunpack.c.h.b16 %v4621
  %v4859 = vunpack.c.l.b16 %v4622
  %v4860 = vunpack.c.h.b16 %v4622
  %v4861 = vunpack.c.l.b16 %v4623
  %v4862 = vunpack.c.h.b16 %v4623
  %v4863 = vunpack.c.l.b16 %v4624
  %v4864 = vunpack.c.h.b16 %v4624
  %v4865 = vunpack.c.l.b16 %v4625
  %v4866 = vunpack.c.h.b16 %v4625
  %v4867 = vunpack.c.l.b16 %v4626
  %v4868 = vunpack.c.h.b16 %v4626
  %v4869 = vunpack.c.l.b16 %v4627
  %v4870 = vunpack.c.h.b16 %v4627
  %v4871 = vunpack.c.l.b16 %v4628
  %v4872 = vunpack.c.h.b16 %v4628
  %v4873 = vunpack.c.l.b16 %v4629
  %v4874 = vunpack.c.h.b16 %v4629
  %v4875 = vunpack.c.l.b16 %v4630
  %v4876 = vunpack.c.h.b16 %v4630
  %v4877 = vunpack.c.l.b16 %v4631
  %v4878 = vunpack.c.h.b16 %v4631
  %v4879 = vunpack.c.l.b16 %v4632
  %v4880 = vunpack.c.h.b16 %v4632
  %v4881 = vunpack.c.l.b16 %v4633
  %v4882 = vunpack.c.h.b16 %v4633
  %v4883 = vunpack.c.l.b16 %v4634
  %v4884 = vunpack.c.h.b16 %v4634
  %v4885 = vunpack.c.l.b16 %v4635
  %v4886 = vunpack.c.h.b16 %v4635
  %v4887 = vunpack.c.l.b16 %v4636
  %v4888 = vunpack.c.h.b16 %v4636
  %v4889 = vunpack.c.l.b16 %v4637
  %v4890 = vunpack.c.h.b16 %v4637
  %v4891 = vunpack.c.l.b16 %v4638
  %v4892 = vunpack.c.h.b16 %v4638
  %v4893 = vunpack.c.l.b16 %v4639
  %v4894 = vunpack.c.h.b16 %v4639
  %v4895 = vunpack.c.l.b16 %v4640
  %v4896 = vunpack.c.h.b16 %v4640
  %v4897 = vunpack.c.l.b16 %v4641
  %v4898 = vunpack.c.h.b16 %v4641
  %v4899 = vunpack.c.l.b16 %v4642
  %v4900 = vunpack.c.h.b16 %v4642
  %v4901 = vunpack.c.l.b16 %v4643
  %v4902 = vunpack.c.h.b16 %v4643
  %v4903 = vunpack.c.l.b16 %v4644
  %v4904 = vunpack.c.h.b16 %v4644
  %v4905 = vunpack.c.l.b16 %v4645
  %v4906 = vunpack.c.h.b16 %v4645
  %v4907 = vunpack.c.l.b16 %v4646
  %v4908 = vunpack.c.h.b16 %v4646
  %v4909 = vunpack.c.l.b16 %v4647
  %v4910 = vunpack.c.h.b16 %v4647
  %v4911 = vunpack.c.l.b16 %v4648
  %v4912 = vunpack.c.h.b16 %v4648
  %v4913 = vunpack.c.l.b16 %v4649
  %v4914 = vunpack.c.h.b16 %v4649
  %v4915 = vunpack.c.l.b16 %v4650
  %v4916 = vunpack.c.h.b16 %v4650
  %v4917 = vunpack.c.l.b16 %v4651
  %v4918 = vunpack.c.h.b16 %v4651
  %v4919 = vunpack.c.l.b16 %v4652
  %v4920 = vunpack.c.h.b16 %v4652
  %v4921 = vunpack.c.l.b16 %v4653
  %v4922 = vunpack.c.h.b16 %v4653
  %v4923 = vunpack.c.l.b16 %v4654
  %v4924 = vunpack.c.h.b16 %v4654
  %v4925 = vunpack.c.l.b16 %v4655
  %v4926 = vunpack.c.h.b16 %v4655
  %v4927 = vunpack.c.l.b16 %v4656
  %v4928 = vunpack.c.h.b16 %v4656
  %v4929 = vunpack.c.l.b16 %v4657
  %v4930 = vunpack.c.h.b16 %v4657
  %v4931 = vunpack.c.l.b16 %v4658
  %v4932 = vunpack.c.h.b16 %v4658
  %v4933 = vunpack.c.l.b16 %v4659
  %v4934 = vunpack.c.h.b16 %v4659
  %v4935 = vunpack.c.l.b16 %v4660
  %v4936 = vunpack.c.h.b16 %v4660
  %v4937 = vpack.c.b16 %v4825, %v4809
  %v4938 = vpack.c.b16 %v4826, %v4810
  %v4939 = vpack.c.b16 %v4827, %v4811
  %v4940 = vpack.c.b16 %v4828, %v4812
  %v4941 = vpack.c.b16 %v4829, %v4813
  %v4942 = vpack.c.b16 %v4830, %v4814
  %v4943 = vpack.c.b16 %v4831, %v4815
  %v4944 = vpack.c.b16 %v4832, %v4816
  %v4945 = vpack.c.b16 %v4833, %v4817
  %v4946 = vpack.c.b16 %v4834, %v4818
  %v4947 = vpack.c.b16 %v4835, %v4819
  %v4948 = vpack.c.b16 %v4836, %v4820
  %v4949 = vpack.c.b16 %v4837, %v4821
  %v4950 = vpack.c.b16 %v4838, %v4822
  %v4951 = vpack.c.b16 %v4839, %v4823
  %v4952 = vpack.c.b16 %v4840, %v4824
  %v4953 = vpack.c.b16 %v4857, %v4841
  %v4954 = vpack.c.b16 %v4858, %v4842
  %v4955 = vpack.c.b16 %v4859, %v4843
  %v4956 = vpack.c.b16 %v4860, %v4844
  %v4957 = vpack.c.b16 %v4861, %v4845
  %v4958 = vpack.c.b16 %v4862, %v4846
  %v4959 = vpack.c.b16 %v4863, %v4847
  %v4960 = vpack.c.b16 %v4864, %v4848
  %v4961 = vpack.c.b16 %v4865, %v4849
  %v4962 = vpack.c.b16 %v4866, %v4850
  %v4963 = vpack.c.b16 %v4867, %v4851
  %v4964 = vpack.c.b16 %v4868, %v4852
  %v4965 = vpack.c.b16 %v4869, %v4853
  %v4966 = vpack.c.b16 %v4870, %v4854
  %v4967 = vpack.c.b16 %v4871, %v4855
  %v4968 = vpack.c.b16 %v4872, %v4856
  %v4969 = vpack.c.b16 %v4889, %v4873
  %v4970 = vpack.c.b16 %v4890, %v4874
  %v4971 = vpack.c.b16 %v4891, %v4875
  %v4972 = vpack.c.b16 %v4892, %v4876
  %v4973 = vpack.c.b16 %v4893, %v4877
  %v4974 = vpack.c.b16 %v4894, %v4878
  %v4975 = vpack.c.b16 %v4895, %v4879
  %v4976 = vpack.c.b16 %v4896, %v4880
  %v4977 = vpack.c.b16 %v4897, %v4881
  %v4978 = vpack.c.b16 %v4898, %v4882
  %v4979 = vpack.c.b16 %v4899, %v4883
  %v4980 = vpack.c.b16 %v4900, %v4884
  %v4981 = vpack.c.b16 %v4901, %v4885
  %v4982 = vpack.c.b16 %v4902, %v4886
  %v4983 = vpack.c.b16 %v4903, %v4887
  %v4984 = vpack.c.b16 %v4904, %v4888
  %v4985 = vpack.c.b16 %v4921, %v4905
  %v4986 = vpack.c.b16 %v4922, %v4906
  %v4987 = vpack.c.b16 %v4923, %v4907
  %v4988 = vpack.c.b16 %v4924, %v4908
  %v4989 = vpack.c.b16 %v4925, %v4909
  %v4990 = vpack.c.b16 %v4926, %v4910
  %v4991 = vpack.c.b16 %v4927, %v4911
  %v4992 = vpack.c.b16 %v4928, %v4912
  %v4993 = vpack.c.b16 %v4929, %v4913
  %v4994 = vpack.c.b16 %v4930, %v4914
  %v4995 = vpack.c.b16 %v4931, %v4915
  %v4996 = vpack.c.b16 %v4932, %v4916
  %v4997 = vpack.c.b16 %v4933, %v4917
  %v4998 = vpack.c.b16 %v4934, %v4918
  %v4999 = vpack.c.b16 %v4935, %v4919
  %v5000 = vpack.c.b16 %v4936, %v4920
  %v5066 = vsel %vm588, %v4593, 0
  %v5069 = vsel %vm588, %v4594, 0
  %v5072 = vsel %vm588, %v4595, 0
  %v5075 = vsel %vm588, %v4596, 0
  %5077 = vmatprep.subr.bf16.mxu0 0
  %5078 = vmatpush1.bf16.msra.mxu0 0
  %5079 = vmatprep.subr.bf16.mxu0 0
  %5080 = vmatpush1.bf16.msra.mxu0 0
  %5081 = vmatprep.subr.bf16.mxu0 0
  %5082 = vmatpush1.bf16.msra.mxu0 0
  %5083 = vmatprep.subr.bf16.mxu0 0
  %5084 = vmatpush1.bf16.msra.mxu0 0
  %5085 = vmatprep.subr.bf16.mxu0 %v4986
  %5086 = vmatpush1.bf16.msra.mxu0 %v4985
  %5087 = vmatprep.subr.bf16.mxu0 %v4970
  %5088 = vmatpush1.bf16.msra.mxu0 %v4969
  %5089 = vmatprep.subr.bf16.mxu0 %v4954
  %5090 = vmatpush1.bf16.msra.mxu0 %v4953
  %5091 = vmatprep.subr.bf16.mxu0 %v4938
  %5092 = vmatpush1.bf16.msra.mxu0 %v4937
  %5093 = vmatprep.subr.bf16.mxu0 0
  %5094 = vmatpush2.bf16.msra.mxu0 0
  %5095 = vmatprep.subr.bf16.mxu0 0
  %5096 = vmatpush2.bf16.msra.mxu0 0
  %5097 = vmatprep.subr.bf16.mxu0 0
  %5098 = vmatpush2.bf16.msra.mxu0 0
  %5099 = vmatprep.subr.bf16.mxu0 0
  %5100 = vmatpush2.bf16.msra.mxu0 0
  %5101 = vmatprep.subr.bf16.mxu0 0
  %5102 = vmatpush2.bf16.msra.mxu0 0
  %5103 = vmatprep.subr.bf16.mxu0 0
  %5104 = vmatpush2.bf16.msra.mxu0 0
  %5105 = vmatprep.subr.bf16.mxu0 0
  %5106 = vmatpush2.bf16.msra.mxu0 0
  %5107 = vmatprep.subr.bf16.mxu0 0
  %5108 = vmatpush2.bf16.msra.mxu0 0
  %5109 = vmatprep.mubr.bf16.mxu0 0
  %5110 = vmatmul.mubr.bf16.gmra.mxu0 %v5066
  %v5111 = vpop.f32.mrf.mxu0
  %v5112 = vadd.f32 %v4668, %v5111
  %v5113 = vpop.f32.mrf.mxu0
  %v5114 = vadd.f32 %v4672, %v5113
  %v5115 = vpop.f32.mrf.mxu0
  %v5116 = vadd.f32 %v4668, %v5115
  %v5117 = vpop.f32.mrf.mxu0
  %v5118 = vadd.f32 %v4672, %v5117
  %5119 = vmatprep.mubr.bf16.mxu0 0
  %5120 = vmatmul.mubr.bf16.gmra.mxu0 %v5069
  %v5121 = vpop.f32.mrf.mxu0
  %v5122 = vadd.f32 %v4668, %v5121
  %v5123 = vpop.f32.mrf.mxu0
  %v5124 = vadd.f32 %v4672, %v5123
  %v5125 = vpop.f32.mrf.mxu0
  %v5126 = vadd.f32 %v4668, %v5125
  %v5127 = vpop.f32.mrf.mxu0
  %v5128 = vadd.f32 %v4672, %v5127
  %5129 = vmatprep.mubr.bf16.mxu0 0
  %5130 = vmatmul.mubr.bf16.gmra.mxu0 %v5072
  %v5131 = vpop.f32.mrf.mxu0
  %v5132 = vadd.f32 %v4668, %v5131
  %v5133 = vpop.f32.mrf.mxu0
  %v5134 = vadd.f32 %v4672, %v5133
  %v5135 = vpop.f32.mrf.mxu0
  %v5136 = vadd.f32 %v4668, %v5135
  %v5137 = vpop.f32.mrf.mxu0
  %v5138 = vadd.f32 %v4672, %v5137
  %5139 = vmatprep.mubr.bf16.mxu0 0
  %5140 = vmatmul.mubr.bf16.gmra.mxu0 %v5075
  %v5141 = vpop.f32.mrf.mxu0
  %v5142 = vadd.f32 %v4668, %v5141
  %v5143 = vpop.f32.mrf.mxu0
  %v5144 = vadd.f32 %v4672, %v5143
  %v5145 = vpop.f32.mrf.mxu0
  %v5146 = vadd.f32 %v4668, %v5145
  %v5147 = vpop.f32.mrf.mxu0
  %v5148 = vadd.f32 %v4672, %v5147
  %5149 = vdwg.mxu0
  %5150 = vmatprep.subr.bf16.mxu0 0
  %5151 = vmatpush1.bf16.msra.mxu0 0
  %5152 = vmatprep.subr.bf16.mxu0 0
  %5153 = vmatpush1.bf16.msra.mxu0 0
  %5154 = vmatprep.subr.bf16.mxu0 0
  %5155 = vmatpush1.bf16.msra.mxu0 0
  %5156 = vmatprep.subr.bf16.mxu0 0
  %5157 = vmatpush1.bf16.msra.mxu0 0
  %5158 = vmatprep.subr.bf16.mxu0 %v4988
  %5159 = vmatpush1.bf16.msra.mxu0 %v4987
  %5160 = vmatprep.subr.bf16.mxu0 %v4972
  %5161 = vmatpush1.bf16.msra.mxu0 %v4971
  %5162 = vmatprep.subr.bf16.mxu0 %v4956
  %5163 = vmatpush1.bf16.msra.mxu0 %v4955
  %5164 = vmatprep.subr.bf16.mxu0 %v4940
  %5165 = vmatpush1.bf16.msra.mxu0 %v4939
  %5166 = vmatprep.subr.bf16.mxu0 0
  %5167 = vmatpush2.bf16.msra.mxu0 0
  %5168 = vmatprep.subr.bf16.mxu0 0
  %5169 = vmatpush2.bf16.msra.mxu0 0
  %5170 = vmatprep.subr.bf16.mxu0 0
  %5171 = vmatpush2.bf16.msra.mxu0 0
  %5172 = vmatprep.subr.bf16.mxu0 0
  %5173 = vmatpush2.bf16.msra.mxu0 0
  %5174 = vmatprep.subr.bf16.mxu0 0
  %5175 = vmatpush2.bf16.msra.mxu0 0
  %5176 = vmatprep.subr.bf16.mxu0 0
  %5177 = vmatpush2.bf16.msra.mxu0 0
  %5178 = vmatprep.subr.bf16.mxu0 0
  %5179 = vmatpush2.bf16.msra.mxu0 0
  %5180 = vmatprep.subr.bf16.mxu0 0
  %5181 = vmatpush2.bf16.msra.mxu0 0
  %5182 = vmatprep.mubr.bf16.mxu0 0
  %5183 = vmatmul.mubr.bf16.gmra.mxu0 %v5066
  %v5184 = vpop.f32.mrf.mxu0
  %v5185 = vadd.f32 %v4676, %v5184
  %v5186 = vpop.f32.mrf.mxu0
  %v5187 = vadd.f32 %v4680, %v5186
  %v5188 = vpop.f32.mrf.mxu0
  %v5189 = vadd.f32 %v4676, %v5188
  %v5190 = vpop.f32.mrf.mxu0
  %v5191 = vadd.f32 %v4680, %v5190
  %5192 = vmatprep.mubr.bf16.mxu0 0
  %5193 = vmatmul.mubr.bf16.gmra.mxu0 %v5069
  %v5194 = vpop.f32.mrf.mxu0
  %v5195 = vadd.f32 %v4676, %v5194
  %v5196 = vpop.f32.mrf.mxu0
  %v5197 = vadd.f32 %v4680, %v5196
  %v5198 = vpop.f32.mrf.mxu0
  %v5199 = vadd.f32 %v4676, %v5198
  %v5200 = vpop.f32.mrf.mxu0
  %v5201 = vadd.f32 %v4680, %v5200
  %5202 = vmatprep.mubr.bf16.mxu0 0
  %5203 = vmatmul.mubr.bf16.gmra.mxu0 %v5072
  %v5204 = vpop.f32.mrf.mxu0
  %v5205 = vadd.f32 %v4676, %v5204
  %v5206 = vpop.f32.mrf.mxu0
  %v5207 = vadd.f32 %v4680, %v5206
  %v5208 = vpop.f32.mrf.mxu0
  %v5209 = vadd.f32 %v4676, %v5208
  %v5210 = vpop.f32.mrf.mxu0
  %v5211 = vadd.f32 %v4680, %v5210
  %5212 = vmatprep.mubr.bf16.mxu0 0
  %5213 = vmatmul.mubr.bf16.gmra.mxu0 %v5075
  %v5214 = vpop.f32.mrf.mxu0
  %v5215 = vadd.f32 %v4676, %v5214
  %v5216 = vpop.f32.mrf.mxu0
  %v5217 = vadd.f32 %v4680, %v5216
  %v5218 = vpop.f32.mrf.mxu0
  %v5219 = vadd.f32 %v4676, %v5218
  %v5220 = vpop.f32.mrf.mxu0
  %v5221 = vadd.f32 %v4680, %v5220
  %5222 = vdwg.mxu0
  %5223 = vmatprep.subr.bf16.mxu0 0
  %5224 = vmatpush1.bf16.msra.mxu0 0
  %5225 = vmatprep.subr.bf16.mxu0 0
  %5226 = vmatpush1.bf16.msra.mxu0 0
  %5227 = vmatprep.subr.bf16.mxu0 0
  %5228 = vmatpush1.bf16.msra.mxu0 0
  %5229 = vmatprep.subr.bf16.mxu0 0
  %5230 = vmatpush1.bf16.msra.mxu0 0
  %5231 = vmatprep.subr.bf16.mxu0 %v4990
  %5232 = vmatpush1.bf16.msra.mxu0 %v4989
  %5233 = vmatprep.subr.bf16.mxu0 %v4974
  %5234 = vmatpush1.bf16.msra.mxu0 %v4973
  %5235 = vmatprep.subr.bf16.mxu0 %v4958
  %5236 = vmatpush1.bf16.msra.mxu0 %v4957
  %5237 = vmatprep.subr.bf16.mxu0 %v4942
  %5238 = vmatpush1.bf16.msra.mxu0 %v4941
  %5239 = vmatprep.subr.bf16.mxu0 0
  %5240 = vmatpush2.bf16.msra.mxu0 0
  %5241 = vmatprep.subr.bf16.mxu0 0
  %5242 = vmatpush2.bf16.msra.mxu0 0
  %5243 = vmatprep.subr.bf16.mxu0 0
  %5244 = vmatpush2.bf16.msra.mxu0 0
  %5245 = vmatprep.subr.bf16.mxu0 0
  %5246 = vmatpush2.bf16.msra.mxu0 0
  %5247 = vmatprep.subr.bf16.mxu0 0
  %5248 = vmatpush2.bf16.msra.mxu0 0
  %5249 = vmatprep.subr.bf16.mxu0 0
  %5250 = vmatpush2.bf16.msra.mxu0 0
  %5251 = vmatprep.subr.bf16.mxu0 0
  %5252 = vmatpush2.bf16.msra.mxu0 0
  %5253 = vmatprep.subr.bf16.mxu0 0
  %5254 = vmatpush2.bf16.msra.mxu0 0
  %5255 = vmatprep.mubr.bf16.mxu0 0
  %5256 = vmatmul.mubr.bf16.gmra.mxu0 %v5066
  %v5257 = vpop.f32.mrf.mxu0
  %v5258 = vadd.f32 %v4684, %v5257
  %v5259 = vpop.f32.mrf.mxu0
  %v5260 = vadd.f32 %v4688, %v5259
  %v5261 = vpop.f32.mrf.mxu0
  %v5262 = vadd.f32 %v4684, %v5261
  %v5263 = vpop.f32.mrf.mxu0
  %v5264 = vadd.f32 %v4688, %v5263
  %5265 = vmatprep.mubr.bf16.mxu0 0
  %5266 = vmatmul.mubr.bf16.gmra.mxu0 %v5069
  %v5267 = vpop.f32.mrf.mxu0
  %v5268 = vadd.f32 %v4684, %v5267
  %v5269 = vpop.f32.mrf.mxu0
  %v5270 = vadd.f32 %v4688, %v5269
  %v5271 = vpop.f32.mrf.mxu0
  %v5272 = vadd.f32 %v4684, %v5271
  %v5273 = vpop.f32.mrf.mxu0
  %v5274 = vadd.f32 %v4688, %v5273
  %5275 = vmatprep.mubr.bf16.mxu0 0
  %5276 = vmatmul.mubr.bf16.gmra.mxu0 %v5072
  %v5277 = vpop.f32.mrf.mxu0
  %v5278 = vadd.f32 %v4684, %v5277
  %v5279 = vpop.f32.mrf.mxu0
  %v5280 = vadd.f32 %v4688, %v5279
  %v5281 = vpop.f32.mrf.mxu0
  %v5282 = vadd.f32 %v4684, %v5281
  %v5283 = vpop.f32.mrf.mxu0
  %v5284 = vadd.f32 %v4688, %v5283
  %5285 = vmatprep.mubr.bf16.mxu0 0
  %5286 = vmatmul.mubr.bf16.gmra.mxu0 %v5075
  %v5287 = vpop.f32.mrf.mxu0
  %v5288 = vadd.f32 %v4684, %v5287
  %v5289 = vpop.f32.mrf.mxu0
  %v5290 = vadd.f32 %v4688, %v5289
  %v5291 = vpop.f32.mrf.mxu0
  %v5292 = vadd.f32 %v4684, %v5291
  %v5293 = vpop.f32.mrf.mxu0
  %v5294 = vadd.f32 %v4688, %v5293
  %5295 = vdwg.mxu0
  %5296 = vmatprep.subr.bf16.mxu0 0
  %5297 = vmatpush1.bf16.msra.mxu0 0
  %5298 = vmatprep.subr.bf16.mxu0 0
  %5299 = vmatpush1.bf16.msra.mxu0 0
  %5300 = vmatprep.subr.bf16.mxu0 0
  %5301 = vmatpush1.bf16.msra.mxu0 0
  %5302 = vmatprep.subr.bf16.mxu0 0
  %5303 = vmatpush1.bf16.msra.mxu0 0
  %5304 = vmatprep.subr.bf16.mxu0 %v4992
  %5305 = vmatpush1.bf16.msra.mxu0 %v4991
  %5306 = vmatprep.subr.bf16.mxu0 %v4976
  %5307 = vmatpush1.bf16.msra.mxu0 %v4975
  %5308 = vmatprep.subr.bf16.mxu0 %v4960
  %5309 = vmatpush1.bf16.msra.mxu0 %v4959
  %5310 = vmatprep.subr.bf16.mxu0 %v4944
  %5311 = vmatpush1.bf16.msra.mxu0 %v4943
  %5312 = vmatprep.subr.bf16.mxu0 0
  %5313 = vmatpush2.bf16.msra.mxu0 0
  %5314 = vmatprep.subr.bf16.mxu0 0
  %5315 = vmatpush2.bf16.msra.mxu0 0
  %5316 = vmatprep.subr.bf16.mxu0 0
  %5317 = vmatpush2.bf16.msra.mxu0 0
  %5318 = vmatprep.subr.bf16.mxu0 0
  %5319 = vmatpush2.bf16.msra.mxu0 0
  %5320 = vmatprep.subr.bf16.mxu0 0
  %5321 = vmatpush2.bf16.msra.mxu0 0
  %5322 = vmatprep.subr.bf16.mxu0 0
  %5323 = vmatpush2.bf16.msra.mxu0 0
  %5324 = vmatprep.subr.bf16.mxu0 0
  %5325 = vmatpush2.bf16.msra.mxu0 0
  %5326 = vmatprep.subr.bf16.mxu0 0
  %5327 = vmatpush2.bf16.msra.mxu0 0
  %5328 = vmatprep.mubr.bf16.mxu0 0
  %5329 = vmatmul.mubr.bf16.gmra.mxu0 %v5066
  %v5330 = vpop.f32.mrf.mxu0
  %v5331 = vadd.f32 %v4692, %v5330
  %v5332 = vpop.f32.mrf.mxu0
  %v5333 = vadd.f32 %v4696, %v5332
  %v5334 = vpop.f32.mrf.mxu0
  %v5335 = vadd.f32 %v4692, %v5334
  %v5336 = vpop.f32.mrf.mxu0
  %v5337 = vadd.f32 %v4696, %v5336
  %5338 = vmatprep.mubr.bf16.mxu0 0
  %5339 = vmatmul.mubr.bf16.gmra.mxu0 %v5069
  %v5340 = vpop.f32.mrf.mxu0
  %v5341 = vadd.f32 %v4692, %v5340
  %v5342 = vpop.f32.mrf.mxu0
  %v5343 = vadd.f32 %v4696, %v5342
  %v5344 = vpop.f32.mrf.mxu0
  %v5345 = vadd.f32 %v4692, %v5344
  %v5346 = vpop.f32.mrf.mxu0
  %v5347 = vadd.f32 %v4696, %v5346
  %5348 = vmatprep.mubr.bf16.mxu0 0
  %5349 = vmatmul.mubr.bf16.gmra.mxu0 %v5072
  %v5350 = vpop.f32.mrf.mxu0
  %v5351 = vadd.f32 %v4692, %v5350
  %v5352 = vpop.f32.mrf.mxu0
  %v5353 = vadd.f32 %v4696, %v5352
  %v5354 = vpop.f32.mrf.mxu0
  %v5355 = vadd.f32 %v4692, %v5354
  %v5356 = vpop.f32.mrf.mxu0
  %v5357 = vadd.f32 %v4696, %v5356
  %5358 = vmatprep.mubr.bf16.mxu0 0
  %5359 = vmatmul.mubr.bf16.gmra.mxu0 %v5075
  %v5360 = vpop.f32.mrf.mxu0
  %v5361 = vadd.f32 %v4692, %v5360
  %v5362 = vpop.f32.mrf.mxu0
  %v5363 = vadd.f32 %v4696, %v5362
  %v5364 = vpop.f32.mrf.mxu0
  %v5365 = vadd.f32 %v4692, %v5364
  %v5366 = vpop.f32.mrf.mxu0
  %v5367 = vadd.f32 %v4696, %v5366
  %5368 = vdwg.mxu0
  %5369 = vmatprep.subr.bf16.mxu0 0
  %5370 = vmatpush1.bf16.msra.mxu0 0
  %5371 = vmatprep.subr.bf16.mxu0 0
  %5372 = vmatpush1.bf16.msra.mxu0 0
  %5373 = vmatprep.subr.bf16.mxu0 0
  %5374 = vmatpush1.bf16.msra.mxu0 0
  %5375 = vmatprep.subr.bf16.mxu0 0
  %5376 = vmatpush1.bf16.msra.mxu0 0
  %5377 = vmatprep.subr.bf16.mxu0 %v4994
  %5378 = vmatpush1.bf16.msra.mxu0 %v4993
  %5379 = vmatprep.subr.bf16.mxu0 %v4978
  %5380 = vmatpush1.bf16.msra.mxu0 %v4977
  %5381 = vmatprep.subr.bf16.mxu0 %v4962
  %5382 = vmatpush1.bf16.msra.mxu0 %v4961
  %5383 = vmatprep.subr.bf16.mxu0 %v4946
  %5384 = vmatpush1.bf16.msra.mxu0 %v4945
  %5385 = vmatprep.subr.bf16.mxu0 0
  %5386 = vmatpush2.bf16.msra.mxu0 0
  %5387 = vmatprep.subr.bf16.mxu0 0
  %5388 = vmatpush2.bf16.msra.mxu0 0
  %5389 = vmatprep.subr.bf16.mxu0 0
  %5390 = vmatpush2.bf16.msra.mxu0 0
  %5391 = vmatprep.subr.bf16.mxu0 0
  %5392 = vmatpush2.bf16.msra.mxu0 0
  %5393 = vmatprep.subr.bf16.mxu0 0
  %5394 = vmatpush2.bf16.msra.mxu0 0
  %5395 = vmatprep.subr.bf16.mxu0 0
  %5396 = vmatpush2.bf16.msra.mxu0 0
  %5397 = vmatprep.subr.bf16.mxu0 0
  %5398 = vmatpush2.bf16.msra.mxu0 0
  %5399 = vmatprep.subr.bf16.mxu0 0
  %5400 = vmatpush2.bf16.msra.mxu0 0
  %5401 = vmatprep.mubr.bf16.mxu0 0
  %5402 = vmatmul.mubr.bf16.gmra.mxu0 %v5066
  %v5403 = vpop.f32.mrf.mxu0
  %v5404 = vadd.f32 %v4700, %v5403
  %v5405 = vpop.f32.mrf.mxu0
  %v5406 = vadd.f32 %v4704, %v5405
  %v5407 = vpop.f32.mrf.mxu0
  %v5408 = vadd.f32 %v4700, %v5407
  %v5409 = vpop.f32.mrf.mxu0
  %v5410 = vadd.f32 %v4704, %v5409
  %5411 = vmatprep.mubr.bf16.mxu0 0
  %5412 = vmatmul.mubr.bf16.gmra.mxu0 %v5069
  %v5413 = vpop.f32.mrf.mxu0
  %v5414 = vadd.f32 %v4700, %v5413
  %v5415 = vpop.f32.mrf.mxu0
  %v5416 = vadd.f32 %v4704, %v5415
  %v5417 = vpop.f32.mrf.mxu0
  %v5418 = vadd.f32 %v4700, %v5417
  %v5419 = vpop.f32.mrf.mxu0
  %v5420 = vadd.f32 %v4704, %v5419
  %5421 = vmatprep.mubr.bf16.mxu0 0
  %5422 = vmatmul.mubr.bf16.gmra.mxu0 %v5072
  %v5423 = vpop.f32.mrf.mxu0
  %v5424 = vadd.f32 %v4700, %v5423
  %v5425 = vpop.f32.mrf.mxu0
  %v5426 = vadd.f32 %v4704, %v5425
  %v5427 = vpop.f32.mrf.mxu0
  %v5428 = vadd.f32 %v4700, %v5427
  %v5429 = vpop.f32.mrf.mxu0
  %v5430 = vadd.f32 %v4704, %v5429
  %5431 = vmatprep.mubr.bf16.mxu0 0
  %5432 = vmatmul.mubr.bf16.gmra.mxu0 %v5075
  %v5433 = vpop.f32.mrf.mxu0
  %v5434 = vadd.f32 %v4700, %v5433
  %v5435 = vpop.f32.mrf.mxu0
  %v5436 = vadd.f32 %v4704, %v5435
  %v5437 = vpop.f32.mrf.mxu0
  %v5438 = vadd.f32 %v4700, %v5437
  %v5439 = vpop.f32.mrf.mxu0
  %v5440 = vadd.f32 %v4704, %v5439
  %5441 = vdwg.mxu0
  %5442 = vmatprep.subr.bf16.mxu0 0
  %5443 = vmatpush1.bf16.msra.mxu0 0
  %5444 = vmatprep.subr.bf16.mxu0 0
  %5445 = vmatpush1.bf16.msra.mxu0 0
  %5446 = vmatprep.subr.bf16.mxu0 0
  %5447 = vmatpush1.bf16.msra.mxu0 0
  %5448 = vmatprep.subr.bf16.mxu0 0
  %5449 = vmatpush1.bf16.msra.mxu0 0
  %5450 = vmatprep.subr.bf16.mxu0 %v4996
  %5451 = vmatpush1.bf16.msra.mxu0 %v4995
  %5452 = vmatprep.subr.bf16.mxu0 %v4980
  %5453 = vmatpush1.bf16.msra.mxu0 %v4979
  %5454 = vmatprep.subr.bf16.mxu0 %v4964
  %5455 = vmatpush1.bf16.msra.mxu0 %v4963
  %5456 = vmatprep.subr.bf16.mxu0 %v4948
  %5457 = vmatpush1.bf16.msra.mxu0 %v4947
  %5458 = vmatprep.subr.bf16.mxu0 0
  %5459 = vmatpush2.bf16.msra.mxu0 0
  %5460 = vmatprep.subr.bf16.mxu0 0
  %5461 = vmatpush2.bf16.msra.mxu0 0
  %5462 = vmatprep.subr.bf16.mxu0 0
  %5463 = vmatpush2.bf16.msra.mxu0 0
  %5464 = vmatprep.subr.bf16.mxu0 0
  %5465 = vmatpush2.bf16.msra.mxu0 0
  %5466 = vmatprep.subr.bf16.mxu0 0
  %5467 = vmatpush2.bf16.msra.mxu0 0
  %5468 = vmatprep.subr.bf16.mxu0 0
  %5469 = vmatpush2.bf16.msra.mxu0 0
  %5470 = vmatprep.subr.bf16.mxu0 0
  %5471 = vmatpush2.bf16.msra.mxu0 0
  %5472 = vmatprep.subr.bf16.mxu0 0
  %5473 = vmatpush2.bf16.msra.mxu0 0
  %5474 = vmatprep.mubr.bf16.mxu0 0
  %5475 = vmatmul.mubr.bf16.gmra.mxu0 %v5066
  %v5476 = vpop.f32.mrf.mxu0
  %v5477 = vadd.f32 %v4708, %v5476
  %v5478 = vpop.f32.mrf.mxu0
  %v5479 = vadd.f32 %v4712, %v5478
  %v5480 = vpop.f32.mrf.mxu0
  %v5481 = vadd.f32 %v4708, %v5480
  %v5482 = vpop.f32.mrf.mxu0
  %v5483 = vadd.f32 %v4712, %v5482
  %5484 = vmatprep.mubr.bf16.mxu0 0
  %5485 = vmatmul.mubr.bf16.gmra.mxu0 %v5069
  %v5486 = vpop.f32.mrf.mxu0
  %v5487 = vadd.f32 %v4708, %v5486
  %v5488 = vpop.f32.mrf.mxu0
  %v5489 = vadd.f32 %v4712, %v5488
  %v5490 = vpop.f32.mrf.mxu0
  %v5491 = vadd.f32 %v4708, %v5490
  %v5492 = vpop.f32.mrf.mxu0
  %v5493 = vadd.f32 %v4712, %v5492
  %5494 = vmatprep.mubr.bf16.mxu0 0
  %5495 = vmatmul.mubr.bf16.gmra.mxu0 %v5072
  %v5496 = vpop.f32.mrf.mxu0
  %v5497 = vadd.f32 %v4708, %v5496
  %v5498 = vpop.f32.mrf.mxu0
  %v5499 = vadd.f32 %v4712, %v5498
  %v5500 = vpop.f32.mrf.mxu0
  %v5501 = vadd.f32 %v4708, %v5500
  %v5502 = vpop.f32.mrf.mxu0
  %v5503 = vadd.f32 %v4712, %v5502
  %5504 = vmatprep.mubr.bf16.mxu0 0
  %5505 = vmatmul.mubr.bf16.gmra.mxu0 %v5075
  %v5506 = vpop.f32.mrf.mxu0
  %v5507 = vadd.f32 %v4708, %v5506
  %v5508 = vpop.f32.mrf.mxu0
  %v5509 = vadd.f32 %v4712, %v5508
  %v5510 = vpop.f32.mrf.mxu0
  %v5511 = vadd.f32 %v4708, %v5510
  %v5512 = vpop.f32.mrf.mxu0
  %v5513 = vadd.f32 %v4712, %v5512
  %5514 = vdwg.mxu0
  %5515 = vmatprep.subr.bf16.mxu0 0
  %5516 = vmatpush1.bf16.msra.mxu0 0
  %5517 = vmatprep.subr.bf16.mxu0 0
  %5518 = vmatpush1.bf16.msra.mxu0 0
  %5519 = vmatprep.subr.bf16.mxu0 0
  %5520 = vmatpush1.bf16.msra.mxu0 0
  %5521 = vmatprep.subr.bf16.mxu0 0
  %5522 = vmatpush1.bf16.msra.mxu0 0
  %5523 = vmatprep.subr.bf16.mxu0 %v4998
  %5524 = vmatpush1.bf16.msra.mxu0 %v4997
  %5525 = vmatprep.subr.bf16.mxu0 %v4982
  %5526 = vmatpush1.bf16.msra.mxu0 %v4981
  %5527 = vmatprep.subr.bf16.mxu0 %v4966
  %5528 = vmatpush1.bf16.msra.mxu0 %v4965
  %5529 = vmatprep.subr.bf16.mxu0 %v4950
  %5530 = vmatpush1.bf16.msra.mxu0 %v4949
  %5531 = vmatprep.subr.bf16.mxu0 0
  %5532 = vmatpush2.bf16.msra.mxu0 0
  %5533 = vmatprep.subr.bf16.mxu0 0
  %5534 = vmatpush2.bf16.msra.mxu0 0
  %5535 = vmatprep.subr.bf16.mxu0 0
  %5536 = vmatpush2.bf16.msra.mxu0 0
  %5537 = vmatprep.subr.bf16.mxu0 0
  %5538 = vmatpush2.bf16.msra.mxu0 0
  %5539 = vmatprep.subr.bf16.mxu0 0
  %5540 = vmatpush2.bf16.msra.mxu0 0
  %5541 = vmatprep.subr.bf16.mxu0 0
  %5542 = vmatpush2.bf16.msra.mxu0 0
  %5543 = vmatprep.subr.bf16.mxu0 0
  %5544 = vmatpush2.bf16.msra.mxu0 0
  %5545 = vmatprep.subr.bf16.mxu0 0
  %5546 = vmatpush2.bf16.msra.mxu0 0
  %5547 = vmatprep.mubr.bf16.mxu0 0
  %5548 = vmatmul.mubr.bf16.gmra.mxu0 %v5066
  %v5549 = vpop.f32.mrf.mxu0
  %v5550 = vadd.f32 %v4716, %v5549
  %v5551 = vpop.f32.mrf.mxu0
  %v5552 = vadd.f32 %v4720, %v5551
  %v5553 = vpop.f32.mrf.mxu0
  %v5554 = vadd.f32 %v4716, %v5553
  %v5555 = vpop.f32.mrf.mxu0
  %v5556 = vadd.f32 %v4720, %v5555
  %5557 = vmatprep.mubr.bf16.mxu0 0
  %5558 = vmatmul.mubr.bf16.gmra.mxu0 %v5069
  %v5559 = vpop.f32.mrf.mxu0
  %v5560 = vadd.f32 %v4716, %v5559
  %v5561 = vpop.f32.mrf.mxu0
  %v5562 = vadd.f32 %v4720, %v5561
  %v5563 = vpop.f32.mrf.mxu0
  %v5564 = vadd.f32 %v4716, %v5563
  %v5565 = vpop.f32.mrf.mxu0
  %v5566 = vadd.f32 %v4720, %v5565
  %5567 = vmatprep.mubr.bf16.mxu0 0
  %5568 = vmatmul.mubr.bf16.gmra.mxu0 %v5072
  %v5569 = vpop.f32.mrf.mxu0
  %v5570 = vadd.f32 %v4716, %v5569
  %v5571 = vpop.f32.mrf.mxu0
  %v5572 = vadd.f32 %v4720, %v5571
  %v5573 = vpop.f32.mrf.mxu0
  %v5574 = vadd.f32 %v4716, %v5573
  %v5575 = vpop.f32.mrf.mxu0
  %v5576 = vadd.f32 %v4720, %v5575
  %5577 = vmatprep.mubr.bf16.mxu0 0
  %5578 = vmatmul.mubr.bf16.gmra.mxu0 %v5075
  %v5579 = vpop.f32.mrf.mxu0
  %v5580 = vadd.f32 %v4716, %v5579
  %v5581 = vpop.f32.mrf.mxu0
  %v5582 = vadd.f32 %v4720, %v5581
  %v5583 = vpop.f32.mrf.mxu0
  %v5584 = vadd.f32 %v4716, %v5583
  %v5585 = vpop.f32.mrf.mxu0
  %v5586 = vadd.f32 %v4720, %v5585
  %5587 = vdwg.mxu0
  %5588 = vmatprep.subr.bf16.mxu0 0
  %5589 = vmatpush1.bf16.msra.mxu0 0
  %5590 = vmatprep.subr.bf16.mxu0 0
  %5591 = vmatpush1.bf16.msra.mxu0 0
  %5592 = vmatprep.subr.bf16.mxu0 0
  %5593 = vmatpush1.bf16.msra.mxu0 0
  %5594 = vmatprep.subr.bf16.mxu0 0
  %5595 = vmatpush1.bf16.msra.mxu0 0
  %5596 = vmatprep.subr.bf16.mxu0 %v5000
  %5597 = vmatpush1.bf16.msra.mxu0 %v4999
  %5598 = vmatprep.subr.bf16.mxu0 %v4984
  %5599 = vmatpush1.bf16.msra.mxu0 %v4983
  %5600 = vmatprep.subr.bf16.mxu0 %v4968
  %5601 = vmatpush1.bf16.msra.mxu0 %v4967
  %5602 = vmatprep.subr.bf16.mxu0 %v4952
  %5603 = vmatpush1.bf16.msra.mxu0 %v4951
  %5604 = vmatprep.subr.bf16.mxu0 0
  %5605 = vmatpush2.bf16.msra.mxu0 0
  %5606 = vmatprep.subr.bf16.mxu0 0
  %5607 = vmatpush2.bf16.msra.mxu0 0
  %5608 = vmatprep.subr.bf16.mxu0 0
  %5609 = vmatpush2.bf16.msra.mxu0 0
  %5610 = vmatprep.subr.bf16.mxu0 0
  %5611 = vmatpush2.bf16.msra.mxu0 0
  %5612 = vmatprep.subr.bf16.mxu0 0
  %5613 = vmatpush2.bf16.msra.mxu0 0
  %5614 = vmatprep.subr.bf16.mxu0 0
  %5615 = vmatpush2.bf16.msra.mxu0 0
  %5616 = vmatprep.subr.bf16.mxu0 0
  %5617 = vmatpush2.bf16.msra.mxu0 0
  %5618 = vmatprep.subr.bf16.mxu0 0
  %5619 = vmatpush2.bf16.msra.mxu0 0
  %5620 = vmatprep.mubr.bf16.mxu0 0
  %5621 = vmatmul.mubr.bf16.gmra.mxu0 %v5066
  %v5622 = vpop.f32.mrf.mxu0
  %v5623 = vadd.f32 %v4724, %v5622
  %v5624 = vpop.f32.mrf.mxu0
  %v5625 = vadd.f32 %v4728, %v5624
  %v5626 = vpop.f32.mrf.mxu0
  %v5627 = vadd.f32 %v4724, %v5626
  %v5628 = vpop.f32.mrf.mxu0
  %v5629 = vadd.f32 %v4728, %v5628
  %5630 = vmatprep.mubr.bf16.mxu0 0
  %5631 = vmatmul.mubr.bf16.gmra.mxu0 %v5069
  %v5632 = vpop.f32.mrf.mxu0
  %v5633 = vadd.f32 %v4724, %v5632
  %v5634 = vpop.f32.mrf.mxu0
  %v5635 = vadd.f32 %v4728, %v5634
  %v5636 = vpop.f32.mrf.mxu0
  %v5637 = vadd.f32 %v4724, %v5636
  %v5638 = vpop.f32.mrf.mxu0
  %v5639 = vadd.f32 %v4728, %v5638
  %5640 = vmatprep.mubr.bf16.mxu0 0
  %5641 = vmatmul.mubr.bf16.gmra.mxu0 %v5072
  %v5642 = vpop.f32.mrf.mxu0
  %v5643 = vadd.f32 %v4724, %v5642
  %v5644 = vpop.f32.mrf.mxu0
  %v5645 = vadd.f32 %v4728, %v5644
  %v5646 = vpop.f32.mrf.mxu0
  %v5647 = vadd.f32 %v4724, %v5646
  %v5648 = vpop.f32.mrf.mxu0
  %v5649 = vadd.f32 %v4728, %v5648
  %5650 = vmatprep.mubr.bf16.mxu0 0
  %5651 = vmatmul.mubr.bf16.gmra.mxu0 %v5075
  %v5652 = vpop.f32.mrf.mxu0
  %v5653 = vadd.f32 %v4724, %v5652
  %v5654 = vpop.f32.mrf.mxu0
  %v5655 = vadd.f32 %v4728, %v5654
  %v5656 = vpop.f32.mrf.mxu0
  %v5657 = vadd.f32 %v4724, %v5656
  %v5658 = vpop.f32.mrf.mxu0
  %v5659 = vadd.f32 %v4728, %v5658
  %5660 = vdwg.mxu0
  %v5661 = vmax.f32 %v5112, 0.0
  %v5662 = vmax.f32 %v5114, 0.0
  %v5663 = vmax.f32 %v5185, 0.0
  %v5664 = vmax.f32 %v5187, 0.0
  %v5665 = vmax.f32 %v5258, 0.0
  %v5666 = vmax.f32 %v5260, 0.0
  %v5667 = vmax.f32 %v5331, 0.0
  %v5668 = vmax.f32 %v5333, 0.0
  %v5669 = vmax.f32 %v5404, 0.0
  %v5670 = vmax.f32 %v5406, 0.0
  %v5671 = vmax.f32 %v5477, 0.0
  %v5672 = vmax.f32 %v5479, 0.0
  %v5673 = vmax.f32 %v5550, 0.0
  %v5674 = vmax.f32 %v5552, 0.0
  %v5675 = vmax.f32 %v5623, 0.0
  %v5676 = vmax.f32 %v5625, 0.0
  %v5677 = vmax.f32 %v5116, 0.0
  %v5678 = vmax.f32 %v5118, 0.0
  %v5679 = vmax.f32 %v5189, 0.0
  %v5680 = vmax.f32 %v5191, 0.0
  %v5681 = vmax.f32 %v5262, 0.0
  %v5682 = vmax.f32 %v5264, 0.0
  %v5683 = vmax.f32 %v5335, 0.0
  %v5684 = vmax.f32 %v5337, 0.0
  %v5685 = vmax.f32 %v5408, 0.0
  %v5686 = vmax.f32 %v5410, 0.0
  %v5687 = vmax.f32 %v5481, 0.0
  %v5688 = vmax.f32 %v5483, 0.0
  %v5689 = vmax.f32 %v5554, 0.0
  %v5690 = vmax.f32 %v5556, 0.0
  %v5691 = vmax.f32 %v5627, 0.0
  %v5692 = vmax.f32 %v5629, 0.0
  %v5693 = vmax.f32 %v5122, 0.0
  %v5694 = vmax.f32 %v5124, 0.0
  %v5695 = vmax.f32 %v5195, 0.0
  %v5696 = vmax.f32 %v5197, 0.0
  %v5697 = vmax.f32 %v5268, 0.0
  %v5698 = vmax.f32 %v5270, 0.0
  %v5699 = vmax.f32 %v5341, 0.0
  %v5700 = vmax.f32 %v5343, 0.0
  %v5701 = vmax.f32 %v5414, 0.0
  %v5702 = vmax.f32 %v5416, 0.0
  %v5703 = vmax.f32 %v5487, 0.0
  %v5704 = vmax.f32 %v5489, 0.0
  %v5705 = vmax.f32 %v5560, 0.0
  %v5706 = vmax.f32 %v5562, 0.0
  %v5707 = vmax.f32 %v5633, 0.0
  %v5708 = vmax.f32 %v5635, 0.0
  %v5709 = vmax.f32 %v5126, 0.0
  %v5710 = vmax.f32 %v5128, 0.0
  %v5711 = vmax.f32 %v5199, 0.0
  %v5712 = vmax.f32 %v5201, 0.0
  %v5713 = vmax.f32 %v5272, 0.0
  %v5714 = vmax.f32 %v5274, 0.0
  %v5715 = vmax.f32 %v5345, 0.0
  %v5716 = vmax.f32 %v5347, 0.0
  %v5717 = vmax.f32 %v5418, 0.0
  %v5718 = vmax.f32 %v5420, 0.0
  %v5719 = vmax.f32 %v5491, 0.0
  %v5720 = vmax.f32 %v5493, 0.0
  %v5721 = vmax.f32 %v5564, 0.0
  %v5722 = vmax.f32 %v5566, 0.0
  %v5723 = vmax.f32 %v5637, 0.0
  %v5724 = vmax.f32 %v5639, 0.0
  %v5725 = vmax.f32 %v5132, 0.0
  %v5726 = vmax.f32 %v5134, 0.0
  %v5727 = vmax.f32 %v5205, 0.0
  %v5728 = vmax.f32 %v5207, 0.0
  %v5729 = vmax.f32 %v5278, 0.0
  %v5730 = vmax.f32 %v5280, 0.0
  %v5731 = vmax.f32 %v5351, 0.0
  %v5732 = vmax.f32 %v5353, 0.0
  %v5733 = vmax.f32 %v5424, 0.0
  %v5734 = vmax.f32 %v5426, 0.0
  %v5735 = vmax.f32 %v5497, 0.0
  %v5736 = vmax.f32 %v5499, 0.0
  %v5737 = vmax.f32 %v5570, 0.0
  %v5738 = vmax.f32 %v5572, 0.0
  %v5739 = vmax.f32 %v5643, 0.0
  %v5740 = vmax.f32 %v5645, 0.0
  %v5741 = vmax.f32 %v5136, 0.0
  %v5742 = vmax.f32 %v5138, 0.0
  %v5743 = vmax.f32 %v5209, 0.0
  %v5744 = vmax.f32 %v5211, 0.0
  %v5745 = vmax.f32 %v5282, 0.0
  %v5746 = vmax.f32 %v5284, 0.0
  %v5747 = vmax.f32 %v5355, 0.0
  %v5748 = vmax.f32 %v5357, 0.0
  %v5749 = vmax.f32 %v5428, 0.0
  %v5750 = vmax.f32 %v5430, 0.0
  %v5751 = vmax.f32 %v5501, 0.0
  %v5752 = vmax.f32 %v5503, 0.0
  %v5753 = vmax.f32 %v5574, 0.0
  %v5754 = vmax.f32 %v5576, 0.0
  %v5755 = vmax.f32 %v5647, 0.0
  %v5756 = vmax.f32 %v5649, 0.0
  %v5757 = vmax.f32 %v5142, 0.0
  %v5758 = vmax.f32 %v5144, 0.0
  %v5759 = vmax.f32 %v5215, 0.0
  %v5760 = vmax.f32 %v5217, 0.0
  %v5761 = vmax.f32 %v5288, 0.0
  %v5762 = vmax.f32 %v5290, 0.0
  %v5763 = vmax.f32 %v5361, 0.0
  %v5764 = vmax.f32 %v5363, 0.0
  %v5765 = vmax.f32 %v5434, 0.0
  %v5766 = vmax.f32 %v5436, 0.0
  %v5767 = vmax.f32 %v5507, 0.0
  %v5768 = vmax.f32 %v5509, 0.0
  %v5769 = vmax.f32 %v5580, 0.0
  %v5770 = vmax.f32 %v5582, 0.0
  %v5771 = vmax.f32 %v5653, 0.0
  %v5772 = vmax.f32 %v5655, 0.0
  %v5773 = vmax.f32 %v5146, 0.0
  %v5774 = vmax.f32 %v5148, 0.0
  %v5775 = vmax.f32 %v5219, 0.0
  %v5776 = vmax.f32 %v5221, 0.0
  %v5777 = vmax.f32 %v5292, 0.0
  %v5778 = vmax.f32 %v5294, 0.0
  %v5779 = vmax.f32 %v5365, 0.0
  %v5780 = vmax.f32 %v5367, 0.0
  %v5781 = vmax.f32 %v5438, 0.0
  %v5782 = vmax.f32 %v5440, 0.0
  %v5783 = vmax.f32 %v5511, 0.0
  %v5784 = vmax.f32 %v5513, 0.0
  %v5785 = vmax.f32 %v5584, 0.0
  %v5786 = vmax.f32 %v5586, 0.0
  %v5787 = vmax.f32 %v5657, 0.0
  %v5788 = vmax.f32 %v5659, 0.0
  %s5789 = smul.u32 4, 256
  %s5790 = smul.u32 %s5789, 1
  %s5791 = sshll.u32 %s5790, 4
  %5792 = dma.done %s258, %s5791
  %v5793 = vpack.c.bf16 %v5677, %v5661
  %v5794 = vpack.c.bf16 %v5678, %v5662
  %v5795 = vpack.c.bf16 %v5679, %v5663
  %v5796 = vpack.c.bf16 %v5680, %v5664
  %v5797 = vpack.c.bf16 %v5681, %v5665
  %v5798 = vpack.c.bf16 %v5682, %v5666
  %v5799 = vpack.c.bf16 %v5683, %v5667
  %v5800 = vpack.c.bf16 %v5684, %v5668
  %v5801 = vpack.c.bf16 %v5685, %v5669
  %v5802 = vpack.c.bf16 %v5686, %v5670
  %v5803 = vpack.c.bf16 %v5687, %v5671
  %v5804 = vpack.c.bf16 %v5688, %v5672
  %v5805 = vpack.c.bf16 %v5689, %v5673
  %v5806 = vpack.c.bf16 %v5690, %v5674
  %v5807 = vpack.c.bf16 %v5691, %v5675
  %v5808 = vpack.c.bf16 %v5692, %v5676
  %v5809 = vpack.c.bf16 %v5709, %v5693
  %v5810 = vpack.c.bf16 %v5710, %v5694
  %v5811 = vpack.c.bf16 %v5711, %v5695
  %v5812 = vpack.c.bf16 %v5712, %v5696
  %v5813 = vpack.c.bf16 %v5713, %v5697
  %v5814 = vpack.c.bf16 %v5714, %v5698
  %v5815 = vpack.c.bf16 %v5715, %v5699
  %v5816 = vpack.c.bf16 %v5716, %v5700
  %v5817 = vpack.c.bf16 %v5717, %v5701
  %v5818 = vpack.c.bf16 %v5718, %v5702
  %v5819 = vpack.c.bf16 %v5719, %v5703
  %v5820 = vpack.c.bf16 %v5720, %v5704
  %v5821 = vpack.c.bf16 %v5721, %v5705
  %v5822 = vpack.c.bf16 %v5722, %v5706
  %v5823 = vpack.c.bf16 %v5723, %v5707
  %v5824 = vpack.c.bf16 %v5724, %v5708
  %v5825 = vpack.c.bf16 %v5741, %v5725
  %v5826 = vpack.c.bf16 %v5742, %v5726
  %v5827 = vpack.c.bf16 %v5743, %v5727
  %v5828 = vpack.c.bf16 %v5744, %v5728
  %v5829 = vpack.c.bf16 %v5745, %v5729
  %v5830 = vpack.c.bf16 %v5746, %v5730
  %v5831 = vpack.c.bf16 %v5747, %v5731
  %v5832 = vpack.c.bf16 %v5748, %v5732
  %v5833 = vpack.c.bf16 %v5749, %v5733
  %v5834 = vpack.c.bf16 %v5750, %v5734
  %v5835 = vpack.c.bf16 %v5751, %v5735
  %v5836 = vpack.c.bf16 %v5752, %v5736
  %v5837 = vpack.c.bf16 %v5753, %v5737
  %v5838 = vpack.c.bf16 %v5754, %v5738
  %v5839 = vpack.c.bf16 %v5755, %v5739
  %v5840 = vpack.c.bf16 %v5756, %v5740
  %v5841 = vpack.c.bf16 %v5773, %v5757
  %v5842 = vpack.c.bf16 %v5774, %v5758
  %v5843 = vpack.c.bf16 %v5775, %v5759
  %v5844 = vpack.c.bf16 %v5776, %v5760
  %v5845 = vpack.c.bf16 %v5777, %v5761
  %v5846 = vpack.c.bf16 %v5778, %v5762
  %v5847 = vpack.c.bf16 %v5779, %v5763
  %v5848 = vpack.c.bf16 %v5780, %v5764
  %v5849 = vpack.c.bf16 %v5781, %v5765
  %v5850 = vpack.c.bf16 %v5782, %v5766
  %v5851 = vpack.c.bf16 %v5783, %v5767
  %v5852 = vpack.c.bf16 %v5784, %v5768
  %v5853 = vpack.c.bf16 %v5785, %v5769
  %v5854 = vpack.c.bf16 %v5786, %v5770
  %v5855 = vpack.c.bf16 %v5787, %v5771
  %v5856 = vpack.c.bf16 %v5788, %v5772
  %v5857 = vld [vmem:[#allocation3] sm:$0xf]
  %v5858 = vld [vmem:[#allocation3 + $0x4] sm:$0xf]
  %v5859 = vld [vmem:[#allocation3 + $0x8] sm:$0xf]
  %v5860 = vld [vmem:[#allocation3 + $0xc] sm:$0xf]
  %v5861 = vld [vmem:[#allocation3 + $0x10] sm:$0xf]
  %v5862 = vld [vmem:[#allocation3 + $0x14] sm:$0xf]
  %v5863 = vld [vmem:[#allocation3 + $0x18] sm:$0xf]
  %v5864 = vld [vmem:[#allocation3 + $0x1c] sm:$0xf]
  %v5865 = vld [vmem:[#allocation3 + $0x20] sm:$0xf]
  %v5866 = vld [vmem:[#allocation3 + $0x24] sm:$0xf]
  %v5867 = vld [vmem:[#allocation3 + $0x28] sm:$0xf]
  %v5868 = vld [vmem:[#allocation3 + $0x2c] sm:$0xf]
  %v5869 = vld [vmem:[#allocation3 + $0x30] sm:$0xf]
  %v5870 = vld [vmem:[#allocation3 + $0x34] sm:$0xf]
  %v5871 = vld [vmem:[#allocation3 + $0x38] sm:$0xf]
  %v5872 = vld [vmem:[#allocation3 + $0x3c] sm:$0xf]
  %v5873 = vld [vmem:[#allocation3 + $0x40] sm:$0xf]
  %v5874 = vld [vmem:[#allocation3 + $0x44] sm:$0xf]
  %v5875 = vld [vmem:[#allocation3 + $0x48] sm:$0xf]
  %v5876 = vld [vmem:[#allocation3 + $0x4c] sm:$0xf]
  %v5877 = vld [vmem:[#allocation3 + $0x50] sm:$0xf]
  %v5878 = vld [vmem:[#allocation3 + $0x54] sm:$0xf]
  %v5879 = vld [vmem:[#allocation3 + $0x58] sm:$0xf]
  %v5880 = vld [vmem:[#allocation3 + $0x5c] sm:$0xf]
  %v5881 = vld [vmem:[#allocation3 + $0x60] sm:$0xf]
  %v5882 = vld [vmem:[#allocation3 + $0x64] sm:$0xf]
  %v5883 = vld [vmem:[#allocation3 + $0x68] sm:$0xf]
  %v5884 = vld [vmem:[#allocation3 + $0x6c] sm:$0xf]
  %v5885 = vld [vmem:[#allocation3 + $0x70] sm:$0xf]
  %v5886 = vld [vmem:[#allocation3 + $0x74] sm:$0xf]
  %v5887 = vld [vmem:[#allocation3 + $0x78] sm:$0xf]
  %v5888 = vld [vmem:[#allocation3 + $0x7c] sm:$0xf]
  %v5889 = vld [vmem:[#allocation3 + $0x80] sm:$0xf]
  %v5890 = vld [vmem:[#allocation3 + $0x84] sm:$0xf]
  %v5891 = vld [vmem:[#allocation3 + $0x88] sm:$0xf]
  %v5892 = vld [vmem:[#allocation3 + $0x8c] sm:$0xf]
  %v5893 = vld [vmem:[#allocation3 + $0x90] sm:$0xf]
  %v5894 = vld [vmem:[#allocation3 + $0x94] sm:$0xf]
  %v5895 = vld [vmem:[#allocation3 + $0x98] sm:$0xf]
  %v5896 = vld [vmem:[#allocation3 + $0x9c] sm:$0xf]
  %v5897 = vld [vmem:[#allocation3 + $0xa0] sm:$0xf]
  %v5898 = vld [vmem:[#allocation3 + $0xa4] sm:$0xf]
  %v5899 = vld [vmem:[#allocation3 + $0xa8] sm:$0xf]
  %v5900 = vld [vmem:[#allocation3 + $0xac] sm:$0xf]
  %v5901 = vld [vmem:[#allocation3 + $0xb0] sm:$0xf]
  %v5902 = vld [vmem:[#allocation3 + $0xb4] sm:$0xf]
  %v5903 = vld [vmem:[#allocation3 + $0xb8] sm:$0xf]
  %v5904 = vld [vmem:[#allocation3 + $0xbc] sm:$0xf]
  %v5905 = vld [vmem:[#allocation3 + $0xc0] sm:$0xf]
  %v5906 = vld [vmem:[#allocation3 + $0xc4] sm:$0xf]
  %v5907 = vld [vmem:[#allocation3 + $0xc8] sm:$0xf]
  %v5908 = vld [vmem:[#allocation3 + $0xcc] sm:$0xf]
  %v5909 = vld [vmem:[#allocation3 + $0xd0] sm:$0xf]
  %v5910 = vld [vmem:[#allocation3 + $0xd4] sm:$0xf]
  %v5911 = vld [vmem:[#allocation3 + $0xd8] sm:$0xf]
  %v5912 = vld [vmem:[#allocation3 + $0xdc] sm:$0xf]
  %v5913 = vld [vmem:[#allocation3 + $0xe0] sm:$0xf]
  %v5914 = vld [vmem:[#allocation3 + $0xe4] sm:$0xf]
  %v5915 = vld [vmem:[#allocation3 + $0xe8] sm:$0xf]
  %v5916 = vld [vmem:[#allocation3 + $0xec] sm:$0xf]
  %v5917 = vld [vmem:[#allocation3 + $0xf0] sm:$0xf]
  %v5918 = vld [vmem:[#allocation3 + $0xf4] sm:$0xf]
  %v5919 = vld [vmem:[#allocation3 + $0xf8] sm:$0xf]
  %v5920 = vld [vmem:[#allocation3 + $0xfc] sm:$0xf]
  %v5921 = vld [vmem:[#allocation3 + $0x100] sm:$0xf]
  %v5922 = vld [vmem:[#allocation3 + $0x104] sm:$0xf]
  %v5923 = vld [vmem:[#allocation3 + $0x108] sm:$0xf]
  %v5924 = vld [vmem:[#allocation3 + $0x10c] sm:$0xf]
  %v5925 = vld [vmem:[#allocation3 + $0x110] sm:$0xf]
  %v5926 = vld [vmem:[#allocation3 + $0x114] sm:$0xf]
  %v5927 = vld [vmem:[#allocation3 + $0x118] sm:$0xf]
  %v5928 = vld [vmem:[#allocation3 + $0x11c] sm:$0xf]
  %v5929 = vld [vmem:[#allocation3 + $0x120] sm:$0xf]
  %v5930 = vld [vmem:[#allocation3 + $0x124] sm:$0xf]
  %v5931 = vld [vmem:[#allocation3 + $0x128] sm:$0xf]
  %v5932 = vld [vmem:[#allocation3 + $0x12c] sm:$0xf]
  %v5933 = vld [vmem:[#allocation3 + $0x130] sm:$0xf]
  %v5934 = vld [vmem:[#allocation3 + $0x134] sm:$0xf]
  %v5935 = vld [vmem:[#allocation3 + $0x138] sm:$0xf]
  %v5936 = vld [vmem:[#allocation3 + $0x13c] sm:$0xf]
  %v5937 = vld [vmem:[#allocation3 + $0x140] sm:$0xf]
  %v5938 = vld [vmem:[#allocation3 + $0x144] sm:$0xf]
  %v5939 = vld [vmem:[#allocation3 + $0x148] sm:$0xf]
  %v5940 = vld [vmem:[#allocation3 + $0x14c] sm:$0xf]
  %v5941 = vld [vmem:[#allocation3 + $0x150] sm:$0xf]
  %v5942 = vld [vmem:[#allocation3 + $0x154] sm:$0xf]
  %v5943 = vld [vmem:[#allocation3 + $0x158] sm:$0xf]
  %v5944 = vld [vmem:[#allocation3 + $0x15c] sm:$0xf]
  %v5945 = vld [vmem:[#allocation3 + $0x160] sm:$0xf]
  %v5946 = vld [vmem:[#allocation3 + $0x164] sm:$0xf]
  %v5947 = vld [vmem:[#allocation3 + $0x168] sm:$0xf]
  %v5948 = vld [vmem:[#allocation3 + $0x16c] sm:$0xf]
  %v5949 = vld [vmem:[#allocation3 + $0x170] sm:$0xf]
  %v5950 = vld [vmem:[#allocation3 + $0x174] sm:$0xf]
  %v5951 = vld [vmem:[#allocation3 + $0x178] sm:$0xf]
  %v5952 = vld [vmem:[#allocation3 + $0x17c] sm:$0xf]
  %v5953 = vld [vmem:[#allocation3 + $0x180] sm:$0xf]
  %v5954 = vld [vmem:[#allocation3 + $0x184] sm:$0xf]
  %v5955 = vld [vmem:[#allocation3 + $0x188] sm:$0xf]
  %v5956 = vld [vmem:[#allocation3 + $0x18c] sm:$0xf]
  %v5957 = vld [vmem:[#allocation3 + $0x190] sm:$0xf]
  %v5958 = vld [vmem:[#allocation3 + $0x194] sm:$0xf]
  %v5959 = vld [vmem:[#allocation3 + $0x198] sm:$0xf]
  %v5960 = vld [vmem:[#allocation3 + $0x19c] sm:$0xf]
  %v5961 = vld [vmem:[#allocation3 + $0x1a0] sm:$0xf]
  %v5962 = vld [vmem:[#allocation3 + $0x1a4] sm:$0xf]
  %v5963 = vld [vmem:[#allocation3 + $0x1a8] sm:$0xf]
  %v5964 = vld [vmem:[#allocation3 + $0x1ac] sm:$0xf]
  %v5965 = vld [vmem:[#allocation3 + $0x1b0] sm:$0xf]
  %v5966 = vld [vmem:[#allocation3 + $0x1b4] sm:$0xf]
  %v5967 = vld [vmem:[#allocation3 + $0x1b8] sm:$0xf]
  %v5968 = vld [vmem:[#allocation3 + $0x1bc] sm:$0xf]
  %v5969 = vld [vmem:[#allocation3 + $0x1c0] sm:$0xf]
  %v5970 = vld [vmem:[#allocation3 + $0x1c4] sm:$0xf]
  %v5971 = vld [vmem:[#allocation3 + $0x1c8] sm:$0xf]
  %v5972 = vld [vmem:[#allocation3 + $0x1cc] sm:$0xf]
  %v5973 = vld [vmem:[#allocation3 + $0x1d0] sm:$0xf]
  %v5974 = vld [vmem:[#allocation3 + $0x1d4] sm:$0xf]
  %v5975 = vld [vmem:[#allocation3 + $0x1d8] sm:$0xf]
  %v5976 = vld [vmem:[#allocation3 + $0x1dc] sm:$0xf]
  %v5977 = vld [vmem:[#allocation3 + $0x1e0] sm:$0xf]
  %v5978 = vld [vmem:[#allocation3 + $0x1e4] sm:$0xf]
  %v5979 = vld [vmem:[#allocation3 + $0x1e8] sm:$0xf]
  %v5980 = vld [vmem:[#allocation3 + $0x1ec] sm:$0xf]
  %v5981 = vld [vmem:[#allocation3 + $0x1f0] sm:$0xf]
  %v5982 = vld [vmem:[#allocation3 + $0x1f4] sm:$0xf]
  %v5983 = vld [vmem:[#allocation3 + $0x1f8] sm:$0xf]
  %v5984 = vld [vmem:[#allocation3 + $0x1fc] sm:$0xf]
  %v5985 = vld [vmem:[#allocation3 + $0x200] sm:$0xf]
  %v5986 = vld [vmem:[#allocation3 + $0x204] sm:$0xf]
  %v5987 = vld [vmem:[#allocation3 + $0x208] sm:$0xf]
  %v5988 = vld [vmem:[#allocation3 + $0x20c] sm:$0xf]
  %v5989 = vld [vmem:[#allocation3 + $0x210] sm:$0xf]
  %v5990 = vld [vmem:[#allocation3 + $0x214] sm:$0xf]
  %v5991 = vld [vmem:[#allocation3 + $0x218] sm:$0xf]
  %v5992 = vld [vmem:[#allocation3 + $0x21c] sm:$0xf]
  %v5993 = vld [vmem:[#allocation3 + $0x220] sm:$0xf]
  %v5994 = vld [vmem:[#allocation3 + $0x224] sm:$0xf]
  %v5995 = vld [vmem:[#allocation3 + $0x228] sm:$0xf]
  %v5996 = vld [vmem:[#allocation3 + $0x22c] sm:$0xf]
  %v5997 = vld [vmem:[#allocation3 + $0x230] sm:$0xf]
  %v5998 = vld [vmem:[#allocation3 + $0x234] sm:$0xf]
  %v5999 = vld [vmem:[#allocation3 + $0x238] sm:$0xf]
  %v6000 = vld [vmem:[#allocation3 + $0x23c] sm:$0xf]
  %v6001 = vld [vmem:[#allocation3 + $0x240] sm:$0xf]
  %v6002 = vld [vmem:[#allocation3 + $0x244] sm:$0xf]
  %v6003 = vld [vmem:[#allocation3 + $0x248] sm:$0xf]
  %v6004 = vld [vmem:[#allocation3 + $0x24c] sm:$0xf]
  %v6005 = vld [vmem:[#allocation3 + $0x250] sm:$0xf]
  %v6006 = vld [vmem:[#allocation3 + $0x254] sm:$0xf]
  %v6007 = vld [vmem:[#allocation3 + $0x258] sm:$0xf]
  %v6008 = vld [vmem:[#allocation3 + $0x25c] sm:$0xf]
  %v6009 = vld [vmem:[#allocation3 + $0x260] sm:$0xf]
  %v6010 = vld [vmem:[#allocation3 + $0x264] sm:$0xf]
  %v6011 = vld [vmem:[#allocation3 + $0x268] sm:$0xf]
  %v6012 = vld [vmem:[#allocation3 + $0x26c] sm:$0xf]
  %v6013 = vld [vmem:[#allocation3 + $0x270] sm:$0xf]
  %v6014 = vld [vmem:[#allocation3 + $0x274] sm:$0xf]
  %v6015 = vld [vmem:[#allocation3 + $0x278] sm:$0xf]
  %v6016 = vld [vmem:[#allocation3 + $0x27c] sm:$0xf]
  %v6017 = vld [vmem:[#allocation3 + $0x280] sm:$0xf]
  %v6018 = vld [vmem:[#allocation3 + $0x284] sm:$0xf]
  %v6019 = vld [vmem:[#allocation3 + $0x288] sm:$0xf]
  %v6020 = vld [vmem:[#allocation3 + $0x28c] sm:$0xf]
  %v6021 = vld [vmem:[#allocation3 + $0x290] sm:$0xf]
  %v6022 = vld [vmem:[#allocation3 + $0x294] sm:$0xf]
  %v6023 = vld [vmem:[#allocation3 + $0x298] sm:$0xf]
  %v6024 = vld [vmem:[#allocation3 + $0x29c] sm:$0xf]
  %v6025 = vld [vmem:[#allocation3 + $0x2a0] sm:$0xf]
  %v6026 = vld [vmem:[#allocation3 + $0x2a4] sm:$0xf]
  %v6027 = vld [vmem:[#allocation3 + $0x2a8] sm:$0xf]
  %v6028 = vld [vmem:[#allocation3 + $0x2ac] sm:$0xf]
  %v6029 = vld [vmem:[#allocation3 + $0x2b0] sm:$0xf]
  %v6030 = vld [vmem:[#allocation3 + $0x2b4] sm:$0xf]
  %v6031 = vld [vmem:[#allocation3 + $0x2b8] sm:$0xf]
  %v6032 = vld [vmem:[#allocation3 + $0x2bc] sm:$0xf]
  %v6033 = vld [vmem:[#allocation3 + $0x2c0] sm:$0xf]
  %v6034 = vld [vmem:[#allocation3 + $0x2c4] sm:$0xf]
  %v6035 = vld [vmem:[#allocation3 + $0x2c8] sm:$0xf]
  %v6036 = vld [vmem:[#allocation3 + $0x2cc] sm:$0xf]
  %v6037 = vld [vmem:[#allocation3 + $0x2d0] sm:$0xf]
  %v6038 = vld [vmem:[#allocation3 + $0x2d4] sm:$0xf]
  %v6039 = vld [vmem:[#allocation3 + $0x2d8] sm:$0xf]
  %v6040 = vld [vmem:[#allocation3 + $0x2dc] sm:$0xf]
  %v6041 = vld [vmem:[#allocation3 + $0x2e0] sm:$0xf]
  %v6042 = vld [vmem:[#allocation3 + $0x2e4] sm:$0xf]
  %v6043 = vld [vmem:[#allocation3 + $0x2e8] sm:$0xf]
  %v6044 = vld [vmem:[#allocation3 + $0x2ec] sm:$0xf]
  %v6045 = vld [vmem:[#allocation3 + $0x2f0] sm:$0xf]
  %v6046 = vld [vmem:[#allocation3 + $0x2f4] sm:$0xf]
  %v6047 = vld [vmem:[#allocation3 + $0x2f8] sm:$0xf]
  %v6048 = vld [vmem:[#allocation3 + $0x2fc] sm:$0xf]
  %v6049 = vld [vmem:[#allocation3 + $0x300] sm:$0xf]
  %v6050 = vld [vmem:[#allocation3 + $0x304] sm:$0xf]
  %v6051 = vld [vmem:[#allocation3 + $0x308] sm:$0xf]
  %v6052 = vld [vmem:[#allocation3 + $0x30c] sm:$0xf]
  %v6053 = vld [vmem:[#allocation3 + $0x310] sm:$0xf]
  %v6054 = vld [vmem:[#allocation3 + $0x314] sm:$0xf]
  %v6055 = vld [vmem:[#allocation3 + $0x318] sm:$0xf]
  %v6056 = vld [vmem:[#allocation3 + $0x31c] sm:$0xf]
  %v6057 = vld [vmem:[#allocation3 + $0x320] sm:$0xf]
  %v6058 = vld [vmem:[#allocation3 + $0x324] sm:$0xf]
  %v6059 = vld [vmem:[#allocation3 + $0x328] sm:$0xf]
  %v6060 = vld [vmem:[#allocation3 + $0x32c] sm:$0xf]
  %v6061 = vld [vmem:[#allocation3 + $0x330] sm:$0xf]
  %v6062 = vld [vmem:[#allocation3 + $0x334] sm:$0xf]
  %v6063 = vld [vmem:[#allocation3 + $0x338] sm:$0xf]
  %v6064 = vld [vmem:[#allocation3 + $0x33c] sm:$0xf]
  %v6065 = vld [vmem:[#allocation3 + $0x340] sm:$0xf]
  %v6066 = vld [vmem:[#allocation3 + $0x344] sm:$0xf]
  %v6067 = vld [vmem:[#allocation3 + $0x348] sm:$0xf]
  %v6068 = vld [vmem:[#allocation3 + $0x34c] sm:$0xf]
  %v6069 = vld [vmem:[#allocation3 + $0x350] sm:$0xf]
  %v6070 = vld [vmem:[#allocation3 + $0x354] sm:$0xf]
  %v6071 = vld [vmem:[#allocation3 + $0x358] sm:$0xf]
  %v6072 = vld [vmem:[#allocation3 + $0x35c] sm:$0xf]
  %v6073 = vld [vmem:[#allocation3 + $0x360] sm:$0xf]
  %v6074 = vld [vmem:[#allocation3 + $0x364] sm:$0xf]
  %v6075 = vld [vmem:[#allocation3 + $0x368] sm:$0xf]
  %v6076 = vld [vmem:[#allocation3 + $0x36c] sm:$0xf]
  %v6077 = vld [vmem:[#allocation3 + $0x370] sm:$0xf]
  %v6078 = vld [vmem:[#allocation3 + $0x374] sm:$0xf]
  %v6079 = vld [vmem:[#allocation3 + $0x378] sm:$0xf]
  %v6080 = vld [vmem:[#allocation3 + $0x37c] sm:$0xf]
  %v6081 = vld [vmem:[#allocation3 + $0x380] sm:$0xf]
  %v6082 = vld [vmem:[#allocation3 + $0x384] sm:$0xf]
  %v6083 = vld [vmem:[#allocation3 + $0x388] sm:$0xf]
  %v6084 = vld [vmem:[#allocation3 + $0x38c] sm:$0xf]
  %v6085 = vld [vmem:[#allocation3 + $0x390] sm:$0xf]
  %v6086 = vld [vmem:[#allocation3 + $0x394] sm:$0xf]
  %v6087 = vld [vmem:[#allocation3 + $0x398] sm:$0xf]
  %v6088 = vld [vmem:[#allocation3 + $0x39c] sm:$0xf]
  %v6089 = vld [vmem:[#allocation3 + $0x3a0] sm:$0xf]
  %v6090 = vld [vmem:[#allocation3 + $0x3a4] sm:$0xf]
  %v6091 = vld [vmem:[#allocation3 + $0x3a8] sm:$0xf]
  %v6092 = vld [vmem:[#allocation3 + $0x3ac] sm:$0xf]
  %v6093 = vld [vmem:[#allocation3 + $0x3b0] sm:$0xf]
  %v6094 = vld [vmem:[#allocation3 + $0x3b4] sm:$0xf]
  %v6095 = vld [vmem:[#allocation3 + $0x3b8] sm:$0xf]
  %v6096 = vld [vmem:[#allocation3 + $0x3bc] sm:$0xf]
  %v6097 = vld [vmem:[#allocation3 + $0x3c0] sm:$0xf]
  %v6098 = vld [vmem:[#allocation3 + $0x3c4] sm:$0xf]
  %v6099 = vld [vmem:[#allocation3 + $0x3c8] sm:$0xf]
  %v6100 = vld [vmem:[#allocation3 + $0x3cc] sm:$0xf]
  %v6101 = vld [vmem:[#allocation3 + $0x3d0] sm:$0xf]
  %v6102 = vld [vmem:[#allocation3 + $0x3d4] sm:$0xf]
  %v6103 = vld [vmem:[#allocation3 + $0x3d8] sm:$0xf]
  %v6104 = vld [vmem:[#allocation3 + $0x3dc] sm:$0xf]
  %v6105 = vld [vmem:[#allocation3 + $0x3e0] sm:$0xf]
  %v6106 = vld [vmem:[#allocation3 + $0x3e4] sm:$0xf]
  %v6107 = vld [vmem:[#allocation3 + $0x3e8] sm:$0xf]
  %v6108 = vld [vmem:[#allocation3 + $0x3ec] sm:$0xf]
  %v6109 = vld [vmem:[#allocation3 + $0x3f0] sm:$0xf]
  %v6110 = vld [vmem:[#allocation3 + $0x3f4] sm:$0xf]
  %v6111 = vld [vmem:[#allocation3 + $0x3f8] sm:$0xf]
  %v6112 = vld [vmem:[#allocation3 + $0x3fc] sm:$0xf]
  %v6113 = vld [vmem:[%s24] sm:$0x1]
  %v6115 = vlaneseq
  %v6116 = vshrl.u32 %v6115, 7
  %v6117 = vsub.s32 0, %v6116
  %v6118 = vrot.slane %v6113, %v6117
  %v6376 = vunpack.c.l.b16 %v5857
  %v6377 = vunpack.c.l.b16 %v5858
  %v6378 = vunpack.c.l.b16 %v5859
  %v6379 = vunpack.c.l.b16 %v5860
  %v6380 = vunpack.c.l.b16 %v5861
  %v6381 = vunpack.c.l.b16 %v5862
  %v6382 = vunpack.c.l.b16 %v5863
  %v6383 = vunpack.c.l.b16 %v5864
  %v6384 = vunpack.c.l.b16 %v5865
  %v6385 = vunpack.c.l.b16 %v5866
  %v6386 = vunpack.c.l.b16 %v5867
  %v6387 = vunpack.c.l.b16 %v5868
  %v6388 = vunpack.c.l.b16 %v5869
  %v6389 = vunpack.c.l.b16 %v5870
  %v6390 = vunpack.c.l.b16 %v5871
  %v6391 = vunpack.c.l.b16 %v5872
  %v6392 = vunpack.c.l.b16 %v5873
  %v6393 = vunpack.c.l.b16 %v5874
  %v6394 = vunpack.c.l.b16 %v5875
  %v6395 = vunpack.c.l.b16 %v5876
  %v6396 = vunpack.c.l.b16 %v5877
  %v6397 = vunpack.c.l.b16 %v5878
  %v6398 = vunpack.c.l.b16 %v5879
  %v6399 = vunpack.c.l.b16 %v5880
  %v6400 = vunpack.c.l.b16 %v5881
  %v6401 = vunpack.c.l.b16 %v5882
  %v6402 = vunpack.c.l.b16 %v5883
  %v6403 = vunpack.c.l.b16 %v5884
  %v6404 = vunpack.c.l.b16 %v5885
  %v6405 = vunpack.c.l.b16 %v5886
  %v6406 = vunpack.c.l.b16 %v5887
  %v6407 = vunpack.c.l.b16 %v5888
  %v6408 = vunpack.c.l.b16 %v5889
  %v6409 = vunpack.c.l.b16 %v5890
  %v6410 = vunpack.c.l.b16 %v5891
  %v6411 = vunpack.c.l.b16 %v5892
  %v6412 = vunpack.c.l.b16 %v5893
  %v6413 = vunpack.c.l.b16 %v5894
  %v6414 = vunpack.c.l.b16 %v5895
  %v6415 = vunpack.c.l.b16 %v5896
  %v6416 = vunpack.c.l.b16 %v5897
  %v6417 = vunpack.c.l.b16 %v5898
  %v6418 = vunpack.c.l.b16 %v5899
  %v6419 = vunpack.c.l.b16 %v5900
  %v6420 = vunpack.c.l.b16 %v5901
  %v6421 = vunpack.c.l.b16 %v5902
  %v6422 = vunpack.c.l.b16 %v5903
  %v6423 = vunpack.c.l.b16 %v5904
  %v6424 = vunpack.c.l.b16 %v5905
  %v6425 = vunpack.c.l.b16 %v5906
  %v6426 = vunpack.c.l.b16 %v5907
  %v6427 = vunpack.c.l.b16 %v5908
  %v6428 = vunpack.c.l.b16 %v5909
  %v6429 = vunpack.c.l.b16 %v5910
  %v6430 = vunpack.c.l.b16 %v5911
  %v6431 = vunpack.c.l.b16 %v5912
  %v6432 = vunpack.c.l.b16 %v5913
  %v6433 = vunpack.c.l.b16 %v5914
  %v6434 = vunpack.c.l.b16 %v5915
  %v6435 = vunpack.c.l.b16 %v5916
  %v6436 = vunpack.c.l.b16 %v5917
  %v6437 = vunpack.c.l.b16 %v5918
  %v6438 = vunpack.c.l.b16 %v5919
  %v6439 = vunpack.c.l.b16 %v5920
  %v6440 = vunpack.c.l.b16 %v5921
  %v6441 = vunpack.c.l.b16 %v5922
  %v6442 = vunpack.c.l.b16 %v5923
  %v6443 = vunpack.c.l.b16 %v5924
  %v6444 = vunpack.c.l.b16 %v5925
  %v6445 = vunpack.c.l.b16 %v5926
  %v6446 = vunpack.c.l.b16 %v5927
  %v6447 = vunpack.c.l.b16 %v5928
  %v6448 = vunpack.c.l.b16 %v5929
  %v6449 = vunpack.c.l.b16 %v5930
  %v6450 = vunpack.c.l.b16 %v5931
  %v6451 = vunpack.c.l.b16 %v5932
  %v6452 = vunpack.c.l.b16 %v5933
  %v6453 = vunpack.c.l.b16 %v5934
  %v6454 = vunpack.c.l.b16 %v5935
  %v6455 = vunpack.c.l.b16 %v5936
  %v6456 = vunpack.c.l.b16 %v5937
  %v6457 = vunpack.c.l.b16 %v5938
  %v6458 = vunpack.c.l.b16 %v5939
  %v6459 = vunpack.c.l.b16 %v5940
  %v6460 = vunpack.c.l.b16 %v5941
  %v6461 = vunpack.c.l.b16 %v5942
  %v6462 = vunpack.c.l.b16 %v5943
  %v6463 = vunpack.c.l.b16 %v5944
  %v6464 = vunpack.c.l.b16 %v5945
  %v6465 = vunpack.c.l.b16 %v5946
  %v6466 = vunpack.c.l.b16 %v5947
  %v6467 = vunpack.c.l.b16 %v5948
  %v6468 = vunpack.c.l.b16 %v5949
  %v6469 = vunpack.c.l.b16 %v5950
  %v6470 = vunpack.c.l.b16 %v5951
  %v6471 = vunpack.c.l.b16 %v5952
  %v6472 = vunpack.c.l.b16 %v5953
  %v6473 = vunpack.c.l.b16 %v5954
  %v6474 = vunpack.c.l.b16 %v5955
  %v6475 = vunpack.c.l.b16 %v5956
  %v6476 = vunpack.c.l.b16 %v5957
  %v6477 = vunpack.c.l.b16 %v5958
  %v6478 = vunpack.c.l.b16 %v5959
  %v6479 = vunpack.c.l.b16 %v5960
  %v6480 = vunpack.c.l.b16 %v5961
  %v6481 = vunpack.c.l.b16 %v5962
  %v6482 = vunpack.c.l.b16 %v5963
  %v6483 = vunpack.c.l.b16 %v5964
  %v6484 = vunpack.c.l.b16 %v5965
  %v6485 = vunpack.c.l.b16 %v5966
  %v6486 = vunpack.c.l.b16 %v5967
  %v6487 = vunpack.c.l.b16 %v5968
  %v6488 = vunpack.c.l.b16 %v5969
  %v6489 = vunpack.c.l.b16 %v5970
  %v6490 = vunpack.c.l.b16 %v5971
  %v6491 = vunpack.c.l.b16 %v5972
  %v6492 = vunpack.c.l.b16 %v5973
  %v6493 = vunpack.c.l.b16 %v5974
  %v6494 = vunpack.c.l.b16 %v5975
  %v6495 = vunpack.c.l.b16 %v5976
  %v6496 = vunpack.c.l.b16 %v5977
  %v6497 = vunpack.c.l.b16 %v5978
  %v6498 = vunpack.c.l.b16 %v5979
  %v6499 = vunpack.c.l.b16 %v5980
  %v6500 = vunpack.c.l.b16 %v5981
  %v6501 = vunpack.c.l.b16 %v5982
  %v6502 = vunpack.c.l.b16 %v5983
  %v6503 = vunpack.c.l.b16 %v5984
  %v6504 = vunpack.c.l.b16 %v5985
  %v6505 = vunpack.c.l.b16 %v5986
  %v6506 = vunpack.c.l.b16 %v5987
  %v6507 = vunpack.c.l.b16 %v5988
  %v6508 = vunpack.c.l.b16 %v5989
  %v6509 = vunpack.c.l.b16 %v5990
  %v6510 = vunpack.c.l.b16 %v5991
  %v6511 = vunpack.c.l.b16 %v5992
  %v6512 = vunpack.c.l.b16 %v5993
  %v6513 = vunpack.c.l.b16 %v5994
  %v6514 = vunpack.c.l.b16 %v5995
  %v6515 = vunpack.c.l.b16 %v5996
  %v6516 = vunpack.c.l.b16 %v5997
  %v6517 = vunpack.c.l.b16 %v5998
  %v6518 = vunpack.c.l.b16 %v5999
  %v6519 = vunpack.c.l.b16 %v6000
  %v6520 = vunpack.c.l.b16 %v6001
  %v6521 = vunpack.c.l.b16 %v6002
  %v6522 = vunpack.c.l.b16 %v6003
  %v6523 = vunpack.c.l.b16 %v6004
  %v6524 = vunpack.c.l.b16 %v6005
  %v6525 = vunpack.c.l.b16 %v6006
  %v6526 = vunpack.c.l.b16 %v6007
  %v6527 = vunpack.c.l.b16 %v6008
  %v6528 = vunpack.c.l.b16 %v6009
  %v6529 = vunpack.c.l.b16 %v6010
  %v6530 = vunpack.c.l.b16 %v6011
  %v6531 = vunpack.c.l.b16 %v6012
  %v6532 = vunpack.c.l.b16 %v6013
  %v6533 = vunpack.c.l.b16 %v6014
  %v6534 = vunpack.c.l.b16 %v6015
  %v6535 = vunpack.c.l.b16 %v6016
  %v6536 = vunpack.c.l.b16 %v6017
  %v6537 = vunpack.c.l.b16 %v6018
  %v6538 = vunpack.c.l.b16 %v6019
  %v6539 = vunpack.c.l.b16 %v6020
  %v6540 = vunpack.c.l.b16 %v6021
  %v6541 = vunpack.c.l.b16 %v6022
  %v6542 = vunpack.c.l.b16 %v6023
  %v6543 = vunpack.c.l.b16 %v6024
  %v6544 = vunpack.c.l.b16 %v6025
  %v6545 = vunpack.c.l.b16 %v6026
  %v6546 = vunpack.c.l.b16 %v6027
  %v6547 = vunpack.c.l.b16 %v6028
  %v6548 = vunpack.c.l.b16 %v6029
  %v6549 = vunpack.c.l.b16 %v6030
  %v6550 = vunpack.c.l.b16 %v6031
  %v6551 = vunpack.c.l.b16 %v6032
  %v6552 = vunpack.c.l.b16 %v6033
  %v6553 = vunpack.c.l.b16 %v6034
  %v6554 = vunpack.c.l.b16 %v6035
  %v6555 = vunpack.c.l.b16 %v6036
  %v6556 = vunpack.c.l.b16 %v6037
  %v6557 = vunpack.c.l.b16 %v6038
  %v6558 = vunpack.c.l.b16 %v6039
  %v6559 = vunpack.c.l.b16 %v6040
  %v6560 = vunpack.c.l.b16 %v6041
  %v6561 = vunpack.c.l.b16 %v6042
  %v6562 = vunpack.c.l.b16 %v6043
  %v6563 = vunpack.c.l.b16 %v6044
  %v6564 = vunpack.c.l.b16 %v6045
  %v6565 = vunpack.c.l.b16 %v6046
  %v6566 = vunpack.c.l.b16 %v6047
  %v6567 = vunpack.c.l.b16 %v6048
  %v6568 = vunpack.c.l.b16 %v6049
  %v6569 = vunpack.c.l.b16 %v6050
  %v6570 = vunpack.c.l.b16 %v6051
  %v6571 = vunpack.c.l.b16 %v6052
  %v6572 = vunpack.c.l.b16 %v6053
  %v6573 = vunpack.c.l.b16 %v6054
  %v6574 = vunpack.c.l.b16 %v6055
  %v6575 = vunpack.c.l.b16 %v6056
  %v6576 = vunpack.c.l.b16 %v6057
  %v6577 = vunpack.c.l.b16 %v6058
  %v6578 = vunpack.c.l.b16 %v6059
  %v6579 = vunpack.c.l.b16 %v6060
  %v6580 = vunpack.c.l.b16 %v6061
  %v6581 = vunpack.c.l.b16 %v6062
  %v6582 = vunpack.c.l.b16 %v6063
  %v6583 = vunpack.c.l.b16 %v6064
  %v6584 = vunpack.c.l.b16 %v6065
  %v6585 = vunpack.c.l.b16 %v6066
  %v6586 = vunpack.c.l.b16 %v6067
  %v6587 = vunpack.c.l.b16 %v6068
  %v6588 = vunpack.c.l.b16 %v6069
  %v6589 = vunpack.c.l.b16 %v6070
  %v6590 = vunpack.c.l.b16 %v6071
  %v6591 = vunpack.c.l.b16 %v6072
  %v6592 = vunpack.c.l.b16 %v6073
  %v6593 = vunpack.c.l.b16 %v6074
  %v6594 = vunpack.c.l.b16 %v6075
  %v6595 = vunpack.c.l.b16 %v6076
  %v6596 = vunpack.c.l.b16 %v6077
  %v6597 = vunpack.c.l.b16 %v6078
  %v6598 = vunpack.c.l.b16 %v6079
  %v6599 = vunpack.c.l.b16 %v6080
  %v6600 = vunpack.c.l.b16 %v6081
  %v6601 = vunpack.c.l.b16 %v6082
  %v6602 = vunpack.c.l.b16 %v6083
  %v6603 = vunpack.c.l.b16 %v6084
  %v6604 = vunpack.c.l.b16 %v6085
  %v6605 = vunpack.c.l.b16 %v6086
  %v6606 = vunpack.c.l.b16 %v6087
  %v6607 = vunpack.c.l.b16 %v6088
  %v6608 = vunpack.c.l.b16 %v6089
  %v6609 = vunpack.c.l.b16 %v6090
  %v6610 = vunpack.c.l.b16 %v6091
  %v6611 = vunpack.c.l.b16 %v6092
  %v6612 = vunpack.c.l.b16 %v6093
  %v6613 = vunpack.c.l.b16 %v6094
  %v6614 = vunpack.c.l.b16 %v6095
  %v6615 = vunpack.c.l.b16 %v6096
  %v6616 = vunpack.c.l.b16 %v6097
  %v6617 = vunpack.c.l.b16 %v6098
  %v6618 = vunpack.c.l.b16 %v6099
  %v6619 = vunpack.c.l.b16 %v6100
  %v6620 = vunpack.c.l.b16 %v6101
  %v6621 = vunpack.c.l.b16 %v6102
  %v6622 = vunpack.c.l.b16 %v6103
  %v6623 = vunpack.c.l.b16 %v6104
  %v6624 = vunpack.c.l.b16 %v6105
  %v6625 = vunpack.c.l.b16 %v6106
  %v6626 = vunpack.c.l.b16 %v6107
  %v6627 = vunpack.c.l.b16 %v6108
  %v6628 = vunpack.c.l.b16 %v6109
  %v6629 = vunpack.c.l.b16 %v6110
  %v6630 = vunpack.c.l.b16 %v6111
  %v6631 = vunpack.c.l.b16 %v6112
  %v6632 = vpack.c.b16 %v6377, %v6376
  %v6633 = vpack.c.b16 %v6379, %v6378
  %v6634 = vpack.c.b16 %v6381, %v6380
  %v6635 = vpack.c.b16 %v6383, %v6382
  %v6636 = vpack.c.b16 %v6385, %v6384
  %v6637 = vpack.c.b16 %v6387, %v6386
  %v6638 = vpack.c.b16 %v6389, %v6388
  %v6639 = vpack.c.b16 %v6391, %v6390
  %v6640 = vpack.c.b16 %v6393, %v6392
  %v6641 = vpack.c.b16 %v6395, %v6394
  %v6642 = vpack.c.b16 %v6397, %v6396
  %v6643 = vpack.c.b16 %v6399, %v6398
  %v6644 = vpack.c.b16 %v6401, %v6400
  %v6645 = vpack.c.b16 %v6403, %v6402
  %v6646 = vpack.c.b16 %v6405, %v6404
  %v6647 = vpack.c.b16 %v6407, %v6406
  %v6648 = vpack.c.b16 %v6409, %v6408
  %v6649 = vpack.c.b16 %v6411, %v6410
  %v6650 = vpack.c.b16 %v6413, %v6412
  %v6651 = vpack.c.b16 %v6415, %v6414
  %v6652 = vpack.c.b16 %v6417, %v6416
  %v6653 = vpack.c.b16 %v6419, %v6418
  %v6654 = vpack.c.b16 %v6421, %v6420
  %v6655 = vpack.c.b16 %v6423, %v6422
  %v6656 = vpack.c.b16 %v6425, %v6424
  %v6657 = vpack.c.b16 %v6427, %v6426
  %v6658 = vpack.c.b16 %v6429, %v6428
  %v6659 = vpack.c.b16 %v6431, %v6430
  %v6660 = vpack.c.b16 %v6433, %v6432
  %v6661 = vpack.c.b16 %v6435, %v6434
  %v6662 = vpack.c.b16 %v6437, %v6436
  %v6663 = vpack.c.b16 %v6439, %v6438
  %v6664 = vpack.c.b16 %v6441, %v6440
  %v6665 = vpack.c.b16 %v6443, %v6442
  %v6666 = vpack.c.b16 %v6445, %v6444
  %v6667 = vpack.c.b16 %v6447, %v6446
  %v6668 = vpack.c.b16 %v6449, %v6448
  %v6669 = vpack.c.b16 %v6451, %v6450
  %v6670 = vpack.c.b16 %v6453, %v6452
  %v6671 = vpack.c.b16 %v6455, %v6454
  %v6672 = vpack.c.b16 %v6457, %v6456
  %v6673 = vpack.c.b16 %v6459, %v6458
  %v6674 = vpack.c.b16 %v6461, %v6460
  %v6675 = vpack.c.b16 %v6463, %v6462
  %v6676 = vpack.c.b16 %v6465, %v6464
  %v6677 = vpack.c.b16 %v6467, %v6466
  %v6678 = vpack.c.b16 %v6469, %v6468
  %v6679 = vpack.c.b16 %v6471, %v6470
  %v6680 = vpack.c.b16 %v6473, %v6472
  %v6681 = vpack.c.b16 %v6475, %v6474
  %v6682 = vpack.c.b16 %v6477, %v6476
  %v6683 = vpack.c.b16 %v6479, %v6478
  %v6684 = vpack.c.b16 %v6481, %v6480
  %v6685 = vpack.c.b16 %v6483, %v6482
  %v6686 = vpack.c.b16 %v6485, %v6484
  %v6687 = vpack.c.b16 %v6487, %v6486
  %v6688 = vpack.c.b16 %v6489, %v6488
  %v6689 = vpack.c.b16 %v6491, %v6490
  %v6690 = vpack.c.b16 %v6493, %v6492
  %v6691 = vpack.c.b16 %v6495, %v6494
  %v6692 = vpack.c.b16 %v6497, %v6496
  %v6693 = vpack.c.b16 %v6499, %v6498
  %v6694 = vpack.c.b16 %v6501, %v6500
  %v6695 = vpack.c.b16 %v6503, %v6502
  %v6696 = vpack.c.b16 %v6505, %v6504
  %v6697 = vpack.c.b16 %v6507, %v6506
  %v6698 = vpack.c.b16 %v6509, %v6508
  %v6699 = vpack.c.b16 %v6511, %v6510
  %v6700 = vpack.c.b16 %v6513, %v6512
  %v6701 = vpack.c.b16 %v6515, %v6514
  %v6702 = vpack.c.b16 %v6517, %v6516
  %v6703 = vpack.c.b16 %v6519, %v6518
  %v6704 = vpack.c.b16 %v6521, %v6520
  %v6705 = vpack.c.b16 %v6523, %v6522
  %v6706 = vpack.c.b16 %v6525, %v6524
  %v6707 = vpack.c.b16 %v6527, %v6526
  %v6708 = vpack.c.b16 %v6529, %v6528
  %v6709 = vpack.c.b16 %v6531, %v6530
  %v6710 = vpack.c.b16 %v6533, %v6532
  %v6711 = vpack.c.b16 %v6535, %v6534
  %v6712 = vpack.c.b16 %v6537, %v6536
  %v6713 = vpack.c.b16 %v6539, %v6538
  %v6714 = vpack.c.b16 %v6541, %v6540
  %v6715 = vpack.c.b16 %v6543, %v6542
  %v6716 = vpack.c.b16 %v6545, %v6544
  %v6717 = vpack.c.b16 %v6547, %v6546
  %v6718 = vpack.c.b16 %v6549, %v6548
  %v6719 = vpack.c.b16 %v6551, %v6550
  %v6720 = vpack.c.b16 %v6553, %v6552
  %v6721 = vpack.c.b16 %v6555, %v6554
  %v6722 = vpack.c.b16 %v6557, %v6556
  %v6723 = vpack.c.b16 %v6559, %v6558
  %v6724 = vpack.c.b16 %v6561, %v6560
  %v6725 = vpack.c.b16 %v6563, %v6562
  %v6726 = vpack.c.b16 %v6565, %v6564
  %v6727 = vpack.c.b16 %v6567, %v6566
  %v6728 = vpack.c.b16 %v6569, %v6568
  %v6729 = vpack.c.b16 %v6571, %v6570
  %v6730 = vpack.c.b16 %v6573, %v6572
  %v6731 = vpack.c.b16 %v6575, %v6574
  %v6732 = vpack.c.b16 %v6577, %v6576
  %v6733 = vpack.c.b16 %v6579, %v6578
  %v6734 = vpack.c.b16 %v6581, %v6580
  %v6735 = vpack.c.b16 %v6583, %v6582
  %v6736 = vpack.c.b16 %v6585, %v6584
  %v6737 = vpack.c.b16 %v6587, %v6586
  %v6738 = vpack.c.b16 %v6589, %v6588
  %v6739 = vpack.c.b16 %v6591, %v6590
  %v6740 = vpack.c.b16 %v6593, %v6592
  %v6741 = vpack.c.b16 %v6595, %v6594
  %v6742 = vpack.c.b16 %v6597, %v6596
  %v6743 = vpack.c.b16 %v6599, %v6598
  %v6744 = vpack.c.b16 %v6601, %v6600
  %v6745 = vpack.c.b16 %v6603, %v6602
  %v6746 = vpack.c.b16 %v6605, %v6604
  %v6747 = vpack.c.b16 %v6607, %v6606
  %v6748 = vpack.c.b16 %v6609, %v6608
  %v6749 = vpack.c.b16 %v6611, %v6610
  %v6750 = vpack.c.b16 %v6613, %v6612
  %v6751 = vpack.c.b16 %v6615, %v6614
  %v6752 = vpack.c.b16 %v6617, %v6616
  %v6753 = vpack.c.b16 %v6619, %v6618
  %v6754 = vpack.c.b16 %v6621, %v6620
  %v6755 = vpack.c.b16 %v6623, %v6622
  %v6756 = vpack.c.b16 %v6625, %v6624
  %v6757 = vpack.c.b16 %v6627, %v6626
  %v6758 = vpack.c.b16 %v6629, %v6628
  %v6759 = vpack.c.b16 %v6631, %v6630
  %6888 = vmatprep.subr.bf16.mxu0 0
  %6889 = vmatpush1.bf16.msra.mxu0 %v6639
  %6890 = vmatprep.subr.bf16.mxu0 0
  %6891 = vmatpush1.bf16.msra.mxu0 %v6638
  %6892 = vmatprep.subr.bf16.mxu0 0
  %6893 = vmatpush1.bf16.msra.mxu0 %v6637
  %6894 = vmatprep.subr.bf16.mxu0 0
  %6895 = vmatpush1.bf16.msra.mxu0 %v6636
  %6896 = vmatprep.subr.bf16.mxu0 0
  %6897 = vmatpush1.bf16.msra.mxu0 %v6635
  %6898 = vmatprep.subr.bf16.mxu0 0
  %6899 = vmatpush1.bf16.msra.mxu0 %v6634
  %6900 = vmatprep.subr.bf16.mxu0 0
  %6901 = vmatpush1.bf16.msra.mxu0 %v6633
  %6902 = vmatprep.subr.bf16.mxu0 0
  %6903 = vmatpush1.bf16.msra.mxu0 %v6632
  %6904 = vmatprep.subr.bf16.mxu0 0
  %6905 = vmatpush2.bf16.msra.mxu0 %v6647
  %6906 = vmatprep.subr.bf16.mxu0 0
  %6907 = vmatpush2.bf16.msra.mxu0 %v6646
  %6908 = vmatprep.subr.bf16.mxu0 0
  %6909 = vmatpush2.bf16.msra.mxu0 %v6645
  %6910 = vmatprep.subr.bf16.mxu0 0
  %6911 = vmatpush2.bf16.msra.mxu0 %v6644
  %6912 = vmatprep.subr.bf16.mxu0 0
  %6913 = vmatpush2.bf16.msra.mxu0 %v6643
  %6914 = vmatprep.subr.bf16.mxu0 0
  %6915 = vmatpush2.bf16.msra.mxu0 %v6642
  %6916 = vmatprep.subr.bf16.mxu0 0
  %6917 = vmatpush2.bf16.msra.mxu0 %v6641
  %6918 = vmatprep.subr.bf16.mxu0 0
  %6919 = vmatpush2.bf16.msra.mxu0 %v6640
  %6920 = vmatprep.mubr.bf16.mxu0 %v5794
  %6921 = vmatmul.mubr.bf16.gmra.mxu0 %v5793
  %v6922 = vpop.f32.mrf.mxu0
  %v6923 = vadd.f32 %v6118, %v6922
  %v6924 = vpop.f32.mrf.mxu0
  %v6925 = vpop.f32.mrf.mxu0
  %v6926 = vadd.f32 %v6118, %v6925
  %v6927 = vpop.f32.mrf.mxu0
  %6928 = vmatprep.mubr.bf16.mxu0 %v5810
  %6929 = vmatmul.mubr.bf16.gmra.mxu0 %v5809
  %v6930 = vpop.f32.mrf.mxu0
  %v6931 = vadd.f32 %v6118, %v6930
  %v6932 = vpop.f32.mrf.mxu0
  %v6933 = vpop.f32.mrf.mxu0
  %v6934 = vadd.f32 %v6118, %v6933
  %v6935 = vpop.f32.mrf.mxu0
  %6936 = vmatprep.mubr.bf16.mxu0 %v5826
  %6937 = vmatmul.mubr.bf16.gmra.mxu0 %v5825
  %v6938 = vpop.f32.mrf.mxu0
  %v6939 = vadd.f32 %v6118, %v6938
  %v6940 = vpop.f32.mrf.mxu0
  %v6941 = vpop.f32.mrf.mxu0
  %v6942 = vadd.f32 %v6118, %v6941
  %v6943 = vpop.f32.mrf.mxu0
  %6944 = vmatprep.mubr.bf16.mxu0 %v5842
  %6945 = vmatmul.mubr.bf16.gmra.mxu0 %v5841
  %v6946 = vpop.f32.mrf.mxu0
  %v6947 = vadd.f32 %v6118, %v6946
  %v6948 = vpop.f32.mrf.mxu0
  %v6949 = vpop.f32.mrf.mxu0
  %v6950 = vadd.f32 %v6118, %v6949
  %v6951 = vpop.f32.mrf.mxu0
  %6952 = vdwg.mxu0
  %6953 = vmatprep.subr.bf16.mxu0 0
  %6954 = vmatpush1.bf16.msra.mxu0 %v6655
  %6955 = vmatprep.subr.bf16.mxu0 0
  %6956 = vmatpush1.bf16.msra.mxu0 %v6654
  %6957 = vmatprep.subr.bf16.mxu0 0
  %6958 = vmatpush1.bf16.msra.mxu0 %v6653
  %6959 = vmatprep.subr.bf16.mxu0 0
  %6960 = vmatpush1.bf16.msra.mxu0 %v6652
  %6961 = vmatprep.subr.bf16.mxu0 0
  %6962 = vmatpush1.bf16.msra.mxu0 %v6651
  %6963 = vmatprep.subr.bf16.mxu0 0
  %6964 = vmatpush1.bf16.msra.mxu0 %v6650
  %6965 = vmatprep.subr.bf16.mxu0 0
  %6966 = vmatpush1.bf16.msra.mxu0 %v6649
  %6967 = vmatprep.subr.bf16.mxu0 0
  %6968 = vmatpush1.bf16.msra.mxu0 %v6648
  %6969 = vmatprep.subr.bf16.mxu0 0
  %6970 = vmatpush2.bf16.msra.mxu0 %v6663
  %6971 = vmatprep.subr.bf16.mxu0 0
  %6972 = vmatpush2.bf16.msra.mxu0 %v6662
  %6973 = vmatprep.subr.bf16.mxu0 0
  %6974 = vmatpush2.bf16.msra.mxu0 %v6661
  %6975 = vmatprep.subr.bf16.mxu0 0
  %6976 = vmatpush2.bf16.msra.mxu0 %v6660
  %6977 = vmatprep.subr.bf16.mxu0 0
  %6978 = vmatpush2.bf16.msra.mxu0 %v6659
  %6979 = vmatprep.subr.bf16.mxu0 0
  %6980 = vmatpush2.bf16.msra.mxu0 %v6658
  %6981 = vmatprep.subr.bf16.mxu0 0
  %6982 = vmatpush2.bf16.msra.mxu0 %v6657
  %6983 = vmatprep.subr.bf16.mxu0 0
  %6984 = vmatpush2.bf16.msra.mxu0 %v6656
  %6985 = vmatprep.mubr.bf16.mxu0 %v5796
  %6986 = vmatmul.mubr.bf16.gmra.mxu0 %v5795
  %v6987 = vpop.f32.mrf.mxu0
  %v6988 = vadd.f32 %v6923, %v6987
  %v6989 = vpop.f32.mrf.mxu0
  %v6990 = vpop.f32.mrf.mxu0
  %v6991 = vadd.f32 %v6926, %v6990
  %v6992 = vpop.f32.mrf.mxu0
  %6993 = vmatprep.mubr.bf16.mxu0 %v5812
  %6994 = vmatmul.mubr.bf16.gmra.mxu0 %v5811
  %v6995 = vpop.f32.mrf.mxu0
  %v6996 = vadd.f32 %v6931, %v6995
  %v6997 = vpop.f32.mrf.mxu0
  %v6998 = vpop.f32.mrf.mxu0
  %v6999 = vadd.f32 %v6934, %v6998
  %v7000 = vpop.f32.mrf.mxu0
  %7001 = vmatprep.mubr.bf16.mxu0 %v5828
  %7002 = vmatmul.mubr.bf16.gmra.mxu0 %v5827
  %v7003 = vpop.f32.mrf.mxu0
  %v7004 = vadd.f32 %v6939, %v7003
  %v7005 = vpop.f32.mrf.mxu0
  %v7006 = vpop.f32.mrf.mxu0
  %v7007 = vadd.f32 %v6942, %v7006
  %v7008 = vpop.f32.mrf.mxu0
  %7009 = vmatprep.mubr.bf16.mxu0 %v5844
  %7010 = vmatmul.mubr.bf16.gmra.mxu0 %v5843
  %v7011 = vpop.f32.mrf.mxu0
  %v7012 = vadd.f32 %v6947, %v7011
  %v7013 = vpop.f32.mrf.mxu0
  %v7014 = vpop.f32.mrf.mxu0
  %v7015 = vadd.f32 %v6950, %v7014
  %v7016 = vpop.f32.mrf.mxu0
  %7017 = vdwg.mxu0
  %7018 = vmatprep.subr.bf16.mxu0 0
  %7019 = vmatpush1.bf16.msra.mxu0 %v6671
  %7020 = vmatprep.subr.bf16.mxu0 0
  %7021 = vmatpush1.bf16.msra.mxu0 %v6670
  %7022 = vmatprep.subr.bf16.mxu0 0
  %7023 = vmatpush1.bf16.msra.mxu0 %v6669
  %7024 = vmatprep.subr.bf16.mxu0 0
  %7025 = vmatpush1.bf16.msra.mxu0 %v6668
  %7026 = vmatprep.subr.bf16.mxu0 0
  %7027 = vmatpush1.bf16.msra.mxu0 %v6667
  %7028 = vmatprep.subr.bf16.mxu0 0
  %7029 = vmatpush1.bf16.msra.mxu0 %v6666
  %7030 = vmatprep.subr.bf16.mxu0 0
  %7031 = vmatpush1.bf16.msra.mxu0 %v6665
  %7032 = vmatprep.subr.bf16.mxu0 0
  %7033 = vmatpush1.bf16.msra.mxu0 %v6664
  %7034 = vmatprep.subr.bf16.mxu0 0
  %7035 = vmatpush2.bf16.msra.mxu0 %v6679
  %7036 = vmatprep.subr.bf16.mxu0 0
  %7037 = vmatpush2.bf16.msra.mxu0 %v6678
  %7038 = vmatprep.subr.bf16.mxu0 0
  %7039 = vmatpush2.bf16.msra.mxu0 %v6677
  %7040 = vmatprep.subr.bf16.mxu0 0
  %7041 = vmatpush2.bf16.msra.mxu0 %v6676
  %7042 = vmatprep.subr.bf16.mxu0 0
  %7043 = vmatpush2.bf16.msra.mxu0 %v6675
  %7044 = vmatprep.subr.bf16.mxu0 0
  %7045 = vmatpush2.bf16.msra.mxu0 %v6674
  %7046 = vmatprep.subr.bf16.mxu0 0
  %7047 = vmatpush2.bf16.msra.mxu0 %v6673
  %7048 = vmatprep.subr.bf16.mxu0 0
  %7049 = vmatpush2.bf16.msra.mxu0 %v6672
  %7050 = vmatprep.mubr.bf16.mxu0 %v5798
  %7051 = vmatmul.mubr.bf16.gmra.mxu0 %v5797
  %v7052 = vpop.f32.mrf.mxu0
  %v7053 = vadd.f32 %v6988, %v7052
  %v7054 = vpop.f32.mrf.mxu0
  %v7055 = vpop.f32.mrf.mxu0
  %v7056 = vadd.f32 %v6991, %v7055
  %v7057 = vpop.f32.mrf.mxu0
  %7058 = vmatprep.mubr.bf16.mxu0 %v5814
  %7059 = vmatmul.mubr.bf16.gmra.mxu0 %v5813
  %v7060 = vpop.f32.mrf.mxu0
  %v7061 = vadd.f32 %v6996, %v7060
  %v7062 = vpop.f32.mrf.mxu0
  %v7063 = vpop.f32.mrf.mxu0
  %v7064 = vadd.f32 %v6999, %v7063
  %v7065 = vpop.f32.mrf.mxu0
  %7066 = vmatprep.mubr.bf16.mxu0 %v5830
  %7067 = vmatmul.mubr.bf16.gmra.mxu0 %v5829
  %v7068 = vpop.f32.mrf.mxu0
  %v7069 = vadd.f32 %v7004, %v7068
  %v7070 = vpop.f32.mrf.mxu0
  %v7071 = vpop.f32.mrf.mxu0
  %v7072 = vadd.f32 %v7007, %v7071
  %v7073 = vpop.f32.mrf.mxu0
  %7074 = vmatprep.mubr.bf16.mxu0 %v5846
  %7075 = vmatmul.mubr.bf16.gmra.mxu0 %v5845
  %v7076 = vpop.f32.mrf.mxu0
  %v7077 = vadd.f32 %v7012, %v7076
  %v7078 = vpop.f32.mrf.mxu0
  %v7079 = vpop.f32.mrf.mxu0
  %v7080 = vadd.f32 %v7015, %v7079
  %v7081 = vpop.f32.mrf.mxu0
  %7082 = vdwg.mxu0
  %7083 = vmatprep.subr.bf16.mxu0 0
  %7084 = vmatpush1.bf16.msra.mxu0 %v6687
  %7085 = vmatprep.subr.bf16.mxu0 0
  %7086 = vmatpush1.bf16.msra.mxu0 %v6686
  %7087 = vmatprep.subr.bf16.mxu0 0
  %7088 = vmatpush1.bf16.msra.mxu0 %v6685
  %7089 = vmatprep.subr.bf16.mxu0 0
  %7090 = vmatpush1.bf16.msra.mxu0 %v6684
  %7091 = vmatprep.subr.bf16.mxu0 0
  %7092 = vmatpush1.bf16.msra.mxu0 %v6683
  %7093 = vmatprep.subr.bf16.mxu0 0
  %7094 = vmatpush1.bf16.msra.mxu0 %v6682
  %7095 = vmatprep.subr.bf16.mxu0 0
  %7096 = vmatpush1.bf16.msra.mxu0 %v6681
  %7097 = vmatprep.subr.bf16.mxu0 0
  %7098 = vmatpush1.bf16.msra.mxu0 %v6680
  %7099 = vmatprep.subr.bf16.mxu0 0
  %7100 = vmatpush2.bf16.msra.mxu0 %v6695
  %7101 = vmatprep.subr.bf16.mxu0 0
  %7102 = vmatpush2.bf16.msra.mxu0 %v6694
  %7103 = vmatprep.subr.bf16.mxu0 0
  %7104 = vmatpush2.bf16.msra.mxu0 %v6693
  %7105 = vmatprep.subr.bf16.mxu0 0
  %7106 = vmatpush2.bf16.msra.mxu0 %v6692
  %7107 = vmatprep.subr.bf16.mxu0 0
  %7108 = vmatpush2.bf16.msra.mxu0 %v6691
  %7109 = vmatprep.subr.bf16.mxu0 0
  %7110 = vmatpush2.bf16.msra.mxu0 %v6690
  %7111 = vmatprep.subr.bf16.mxu0 0
  %7112 = vmatpush2.bf16.msra.mxu0 %v6689
  %7113 = vmatprep.subr.bf16.mxu0 0
  %7114 = vmatpush2.bf16.msra.mxu0 %v6688
  %7115 = vmatprep.mubr.bf16.mxu0 %v5800
  %7116 = vmatmul.mubr.bf16.gmra.mxu0 %v5799
  %v7117 = vpop.f32.mrf.mxu0
  %v7118 = vadd.f32 %v7053, %v7117
  %v7119 = vpop.f32.mrf.mxu0
  %v7120 = vpop.f32.mrf.mxu0
  %v7121 = vadd.f32 %v7056, %v7120
  %v7122 = vpop.f32.mrf.mxu0
  %7123 = vmatprep.mubr.bf16.mxu0 %v5816
  %7124 = vmatmul.mubr.bf16.gmra.mxu0 %v5815
  %v7125 = vpop.f32.mrf.mxu0
  %v7126 = vadd.f32 %v7061, %v7125
  %v7127 = vpop.f32.mrf.mxu0
  %v7128 = vpop.f32.mrf.mxu0
  %v7129 = vadd.f32 %v7064, %v7128
  %v7130 = vpop.f32.mrf.mxu0
  %7131 = vmatprep.mubr.bf16.mxu0 %v5832
  %7132 = vmatmul.mubr.bf16.gmra.mxu0 %v5831
  %v7133 = vpop.f32.mrf.mxu0
  %v7134 = vadd.f32 %v7069, %v7133
  %v7135 = vpop.f32.mrf.mxu0
  %v7136 = vpop.f32.mrf.mxu0
  %v7137 = vadd.f32 %v7072, %v7136
  %v7138 = vpop.f32.mrf.mxu0
  %7139 = vmatprep.mubr.bf16.mxu0 %v5848
  %7140 = vmatmul.mubr.bf16.gmra.mxu0 %v5847
  %v7141 = vpop.f32.mrf.mxu0
  %v7142 = vadd.f32 %v7077, %v7141
  %v7143 = vpop.f32.mrf.mxu0
  %v7144 = vpop.f32.mrf.mxu0
  %v7145 = vadd.f32 %v7080, %v7144
  %v7146 = vpop.f32.mrf.mxu0
  %7147 = vdwg.mxu0
  %7148 = vmatprep.subr.bf16.mxu0 0
  %7149 = vmatpush1.bf16.msra.mxu0 %v6703
  %7150 = vmatprep.subr.bf16.mxu0 0
  %7151 = vmatpush1.bf16.msra.mxu0 %v6702
  %7152 = vmatprep.subr.bf16.mxu0 0
  %7153 = vmatpush1.bf16.msra.mxu0 %v6701
  %7154 = vmatprep.subr.bf16.mxu0 0
  %7155 = vmatpush1.bf16.msra.mxu0 %v6700
  %7156 = vmatprep.subr.bf16.mxu0 0
  %7157 = vmatpush1.bf16.msra.mxu0 %v6699
  %7158 = vmatprep.subr.bf16.mxu0 0
  %7159 = vmatpush1.bf16.msra.mxu0 %v6698
  %7160 = vmatprep.subr.bf16.mxu0 0
  %7161 = vmatpush1.bf16.msra.mxu0 %v6697
  %7162 = vmatprep.subr.bf16.mxu0 0
  %7163 = vmatpush1.bf16.msra.mxu0 %v6696
  %7164 = vmatprep.subr.bf16.mxu0 0
  %7165 = vmatpush2.bf16.msra.mxu0 %v6711
  %7166 = vmatprep.subr.bf16.mxu0 0
  %7167 = vmatpush2.bf16.msra.mxu0 %v6710
  %7168 = vmatprep.subr.bf16.mxu0 0
  %7169 = vmatpush2.bf16.msra.mxu0 %v6709
  %7170 = vmatprep.subr.bf16.mxu0 0
  %7171 = vmatpush2.bf16.msra.mxu0 %v6708
  %7172 = vmatprep.subr.bf16.mxu0 0
  %7173 = vmatpush2.bf16.msra.mxu0 %v6707
  %7174 = vmatprep.subr.bf16.mxu0 0
  %7175 = vmatpush2.bf16.msra.mxu0 %v6706
  %7176 = vmatprep.subr.bf16.mxu0 0
  %7177 = vmatpush2.bf16.msra.mxu0 %v6705
  %7178 = vmatprep.subr.bf16.mxu0 0
  %7179 = vmatpush2.bf16.msra.mxu0 %v6704
  %7180 = vmatprep.mubr.bf16.mxu0 %v5802
  %7181 = vmatmul.mubr.bf16.gmra.mxu0 %v5801
  %v7182 = vpop.f32.mrf.mxu0
  %v7183 = vadd.f32 %v7118, %v7182
  %v7184 = vpop.f32.mrf.mxu0
  %v7185 = vpop.f32.mrf.mxu0
  %v7186 = vadd.f32 %v7121, %v7185
  %v7187 = vpop.f32.mrf.mxu0
  %7188 = vmatprep.mubr.bf16.mxu0 %v5818
  %7189 = vmatmul.mubr.bf16.gmra.mxu0 %v5817
  %v7190 = vpop.f32.mrf.mxu0
  %v7191 = vadd.f32 %v7126, %v7190
  %v7192 = vpop.f32.mrf.mxu0
  %v7193 = vpop.f32.mrf.mxu0
  %v7194 = vadd.f32 %v7129, %v7193
  %v7195 = vpop.f32.mrf.mxu0
  %7196 = vmatprep.mubr.bf16.mxu0 %v5834
  %7197 = vmatmul.mubr.bf16.gmra.mxu0 %v5833
  %v7198 = vpop.f32.mrf.mxu0
  %v7199 = vadd.f32 %v7134, %v7198
  %v7200 = vpop.f32.mrf.mxu0
  %v7201 = vpop.f32.mrf.mxu0
  %v7202 = vadd.f32 %v7137, %v7201
  %v7203 = vpop.f32.mrf.mxu0
  %7204 = vmatprep.mubr.bf16.mxu0 %v5850
  %7205 = vmatmul.mubr.bf16.gmra.mxu0 %v5849
  %v7206 = vpop.f32.mrf.mxu0
  %v7207 = vadd.f32 %v7142, %v7206
  %v7208 = vpop.f32.mrf.mxu0
  %v7209 = vpop.f32.mrf.mxu0
  %v7210 = vadd.f32 %v7145, %v7209
  %v7211 = vpop.f32.mrf.mxu0
  %7212 = vdwg.mxu0
  %7213 = vmatprep.subr.bf16.mxu0 0
  %7214 = vmatpush1.bf16.msra.mxu0 %v6719
  %7215 = vmatprep.subr.bf16.mxu0 0
  %7216 = vmatpush1.bf16.msra.mxu0 %v6718
  %7217 = vmatprep.subr.bf16.mxu0 0
  %7218 = vmatpush1.bf16.msra.mxu0 %v6717
  %7219 = vmatprep.subr.bf16.mxu0 0
  %7220 = vmatpush1.bf16.msra.mxu0 %v6716
  %7221 = vmatprep.subr.bf16.mxu0 0
  %7222 = vmatpush1.bf16.msra.mxu0 %v6715
  %7223 = vmatprep.subr.bf16.mxu0 0
  %7224 = vmatpush1.bf16.msra.mxu0 %v6714
  %7225 = vmatprep.subr.bf16.mxu0 0
  %7226 = vmatpush1.bf16.msra.mxu0 %v6713
  %7227 = vmatprep.subr.bf16.mxu0 0
  %7228 = vmatpush1.bf16.msra.mxu0 %v6712
  %7229 = vmatprep.subr.bf16.mxu0 0
  %7230 = vmatpush2.bf16.msra.mxu0 %v6727
  %7231 = vmatprep.subr.bf16.mxu0 0
  %7232 = vmatpush2.bf16.msra.mxu0 %v6726
  %7233 = vmatprep.subr.bf16.mxu0 0
  %7234 = vmatpush2.bf16.msra.mxu0 %v6725
  %7235 = vmatprep.subr.bf16.mxu0 0
  %7236 = vmatpush2.bf16.msra.mxu0 %v6724
  %7237 = vmatprep.subr.bf16.mxu0 0
  %7238 = vmatpush2.bf16.msra.mxu0 %v6723
  %7239 = vmatprep.subr.bf16.mxu0 0
  %7240 = vmatpush2.bf16.msra.mxu0 %v6722
  %7241 = vmatprep.subr.bf16.mxu0 0
  %7242 = vmatpush2.bf16.msra.mxu0 %v6721
  %7243 = vmatprep.subr.bf16.mxu0 0
  %7244 = vmatpush2.bf16.msra.mxu0 %v6720
  %7245 = vmatprep.mubr.bf16.mxu0 %v5804
  %7246 = vmatmul.mubr.bf16.gmra.mxu0 %v5803
  %v7247 = vpop.f32.mrf.mxu0
  %v7248 = vadd.f32 %v7183, %v7247
  %v7249 = vpop.f32.mrf.mxu0
  %v7250 = vpop.f32.mrf.mxu0
  %v7251 = vadd.f32 %v7186, %v7250
  %v7252 = vpop.f32.mrf.mxu0
  %7253 = vmatprep.mubr.bf16.mxu0 %v5820
  %7254 = vmatmul.mubr.bf16.gmra.mxu0 %v5819
  %v7255 = vpop.f32.mrf.mxu0
  %v7256 = vadd.f32 %v7191, %v7255
  %v7257 = vpop.f32.mrf.mxu0
  %v7258 = vpop.f32.mrf.mxu0
  %v7259 = vadd.f32 %v7194, %v7258
  %v7260 = vpop.f32.mrf.mxu0
  %7261 = vmatprep.mubr.bf16.mxu0 %v5836
  %7262 = vmatmul.mubr.bf16.gmra.mxu0 %v5835
  %v7263 = vpop.f32.mrf.mxu0
  %v7264 = vadd.f32 %v7199, %v7263
  %v7265 = vpop.f32.mrf.mxu0
  %v7266 = vpop.f32.mrf.mxu0
  %v7267 = vadd.f32 %v7202, %v7266
  %v7268 = vpop.f32.mrf.mxu0
  %7269 = vmatprep.mubr.bf16.mxu0 %v5852
  %7270 = vmatmul.mubr.bf16.gmra.mxu0 %v5851
  %v7271 = vpop.f32.mrf.mxu0
  %v7272 = vadd.f32 %v7207, %v7271
  %v7273 = vpop.f32.mrf.mxu0
  %v7274 = vpop.f32.mrf.mxu0
  %v7275 = vadd.f32 %v7210, %v7274
  %v7276 = vpop.f32.mrf.mxu0
  %7277 = vdwg.mxu0
  %7278 = vmatprep.subr.bf16.mxu0 0
  %7279 = vmatpush1.bf16.msra.mxu0 %v6735
  %7280 = vmatprep.subr.bf16.mxu0 0
  %7281 = vmatpush1.bf16.msra.mxu0 %v6734
  %7282 = vmatprep.subr.bf16.mxu0 0
  %7283 = vmatpush1.bf16.msra.mxu0 %v6733
  %7284 = vmatprep.subr.bf16.mxu0 0
  %7285 = vmatpush1.bf16.msra.mxu0 %v6732
  %7286 = vmatprep.subr.bf16.mxu0 0
  %7287 = vmatpush1.bf16.msra.mxu0 %v6731
  %7288 = vmatprep.subr.bf16.mxu0 0
  %7289 = vmatpush1.bf16.msra.mxu0 %v6730
  %7290 = vmatprep.subr.bf16.mxu0 0
  %7291 = vmatpush1.bf16.msra.mxu0 %v6729
  %7292 = vmatprep.subr.bf16.mxu0 0
  %7293 = vmatpush1.bf16.msra.mxu0 %v6728
  %7294 = vmatprep.subr.bf16.mxu0 0
  %7295 = vmatpush2.bf16.msra.mxu0 %v6743
  %7296 = vmatprep.subr.bf16.mxu0 0
  %7297 = vmatpush2.bf16.msra.mxu0 %v6742
  %7298 = vmatprep.subr.bf16.mxu0 0
  %7299 = vmatpush2.bf16.msra.mxu0 %v6741
  %7300 = vmatprep.subr.bf16.mxu0 0
  %7301 = vmatpush2.bf16.msra.mxu0 %v6740
  %7302 = vmatprep.subr.bf16.mxu0 0
  %7303 = vmatpush2.bf16.msra.mxu0 %v6739
  %7304 = vmatprep.subr.bf16.mxu0 0
  %7305 = vmatpush2.bf16.msra.mxu0 %v6738
  %7306 = vmatprep.subr.bf16.mxu0 0
  %7307 = vmatpush2.bf16.msra.mxu0 %v6737
  %7308 = vmatprep.subr.bf16.mxu0 0
  %7309 = vmatpush2.bf16.msra.mxu0 %v6736
  %7310 = vmatprep.mubr.bf16.mxu0 %v5806
  %7311 = vmatmul.mubr.bf16.gmra.mxu0 %v5805
  %v7312 = vpop.f32.mrf.mxu0
  %v7313 = vadd.f32 %v7248, %v7312
  %v7314 = vpop.f32.mrf.mxu0
  %v7315 = vpop.f32.mrf.mxu0
  %v7316 = vadd.f32 %v7251, %v7315
  %v7317 = vpop.f32.mrf.mxu0
  %7318 = vmatprep.mubr.bf16.mxu0 %v5822
  %7319 = vmatmul.mubr.bf16.gmra.mxu0 %v5821
  %v7320 = vpop.f32.mrf.mxu0
  %v7321 = vadd.f32 %v7256, %v7320
  %v7322 = vpop.f32.mrf.mxu0
  %v7323 = vpop.f32.mrf.mxu0
  %v7324 = vadd.f32 %v7259, %v7323
  %v7325 = vpop.f32.mrf.mxu0
  %7326 = vmatprep.mubr.bf16.mxu0 %v5838
  %7327 = vmatmul.mubr.bf16.gmra.mxu0 %v5837
  %v7328 = vpop.f32.mrf.mxu0
  %v7329 = vadd.f32 %v7264, %v7328
  %v7330 = vpop.f32.mrf.mxu0
  %v7331 = vpop.f32.mrf.mxu0
  %v7332 = vadd.f32 %v7267, %v7331
  %v7333 = vpop.f32.mrf.mxu0
  %7334 = vmatprep.mubr.bf16.mxu0 %v5854
  %7335 = vmatmul.mubr.bf16.gmra.mxu0 %v5853
  %v7336 = vpop.f32.mrf.mxu0
  %v7337 = vadd.f32 %v7272, %v7336
  %v7338 = vpop.f32.mrf.mxu0
  %v7339 = vpop.f32.mrf.mxu0
  %v7340 = vadd.f32 %v7275, %v7339
  %v7341 = vpop.f32.mrf.mxu0
  %7342 = vdwg.mxu0
  %7343 = vmatprep.subr.bf16.mxu0 0
  %7344 = vmatpush1.bf16.msra.mxu0 %v6751
  %7345 = vmatprep.subr.bf16.mxu0 0
  %7346 = vmatpush1.bf16.msra.mxu0 %v6750
  %7347 = vmatprep.subr.bf16.mxu0 0
  %7348 = vmatpush1.bf16.msra.mxu0 %v6749
  %7349 = vmatprep.subr.bf16.mxu0 0
  %7350 = vmatpush1.bf16.msra.mxu0 %v6748
  %7351 = vmatprep.subr.bf16.mxu0 0
  %7352 = vmatpush1.bf16.msra.mxu0 %v6747
  %7353 = vmatprep.subr.bf16.mxu0 0
  %7354 = vmatpush1.bf16.msra.mxu0 %v6746
  %7355 = vmatprep.subr.bf16.mxu0 0
  %7356 = vmatpush1.bf16.msra.mxu0 %v6745
  %7357 = vmatprep.subr.bf16.mxu0 0
  %7358 = vmatpush1.bf16.msra.mxu0 %v6744
  %7359 = vmatprep.subr.bf16.mxu0 0
  %7360 = vmatpush2.bf16.msra.mxu0 %v6759
  %7361 = vmatprep.subr.bf16.mxu0 0
  %7362 = vmatpush2.bf16.msra.mxu0 %v6758
  %7363 = vmatprep.subr.bf16.mxu0 0
  %7364 = vmatpush2.bf16.msra.mxu0 %v6757
  %7365 = vmatprep.subr.bf16.mxu0 0
  %7366 = vmatpush2.bf16.msra.mxu0 %v6756
  %7367 = vmatprep.subr.bf16.mxu0 0
  %7368 = vmatpush2.bf16.msra.mxu0 %v6755
  %7369 = vmatprep.subr.bf16.mxu0 0
  %7370 = vmatpush2.bf16.msra.mxu0 %v6754
  %7371 = vmatprep.subr.bf16.mxu0 0
  %7372 = vmatpush2.bf16.msra.mxu0 %v6753
  %7373 = vmatprep.subr.bf16.mxu0 0
  %7374 = vmatpush2.bf16.msra.mxu0 %v6752
  %7375 = vmatprep.mubr.bf16.mxu0 %v5808
  %7376 = vmatmul.mubr.bf16.gmra.mxu0 %v5807
  %v7377 = vpop.f32.mrf.mxu0
  %v7378 = vadd.f32 %v7313, %v7377
  %v7379 = vpop.f32.mrf.mxu0
  %v7380 = vpop.f32.mrf.mxu0
  %v7381 = vadd.f32 %v7316, %v7380
  %v7382 = vpop.f32.mrf.mxu0
  %7383 = vmatprep.mubr.bf16.mxu0 %v5824
  %7384 = vmatmul.mubr.bf16.gmra.mxu0 %v5823
  %v7385 = vpop.f32.mrf.mxu0
  %v7386 = vadd.f32 %v7321, %v7385
  %v7387 = vpop.f32.mrf.mxu0
  %v7388 = vpop.f32.mrf.mxu0
  %v7389 = vadd.f32 %v7324, %v7388
  %v7390 = vpop.f32.mrf.mxu0
  %7391 = vmatprep.mubr.bf16.mxu0 %v5840
  %7392 = vmatmul.mubr.bf16.gmra.mxu0 %v5839
  %v7393 = vpop.f32.mrf.mxu0
  %v7394 = vadd.f32 %v7329, %v7393
  %v7395 = vpop.f32.mrf.mxu0
  %v7396 = vpop.f32.mrf.mxu0
  %v7397 = vadd.f32 %v7332, %v7396
  %v7398 = vpop.f32.mrf.mxu0
  %7399 = vmatprep.mubr.bf16.mxu0 %v5856
  %7400 = vmatmul.mubr.bf16.gmra.mxu0 %v5855
  %v7401 = vpop.f32.mrf.mxu0
  %v7402 = vadd.f32 %v7337, %v7401
  %v7403 = vpop.f32.mrf.mxu0
  %v7404 = vpop.f32.mrf.mxu0
  %v7405 = vadd.f32 %v7340, %v7404
  %v7406 = vpop.f32.mrf.mxu0
  %7407 = vdwg.mxu0
  %v7408 = vadd.f32 %v4581, %v7378
  %v7409 = vadd.f32 %v4582, %v7381
  %v7410 = vadd.f32 %v4583, %v7386
  %v7411 = vadd.f32 %v4584, %v7389
  %v7412 = vadd.f32 %v4585, %v7394
  %v7413 = vadd.f32 %v4586, %v7397
  %v7414 = vadd.f32 %v4587, %v7402
  %v7415 = vadd.f32 %v4588, %v7405
  %v7416 = vld [vmem:[%s25] sm:$0x1]
  %v7417 = vld [vmem:[%s26] sm:$0x1]
  %v7418 = vsel %vm588, %v7408, 0.0
  %7419 = vadd.xlane.f32.xlu0 %v7418
  %v7420 = vpop.xlane.xlu0 %7419
  %v7421 = vsel %vm588, %v7409, 0.0
  %7422 = vadd.xlane.f32.xlu0 %v7421
  %v7423 = vpop.xlane.xlu0 %7422
  %v7424 = vsel %vm588, %v7410, 0.0
  %7425 = vadd.xlane.f32.xlu0 %v7424
  %v7426 = vpop.xlane.xlu0 %7425
  %v7427 = vsel %vm588, %v7411, 0.0
  %7428 = vadd.xlane.f32.xlu0 %v7427
  %v7429 = vpop.xlane.xlu0 %7428
  %v7430 = vsel %vm588, %v7412, 0.0
  %7431 = vadd.xlane.f32.xlu0 %v7430
  %v7432 = vpop.xlane.xlu0 %7431
  %v7433 = vsel %vm588, %v7413, 0.0
  %7434 = vadd.xlane.f32.xlu0 %v7433
  %v7435 = vpop.xlane.xlu0 %7434
  %v7436 = vsel %vm588, %v7414, 0.0
  %7437 = vadd.xlane.f32.xlu0 %v7436
  %v7438 = vpop.xlane.xlu0 %7437
  %v7439 = vsel %vm588, %v7415, 0.0
  %7440 = vadd.xlane.f32.xlu0 %v7439
  %v7441 = vpop.xlane.xlu0 %7440
  %v7442 = vmul.f32 %v7420, %v4480
  %v7443 = vmul.f32 %v7423, %v4480
  %v7444 = vmul.f32 %v7426, %v4480
  %v7445 = vmul.f32 %v7429, %v4480
  %v7446 = vmul.f32 %v7432, %v4480
  %v7447 = vmul.f32 %v7435, %v4480
  %v7448 = vmul.f32 %v7438, %v4480
  %v7449 = vmul.f32 %v7441, %v4480
  %v7450 = vsub.f32 %v7408, %v7442
  %v7451 = vsub.f32 %v7409, %v7443
  %v7452 = vsub.f32 %v7410, %v7444
  %v7453 = vsub.f32 %v7411, %v7445
  %v7454 = vsub.f32 %v7412, %v7446
  %v7455 = vsub.f32 %v7413, %v7447
  %v7456 = vsub.f32 %v7414, %v7448
  %v7457 = vsub.f32 %v7415, %v7449
  %v7458 = vmul.f32 %v7450, %v7450
  %v7459 = vmul.f32 %v7451, %v7451
  %v7460 = vmul.f32 %v7452, %v7452
  %v7461 = vmul.f32 %v7453, %v7453
  %v7462 = vmul.f32 %v7454, %v7454
  %v7463 = vmul.f32 %v7455, %v7455
  %v7464 = vmul.f32 %v7456, %v7456
  %v7465 = vmul.f32 %v7457, %v7457
  %v7466 = vsel %vm588, %v7458, 0.0
  %7467 = vadd.xlane.f32.xlu0 %v7466
  %v7468 = vpop.xlane.xlu0 %7467
  %v7469 = vsel %vm588, %v7459, 0.0
  %7470 = vadd.xlane.f32.xlu0 %v7469
  %v7471 = vpop.xlane.xlu0 %7470
  %v7472 = vsel %vm588, %v7460, 0.0
  %7473 = vadd.xlane.f32.xlu0 %v7472
  %v7474 = vpop.xlane.xlu0 %7473
  %v7475 = vsel %vm588, %v7461, 0.0
  %7476 = vadd.xlane.f32.xlu0 %v7475
  %v7477 = vpop.xlane.xlu0 %7476
  %v7478 = vsel %vm588, %v7462, 0.0
  %7479 = vadd.xlane.f32.xlu0 %v7478
  %v7480 = vpop.xlane.xlu0 %7479
  %v7481 = vsel %vm588, %v7463, 0.0
  %7482 = vadd.xlane.f32.xlu0 %v7481
  %v7483 = vpop.xlane.xlu0 %7482
  %v7484 = vsel %vm588, %v7464, 0.0
  %7485 = vadd.xlane.f32.xlu0 %v7484
  %v7486 = vpop.xlane.xlu0 %7485
  %v7487 = vsel %vm588, %v7465, 0.0
  %7488 = vadd.xlane.f32.xlu0 %v7487
  %v7489 = vpop.xlane.xlu0 %7488
  %v7490 = vmul.f32 %v7468, %v4480
  %v7491 = vmul.f32 %v7471, %v4480
  %v7492 = vmul.f32 %v7474, %v4480
  %v7493 = vmul.f32 %v7477, %v4480
  %v7494 = vmul.f32 %v7480, %v4480
  %v7495 = vmul.f32 %v7483, %v4480
  %v7496 = vmul.f32 %v7486, %v4480
  %v7497 = vmul.f32 %v7489, %v4480
  %v7498 = vadd.f32 %v7490, 1e-05
  %v7499 = vadd.f32 %v7491, 1e-05
  %v7500 = vadd.f32 %v7492, 1e-05
  %v7501 = vadd.f32 %v7493, 1e-05
  %v7502 = vadd.f32 %v7494, 1e-05
  %v7503 = vadd.f32 %v7495, 1e-05
  %v7504 = vadd.f32 %v7496, 1e-05
  %v7505 = vadd.f32 %v7497, 1e-05
  %v7506 = vrsqrt.pop %v7498
  %v7507 = vrsqrt.pop %v7499
  %v7508 = vrsqrt.pop %v7500
  %v7509 = vrsqrt.pop %v7501
  %v7510 = vrsqrt.pop %v7502
  %v7511 = vrsqrt.pop %v7503
  %v7512 = vrsqrt.pop %v7504
  %v7513 = vrsqrt.pop %v7505
  %v7514 = vmul.f32 %v7450, %v7506
  %v7515 = vmul.f32 %v7451, %v7507
  %v7516 = vmul.f32 %v7452, %v7508
  %v7517 = vmul.f32 %v7453, %v7509
  %v7518 = vmul.f32 %v7454, %v7510
  %v7519 = vmul.f32 %v7455, %v7511
  %v7520 = vmul.f32 %v7456, %v7512
  %v7521 = vmul.f32 %v7457, %v7513
  %v7523 = vlaneseq
  %v7524 = vshrl.u32 %v7523, 7
  %v7525 = vsub.s32 0, %v7524
  %v7526 = vrot.slane %v7416, %v7525
  %v7528 = vmul.f32 %v7514, %v7526
  %v7529 = vmul.f32 %v7515, %v7526
  %v7530 = vmul.f32 %v7516, %v7526
  %v7531 = vmul.f32 %v7517, %v7526
  %v7532 = vmul.f32 %v7518, %v7526
  %v7533 = vmul.f32 %v7519, %v7526
  %v7534 = vmul.f32 %v7520, %v7526
  %v7535 = vmul.f32 %v7521, %v7526
  %v7537 = vlaneseq
  %v7538 = vshrl.u32 %v7537, 7
  %v7539 = vsub.s32 0, %v7538
  %v7540 = vrot.slane %v7417, %v7539
  %v7542 = vadd.f32 %v7528, %v7540
  %v7543 = vadd.f32 %v7529, %v7540
  %v7544 = vadd.f32 %v7530, %v7540
  %v7545 = vadd.f32 %v7531, %v7540
  %v7546 = vadd.f32 %v7532, %v7540
  %v7547 = vadd.f32 %v7533, %v7540
  %v7548 = vadd.f32 %v7534, %v7540
  %v7549 = vadd.f32 %v7535, %v7540
  %v7550 = vmul.u32 %v1983, 8
  %vm7551 = vcmp.eq.s32.totalorder %v1794, %v7550
  %v7552 = vsel %vm7551, 1, 0
  %v7553 = vcvt.s32.f32 %v7552
  %vm7554 = vcmp.eq.s32.totalorder %v1983, 0
  %v7555 = vstv %s564
  %vm7556 = vcmp.eq.s32.totalorder %v1794, %v7555
  %vm7557 = vmand %vm7554, %vm7556
  %vm7558 = vcmp.eq.s32.totalorder %v1983, 1
  %s7559 = sadd.s32 %s565, 8
  %v7560 = vstv %s7559
  %vm7561 = vcmp.eq.s32.totalorder %v1794, %v7560
  %vm7562 = vmand %vm7558, %vm7561
  %vm7563 = vmor %vm7557, %vm7562
  %vm7564 = vcmp.eq.s32.totalorder %v1983, 2
  %s7565 = sadd.s32 %s566, 16
  %v7566 = vstv %s7565
  %vm7567 = vcmp.eq.s32.totalorder %v1794, %v7566
  %vm7568 = vmand %vm7564, %vm7567
  %vm7569 = vmor %vm7563, %vm7568
  %vm7570 = vcmp.eq.s32.totalorder %v1983, 3
  %s7571 = sadd.s32 %s567, 24
  %v7572 = vstv %s7571
  %vm7573 = vcmp.eq.s32.totalorder %v1794, %v7572
  %vm7574 = vmand %vm7570, %vm7573
  %vm7575 = vmor %vm7569, %vm7574
  %vm7576 = vcmp.eq.s32.totalorder %v1983, 4
  %s7577 = sadd.s32 %s568, 32
  %v7578 = vstv %s7577
  %vm7579 = vcmp.eq.s32.totalorder %v1794, %v7578
  %vm7580 = vmand %vm7576, %vm7579
  %vm7581 = vmor %vm7575, %vm7580
  %vm7582 = vcmp.eq.s32.totalorder %v1983, 5
  %s7583 = sadd.s32 %s569, 40
  %v7584 = vstv %s7583
  %vm7585 = vcmp.eq.s32.totalorder %v1794, %v7584
  %vm7586 = vmand %vm7582, %vm7585
  %vm7587 = vmor %vm7581, %vm7586
  %vm7588 = vcmp.eq.s32.totalorder %v1983, 6
  %s7589 = sadd.s32 %s570, 48
  %v7590 = vstv %s7589
  %vm7591 = vcmp.eq.s32.totalorder %v1794, %v7590
  %vm7592 = vmand %vm7588, %vm7591
  %vm7593 = vmor %vm7587, %vm7592
  %vm7594 = vcmp.eq.s32.totalorder %v1983, 7
  %s7595 = sadd.s32 %s571, 56
  %v7596 = vstv %s7595
  %vm7597 = vcmp.eq.s32.totalorder %v1794, %v7596
  %vm7598 = vmand %vm7594, %vm7597
  %vm7599 = vmor %vm7593, %vm7598
  %v7600 = vsel %vm7599, 1, 0
  %v7601 = vcvt.s32.f32 %v7600
  %v7603 = vsel %vm588, %v7553, 0
  %7605 = vmatprep.subr.mxu0 0.0
  %7606 = vmatpush1.msra.mxu0 0.0
  %7607 = vmatprep.subr.mxu0 0.0
  %7608 = vmatpush1.msra.mxu0 0.0
  %7609 = vmatprep.subr.mxu0 0.0
  %7610 = vmatpush1.msra.mxu0 0.0
  %7611 = vmatprep.subr.mxu0 0.0
  %7612 = vmatpush1.msra.mxu0 0.0
  %7613 = vmatprep.subr.mxu0 0.0
  %7614 = vmatpush1.msra.mxu0 0.0
  %7615 = vmatprep.subr.mxu0 0.0
  %7616 = vmatpush1.msra.mxu0 0.0
  %7617 = vmatprep.subr.mxu0 0.0
  %7618 = vmatpush1.msra.mxu0 0.0
  %7619 = vmatprep.subr.mxu0 0.0
  %7620 = vmatpush1.msra.mxu0 0.0
  %7621 = vmatprep.subr.mxu0 0.0
  %7622 = vmatpush1.msra.mxu0 %v7549
  %7623 = vmatprep.subr.mxu0 0.0
  %7624 = vmatpush1.msra.mxu0 %v7548
  %7625 = vmatprep.subr.mxu0 0.0
  %7626 = vmatpush1.msra.mxu0 %v7547
  %7627 = vmatprep.subr.mxu0 0.0
  %7628 = vmatpush1.msra.mxu0 %v7546
  %7629 = vmatprep.subr.mxu0 0.0
  %7630 = vmatpush1.msra.mxu0 %v7545
  %7631 = vmatprep.subr.mxu0 0.0
  %7632 = vmatpush1.msra.mxu0 %v7544
  %7633 = vmatprep.subr.mxu0 0.0
  %7634 = vmatpush1.msra.mxu0 %v7543
  %7635 = vmatprep.subr.mxu0 0.0
  %7636 = vmatpush1.msra.mxu0 %v7542
  %7637 = vmatprep.subr.mxu0 0.0
  %7638 = vmatpush2.msra.mxu0 0.0
  %7639 = vmatprep.subr.mxu0 0.0
  %7640 = vmatpush2.msra.mxu0 0.0
  %7641 = vmatprep.subr.mxu0 0.0
  %7642 = vmatpush2.msra.mxu0 0.0
  %7643 = vmatprep.subr.mxu0 0.0
  %7644 = vmatpush2.msra.mxu0 0.0
  %7645 = vmatprep.subr.mxu0 0.0
  %7646 = vmatpush2.msra.mxu0 0.0
  %7647 = vmatprep.subr.mxu0 0.0
  %7648 = vmatpush2.msra.mxu0 0.0
  %7649 = vmatprep.subr.mxu0 0.0
  %7650 = vmatpush2.msra.mxu0 0.0
  %7651 = vmatprep.subr.mxu0 0.0
  %7652 = vmatpush2.msra.mxu0 0.0
  %7653 = vmatprep.subr.mxu0 0.0
  %7654 = vmatpush2.msra.mxu0 0.0
  %7655 = vmatprep.subr.mxu0 0.0
  %7656 = vmatpush2.msra.mxu0 0.0
  %7657 = vmatprep.subr.mxu0 0.0
  %7658 = vmatpush2.msra.mxu0 0.0
  %7659 = vmatprep.subr.mxu0 0.0
  %7660 = vmatpush2.msra.mxu0 0.0
  %7661 = vmatprep.subr.mxu0 0.0
  %7662 = vmatpush2.msra.mxu0 0.0
  %7663 = vmatprep.subr.mxu0 0.0
  %7664 = vmatpush2.msra.mxu0 0.0
  %7665 = vmatprep.subr.mxu0 0.0
  %7666 = vmatpush2.msra.mxu0 0.0
  %7667 = vmatprep.subr.mxu0 0.0
  %7668 = vmatpush2.msra.mxu0 0.0
  %7669 = vmatprep.mubr.f32.mxu0 0.0
  %7670 = vmatmul.mubr.f32.gmra.mxu0 %v7603
  %v7671 = vpop.f32.mrf.mxu0
  %v7672 = vadd.f32 0.0, %v7671
  %v7673 = vpop.f32.mrf.mxu0
  %7674 = vdwg.mxu0
  %v7676 = vsel %vm588, %v7601, 0
  %7678 = vmatprep.subr.mxu0 0.0
  %7679 = vmatpush1.msra.mxu0 0.0
  %7680 = vmatprep.subr.mxu0 0.0
  %7681 = vmatpush1.msra.mxu0 0.0
  %7682 = vmatprep.subr.mxu0 0.0
  %7683 = vmatpush1.msra.mxu0 0.0
  %7684 = vmatprep.subr.mxu0 0.0
  %7685 = vmatpush1.msra.mxu0 0.0
  %7686 = vmatprep.subr.mxu0 0.0
  %7687 = vmatpush1.msra.mxu0 0.0
  %7688 = vmatprep.subr.mxu0 0.0
  %7689 = vmatpush1.msra.mxu0 0.0
  %7690 = vmatprep.subr.mxu0 0.0
  %7691 = vmatpush1.msra.mxu0 0.0
  %7692 = vmatprep.subr.mxu0 0.0
  %7693 = vmatpush1.msra.mxu0 0.0
  %7694 = vmatprep.subr.mxu0 0.0
  %7695 = vmatpush1.msra.mxu0 %v7549
  %7696 = vmatprep.subr.mxu0 0.0
  %7697 = vmatpush1.msra.mxu0 %v7548
  %7698 = vmatprep.subr.mxu0 0.0
  %7699 = vmatpush1.msra.mxu0 %v7547
  %7700 = vmatprep.subr.mxu0 0.0
  %7701 = vmatpush1.msra.mxu0 %v7546
  %7702 = vmatprep.subr.mxu0 0.0
  %7703 = vmatpush1.msra.mxu0 %v7545
  %7704 = vmatprep.subr.mxu0 0.0
  %7705 = vmatpush1.msra.mxu0 %v7544
  %7706 = vmatprep.subr.mxu0 0.0
  %7707 = vmatpush1.msra.mxu0 %v7543
  %7708 = vmatprep.subr.mxu0 0.0
  %7709 = vmatpush1.msra.mxu0 %v7542
  %7710 = vmatprep.subr.mxu0 0.0
  %7711 = vmatpush2.msra.mxu0 0.0
  %7712 = vmatprep.subr.mxu0 0.0
  %7713 = vmatpush2.msra.mxu0 0.0
  %7714 = vmatprep.subr.mxu0 0.0
  %7715 = vmatpush2.msra.mxu0 0.0
  %7716 = vmatprep.subr.mxu0 0.0
  %7717 = vmatpush2.msra.mxu0 0.0
  %7718 = vmatprep.subr.mxu0 0.0
  %7719 = vmatpush2.msra.mxu0 0.0
  %7720 = vmatprep.subr.mxu0 0.0
  %7721 = vmatpush2.msra.mxu0 0.0
  %7722 = vmatprep.subr.mxu0 0.0
  %7723 = vmatpush2.msra.mxu0 0.0
  %7724 = vmatprep.subr.mxu0 0.0
  %7725 = vmatpush2.msra.mxu0 0.0
  %7726 = vmatprep.subr.mxu0 0.0
  %7727 = vmatpush2.msra.mxu0 0.0
  %7728 = vmatprep.subr.mxu0 0.0
  %7729 = vmatpush2.msra.mxu0 0.0
  %7730 = vmatprep.subr.mxu0 0.0
  %7731 = vmatpush2.msra.mxu0 0.0
  %7732 = vmatprep.subr.mxu0 0.0
  %7733 = vmatpush2.msra.mxu0 0.0
  %7734 = vmatprep.subr.mxu0 0.0
  %7735 = vmatpush2.msra.mxu0 0.0
  %7736 = vmatprep.subr.mxu0 0.0
  %7737 = vmatpush2.msra.mxu0 0.0
  %7738 = vmatprep.subr.mxu0 0.0
  %7739 = vmatpush2.msra.mxu0 0.0
  %7740 = vmatprep.subr.mxu0 0.0
  %7741 = vmatpush2.msra.mxu0 0.0
  %7742 = vmatprep.mubr.f32.mxu0 0.0
  %7743 = vmatmul.mubr.f32.gmra.mxu0 %v7676
  %v7744 = vpop.f32.mrf.mxu0
  %v7745 = vadd.f32 0.0, %v7744
  %v7746 = vpop.f32.mrf.mxu0
  %7747 = vdwg.mxu0
  %v7748 = vmul.f32 %v7672, %v7745
  %vm7749 = vcmask 519168
  %v7750 = vsel %vm7749, %v7748, 0.0
  %7751 = vadd.xlane.f32.xlu0 %v7750
  %v7752 = vpop.xlane.xlu0 %7751
  %vm7753 = vcmask 1043456
  %v7754 = vsel %vm7753, %v7752, -inf
  %v7755 = vrot.slane %v7754, 4
  %v7756 = vmax.f32 %v7754, %v7755
  %v7757 = vrot.slane %v7756, 2
  %v7758 = vmax.f32 %v7756, %v7757
  %v7759 = vrot.slane %v7758, 1
  %v7760 = vmax.f32 %v7758, %v7759
  %v7761 = vsub.f32 %v7752, %v7760
  %v7762 = vmul.f32 %v7761, 1.442695
  %v7763 = vpow.pop %v7762
  %v7764 = vsel %vm7753, %v7763, 0.0
  %v7765 = vrot.slane %v7764, 4
  %v7766 = vadd.f32 %v7764, %v7765
  %v7767 = vrot.slane %v7766, 2
  %v7768 = vadd.f32 %v7766, %v7767
  %v7769 = vrot.slane %v7768, 1
  %v7770 = vadd.f32 %v7768, %v7769
  %v7771 = vrcp.pop %v7770
  %v7772 = vmul.f32 %v7763, %v7771
  %v7773 = vmul.f32 %v7772, %v7672
  %v7774 = vsel %vm7749, %v7773, 0.0
  %v7775 = vrot.slane %v7774, 4
  %v7776 = vadd.f32 %v7774, %v7775
  %v7777 = vrot.slane %v7776, 2
  %v7778 = vadd.f32 %v7776, %v7777
  %v7779 = vrot.slane %v7778, 1
  %v7780 = vadd.f32 %v7778, %v7779
  %v7781 = vmul.f32 %v7772, %v7745
  %v7782 = vsel %vm7749, %v7781, 0.0
  %v7783 = vrot.slane %v7782, 4
  %v7784 = vadd.f32 %v7782, %v7783
  %v7785 = vrot.slane %v7784, 2
  %v7786 = vadd.f32 %v7784, %v7785
  %v7787 = vrot.slane %v7786, 1
  %v7788 = vadd.f32 %v7786, %v7787
  %v7789 = vmul.f32 %v7780, %v7788
  %v7790 = vsel %vm588, %v7789, 0.0
  %7791 = vadd.xlane.f32.xlu0 %v7790
  %v7792 = vpop.xlane.xlu0 %7791
  %vm7793 = vcmp.eq.s32.totalorder %v1794, 0
  %v7794 = vsel %vm7793, %v7792, 0.0
  %vm7795 = vcmask 523268
  %v7796 = vsel %vm7795, %v7748, 0.0
  %7797 = vadd.xlane.f32.xlu0 %v7796
  %v7798 = vpop.xlane.xlu0 %7797
  %vm7799 = vcmask 1047556
  %v7800 = vsel %vm7799, %v7798, -inf
  %v7801 = vrot.slane %v7800, 4
  %v7802 = vmax.f32 %v7800, %v7801
  %v7803 = vrot.slane %v7802, 2
  %v7804 = vmax.f32 %v7802, %v7803
  %v7805 = vrot.slane %v7804, 1
  %v7806 = vmax.f32 %v7804, %v7805
  %v7807 = vsub.f32 %v7798, %v7806
  %v7808 = vmul.f32 %v7807, 1.442695
  %v7809 = vpow.pop %v7808
  %v7811 = vrot.slane %v7809, 4
  %v7813 = vsel %vm7753, %v7811, 0.0
  %v7814 = vrot.slane %v7813, 4
  %v7815 = vadd.f32 %v7813, %v7814
  %v7816 = vrot.slane %v7815, 2
  %v7817 = vadd.f32 %v7815, %v7816
  %v7818 = vrot.slane %v7817, 1
  %v7819 = vadd.f32 %v7817, %v7818
  %v7820 = vrcp.pop %v7819
  %v7821 = vmul.f32 %v7809, %v7820
  %v7822 = vmul.f32 %v7821, %v7672
  %v7824 = vrot.slane %v7822, 4
  %v7826 = vsel %vm7749, %v7824, 0.0
  %v7827 = vrot.slane %v7826, 4
  %v7828 = vadd.f32 %v7826, %v7827
  %v7829 = vrot.slane %v7828, 2
  %v7830 = vadd.f32 %v7828, %v7829
  %v7831 = vrot.slane %v7830, 1
  %v7832 = vadd.f32 %v7830, %v7831
  %v7833 = vmul.f32 %v7821, %v7745
  %v7835 = vrot.slane %v7833, 4
  %v7837 = vsel %vm7749, %v7835, 0.0
  %v7838 = vrot.slane %v7837, 4
  %v7839 = vadd.f32 %v7837, %v7838
  %v7840 = vrot.slane %v7839, 2
  %v7841 = vadd.f32 %v7839, %v7840
  %v7842 = vrot.slane %v7841, 1
  %v7843 = vadd.f32 %v7841, %v7842
  %v7844 = vmul.f32 %v7832, %v7843
  %v7845 = vsel %vm588, %v7844, 0.0
  %7846 = vadd.xlane.f32.xlu0 %v7845
  %v7847 = vpop.xlane.xlu0 %7846
  %vm7848 = vcmp.eq.s32.totalorder %v1794, 1
  %v7849 = vsel %vm7848, %v7847, %v7794
  %7850 = vst [vmem:[%s27] sm:$0x1] %v7849
  // Predicated region
  $region162: #{forward.1} parent=0 // pred_check
    _
  $region163: #{forward.1} parent=0 // pred_check_branch
    %7852 = sbr.rel (0) target = $region165
  $region164: #{forward.1} parent=0 // pred_region
    _
  $region165: #{forward.1} parent=0 // pred_fallthru
    _
  // Predicated region
  $region166: #{forward.1} parent=0 // pred_check
    _
  $region167: #{forward.1} parent=0 // pred_check_branch
    %7854 = sbr.rel (0) target = $region169
  $region168: #{forward.1} parent=0 // pred_region
    _
  $region169: #{forward.1} parent=0 // pred_fallthru
    _
  %7855 = vsyncmov [#allocation4]
  %s7856 = vpop.sfrf %7855
  %p7857 = scmp.eq.s32.totalorder %s7856, 0
  %p7858 = pneg %p7857
  %7860 = shalt.err (%p7858)
  %s7861 = scalar_lea.sflag [#allocation4], 1
  %7862 = vsyncmov %s7861
  %s7863 = vpop.sfrf %7862
  %p7864 = scmp.eq.s32.totalorder %s7863, 0
  %p7865 = pneg %p7864
  %7867 = shalt.err (%p7865)

</llo_original>
